<compile_context>
chip_gen: v6e
topology: v6e:2x2x1
jax: 0.10.0
libtpu: 0.0.40
codegen_flags: <defaults>
</compile_context>

<pallas_src>
import functools

import jax
import jax.numpy as jnp
from jax.experimental import pallas as pl
from jax.experimental.pallas import tpu as pltpu

CP = 128                        # padded channel count (lane width)
K1 = 32                         # conv1 im2col contraction: 3*3*3 = 27 padded to 32
_VMEM_LIMIT = 32 * 1024 * 1024  # scoped-VMEM limit; safe on v5e / v6e / v7x


def _round_up(x, m):
    return (x + m - 1) // m * m


# ---------------------------------------------------------------------------
# Fused whole-network kernel
# ---------------------------------------------------------------------------
# Padded-flat activation layout for the shifted-slab convs: flat row = r*Wp + c for
# padded row r / padded col c, Wp rounded up to a multiple of 8 (aligned row starts),
# 1 top pad row, >=2 bottom slack rows, zero halo.  For tap (kh, kw) the contiguous
# slab starting at kh*Wp + kw of length H*Wp is that tap's im2col patch matrix; the
# junk columns (c >= W) are computed but never read by the pooling epilogue.
def _fused_cnn_kernel(x1_ref, w1_ref, b1_ref, w2_ref, b2_ref, w3_ref, b3_ref,
                      fc1w_ref, fc1b_ref, fc2w_ref, fc2b_ref, o_ref,
                      p2_ref, p3_ref, vbuf_ref, feat_ref,
                      *, H, W, Wp2, Wp3, B_TILE):
    H2, W2 = H // 2, W // 2
    H3, W3 = H // 4, W // 4
    Hf, Wf = H // 8, W // 8
    HWf = Hf * Wf

    # Halo rows of the padded next-layer-input scratches must be zero.  Interior rows
    # are fully overwritten for every image below, so zero once per grid step (cheap,
    # small VMEM scratches -- not a per-image memset of an HBM output block).
    p2_ref[...] = jnp.zeros(p2_ref.shape, p2_ref.dtype)
    p3_ref[...] = jnp.zeros(p3_ref.shape, p3_ref.dtype)

    def conv3x3(src_ref, w_ref, b_ref, rows, wp):
        # 9 shifted-slab MXU dots accumulated in a LOCAL f32 value (no VMEM RMW);
        # bias + ReLU fused into the returned value.
        acc = None
        for kh in range(3):
            for kw in range(3):
                slab = src_ref[pl.ds(kh * wp + kw, rows), :]          # (rows, CP) bf16
                d = jnp.dot(slab, w_ref[kh * 3 + kw],
                            preferred_element_type=jnp.float32)
                acc = d if acc is None else acc + d
        return jnp.maximum(acc + b_ref[...], 0.0)                      # (rows, CP) f32

    def pool2x2(v, h, w, s, emit):
        # v: conv output value, flat row = r*s + c (cols c >= w are junk, never read).
        # Vertical max is ONE big VPU op (aligned value slices, offsets multiple of 8);
        # per pooled row only two stride-2 sublane reads remain.
        vert = jnp.maximum(v[: (h - 1) * s], v[s: h * s])
        vbuf_ref[pl.ds(0, (h - 1) * s), :] = vert
        for ho in range(h // 2):
            base = 2 * ho * s
            even = vbuf_ref[pl.ds(base, w // 2, stride=2), :]
            odd = vbuf_ref[pl.ds(base + 1, w // 2, stride=2), :]
            emit(ho, jnp.maximum(even, odd))                           # (w//2, CP) f32

    for b in range(B_TILE):
        # ---- conv1: single (H*W, K1) x (K1, CP) dot over wrapper-side im2col ----
        v1 = jnp.maximum(
            jnp.dot(x1_ref[b], w1_ref[...], preferred_element_type=jnp.float32)
            + b1_ref[...], 0.0)                                        # (H*W, CP) f32

        def emit1(ho, pooled):
            p2_ref[pl.ds((ho + 1) * Wp2 + 1, W2), :] = pooled.astype(p2_ref.dtype)

        pool2x2(v1, H, W, W, emit1)

        # ---- conv2 (9 shifted slabs from the VMEM-resident padded activation) ----
        v2 = conv3x3(p2_ref, w2_ref, b2_ref, H2 * Wp2, Wp2)

        def emit2(ho, pooled):
            p3_ref[pl.ds((ho + 1) * Wp3 + 1, W3), :] = pooled.astype(p3_ref.dtype)

        pool2x2(v2, H2, W2, Wp2, emit2)

        # ---- conv3 ----
        v3 = conv3x3(p3_ref, w3_ref, b3_ref, H3 * Wp3, Wp3)

        def emit3(ho, pooled):
            feat_ref[pl.ds(b * HWf + ho * Wf, Wf), :] = pooled         # f32 features

        pool2x2(v3, H3, W3, Wp3, emit3)

    # ---- FC head: fc1 + bias + ReLU + fc2 + bias (classes padded to 128 lanes) ----
    acc = None
    for r in range(HWf):
        xr = feat_ref[pl.ds(r, B_TILE, stride=HWf), :].astype(jnp.bfloat16)  # (B, CP)
        d = jnp.dot(xr, fc1w_ref[pl.ds(r * CP, CP), :],
                    preferred_element_type=jnp.float32)
        acc = d if acc is None else acc + d
    hidden = jnp.maximum(acc + fc1b_ref[...], 0.0).astype(jnp.bfloat16)
    logits = jnp.dot(hidden, fc2w_ref[...],
                     preferred_element_type=jnp.float32) + fc2b_ref[...]
    o_ref[...] = logits                                                # (B_TILE, CP) f32


def _fused_cnn(im, w1, b1, w2, b2, w3, b3, fc1w, fc1b, fc2w, fc2b, *, H, W):
    N = im.shape[0]
    B_TILE = N if N <= 8 else 8
    assert N % B_TILE == 0, "batch must be <= 8 or a multiple of 8"
    H2, W2 = H // 2, W // 2
    H3, W3 = H // 4, W // 4
    Hf, Wf = H // 8, W // 8
    Wp2 = _round_up(W2 + 2, 8)          # 8-aligned padded widths for layers 2 & 3
    Wp3 = _round_up(W3 + 2, 8)
    F, HID = fc1w.shape
    vrows = max((H - 1) * W, (H2 - 1) * Wp2, (H3 - 1) * Wp3)
    kern = functools.partial(_fused_cnn_kernel, H=H, W=W, Wp2=Wp2, Wp3=Wp3,
                             B_TILE=B_TILE)
    return pl.pallas_call(
        kern,
        out_shape=jax.ShapeDtypeStruct((N, CP), jnp.float32),
        grid_spec=pltpu.PrefetchScalarGridSpec(
            num_scalar_prefetch=0,
            grid=(N // B_TILE,),
            in_specs=[
                pl.BlockSpec((B_TILE, H * W, K1), lambda i: (i, 0, 0)),  # conv1 im2col
                pl.BlockSpec((K1, CP), lambda i: (0, 0)),                # w1
                pl.BlockSpec((1, CP), lambda i: (0, 0)),                 # b1
                pl.BlockSpec((9, CP, CP), lambda i: (0, 0, 0)),          # w2
                pl.BlockSpec((1, CP), lambda i: (0, 0)),                 # b2
                pl.BlockSpec((9, CP, CP), lambda i: (0, 0, 0)),          # w3
                pl.BlockSpec((1, CP), lambda i: (0, 0)),                 # b3
                pl.BlockSpec((F, HID), lambda i: (0, 0)),                # fc1_w
                pl.BlockSpec((1, HID), lambda i: (0, 0)),                # fc1_b
                pl.BlockSpec((HID, CP), lambda i: (0, 0)),               # fc2_w (padded)
                pl.BlockSpec((1, CP), lambda i: (0, 0)),                 # fc2_b (padded)
            ],
            out_specs=pl.BlockSpec((B_TILE, CP), lambda i: (i, 0)),      # lane-dense out
            scratch_shapes=[
                pltpu.VMEM(((H2 + 3) * Wp2, CP), jnp.bfloat16),   # conv2 padded input
                pltpu.VMEM(((H3 + 3) * Wp3, CP), jnp.bfloat16),   # conv3 padded input
                pltpu.VMEM((vrows, CP), jnp.float32),             # vertical-max buffer
                pltpu.VMEM((B_TILE * Hf * Wf, CP), jnp.float32),  # FC features
            ],
        ),
        compiler_params=pltpu.CompilerParams(
            dimension_semantics=("parallel",),     # batch tiles split across TensorCores
            vmem_limit_bytes=_VMEM_LIMIT,
        ),
    )(im, w1, b1, w2, b2, w3, b3, fc1w, fc1b, fc2w, fc2b)


# ---------------------------------------------------------------------------
# One-time parameter prep (outside jit) + forward pass
# ---------------------------------------------------------------------------
def _prep_conv_w(w, cin_pad, cout_pad):
    """(Cout, Cin, 3, 3) torch conv weight -> (9, cin_pad, cout_pad) bf16."""
    cout, cin = int(w.shape[0]), int(w.shape[1])
    w = jnp.transpose(w, (2, 3, 1, 0))                            # (kh, kw, cin, cout)
    w = jnp.pad(w, ((0, 0), (0, 0), (0, cin_pad - cin), (0, cout_pad - cout)))
    return w.reshape(9, cin_pad, cout_pad).astype(jnp.bfloat16)


def _pad_bias(b, n):
    return jnp.pad(b, (0, n - b.shape[0])).reshape(1, n).astype(jnp.float32)


def prepare_params(params, image_size):
    """One-time layout + dtype prep of the torch-convention params (outside jit)."""
    Hf = Wf = image_size // 8
    hid = params["fc1_w"].shape[0]
    ncls = params["fc2_w"].shape[0]
    cout1 = params["w1"].shape[0]
    # conv1 as (kh, kw, cin)-ordered im2col weight: 27 -> K1 rows, cout -> CP cols.
    w1 = jnp.transpose(params["w1"], (2, 3, 1, 0)).reshape(27, cout1)
    w1 = jnp.pad(w1, ((0, K1 - 27), (0, CP - cout1))).astype(jnp.bfloat16)
    # fc1: bake torch's channel-major flatten of (128, Hf, Wf) into (h, w, c) row order.
    fc1 = params["fc1_w"].reshape(hid, CP, Hf, Wf)
    fc1 = jnp.transpose(fc1, (2, 3, 1, 0)).reshape(Hf * Wf * CP, hid)
    # fc2: (classes, 256) -> (256, 128) with zero-padded class columns (lane-dense out).
    fc2 = jnp.pad(jnp.transpose(params["fc2_w"], (1, 0)), ((0, 0), (0, CP - ncls)))
    return {
        "w1": w1, "b1": _pad_bias(params["b1"], CP),
        "w2": _prep_conv_w(params["w2"], CP, CP), "b2": _pad_bias(params["b2"], CP),
        "w3": _prep_conv_w(params["w3"], CP, CP), "b3": _pad_bias(params["b3"], CP),
        "fc1_w": fc1.astype(jnp.bfloat16),
        "fc1_b": params["fc1_b"].reshape(1, -1).astype(jnp.float32),
        "fc2_w": fc2.astype(jnp.bfloat16),
        "fc2_b": _pad_bias(params["fc2_b"], CP),
    }


def simple_cnn_forward(x_nchw, kp, num_classes):
    """SimpleCNN forward (eval semantics: Dropout = identity).  Outputs differ from an
    f32 PyTorch reference at roughly bf16 precision (intentional)."""
    N, Cin, H, W = x_nchw.shape
    assert Cin == 3 and H % 8 == 0 and W % 8 == 0
    # conv1 im2col on the wrapper side (tiny: 27 features per output pixel), bf16.
    xp = jnp.pad(x_nchw, ((0, 0), (0, 0), (1, 1), (1, 1)))
    taps = [xp[:, :, kh:kh + H, kw:kw + W] for kh in range(3) for kw in range(3)]
    im = jnp.stack(taps, axis=1)                                   # (N, 9, Cin, H, W)
    im = jnp.transpose(im, (0, 3, 4, 1, 2)).reshape(N, H * W, 9 * Cin)
    im = jnp.pad(im, ((0, 0), (0, 0), (0, K1 - 9 * Cin))).astype(jnp.bfloat16)
    logits = _fused_cnn(im, kp["w1"], kp["b1"], kp["w2"], kp["b2"],
                        kp["w3"], kp["b3"], kp["fc1_w"], kp["fc1_b"],
                        kp["fc2_w"], kp["fc2_b"], H=H, W=W)
    return logits[:, :num_classes]


def init_params(key, image_size, num_classes):
    ks = jax.random.split(key, 10)
    s = 0.05
    flat = (image_size // 8) ** 2 * 128
    return {
        "w1": jax.random.normal(ks[0], (32, 3, 3, 3), jnp.float32) * s,
        "b1": jax.random.normal(ks[1], (32,), jnp.float32) * s,
        "w2": jax.random.normal(ks[2], (64, 32, 3, 3), jnp.float32) * s,
        "b2": jax.random.normal(ks[3], (64,), jnp.float32) * s,
        "w3": jax.random.normal(ks[4], (128, 64, 3, 3), jnp.float32) * s,
        "b3": jax.random.normal(ks[5], (128,), jnp.float32) * s,
        "fc1_w": jax.random.normal(ks[6], (256, flat), jnp.float32) * s,
        "fc1_b": jax.random.normal(ks[7], (256,), jnp.float32) * s,
        "fc2_w": jax.random.normal(ks[8], (num_classes, 256), jnp.float32) * s,
        "fc2_b": jax.random.normal(ks[9], (num_classes,), jnp.float32) * s,
    }


# ---------------------------------------------------------------------------
# Pure-JAX f32 reference (torch semantics) for a loose numerical sanity check
# ---------------------------------------------------------------------------
def _ref_conv3x3(x, w, b):
    N, C, H, W = x.shape
    xp = jnp.pad(x, ((0, 0), (0, 0), (1, 1), (1, 1)))
    out = jnp.zeros((N, w.shape[0], H, W), jnp.float32)
    for kh in range(3):
        for kw in range(3):
            patch = xp[:, :, kh:kh + H, kw:kw + W]
            out = out + jnp.einsum('nchw,oc->nohw', patch, w[:, :, kh, kw])
    return out + b[None, :, None, None]


def _ref_pool2(x):
    N, C, H, W = x.shape
    return jnp.max(x.reshape(N, C, H // 2, 2, W // 2, 2), axis=(3, 5))


def reference_forward(x, params):
    h = _ref_pool2(jax.nn.relu(_ref_conv3x3(x, params["w1"], params["b1"])))
    h = _ref_pool2(jax.nn.relu(_ref_conv3x3(h, params["w2"], params["b2"])))
    h = _ref_pool2(jax.nn.relu(_ref_conv3x3(h, params["w3"], params["b3"])))
    h = h.reshape(x.shape[0], -1)                       # torch channel-major flatten
    h = jax.nn.relu(h @ params["fc1_w"].T + params["fc1_b"])
    return h @ params["fc2_w"].T + params["fc2_b"]


if __name__ == "__main__":
    IMAGE_SIZE = 16      # config['image_size']
    NUM_CLASSES = 10
    BATCH = 2

    key = jax.random.PRNGKey(0)
    k_x, k_p = jax.random.split(key)
    x = jax.random.normal(k_x, (BATCH, 3, IMAGE_SIZE, IMAGE_SIZE), jnp.float32)  # NCHW
    params = init_params(k_p, IMAGE_SIZE, NUM_CLASSES)
    kparams = prepare_params(params, IMAGE_SIZE)     # one-time layout/dtype prep

    fwd = jax.jit(lambda xx, pp: simple_cnn_forward(xx, pp, NUM_CLASSES))
    out = jax.block_until_ready(fwd(x, kparams))
    assert out.shape == (BATCH, NUM_CLASSES), out.shape
    assert bool(jnp.all(jnp.isfinite(out)))

    ref = reference_forward(x, params)
    assert bool(jnp.allclose(out, ref, rtol=5e-2, atol=5e-2)), (out, ref)
    print("KERNEL_OK")
</pallas_src>

<mosaic_0001>
module attributes {stable_mosaic.version = 11 : i64} {
  func.func @_fused_cnn_kernel(%arg0: i32, %arg1: memref<2x256x32xbf16, #tpu.memory_space<vmem>>, %arg2: memref<32x128xbf16, #tpu.memory_space<vmem>>, %arg3: memref<1x128xf32, #tpu.memory_space<vmem>>, %arg4: memref<9x128x128xbf16, #tpu.memory_space<vmem>>, %arg5: memref<1x128xf32, #tpu.memory_space<vmem>>, %arg6: memref<9x128x128xbf16, #tpu.memory_space<vmem>>, %arg7: memref<1x128xf32, #tpu.memory_space<vmem>>, %arg8: memref<512x256xbf16, #tpu.memory_space<vmem>>, %arg9: memref<1x256xf32, #tpu.memory_space<vmem>>, %arg10: memref<256x128xbf16, #tpu.memory_space<vmem>>, %arg11: memref<1x128xf32, #tpu.memory_space<vmem>>, %arg12: memref<2x128xf32, #tpu.memory_space<vmem>>, %arg13: memref<176x128xbf16, #tpu.memory_space<vmem>>, %arg14: memref<56x128xbf16, #tpu.memory_space<vmem>>, %arg15: memref<240x128xf32, #tpu.memory_space<vmem>>, %arg16: memref<8x128xf32, #tpu.memory_space<vmem>>) attributes {dimension_semantics = [#tpu.dimension_semantics<parallel>], iteration_bounds = array<i64: 1>, scalar_prefetch = 0 : i64, scratch_operands = 4 : i64, tpu.core_type = #tpu.core_type<tc>, window_params = [{transform_indices = @transform_0, window_bounds = array<i64: 2, 256, 32>}, {pipeline_mode = #tpu.pipeline_mode<synchronous>, transform_indices = @transform_1, window_bounds = array<i64: 32, 128>}, {pipeline_mode = #tpu.pipeline_mode<synchronous>, transform_indices = @transform_2, window_bounds = array<i64: 1, 128>}, {pipeline_mode = #tpu.pipeline_mode<synchronous>, transform_indices = @transform_3, window_bounds = array<i64: 9, 128, 128>}, {pipeline_mode = #tpu.pipeline_mode<synchronous>, transform_indices = @transform_4, window_bounds = array<i64: 1, 128>}, {pipeline_mode = #tpu.pipeline_mode<synchronous>, transform_indices = @transform_5, window_bounds = array<i64: 9, 128, 128>}, {pipeline_mode = #tpu.pipeline_mode<synchronous>, transform_indices = @transform_6, window_bounds = array<i64: 1, 128>}, {pipeline_mode = #tpu.pipeline_mode<synchronous>, transform_indices = @transform_7, window_bounds = array<i64: 512, 256>}, {pipeline_mode = #tpu.pipeline_mode<synchronous>, transform_indices = @transform_8, window_bounds = array<i64: 1, 256>}, {pipeline_mode = #tpu.pipeline_mode<synchronous>, transform_indices = @transform_9, window_bounds = array<i64: 256, 128>}, {pipeline_mode = #tpu.pipeline_mode<synchronous>, transform_indices = @transform_10, window_bounds = array<i64: 1, 128>}, {transform_indices = @transform_11, window_bounds = array<i64: 2, 128>}]} {
    %cst = arith.constant 0.000000e+00 : bf16
    %0 = vector.broadcast %cst : bf16 to vector<176x128xbf16>
    %c0 = arith.constant 0 : index
    %c0_0 = arith.constant 0 : index
    %1 = vector.load %arg13[%c0, %c0_0] : memref<176x128xbf16, #tpu.memory_space<vmem>>, vector<176x128xbf16>
    tpu.vector_store %arg13[%c0, %c0_0], %0 {strides = array<i32>} : memref<176x128xbf16, #tpu.memory_space<vmem>>, vector<176x128xbf16>,
    %cst_1 = arith.constant 0.000000e+00 : bf16
    %2 = vector.broadcast %cst_1 : bf16 to vector<56x128xbf16>
    %c0_2 = arith.constant 0 : index
    %c0_3 = arith.constant 0 : index
    %3 = vector.load %arg14[%c0_2, %c0_3] : memref<56x128xbf16, #tpu.memory_space<vmem>>, vector<56x128xbf16>
    tpu.vector_store %arg14[%c0_2, %c0_3], %2 {strides = array<i32>} : memref<56x128xbf16, #tpu.memory_space<vmem>>, vector<56x128xbf16>,
    %c0_4 = arith.constant 0 : index
    %c0_5 = arith.constant 0 : index
    %c0_6 = arith.constant 0 : index
    %4 = vector.load %arg1[%c0_4, %c0_5, %c0_6] : memref<2x256x32xbf16, #tpu.memory_space<vmem>>, vector<1x256x32xbf16>
    %5 = vector.shape_cast %4 : vector<1x256x32xbf16> to vector<256x32xbf16>
    %c0_7 = arith.constant 0 : index
    %c0_8 = arith.constant 0 : index
    %6 = vector.load %arg2[%c0_7, %c0_8] : memref<32x128xbf16, #tpu.memory_space<vmem>>, vector<32x128xbf16>
    %cst_9 = arith.constant dense<0.000000e+00> : vector<256x128xf32>
    %7 = tpu.matmul %5, %6, %cst_9 {dimension_numbers = #tpu.dot_dimension_numbers<[1], [0], [0], [1], [0, 0, 1, 1], [], []>} : vector<256x32xbf16>, vector<32x128xbf16>, vector<256x128xf32> -> vector<256x128xf32>
    %c0_10 = arith.constant 0 : index
    %c0_11 = arith.constant 0 : index
    %8 = vector.load %arg3[%c0_10, %c0_11] : memref<1x128xf32, #tpu.memory_space<vmem>>, vector<1x128xf32>
    %9 = vector.broadcast %8 : vector<1x128xf32> to vector<256x128xf32>
    %10 = arith.addf %7, %9 : vector<256x128xf32>
    %cst_12 = arith.constant 0.000000e+00 : f32
    %11 = vector.broadcast %cst_12 : f32 to vector<256x128xf32>
    %12 = arith.maximumf %10, %11 : vector<256x128xf32>
    %13 = vector.extract_strided_slice %12 {offsets = [0, 0], sizes = [240, 128], strides = [1, 1]} : vector<256x128xf32> to vector<240x128xf32>
    %14 = vector.extract_strided_slice %12 {offsets = [16, 0], sizes = [240, 128], strides = [1, 1]} : vector<256x128xf32> to vector<240x128xf32>
    %15 = arith.maximumf %13, %14 : vector<240x128xf32>
    %c0_13 = arith.constant 0 : index
    %c0_14 = arith.constant 0 : index
    %16 = vector.load %arg15[%c0_13, %c0_14] : memref<240x128xf32, #tpu.memory_space<vmem>>, vector<240x128xf32>
    tpu.vector_store %arg15[%c0_13, %c0_14], %15 {strides = array<i32>} : memref<240x128xf32, #tpu.memory_space<vmem>>, vector<240x128xf32>,
    %c0_15 = arith.constant 0 : index
    %c0_16 = arith.constant 0 : index
    %17 = tpu.strided_load %arg15[%c0_15, %c0_16] {strides = array<i32: 2, 1>} : memref<240x128xf32, #tpu.memory_space<vmem>>, vector<8x128xf32>
    %c1 = arith.constant 1 : index
    %c0_17 = arith.constant 0 : index
    %18 = tpu.strided_load %arg15[%c1, %c0_17] {strides = array<i32: 2, 1>} : memref<240x128xf32, #tpu.memory_space<vmem>>, vector<8x128xf32>
    %19 = arith.maximumf %17, %18 : vector<8x128xf32>
    %20 = arith.truncf %19 : vector<8x128xf32> to vector<8x128xbf16>
    %c17 = arith.constant 17 : index
    %c0_18 = arith.constant 0 : index
    %21 = vector.load %arg13[%c17, %c0_18] : memref<176x128xbf16, #tpu.memory_space<vmem>>, vector<8x128xbf16>
    tpu.vector_store %arg13[%c17, %c0_18], %20 {strides = array<i32>} : memref<176x128xbf16, #tpu.memory_space<vmem>>, vector<8x128xbf16>,
    %c32 = arith.constant 32 : index
    %c0_19 = arith.constant 0 : index
    %22 = tpu.strided_load %arg15[%c32, %c0_19] {strides = array<i32: 2, 1>} : memref<240x128xf32, #tpu.memory_space<vmem>>, vector<8x128xf32>
    %c33 = arith.constant 33 : index
    %c0_20 = arith.constant 0 : index
    %23 = tpu.strided_load %arg15[%c33, %c0_20] {strides = array<i32: 2, 1>} : memref<240x128xf32, #tpu.memory_space<vmem>>, vector<8x128xf32>
    %24 = arith.maximumf %22, %23 : vector<8x128xf32>
    %25 = arith.truncf %24 : vector<8x128xf32> to vector<8x128xbf16>
    %c33_21 = arith.constant 33 : index
    %c0_22 = arith.constant 0 : index
    %26 = vector.load %arg13[%c33_21, %c0_22] : memref<176x128xbf16, #tpu.memory_space<vmem>>, vector<8x128xbf16>
    tpu.vector_store %arg13[%c33_21, %c0_22], %25 {strides = array<i32>} : memref<176x128xbf16, #tpu.memory_space<vmem>>, vector<8x128xbf16>,
    %c64 = arith.constant 64 : index
    %c0_23 = arith.constant 0 : index
    %27 = tpu.strided_load %arg15[%c64, %c0_23] {strides = array<i32: 2, 1>} : memref<240x128xf32, #tpu.memory_space<vmem>>, vector<8x128xf32>
    %c65 = arith.constant 65 : index
    %c0_24 = arith.constant 0 : index
    %28 = tpu.strided_load %arg15[%c65, %c0_24] {strides = array<i32: 2, 1>} : memref<240x128xf32, #tpu.memory_space<vmem>>, vector<8x128xf32>
    %29 = arith.maximumf %27, %28 : vector<8x128xf32>
    %30 = arith.truncf %29 : vector<8x128xf32> to vector<8x128xbf16>
    %c49 = arith.constant 49 : index
    %c0_25 = arith.constant 0 : index
    %31 = vector.load %arg13[%c49, %c0_25] : memref<176x128xbf16, #tpu.memory_space<vmem>>, vector<8x128xbf16>
    tpu.vector_store %arg13[%c49, %c0_25], %30 {strides = array<i32>} : memref<176x128xbf16, #tpu.memory_space<vmem>>, vector<8x128xbf16>,
    %c96 = arith.constant 96 : index
    %c0_26 = arith.constant 0 : index
    %32 = tpu.strided_load %arg15[%c96, %c0_26] {strides = array<i32: 2, 1>} : memref<240x128xf32, #tpu.memory_space<vmem>>, vector<8x128xf32>
    %c97 = arith.constant 97 : index
    %c0_27 = arith.constant 0 : index
    %33 = tpu.strided_load %arg15[%c97, %c0_27] {strides = array<i32: 2, 1>} : memref<240x128xf32, #tpu.memory_space<vmem>>, vector<8x128xf32>
    %34 = arith.maximumf %32, %33 : vector<8x128xf32>
    %35 = arith.truncf %34 : vector<8x128xf32> to vector<8x128xbf16>
    %c65_28 = arith.constant 65 : index
    %c0_29 = arith.constant 0 : index
    %36 = vector.load %arg13[%c65_28, %c0_29] : memref<176x128xbf16, #tpu.memory_space<vmem>>, vector<8x128xbf16>
    tpu.vector_store %arg13[%c65_28, %c0_29], %35 {strides = array<i32>} : memref<176x128xbf16, #tpu.memory_space<vmem>>, vector<8x128xbf16>,
    %c128 = arith.constant 128 : index
    %c0_30 = arith.constant 0 : index
    %37 = tpu.strided_load %arg15[%c128, %c0_30] {strides = array<i32: 2, 1>} : memref<240x128xf32, #tpu.memory_space<vmem>>, vector<8x128xf32>
    %c129 = arith.constant 129 : index
    %c0_31 = arith.constant 0 : index
    %38 = tpu.strided_load %arg15[%c129, %c0_31] {strides = array<i32: 2, 1>} : memref<240x128xf32, #tpu.memory_space<vmem>>, vector<8x128xf32>
    %39 = arith.maximumf %37, %38 : vector<8x128xf32>
    %40 = arith.truncf %39 : vector<8x128xf32> to vector<8x128xbf16>
    %c81 = arith.constant 81 : index
    %c0_32 = arith.constant 0 : index
    %41 = vector.load %arg13[%c81, %c0_32] : memref<176x128xbf16, #tpu.memory_space<vmem>>, vector<8x128xbf16>
    tpu.vector_store %arg13[%c81, %c0_32], %40 {strides = array<i32>} : memref<176x128xbf16, #tpu.memory_space<vmem>>, vector<8x128xbf16>,
    %c160 = arith.constant 160 : index
    %c0_33 = arith.constant 0 : index
    %42 = tpu.strided_load %arg15[%c160, %c0_33] {strides = array<i32: 2, 1>} : memref<240x128xf32, #tpu.memory_space<vmem>>, vector<8x128xf32>
    %c161 = arith.constant 161 : index
    %c0_34 = arith.constant 0 : index
    %43 = tpu.strided_load %arg15[%c161, %c0_34] {strides = array<i32: 2, 1>} : memref<240x128xf32, #tpu.memory_space<vmem>>, vector<8x128xf32>
    %44 = arith.maximumf %42, %43 : vector<8x128xf32>
    %45 = arith.truncf %44 : vector<8x128xf32> to vector<8x128xbf16>
    %c97_35 = arith.constant 97 : index
    %c0_36 = arith.constant 0 : index
    %46 = vector.load %arg13[%c97_35, %c0_36] : memref<176x128xbf16, #tpu.memory_space<vmem>>, vector<8x128xbf16>
    tpu.vector_store %arg13[%c97_35, %c0_36], %45 {strides = array<i32>} : memref<176x128xbf16, #tpu.memory_space<vmem>>, vector<8x128xbf16>,
    %c192 = arith.constant 192 : index
    %c0_37 = arith.constant 0 : index
    %47 = tpu.strided_load %arg15[%c192, %c0_37] {strides = array<i32: 2, 1>} : memref<240x128xf32, #tpu.memory_space<vmem>>, vector<8x128xf32>
    %c193 = arith.constant 193 : index
    %c0_38 = arith.constant 0 : index
    %48 = tpu.strided_load %arg15[%c193, %c0_38] {strides = array<i32: 2, 1>} : memref<240x128xf32, #tpu.memory_space<vmem>>, vector<8x128xf32>
    %49 = arith.maximumf %47, %48 : vector<8x128xf32>
    %50 = arith.truncf %49 : vector<8x128xf32> to vector<8x128xbf16>
    %c113 = arith.constant 113 : index
    %c0_39 = arith.constant 0 : index
    %51 = vector.load %arg13[%c113, %c0_39] : memref<176x128xbf16, #tpu.memory_space<vmem>>, vector<8x128xbf16>
    tpu.vector_store %arg13[%c113, %c0_39], %50 {strides = array<i32>} : memref<176x128xbf16, #tpu.memory_space<vmem>>, vector<8x128xbf16>,
    %c224 = arith.constant 224 : index
    %c0_40 = arith.constant 0 : index
    %52 = tpu.strided_load %arg15[%c224, %c0_40] {strides = array<i32: 2, 1>} : memref<240x128xf32, #tpu.memory_space<vmem>>, vector<8x128xf32>
    %c225 = arith.constant 225 : index
    %c0_41 = arith.constant 0 : index
    %53 = tpu.strided_load %arg15[%c225, %c0_41] {strides = array<i32: 2, 1>} : memref<240x128xf32, #tpu.memory_space<vmem>>, vector<8x128xf32>
    %54 = arith.maximumf %52, %53 : vector<8x128xf32>
    %55 = arith.truncf %54 : vector<8x128xf32> to vector<8x128xbf16>
    %c129_42 = arith.constant 129 : index
    %c0_43 = arith.constant 0 : index
    %56 = vector.load %arg13[%c129_42, %c0_43] : memref<176x128xbf16, #tpu.memory_space<vmem>>, vector<8x128xbf16>
    tpu.vector_store %arg13[%c129_42, %c0_43], %55 {strides = array<i32>} : memref<176x128xbf16, #tpu.memory_space<vmem>>, vector<8x128xbf16>,
    %c0_44 = arith.constant 0 : index
    %c0_45 = arith.constant 0 : index
    %57 = vector.load %arg13[%c0_44, %c0_45] : memref<176x128xbf16, #tpu.memory_space<vmem>>, vector<128x128xbf16>
    %c0_46 = arith.constant 0 : index
    %c0_47 = arith.constant 0 : index
    %c0_48 = arith.constant 0 : index
    %58 = vector.load %arg4[%c0_46, %c0_47, %c0_48] : memref<9x128x128xbf16, #tpu.memory_space<vmem>>, vector<1x128x128xbf16>
    %59 = vector.shape_cast %58 : vector<1x128x128xbf16> to vector<128x128xbf16>
    %cst_49 = arith.constant dense<0.000000e+00> : vector<128x128xf32>
    %60 = tpu.matmul %57, %59, %cst_49 {dimension_numbers = #tpu.dot_dimension_numbers<[1], [0], [0], [1], [0, 0, 1, 1], [], []>} : vector<128x128xbf16>, vector<128x128xbf16>, vector<128x128xf32> -> vector<128x128xf32>
    %c1_50 = arith.constant 1 : index
    %c0_51 = arith.constant 0 : index
    %61 = vector.load %arg13[%c1_50, %c0_51] : memref<176x128xbf16, #tpu.memory_space<vmem>>, vector<128x128xbf16>
    %c1_52 = arith.constant 1 : index
    %c0_53 = arith.constant 0 : index
    %c0_54 = arith.constant 0 : index
    %62 = vector.load %arg4[%c1_52, %c0_53, %c0_54] : memref<9x128x128xbf16, #tpu.memory_space<vmem>>, vector<1x128x128xbf16>
    %63 = vector.shape_cast %62 : vector<1x128x128xbf16> to vector<128x128xbf16>
    %cst_55 = arith.constant dense<0.000000e+00> : vector<128x128xf32>
    %64 = tpu.matmul %61, %63, %cst_55 {dimension_numbers = #tpu.dot_dimension_numbers<[1], [0], [0], [1], [0, 0, 1, 1], [], []>} : vector<128x128xbf16>, vector<128x128xbf16>, vector<128x128xf32> -> vector<128x128xf32>
    %65 = arith.addf %60, %64 : vector<128x128xf32>
    %c2 = arith.constant 2 : index
    %c0_56 = arith.constant 0 : index
    %66 = vector.load %arg13[%c2, %c0_56] : memref<176x128xbf16, #tpu.memory_space<vmem>>, vector<128x128xbf16>
    %c2_57 = arith.constant 2 : index
    %c0_58 = arith.constant 0 : index
    %c0_59 = arith.constant 0 : index
    %67 = vector.load %arg4[%c2_57, %c0_58, %c0_59] : memref<9x128x128xbf16, #tpu.memory_space<vmem>>, vector<1x128x128xbf16>
    %68 = vector.shape_cast %67 : vector<1x128x128xbf16> to vector<128x128xbf16>
    %cst_60 = arith.constant dense<0.000000e+00> : vector<128x128xf32>
    %69 = tpu.matmul %66, %68, %cst_60 {dimension_numbers = #tpu.dot_dimension_numbers<[1], [0], [0], [1], [0, 0, 1, 1], [], []>} : vector<128x128xbf16>, vector<128x128xbf16>, vector<128x128xf32> -> vector<128x128xf32>
    %70 = arith.addf %65, %69 : vector<128x128xf32>
    %c16 = arith.constant 16 : index
    %c0_61 = arith.constant 0 : index
    %71 = vector.load %arg13[%c16, %c0_61] : memref<176x128xbf16, #tpu.memory_space<vmem>>, vector<128x128xbf16>
    %c3 = arith.constant 3 : index
    %c0_62 = arith.constant 0 : index
    %c0_63 = arith.constant 0 : index
    %72 = vector.load %arg4[%c3, %c0_62, %c0_63] : memref<9x128x128xbf16, #tpu.memory_space<vmem>>, vector<1x128x128xbf16>
    %73 = vector.shape_cast %72 : vector<1x128x128xbf16> to vector<128x128xbf16>
    %cst_64 = arith.constant dense<0.000000e+00> : vector<128x128xf32>
    %74 = tpu.matmul %71, %73, %cst_64 {dimension_numbers = #tpu.dot_dimension_numbers<[1], [0], [0], [1], [0, 0, 1, 1], [], []>} : vector<128x128xbf16>, vector<128x128xbf16>, vector<128x128xf32> -> vector<128x128xf32>
    %75 = arith.addf %70, %74 : vector<128x128xf32>
    %c17_65 = arith.constant 17 : index
    %c0_66 = arith.constant 0 : index
    %76 = vector.load %arg13[%c17_65, %c0_66] : memref<176x128xbf16, #tpu.memory_space<vmem>>, vector<128x128xbf16>
    %c4 = arith.constant 4 : index
    %c0_67 = arith.constant 0 : index
    %c0_68 = arith.constant 0 : index
    %77 = vector.load %arg4[%c4, %c0_67, %c0_68] : memref<9x128x128xbf16, #tpu.memory_space<vmem>>, vector<1x128x128xbf16>
    %78 = vector.shape_cast %77 : vector<1x128x128xbf16> to vector<128x128xbf16>
    %cst_69 = arith.constant dense<0.000000e+00> : vector<128x128xf32>
    %79 = tpu.matmul %76, %78, %cst_69 {dimension_numbers = #tpu.dot_dimension_numbers<[1], [0], [0], [1], [0, 0, 1, 1], [], []>} : vector<128x128xbf16>, vector<128x128xbf16>, vector<128x128xf32> -> vector<128x128xf32>
    %80 = arith.addf %75, %79 : vector<128x128xf32>
    %c18 = arith.constant 18 : index
    %c0_70 = arith.constant 0 : index
    %81 = vector.load %arg13[%c18, %c0_70] : memref<176x128xbf16, #tpu.memory_space<vmem>>, vector<128x128xbf16>
    %c5 = arith.constant 5 : index
    %c0_71 = arith.constant 0 : index
    %c0_72 = arith.constant 0 : index
    %82 = vector.load %arg4[%c5, %c0_71, %c0_72] : memref<9x128x128xbf16, #tpu.memory_space<vmem>>, vector<1x128x128xbf16>
    %83 = vector.shape_cast %82 : vector<1x128x128xbf16> to vector<128x128xbf16>
    %cst_73 = arith.constant dense<0.000000e+00> : vector<128x128xf32>
    %84 = tpu.matmul %81, %83, %cst_73 {dimension_numbers = #tpu.dot_dimension_numbers<[1], [0], [0], [1], [0, 0, 1, 1], [], []>} : vector<128x128xbf16>, vector<128x128xbf16>, vector<128x128xf32> -> vector<128x128xf32>
    %85 = arith.addf %80, %84 : vector<128x128xf32>
    %c32_74 = arith.constant 32 : index
    %c0_75 = arith.constant 0 : index
    %86 = vector.load %arg13[%c32_74, %c0_75] : memref<176x128xbf16, #tpu.memory_space<vmem>>, vector<128x128xbf16>
    %c6 = arith.constant 6 : index
    %c0_76 = arith.constant 0 : index
    %c0_77 = arith.constant 0 : index
    %87 = vector.load %arg4[%c6, %c0_76, %c0_77] : memref<9x128x128xbf16, #tpu.memory_space<vmem>>, vector<1x128x128xbf16>
    %88 = vector.shape_cast %87 : vector<1x128x128xbf16> to vector<128x128xbf16>
    %cst_78 = arith.constant dense<0.000000e+00> : vector<128x128xf32>
    %89 = tpu.matmul %86, %88, %cst_78 {dimension_numbers = #tpu.dot_dimension_numbers<[1], [0], [0], [1], [0, 0, 1, 1], [], []>} : vector<128x128xbf16>, vector<128x128xbf16>, vector<128x128xf32> -> vector<128x128xf32>
    %90 = arith.addf %85, %89 : vector<128x128xf32>
    %c33_79 = arith.constant 33 : index
    %c0_80 = arith.constant 0 : index
    %91 = vector.load %arg13[%c33_79, %c0_80] : memref<176x128xbf16, #tpu.memory_space<vmem>>, vector<128x128xbf16>
    %c7 = arith.constant 7 : index
    %c0_81 = arith.constant 0 : index
    %c0_82 = arith.constant 0 : index
    %92 = vector.load %arg4[%c7, %c0_81, %c0_82] : memref<9x128x128xbf16, #tpu.memory_space<vmem>>, vector<1x128x128xbf16>
    %93 = vector.shape_cast %92 : vector<1x128x128xbf16> to vector<128x128xbf16>
    %cst_83 = arith.constant dense<0.000000e+00> : vector<128x128xf32>
    %94 = tpu.matmul %91, %93, %cst_83 {dimension_numbers = #tpu.dot_dimension_numbers<[1], [0], [0], [1], [0, 0, 1, 1], [], []>} : vector<128x128xbf16>, vector<128x128xbf16>, vector<128x128xf32> -> vector<128x128xf32>
    %95 = arith.addf %90, %94 : vector<128x128xf32>
    %c34 = arith.constant 34 : index
    %c0_84 = arith.constant 0 : index
    %96 = vector.load %arg13[%c34, %c0_84] : memref<176x128xbf16, #tpu.memory_space<vmem>>, vector<128x128xbf16>
    %c8 = arith.constant 8 : index
    %c0_85 = arith.constant 0 : index
    %c0_86 = arith.constant 0 : index
    %97 = vector.load %arg4[%c8, %c0_85, %c0_86] : memref<9x128x128xbf16, #tpu.memory_space<vmem>>, vector<1x128x128xbf16>
    %98 = vector.shape_cast %97 : vector<1x128x128xbf16> to vector<128x128xbf16>
    %cst_87 = arith.constant dense<0.000000e+00> : vector<128x128xf32>
    %99 = tpu.matmul %96, %98, %cst_87 {dimension_numbers = #tpu.dot_dimension_numbers<[1], [0], [0], [1], [0, 0, 1, 1], [], []>} : vector<128x128xbf16>, vector<128x128xbf16>, vector<128x128xf32> -> vector<128x128xf32>
    %100 = arith.addf %95, %99 : vector<128x128xf32>
    %c0_88 = arith.constant 0 : index
    %c0_89 = arith.constant 0 : index
    %101 = vector.load %arg5[%c0_88, %c0_89] : memref<1x128xf32, #tpu.memory_space<vmem>>, vector<1x128xf32>
    %102 = vector.broadcast %101 : vector<1x128xf32> to vector<128x128xf32>
    %103 = arith.addf %100, %102 : vector<128x128xf32>
    %cst_90 = arith.constant 0.000000e+00 : f32
    %104 = vector.broadcast %cst_90 : f32 to vector<128x128xf32>
    %105 = arith.maximumf %103, %104 : vector<128x128xf32>
    %106 = vector.extract_strided_slice %105 {offsets = [0, 0], sizes = [112, 128], strides = [1, 1]} : vector<128x128xf32> to vector<112x128xf32>
    %107 = vector.extract_strided_slice %105 {offsets = [16, 0], sizes = [112, 128], strides = [1, 1]} : vector<128x128xf32> to vector<112x128xf32>
    %108 = arith.maximumf %106, %107 : vector<112x128xf32>
    %c0_91 = arith.constant 0 : index
    %c0_92 = arith.constant 0 : index
    %109 = vector.load %arg15[%c0_91, %c0_92] : memref<240x128xf32, #tpu.memory_space<vmem>>, vector<112x128xf32>
    tpu.vector_store %arg15[%c0_91, %c0_92], %108 {strides = array<i32>} : memref<240x128xf32, #tpu.memory_space<vmem>>, vector<112x128xf32>,
    %c0_93 = arith.constant 0 : index
    %c0_94 = arith.constant 0 : index
    %110 = tpu.strided_load %arg15[%c0_93, %c0_94] {strides = array<i32: 2, 1>} : memref<240x128xf32, #tpu.memory_space<vmem>>, vector<4x128xf32>
    %c1_95 = arith.constant 1 : index
    %c0_96 = arith.constant 0 : index
    %111 = tpu.strided_load %arg15[%c1_95, %c0_96] {strides = array<i32: 2, 1>} : memref<240x128xf32, #tpu.memory_space<vmem>>, vector<4x128xf32>
    %112 = arith.maximumf %110, %111 : vector<4x128xf32>
    %113 = arith.truncf %112 : vector<4x128xf32> to vector<4x128xbf16>
    %c9 = arith.constant 9 : index
    %c0_97 = arith.constant 0 : index
    %114 = vector.load %arg14[%c9, %c0_97] : memref<56x128xbf16, #tpu.memory_space<vmem>>, vector<4x128xbf16>
    tpu.vector_store %arg14[%c9, %c0_97], %113 {strides = array<i32>} : memref<56x128xbf16, #tpu.memory_space<vmem>>, vector<4x128xbf16>,
    %c32_98 = arith.constant 32 : index
    %c0_99 = arith.constant 0 : index
    %115 = tpu.strided_load %arg15[%c32_98, %c0_99] {strides = array<i32: 2, 1>} : memref<240x128xf32, #tpu.memory_space<vmem>>, vector<4x128xf32>
    %c33_100 = arith.constant 33 : index
    %c0_101 = arith.constant 0 : index
    %116 = tpu.strided_load %arg15[%c33_100, %c0_101] {strides = array<i32: 2, 1>} : memref<240x128xf32, #tpu.memory_space<vmem>>, vector<4x128xf32>
    %117 = arith.maximumf %115, %116 : vector<4x128xf32>
    %118 = arith.truncf %117 : vector<4x128xf32> to vector<4x128xbf16>
    %c17_102 = arith.constant 17 : index
    %c0_103 = arith.constant 0 : index
    %119 = vector.load %arg14[%c17_102, %c0_103] : memref<56x128xbf16, #tpu.memory_space<vmem>>, vector<4x128xbf16>
    tpu.vector_store %arg14[%c17_102, %c0_103], %118 {strides = array<i32>} : memref<56x128xbf16, #tpu.memory_space<vmem>>, vector<4x128xbf16>,
    %c64_104 = arith.constant 64 : index
    %c0_105 = arith.constant 0 : index
    %120 = tpu.strided_load %arg15[%c64_104, %c0_105] {strides = array<i32: 2, 1>} : memref<240x128xf32, #tpu.memory_space<vmem>>, vector<4x128xf32>
    %c65_106 = arith.constant 65 : index
    %c0_107 = arith.constant 0 : index
    %121 = tpu.strided_load %arg15[%c65_106, %c0_107] {strides = array<i32: 2, 1>} : memref<240x128xf32, #tpu.memory_space<vmem>>, vector<4x128xf32>
    %122 = arith.maximumf %120, %121 : vector<4x128xf32>
    %123 = arith.truncf %122 : vector<4x128xf32> to vector<4x128xbf16>
    %c25 = arith.constant 25 : index
    %c0_108 = arith.constant 0 : index
    %124 = vector.load %arg14[%c25, %c0_108] : memref<56x128xbf16, #tpu.memory_space<vmem>>, vector<4x128xbf16>
    tpu.vector_store %arg14[%c25, %c0_108], %123 {strides = array<i32>} : memref<56x128xbf16, #tpu.memory_space<vmem>>, vector<4x128xbf16>,
    %c96_109 = arith.constant 96 : index
    %c0_110 = arith.constant 0 : index
    %125 = tpu.strided_load %arg15[%c96_109, %c0_110] {strides = array<i32: 2, 1>} : memref<240x128xf32, #tpu.memory_space<vmem>>, vector<4x128xf32>
    %c97_111 = arith.constant 97 : index
    %c0_112 = arith.constant 0 : index
    %126 = tpu.strided_load %arg15[%c97_111, %c0_112] {strides = array<i32: 2, 1>} : memref<240x128xf32, #tpu.memory_space<vmem>>, vector<4x128xf32>
    %127 = arith.maximumf %125, %126 : vector<4x128xf32>
    %128 = arith.truncf %127 : vector<4x128xf32> to vector<4x128xbf16>
    %c33_113 = arith.constant 33 : index
    %c0_114 = arith.constant 0 : index
    %129 = vector.load %arg14[%c33_113, %c0_114] : memref<56x128xbf16, #tpu.memory_space<vmem>>, vector<4x128xbf16>
    tpu.vector_store %arg14[%c33_113, %c0_114], %128 {strides = array<i32>} : memref<56x128xbf16, #tpu.memory_space<vmem>>, vector<4x128xbf16>,
    %c0_115 = arith.constant 0 : index
    %c0_116 = arith.constant 0 : index
    %130 = vector.load %arg14[%c0_115, %c0_116] : memref<56x128xbf16, #tpu.memory_space<vmem>>, vector<32x128xbf16>
    %c0_117 = arith.constant 0 : index
    %c0_118 = arith.constant 0 : index
    %c0_119 = arith.constant 0 : index
    %131 = vector.load %arg6[%c0_117, %c0_118, %c0_119] : memref<9x128x128xbf16, #tpu.memory_space<vmem>>, vector<1x128x128xbf16>
    %132 = vector.shape_cast %131 : vector<1x128x128xbf16> to vector<128x128xbf16>
    %cst_120 = arith.constant dense<0.000000e+00> : vector<32x128xf32>
    %133 = tpu.matmul %130, %132, %cst_120 {dimension_numbers = #tpu.dot_dimension_numbers<[1], [0], [0], [1], [0, 0, 1, 1], [], []>} : vector<32x128xbf16>, vector<128x128xbf16>, vector<32x128xf32> -> vector<32x128xf32>
    %c1_121 = arith.constant 1 : index
    %c0_122 = arith.constant 0 : index
    %134 = vector.load %arg14[%c1_121, %c0_122] : memref<56x128xbf16, #tpu.memory_space<vmem>>, vector<32x128xbf16>
    %c1_123 = arith.constant 1 : index
    %c0_124 = arith.constant 0 : index
    %c0_125 = arith.constant 0 : index
    %135 = vector.load %arg6[%c1_123, %c0_124, %c0_125] : memref<9x128x128xbf16, #tpu.memory_space<vmem>>, vector<1x128x128xbf16>
    %136 = vector.shape_cast %135 : vector<1x128x128xbf16> to vector<128x128xbf16>
    %cst_126 = arith.constant dense<0.000000e+00> : vector<32x128xf32>
    %137 = tpu.matmul %134, %136, %cst_126 {dimension_numbers = #tpu.dot_dimension_numbers<[1], [0], [0], [1], [0, 0, 1, 1], [], []>} : vector<32x128xbf16>, vector<128x128xbf16>, vector<32x128xf32> -> vector<32x128xf32>
    %138 = arith.addf %133, %137 : vector<32x128xf32>
    %c2_127 = arith.constant 2 : index
    %c0_128 = arith.constant 0 : index
    %139 = vector.load %arg14[%c2_127, %c0_128] : memref<56x128xbf16, #tpu.memory_space<vmem>>, vector<32x128xbf16>
    %c2_129 = arith.constant 2 : index
    %c0_130 = arith.constant 0 : index
    %c0_131 = arith.constant 0 : index
    %140 = vector.load %arg6[%c2_129, %c0_130, %c0_131] : memref<9x128x128xbf16, #tpu.memory_space<vmem>>, vector<1x128x128xbf16>
    %141 = vector.shape_cast %140 : vector<1x128x128xbf16> to vector<128x128xbf16>
    %cst_132 = arith.constant dense<0.000000e+00> : vector<32x128xf32>
    %142 = tpu.matmul %139, %141, %cst_132 {dimension_numbers = #tpu.dot_dimension_numbers<[1], [0], [0], [1], [0, 0, 1, 1], [], []>} : vector<32x128xbf16>, vector<128x128xbf16>, vector<32x128xf32> -> vector<32x128xf32>
    %143 = arith.addf %138, %142 : vector<32x128xf32>
    %c8_133 = arith.constant 8 : index
    %c0_134 = arith.constant 0 : index
    %144 = vector.load %arg14[%c8_133, %c0_134] : memref<56x128xbf16, #tpu.memory_space<vmem>>, vector<32x128xbf16>
    %c3_135 = arith.constant 3 : index
    %c0_136 = arith.constant 0 : index
    %c0_137 = arith.constant 0 : index
    %145 = vector.load %arg6[%c3_135, %c0_136, %c0_137] : memref<9x128x128xbf16, #tpu.memory_space<vmem>>, vector<1x128x128xbf16>
    %146 = vector.shape_cast %145 : vector<1x128x128xbf16> to vector<128x128xbf16>
    %cst_138 = arith.constant dense<0.000000e+00> : vector<32x128xf32>
    %147 = tpu.matmul %144, %146, %cst_138 {dimension_numbers = #tpu.dot_dimension_numbers<[1], [0], [0], [1], [0, 0, 1, 1], [], []>} : vector<32x128xbf16>, vector<128x128xbf16>, vector<32x128xf32> -> vector<32x128xf32>
    %148 = arith.addf %143, %147 : vector<32x128xf32>
    %c9_139 = arith.constant 9 : index
    %c0_140 = arith.constant 0 : index
    %149 = vector.load %arg14[%c9_139, %c0_140] : memref<56x128xbf16, #tpu.memory_space<vmem>>, vector<32x128xbf16>
    %c4_141 = arith.constant 4 : index
    %c0_142 = arith.constant 0 : index
    %c0_143 = arith.constant 0 : index
    %150 = vector.load %arg6[%c4_141, %c0_142, %c0_143] : memref<9x128x128xbf16, #tpu.memory_space<vmem>>, vector<1x128x128xbf16>
    %151 = vector.shape_cast %150 : vector<1x128x128xbf16> to vector<128x128xbf16>
    %cst_144 = arith.constant dense<0.000000e+00> : vector<32x128xf32>
    %152 = tpu.matmul %149, %151, %cst_144 {dimension_numbers = #tpu.dot_dimension_numbers<[1], [0], [0], [1], [0, 0, 1, 1], [], []>} : vector<32x128xbf16>, vector<128x128xbf16>, vector<32x128xf32> -> vector<32x128xf32>
    %153 = arith.addf %148, %152 : vector<32x128xf32>
    %c10 = arith.constant 10 : index
    %c0_145 = arith.constant 0 : index
    %154 = vector.load %arg14[%c10, %c0_145] : memref<56x128xbf16, #tpu.memory_space<vmem>>, vector<32x128xbf16>
    %c5_146 = arith.constant 5 : index
    %c0_147 = arith.constant 0 : index
    %c0_148 = arith.constant 0 : index
    %155 = vector.load %arg6[%c5_146, %c0_147, %c0_148] : memref<9x128x128xbf16, #tpu.memory_space<vmem>>, vector<1x128x128xbf16>
    %156 = vector.shape_cast %155 : vector<1x128x128xbf16> to vector<128x128xbf16>
    %cst_149 = arith.constant dense<0.000000e+00> : vector<32x128xf32>
    %157 = tpu.matmul %154, %156, %cst_149 {dimension_numbers = #tpu.dot_dimension_numbers<[1], [0], [0], [1], [0, 0, 1, 1], [], []>} : vector<32x128xbf16>, vector<128x128xbf16>, vector<32x128xf32> -> vector<32x128xf32>
    %158 = arith.addf %153, %157 : vector<32x128xf32>
    %c16_150 = arith.constant 16 : index
    %c0_151 = arith.constant 0 : index
    %159 = vector.load %arg14[%c16_150, %c0_151] : memref<56x128xbf16, #tpu.memory_space<vmem>>, vector<32x128xbf16>
    %c6_152 = arith.constant 6 : index
    %c0_153 = arith.constant 0 : index
    %c0_154 = arith.constant 0 : index
    %160 = vector.load %arg6[%c6_152, %c0_153, %c0_154] : memref<9x128x128xbf16, #tpu.memory_space<vmem>>, vector<1x128x128xbf16>
    %161 = vector.shape_cast %160 : vector<1x128x128xbf16> to vector<128x128xbf16>
    %cst_155 = arith.constant dense<0.000000e+00> : vector<32x128xf32>
    %162 = tpu.matmul %159, %161, %cst_155 {dimension_numbers = #tpu.dot_dimension_numbers<[1], [0], [0], [1], [0, 0, 1, 1], [], []>} : vector<32x128xbf16>, vector<128x128xbf16>, vector<32x128xf32> -> vector<32x128xf32>
    %163 = arith.addf %158, %162 : vector<32x128xf32>
    %c17_156 = arith.constant 17 : index
    %c0_157 = arith.constant 0 : index
    %164 = vector.load %arg14[%c17_156, %c0_157] : memref<56x128xbf16, #tpu.memory_space<vmem>>, vector<32x128xbf16>
    %c7_158 = arith.constant 7 : index
    %c0_159 = arith.constant 0 : index
    %c0_160 = arith.constant 0 : index
    %165 = vector.load %arg6[%c7_158, %c0_159, %c0_160] : memref<9x128x128xbf16, #tpu.memory_space<vmem>>, vector<1x128x128xbf16>
    %166 = vector.shape_cast %165 : vector<1x128x128xbf16> to vector<128x128xbf16>
    %cst_161 = arith.constant dense<0.000000e+00> : vector<32x128xf32>
    %167 = tpu.matmul %164, %166, %cst_161 {dimension_numbers = #tpu.dot_dimension_numbers<[1], [0], [0], [1], [0, 0, 1, 1], [], []>} : vector<32x128xbf16>, vector<128x128xbf16>, vector<32x128xf32> -> vector<32x128xf32>
    %168 = arith.addf %163, %167 : vector<32x128xf32>
    %c18_162 = arith.constant 18 : index
    %c0_163 = arith.constant 0 : index
    %169 = vector.load %arg14[%c18_162, %c0_163] : memref<56x128xbf16, #tpu.memory_space<vmem>>, vector<32x128xbf16>
    %c8_164 = arith.constant 8 : index
    %c0_165 = arith.constant 0 : index
    %c0_166 = arith.constant 0 : index
    %170 = vector.load %arg6[%c8_164, %c0_165, %c0_166] : memref<9x128x128xbf16, #tpu.memory_space<vmem>>, vector<1x128x128xbf16>
    %171 = vector.shape_cast %170 : vector<1x128x128xbf16> to vector<128x128xbf16>
    %cst_167 = arith.constant dense<0.000000e+00> : vector<32x128xf32>
    %172 = tpu.matmul %169, %171, %cst_167 {dimension_numbers = #tpu.dot_dimension_numbers<[1], [0], [0], [1], [0, 0, 1, 1], [], []>} : vector<32x128xbf16>, vector<128x128xbf16>, vector<32x128xf32> -> vector<32x128xf32>
    %173 = arith.addf %168, %172 : vector<32x128xf32>
    %c0_168 = arith.constant 0 : index
    %c0_169 = arith.constant 0 : index
    %174 = vector.load %arg7[%c0_168, %c0_169] : memref<1x128xf32, #tpu.memory_space<vmem>>, vector<1x128xf32>
    %175 = vector.broadcast %174 : vector<1x128xf32> to vector<32x128xf32>
    %176 = arith.addf %173, %175 : vector<32x128xf32>
    %cst_170 = arith.constant 0.000000e+00 : f32
    %177 = vector.broadcast %cst_170 : f32 to vector<32x128xf32>
    %178 = arith.maximumf %176, %177 : vector<32x128xf32>
    %179 = vector.extract_strided_slice %178 {offsets = [0, 0], sizes = [24, 128], strides = [1, 1]} : vector<32x128xf32> to vector<24x128xf32>
    %180 = vector.extract_strided_slice %178 {offsets = [8, 0], sizes = [24, 128], strides = [1, 1]} : vector<32x128xf32> to vector<24x128xf32>
    %181 = arith.maximumf %179, %180 : vector<24x128xf32>
    %c0_171 = arith.constant 0 : index
    %c0_172 = arith.constant 0 : index
    %182 = vector.load %arg15[%c0_171, %c0_172] : memref<240x128xf32, #tpu.memory_space<vmem>>, vector<24x128xf32>
    tpu.vector_store %arg15[%c0_171, %c0_172], %181 {strides = array<i32>} : memref<240x128xf32, #tpu.memory_space<vmem>>, vector<24x128xf32>,
    %c0_173 = arith.constant 0 : index
    %c0_174 = arith.constant 0 : index
    %183 = tpu.strided_load %arg15[%c0_173, %c0_174] {strides = array<i32: 2, 1>} : memref<240x128xf32, #tpu.memory_space<vmem>>, vector<2x128xf32>
    %c1_175 = arith.constant 1 : index
    %c0_176 = arith.constant 0 : index
    %184 = tpu.strided_load %arg15[%c1_175, %c0_176] {strides = array<i32: 2, 1>} : memref<240x128xf32, #tpu.memory_space<vmem>>, vector<2x128xf32>
    %185 = arith.maximumf %183, %184 : vector<2x128xf32>
    %c0_177 = arith.constant 0 : index
    %c0_178 = arith.constant 0 : index
    %186 = vector.load %arg16[%c0_177, %c0_178] : memref<8x128xf32, #tpu.memory_space<vmem>>, vector<2x128xf32>
    tpu.vector_store %arg16[%c0_177, %c0_178], %185 {strides = array<i32>} : memref<8x128xf32, #tpu.memory_space<vmem>>, vector<2x128xf32>,
    %c16_179 = arith.constant 16 : index
    %c0_180 = arith.constant 0 : index
    %187 = tpu.strided_load %arg15[%c16_179, %c0_180] {strides = array<i32: 2, 1>} : memref<240x128xf32, #tpu.memory_space<vmem>>, vector<2x128xf32>
    %c17_181 = arith.constant 17 : index
    %c0_182 = arith.constant 0 : index
    %188 = tpu.strided_load %arg15[%c17_181, %c0_182] {strides = array<i32: 2, 1>} : memref<240x128xf32, #tpu.memory_space<vmem>>, vector<2x128xf32>
    %189 = arith.maximumf %187, %188 : vector<2x128xf32>
    %c2_183 = arith.constant 2 : index
    %c0_184 = arith.constant 0 : index
    %190 = vector.load %arg16[%c2_183, %c0_184] : memref<8x128xf32, #tpu.memory_space<vmem>>, vector<2x128xf32>
    tpu.vector_store %arg16[%c2_183, %c0_184], %189 {strides = array<i32>} : memref<8x128xf32, #tpu.memory_space<vmem>>, vector<2x128xf32>,
    %c1_185 = arith.constant 1 : index
    %c0_186 = arith.constant 0 : index
    %c0_187 = arith.constant 0 : index
    %191 = vector.load %arg1[%c1_185, %c0_186, %c0_187] : memref<2x256x32xbf16, #tpu.memory_space<vmem>>, vector<1x256x32xbf16>
    %192 = vector.shape_cast %191 : vector<1x256x32xbf16> to vector<256x32xbf16>
    %c0_188 = arith.constant 0 : index
    %c0_189 = arith.constant 0 : index
    %193 = vector.load %arg2[%c0_188, %c0_189] : memref<32x128xbf16, #tpu.memory_space<vmem>>, vector<32x128xbf16>
    %cst_190 = arith.constant dense<0.000000e+00> : vector<256x128xf32>
    %194 = tpu.matmul %192, %193, %cst_190 {dimension_numbers = #tpu.dot_dimension_numbers<[1], [0], [0], [1], [0, 0, 1, 1], [], []>} : vector<256x32xbf16>, vector<32x128xbf16>, vector<256x128xf32> -> vector<256x128xf32>
    %c0_191 = arith.constant 0 : index
    %c0_192 = arith.constant 0 : index
    %195 = vector.load %arg3[%c0_191, %c0_192] : memref<1x128xf32, #tpu.memory_space<vmem>>, vector<1x128xf32>
    %196 = vector.broadcast %195 : vector<1x128xf32> to vector<256x128xf32>
    %197 = arith.addf %194, %196 : vector<256x128xf32>
    %cst_193 = arith.constant 0.000000e+00 : f32
    %198 = vector.broadcast %cst_193 : f32 to vector<256x128xf32>
    %199 = arith.maximumf %197, %198 : vector<256x128xf32>
    %200 = vector.extract_strided_slice %199 {offsets = [0, 0], sizes = [240, 128], strides = [1, 1]} : vector<256x128xf32> to vector<240x128xf32>
    %201 = vector.extract_strided_slice %199 {offsets = [16, 0], sizes = [240, 128], strides = [1, 1]} : vector<256x128xf32> to vector<240x128xf32>
    %202 = arith.maximumf %200, %201 : vector<240x128xf32>
    %c0_194 = arith.constant 0 : index
    %c0_195 = arith.constant 0 : index
    %203 = vector.load %arg15[%c0_194, %c0_195] : memref<240x128xf32, #tpu.memory_space<vmem>>, vector<240x128xf32>
    tpu.vector_store %arg15[%c0_194, %c0_195], %202 {strides = array<i32>} : memref<240x128xf32, #tpu.memory_space<vmem>>, vector<240x128xf32>,
    %c0_196 = arith.constant 0 : index
    %c0_197 = arith.constant 0 : index
    %204 = tpu.strided_load %arg15[%c0_196, %c0_197] {strides = array<i32: 2, 1>} : memref<240x128xf32, #tpu.memory_space<vmem>>, vector<8x128xf32>
    %c1_198 = arith.constant 1 : index
    %c0_199 = arith.constant 0 : index
    %205 = tpu.strided_load %arg15[%c1_198, %c0_199] {strides = array<i32: 2, 1>} : memref<240x128xf32, #tpu.memory_space<vmem>>, vector<8x128xf32>
    %206 = arith.maximumf %204, %205 : vector<8x128xf32>
    %207 = arith.truncf %206 : vector<8x128xf32> to vector<8x128xbf16>
    %c17_200 = arith.constant 17 : index
    %c0_201 = arith.constant 0 : index
    %208 = vector.load %arg13[%c17_200, %c0_201] : memref<176x128xbf16, #tpu.memory_space<vmem>>, vector<8x128xbf16>
    tpu.vector_store %arg13[%c17_200, %c0_201], %207 {strides = array<i32>} : memref<176x128xbf16, #tpu.memory_space<vmem>>, vector<8x128xbf16>,
    %c32_202 = arith.constant 32 : index
    %c0_203 = arith.constant 0 : index
    %209 = tpu.strided_load %arg15[%c32_202, %c0_203] {strides = array<i32: 2, 1>} : memref<240x128xf32, #tpu.memory_space<vmem>>, vector<8x128xf32>
    %c33_204 = arith.constant 33 : index
    %c0_205 = arith.constant 0 : index
    %210 = tpu.strided_load %arg15[%c33_204, %c0_205] {strides = array<i32: 2, 1>} : memref<240x128xf32, #tpu.memory_space<vmem>>, vector<8x128xf32>
    %211 = arith.maximumf %209, %210 : vector<8x128xf32>
    %212 = arith.truncf %211 : vector<8x128xf32> to vector<8x128xbf16>
    %c33_206 = arith.constant 33 : index
    %c0_207 = arith.constant 0 : index
    %213 = vector.load %arg13[%c33_206, %c0_207] : memref<176x128xbf16, #tpu.memory_space<vmem>>, vector<8x128xbf16>
    tpu.vector_store %arg13[%c33_206, %c0_207], %212 {strides = array<i32>} : memref<176x128xbf16, #tpu.memory_space<vmem>>, vector<8x128xbf16>,
    %c64_208 = arith.constant 64 : index
    %c0_209 = arith.constant 0 : index
    %214 = tpu.strided_load %arg15[%c64_208, %c0_209] {strides = array<i32: 2, 1>} : memref<240x128xf32, #tpu.memory_space<vmem>>, vector<8x128xf32>
    %c65_210 = arith.constant 65 : index
    %c0_211 = arith.constant 0 : index
    %215 = tpu.strided_load %arg15[%c65_210, %c0_211] {strides = array<i32: 2, 1>} : memref<240x128xf32, #tpu.memory_space<vmem>>, vector<8x128xf32>
    %216 = arith.maximumf %214, %215 : vector<8x128xf32>
    %217 = arith.truncf %216 : vector<8x128xf32> to vector<8x128xbf16>
    %c49_212 = arith.constant 49 : index
    %c0_213 = arith.constant 0 : index
    %218 = vector.load %arg13[%c49_212, %c0_213] : memref<176x128xbf16, #tpu.memory_space<vmem>>, vector<8x128xbf16>
    tpu.vector_store %arg13[%c49_212, %c0_213], %217 {strides = array<i32>} : memref<176x128xbf16, #tpu.memory_space<vmem>>, vector<8x128xbf16>,
    %c96_214 = arith.constant 96 : index
    %c0_215 = arith.constant 0 : index
    %219 = tpu.strided_load %arg15[%c96_214, %c0_215] {strides = array<i32: 2, 1>} : memref<240x128xf32, #tpu.memory_space<vmem>>, vector<8x128xf32>
    %c97_216 = arith.constant 97 : index
    %c0_217 = arith.constant 0 : index
    %220 = tpu.strided_load %arg15[%c97_216, %c0_217] {strides = array<i32: 2, 1>} : memref<240x128xf32, #tpu.memory_space<vmem>>, vector<8x128xf32>
    %221 = arith.maximumf %219, %220 : vector<8x128xf32>
    %222 = arith.truncf %221 : vector<8x128xf32> to vector<8x128xbf16>
    %c65_218 = arith.constant 65 : index
    %c0_219 = arith.constant 0 : index
    %223 = vector.load %arg13[%c65_218, %c0_219] : memref<176x128xbf16, #tpu.memory_space<vmem>>, vector<8x128xbf16>
    tpu.vector_store %arg13[%c65_218, %c0_219], %222 {strides = array<i32>} : memref<176x128xbf16, #tpu.memory_space<vmem>>, vector<8x128xbf16>,
    %c128_220 = arith.constant 128 : index
    %c0_221 = arith.constant 0 : index
    %224 = tpu.strided_load %arg15[%c128_220, %c0_221] {strides = array<i32: 2, 1>} : memref<240x128xf32, #tpu.memory_space<vmem>>, vector<8x128xf32>
    %c129_222 = arith.constant 129 : index
    %c0_223 = arith.constant 0 : index
    %225 = tpu.strided_load %arg15[%c129_222, %c0_223] {strides = array<i32: 2, 1>} : memref<240x128xf32, #tpu.memory_space<vmem>>, vector<8x128xf32>
    %226 = arith.maximumf %224, %225 : vector<8x128xf32>
    %227 = arith.truncf %226 : vector<8x128xf32> to vector<8x128xbf16>
    %c81_224 = arith.constant 81 : index
    %c0_225 = arith.constant 0 : index
    %228 = vector.load %arg13[%c81_224, %c0_225] : memref<176x128xbf16, #tpu.memory_space<vmem>>, vector<8x128xbf16>
    tpu.vector_store %arg13[%c81_224, %c0_225], %227 {strides = array<i32>} : memref<176x128xbf16, #tpu.memory_space<vmem>>, vector<8x128xbf16>,
    %c160_226 = arith.constant 160 : index
    %c0_227 = arith.constant 0 : index
    %229 = tpu.strided_load %arg15[%c160_226, %c0_227] {strides = array<i32: 2, 1>} : memref<240x128xf32, #tpu.memory_space<vmem>>, vector<8x128xf32>
    %c161_228 = arith.constant 161 : index
    %c0_229 = arith.constant 0 : index
    %230 = tpu.strided_load %arg15[%c161_228, %c0_229] {strides = array<i32: 2, 1>} : memref<240x128xf32, #tpu.memory_space<vmem>>, vector<8x128xf32>
    %231 = arith.maximumf %229, %230 : vector<8x128xf32>
    %232 = arith.truncf %231 : vector<8x128xf32> to vector<8x128xbf16>
    %c97_230 = arith.constant 97 : index
    %c0_231 = arith.constant 0 : index
    %233 = vector.load %arg13[%c97_230, %c0_231] : memref<176x128xbf16, #tpu.memory_space<vmem>>, vector<8x128xbf16>
    tpu.vector_store %arg13[%c97_230, %c0_231], %232 {strides = array<i32>} : memref<176x128xbf16, #tpu.memory_space<vmem>>, vector<8x128xbf16>,
    %c192_232 = arith.constant 192 : index
    %c0_233 = arith.constant 0 : index
    %234 = tpu.strided_load %arg15[%c192_232, %c0_233] {strides = array<i32: 2, 1>} : memref<240x128xf32, #tpu.memory_space<vmem>>, vector<8x128xf32>
    %c193_234 = arith.constant 193 : index
    %c0_235 = arith.constant 0 : index
    %235 = tpu.strided_load %arg15[%c193_234, %c0_235] {strides = array<i32: 2, 1>} : memref<240x128xf32, #tpu.memory_space<vmem>>, vector<8x128xf32>
    %236 = arith.maximumf %234, %235 : vector<8x128xf32>
    %237 = arith.truncf %236 : vector<8x128xf32> to vector<8x128xbf16>
    %c113_236 = arith.constant 113 : index
    %c0_237 = arith.constant 0 : index
    %238 = vector.load %arg13[%c113_236, %c0_237] : memref<176x128xbf16, #tpu.memory_space<vmem>>, vector<8x128xbf16>
    tpu.vector_store %arg13[%c113_236, %c0_237], %237 {strides = array<i32>} : memref<176x128xbf16, #tpu.memory_space<vmem>>, vector<8x128xbf16>,
    %c224_238 = arith.constant 224 : index
    %c0_239 = arith.constant 0 : index
    %239 = tpu.strided_load %arg15[%c224_238, %c0_239] {strides = array<i32: 2, 1>} : memref<240x128xf32, #tpu.memory_space<vmem>>, vector<8x128xf32>
    %c225_240 = arith.constant 225 : index
    %c0_241 = arith.constant 0 : index
    %240 = tpu.strided_load %arg15[%c225_240, %c0_241] {strides = array<i32: 2, 1>} : memref<240x128xf32, #tpu.memory_space<vmem>>, vector<8x128xf32>
    %241 = arith.maximumf %239, %240 : vector<8x128xf32>
    %242 = arith.truncf %241 : vector<8x128xf32> to vector<8x128xbf16>
    %c129_242 = arith.constant 129 : index
    %c0_243 = arith.constant 0 : index
    %243 = vector.load %arg13[%c129_242, %c0_243] : memref<176x128xbf16, #tpu.memory_space<vmem>>, vector<8x128xbf16>
    tpu.vector_store %arg13[%c129_242, %c0_243], %242 {strides = array<i32>} : memref<176x128xbf16, #tpu.memory_space<vmem>>, vector<8x128xbf16>,
    %c0_244 = arith.constant 0 : index
    %c0_245 = arith.constant 0 : index
    %244 = vector.load %arg13[%c0_244, %c0_245] : memref<176x128xbf16, #tpu.memory_space<vmem>>, vector<128x128xbf16>
    %c0_246 = arith.constant 0 : index
    %c0_247 = arith.constant 0 : index
    %c0_248 = arith.constant 0 : index
    %245 = vector.load %arg4[%c0_246, %c0_247, %c0_248] : memref<9x128x128xbf16, #tpu.memory_space<vmem>>, vector<1x128x128xbf16>
    %246 = vector.shape_cast %245 : vector<1x128x128xbf16> to vector<128x128xbf16>
    %cst_249 = arith.constant dense<0.000000e+00> : vector<128x128xf32>
    %247 = tpu.matmul %244, %246, %cst_249 {dimension_numbers = #tpu.dot_dimension_numbers<[1], [0], [0], [1], [0, 0, 1, 1], [], []>} : vector<128x128xbf16>, vector<128x128xbf16>, vector<128x128xf32> -> vector<128x128xf32>
    %c1_250 = arith.constant 1 : index
    %c0_251 = arith.constant 0 : index
    %248 = vector.load %arg13[%c1_250, %c0_251] : memref<176x128xbf16, #tpu.memory_space<vmem>>, vector<128x128xbf16>
    %c1_252 = arith.constant 1 : index
    %c0_253 = arith.constant 0 : index
    %c0_254 = arith.constant 0 : index
    %249 = vector.load %arg4[%c1_252, %c0_253, %c0_254] : memref<9x128x128xbf16, #tpu.memory_space<vmem>>, vector<1x128x128xbf16>
    %250 = vector.shape_cast %249 : vector<1x128x128xbf16> to vector<128x128xbf16>
    %cst_255 = arith.constant dense<0.000000e+00> : vector<128x128xf32>
    %251 = tpu.matmul %248, %250, %cst_255 {dimension_numbers = #tpu.dot_dimension_numbers<[1], [0], [0], [1], [0, 0, 1, 1], [], []>} : vector<128x128xbf16>, vector<128x128xbf16>, vector<128x128xf32> -> vector<128x128xf32>
    %252 = arith.addf %247, %251 : vector<128x128xf32>
    %c2_256 = arith.constant 2 : index
    %c0_257 = arith.constant 0 : index
    %253 = vector.load %arg13[%c2_256, %c0_257] : memref<176x128xbf16, #tpu.memory_space<vmem>>, vector<128x128xbf16>
    %c2_258 = arith.constant 2 : index
    %c0_259 = arith.constant 0 : index
    %c0_260 = arith.constant 0 : index
    %254 = vector.load %arg4[%c2_258, %c0_259, %c0_260] : memref<9x128x128xbf16, #tpu.memory_space<vmem>>, vector<1x128x128xbf16>
    %255 = vector.shape_cast %254 : vector<1x128x128xbf16> to vector<128x128xbf16>
    %cst_261 = arith.constant dense<0.000000e+00> : vector<128x128xf32>
    %256 = tpu.matmul %253, %255, %cst_261 {dimension_numbers = #tpu.dot_dimension_numbers<[1], [0], [0], [1], [0, 0, 1, 1], [], []>} : vector<128x128xbf16>, vector<128x128xbf16>, vector<128x128xf32> -> vector<128x128xf32>
    %257 = arith.addf %252, %256 : vector<128x128xf32>
    %c16_262 = arith.constant 16 : index
    %c0_263 = arith.constant 0 : index
    %258 = vector.load %arg13[%c16_262, %c0_263] : memref<176x128xbf16, #tpu.memory_space<vmem>>, vector<128x128xbf16>
    %c3_264 = arith.constant 3 : index
    %c0_265 = arith.constant 0 : index
    %c0_266 = arith.constant 0 : index
    %259 = vector.load %arg4[%c3_264, %c0_265, %c0_266] : memref<9x128x128xbf16, #tpu.memory_space<vmem>>, vector<1x128x128xbf16>
    %260 = vector.shape_cast %259 : vector<1x128x128xbf16> to vector<128x128xbf16>
    %cst_267 = arith.constant dense<0.000000e+00> : vector<128x128xf32>
    %261 = tpu.matmul %258, %260, %cst_267 {dimension_numbers = #tpu.dot_dimension_numbers<[1], [0], [0], [1], [0, 0, 1, 1], [], []>} : vector<128x128xbf16>, vector<128x128xbf16>, vector<128x128xf32> -> vector<128x128xf32>
    %262 = arith.addf %257, %261 : vector<128x128xf32>
    %c17_268 = arith.constant 17 : index
    %c0_269 = arith.constant 0 : index
    %263 = vector.load %arg13[%c17_268, %c0_269] : memref<176x128xbf16, #tpu.memory_space<vmem>>, vector<128x128xbf16>
    %c4_270 = arith.constant 4 : index
    %c0_271 = arith.constant 0 : index
    %c0_272 = arith.constant 0 : index
    %264 = vector.load %arg4[%c4_270, %c0_271, %c0_272] : memref<9x128x128xbf16, #tpu.memory_space<vmem>>, vector<1x128x128xbf16>
    %265 = vector.shape_cast %264 : vector<1x128x128xbf16> to vector<128x128xbf16>
    %cst_273 = arith.constant dense<0.000000e+00> : vector<128x128xf32>
    %266 = tpu.matmul %263, %265, %cst_273 {dimension_numbers = #tpu.dot_dimension_numbers<[1], [0], [0], [1], [0, 0, 1, 1], [], []>} : vector<128x128xbf16>, vector<128x128xbf16>, vector<128x128xf32> -> vector<128x128xf32>
    %267 = arith.addf %262, %266 : vector<128x128xf32>
    %c18_274 = arith.constant 18 : index
    %c0_275 = arith.constant 0 : index
    %268 = vector.load %arg13[%c18_274, %c0_275] : memref<176x128xbf16, #tpu.memory_space<vmem>>, vector<128x128xbf16>
    %c5_276 = arith.constant 5 : index
    %c0_277 = arith.constant 0 : index
    %c0_278 = arith.constant 0 : index
    %269 = vector.load %arg4[%c5_276, %c0_277, %c0_278] : memref<9x128x128xbf16, #tpu.memory_space<vmem>>, vector<1x128x128xbf16>
    %270 = vector.shape_cast %269 : vector<1x128x128xbf16> to vector<128x128xbf16>
    %cst_279 = arith.constant dense<0.000000e+00> : vector<128x128xf32>
    %271 = tpu.matmul %268, %270, %cst_279 {dimension_numbers = #tpu.dot_dimension_numbers<[1], [0], [0], [1], [0, 0, 1, 1], [], []>} : vector<128x128xbf16>, vector<128x128xbf16>, vector<128x128xf32> -> vector<128x128xf32>
    %272 = arith.addf %267, %271 : vector<128x128xf32>
    %c32_280 = arith.constant 32 : index
    %c0_281 = arith.constant 0 : index
    %273 = vector.load %arg13[%c32_280, %c0_281] : memref<176x128xbf16, #tpu.memory_space<vmem>>, vector<128x128xbf16>
    %c6_282 = arith.constant 6 : index
    %c0_283 = arith.constant 0 : index
    %c0_284 = arith.constant 0 : index
    %274 = vector.load %arg4[%c6_282, %c0_283, %c0_284] : memref<9x128x128xbf16, #tpu.memory_space<vmem>>, vector<1x128x128xbf16>
    %275 = vector.shape_cast %274 : vector<1x128x128xbf16> to vector<128x128xbf16>
    %cst_285 = arith.constant dense<0.000000e+00> : vector<128x128xf32>
    %276 = tpu.matmul %273, %275, %cst_285 {dimension_numbers = #tpu.dot_dimension_numbers<[1], [0], [0], [1], [0, 0, 1, 1], [], []>} : vector<128x128xbf16>, vector<128x128xbf16>, vector<128x128xf32> -> vector<128x128xf32>
    %277 = arith.addf %272, %276 : vector<128x128xf32>
    %c33_286 = arith.constant 33 : index
    %c0_287 = arith.constant 0 : index
    %278 = vector.load %arg13[%c33_286, %c0_287] : memref<176x128xbf16, #tpu.memory_space<vmem>>, vector<128x128xbf16>
    %c7_288 = arith.constant 7 : index
    %c0_289 = arith.constant 0 : index
    %c0_290 = arith.constant 0 : index
    %279 = vector.load %arg4[%c7_288, %c0_289, %c0_290] : memref<9x128x128xbf16, #tpu.memory_space<vmem>>, vector<1x128x128xbf16>
    %280 = vector.shape_cast %279 : vector<1x128x128xbf16> to vector<128x128xbf16>
    %cst_291 = arith.constant dense<0.000000e+00> : vector<128x128xf32>
    %281 = tpu.matmul %278, %280, %cst_291 {dimension_numbers = #tpu.dot_dimension_numbers<[1], [0], [0], [1], [0, 0, 1, 1], [], []>} : vector<128x128xbf16>, vector<128x128xbf16>, vector<128x128xf32> -> vector<128x128xf32>
    %282 = arith.addf %277, %281 : vector<128x128xf32>
    %c34_292 = arith.constant 34 : index
    %c0_293 = arith.constant 0 : index
    %283 = vector.load %arg13[%c34_292, %c0_293] : memref<176x128xbf16, #tpu.memory_space<vmem>>, vector<128x128xbf16>
    %c8_294 = arith.constant 8 : index
    %c0_295 = arith.constant 0 : index
    %c0_296 = arith.constant 0 : index
    %284 = vector.load %arg4[%c8_294, %c0_295, %c0_296] : memref<9x128x128xbf16, #tpu.memory_space<vmem>>, vector<1x128x128xbf16>
    %285 = vector.shape_cast %284 : vector<1x128x128xbf16> to vector<128x128xbf16>
    %cst_297 = arith.constant dense<0.000000e+00> : vector<128x128xf32>
    %286 = tpu.matmul %283, %285, %cst_297 {dimension_numbers = #tpu.dot_dimension_numbers<[1], [0], [0], [1], [0, 0, 1, 1], [], []>} : vector<128x128xbf16>, vector<128x128xbf16>, vector<128x128xf32> -> vector<128x128xf32>
    %287 = arith.addf %282, %286 : vector<128x128xf32>
    %c0_298 = arith.constant 0 : index
    %c0_299 = arith.constant 0 : index
    %288 = vector.load %arg5[%c0_298, %c0_299] : memref<1x128xf32, #tpu.memory_space<vmem>>, vector<1x128xf32>
    %289 = vector.broadcast %288 : vector<1x128xf32> to vector<128x128xf32>
    %290 = arith.addf %287, %289 : vector<128x128xf32>
    %cst_300 = arith.constant 0.000000e+00 : f32
    %291 = vector.broadcast %cst_300 : f32 to vector<128x128xf32>
    %292 = arith.maximumf %290, %291 : vector<128x128xf32>
    %293 = vector.extract_strided_slice %292 {offsets = [0, 0], sizes = [112, 128], strides = [1, 1]} : vector<128x128xf32> to vector<112x128xf32>
    %294 = vector.extract_strided_slice %292 {offsets = [16, 0], sizes = [112, 128], strides = [1, 1]} : vector<128x128xf32> to vector<112x128xf32>
    %295 = arith.maximumf %293, %294 : vector<112x128xf32>
    %c0_301 = arith.constant 0 : index
    %c0_302 = arith.constant 0 : index
    %296 = vector.load %arg15[%c0_301, %c0_302] : memref<240x128xf32, #tpu.memory_space<vmem>>, vector<112x128xf32>
    tpu.vector_store %arg15[%c0_301, %c0_302], %295 {strides = array<i32>} : memref<240x128xf32, #tpu.memory_space<vmem>>, vector<112x128xf32>,
    %c0_303 = arith.constant 0 : index
    %c0_304 = arith.constant 0 : index
    %297 = tpu.strided_load %arg15[%c0_303, %c0_304] {strides = array<i32: 2, 1>} : memref<240x128xf32, #tpu.memory_space<vmem>>, vector<4x128xf32>
    %c1_305 = arith.constant 1 : index
    %c0_306 = arith.constant 0 : index
    %298 = tpu.strided_load %arg15[%c1_305, %c0_306] {strides = array<i32: 2, 1>} : memref<240x128xf32, #tpu.memory_space<vmem>>, vector<4x128xf32>
    %299 = arith.maximumf %297, %298 : vector<4x128xf32>
    %300 = arith.truncf %299 : vector<4x128xf32> to vector<4x128xbf16>
    %c9_307 = arith.constant 9 : index
    %c0_308 = arith.constant 0 : index
    %301 = vector.load %arg14[%c9_307, %c0_308] : memref<56x128xbf16, #tpu.memory_space<vmem>>, vector<4x128xbf16>
    tpu.vector_store %arg14[%c9_307, %c0_308], %300 {strides = array<i32>} : memref<56x128xbf16, #tpu.memory_space<vmem>>, vector<4x128xbf16>,
    %c32_309 = arith.constant 32 : index
    %c0_310 = arith.constant 0 : index
    %302 = tpu.strided_load %arg15[%c32_309, %c0_310] {strides = array<i32: 2, 1>} : memref<240x128xf32, #tpu.memory_space<vmem>>, vector<4x128xf32>
    %c33_311 = arith.constant 33 : index
    %c0_312 = arith.constant 0 : index
    %303 = tpu.strided_load %arg15[%c33_311, %c0_312] {strides = array<i32: 2, 1>} : memref<240x128xf32, #tpu.memory_space<vmem>>, vector<4x128xf32>
    %304 = arith.maximumf %302, %303 : vector<4x128xf32>
    %305 = arith.truncf %304 : vector<4x128xf32> to vector<4x128xbf16>
    %c17_313 = arith.constant 17 : index
    %c0_314 = arith.constant 0 : index
    %306 = vector.load %arg14[%c17_313, %c0_314] : memref<56x128xbf16, #tpu.memory_space<vmem>>, vector<4x128xbf16>
    tpu.vector_store %arg14[%c17_313, %c0_314], %305 {strides = array<i32>} : memref<56x128xbf16, #tpu.memory_space<vmem>>, vector<4x128xbf16>,
    %c64_315 = arith.constant 64 : index
    %c0_316 = arith.constant 0 : index
    %307 = tpu.strided_load %arg15[%c64_315, %c0_316] {strides = array<i32: 2, 1>} : memref<240x128xf32, #tpu.memory_space<vmem>>, vector<4x128xf32>
    %c65_317 = arith.constant 65 : index
    %c0_318 = arith.constant 0 : index
    %308 = tpu.strided_load %arg15[%c65_317, %c0_318] {strides = array<i32: 2, 1>} : memref<240x128xf32, #tpu.memory_space<vmem>>, vector<4x128xf32>
    %309 = arith.maximumf %307, %308 : vector<4x128xf32>
    %310 = arith.truncf %309 : vector<4x128xf32> to vector<4x128xbf16>
    %c25_319 = arith.constant 25 : index
    %c0_320 = arith.constant 0 : index
    %311 = vector.load %arg14[%c25_319, %c0_320] : memref<56x128xbf16, #tpu.memory_space<vmem>>, vector<4x128xbf16>
    tpu.vector_store %arg14[%c25_319, %c0_320], %310 {strides = array<i32>} : memref<56x128xbf16, #tpu.memory_space<vmem>>, vector<4x128xbf16>,
    %c96_321 = arith.constant 96 : index
    %c0_322 = arith.constant 0 : index
    %312 = tpu.strided_load %arg15[%c96_321, %c0_322] {strides = array<i32: 2, 1>} : memref<240x128xf32, #tpu.memory_space<vmem>>, vector<4x128xf32>
    %c97_323 = arith.constant 97 : index
    %c0_324 = arith.constant 0 : index
    %313 = tpu.strided_load %arg15[%c97_323, %c0_324] {strides = array<i32: 2, 1>} : memref<240x128xf32, #tpu.memory_space<vmem>>, vector<4x128xf32>
    %314 = arith.maximumf %312, %313 : vector<4x128xf32>
    %315 = arith.truncf %314 : vector<4x128xf32> to vector<4x128xbf16>
    %c33_325 = arith.constant 33 : index
    %c0_326 = arith.constant 0 : index
    %316 = vector.load %arg14[%c33_325, %c0_326] : memref<56x128xbf16, #tpu.memory_space<vmem>>, vector<4x128xbf16>
    tpu.vector_store %arg14[%c33_325, %c0_326], %315 {strides = array<i32>} : memref<56x128xbf16, #tpu.memory_space<vmem>>, vector<4x128xbf16>,
    %c0_327 = arith.constant 0 : index
    %c0_328 = arith.constant 0 : index
    %317 = vector.load %arg14[%c0_327, %c0_328] : memref<56x128xbf16, #tpu.memory_space<vmem>>, vector<32x128xbf16>
    %c0_329 = arith.constant 0 : index
    %c0_330 = arith.constant 0 : index
    %c0_331 = arith.constant 0 : index
    %318 = vector.load %arg6[%c0_329, %c0_330, %c0_331] : memref<9x128x128xbf16, #tpu.memory_space<vmem>>, vector<1x128x128xbf16>
    %319 = vector.shape_cast %318 : vector<1x128x128xbf16> to vector<128x128xbf16>
    %cst_332 = arith.constant dense<0.000000e+00> : vector<32x128xf32>
    %320 = tpu.matmul %317, %319, %cst_332 {dimension_numbers = #tpu.dot_dimension_numbers<[1], [0], [0], [1], [0, 0, 1, 1], [], []>} : vector<32x128xbf16>, vector<128x128xbf16>, vector<32x128xf32> -> vector<32x128xf32>
    %c1_333 = arith.constant 1 : index
    %c0_334 = arith.constant 0 : index
    %321 = vector.load %arg14[%c1_333, %c0_334] : memref<56x128xbf16, #tpu.memory_space<vmem>>, vector<32x128xbf16>
    %c1_335 = arith.constant 1 : index
    %c0_336 = arith.constant 0 : index
    %c0_337 = arith.constant 0 : index
    %322 = vector.load %arg6[%c1_335, %c0_336, %c0_337] : memref<9x128x128xbf16, #tpu.memory_space<vmem>>, vector<1x128x128xbf16>
    %323 = vector.shape_cast %322 : vector<1x128x128xbf16> to vector<128x128xbf16>
    %cst_338 = arith.constant dense<0.000000e+00> : vector<32x128xf32>
    %324 = tpu.matmul %321, %323, %cst_338 {dimension_numbers = #tpu.dot_dimension_numbers<[1], [0], [0], [1], [0, 0, 1, 1], [], []>} : vector<32x128xbf16>, vector<128x128xbf16>, vector<32x128xf32> -> vector<32x128xf32>
    %325 = arith.addf %320, %324 : vector<32x128xf32>
    %c2_339 = arith.constant 2 : index
    %c0_340 = arith.constant 0 : index
    %326 = vector.load %arg14[%c2_339, %c0_340] : memref<56x128xbf16, #tpu.memory_space<vmem>>, vector<32x128xbf16>
    %c2_341 = arith.constant 2 : index
    %c0_342 = arith.constant 0 : index
    %c0_343 = arith.constant 0 : index
    %327 = vector.load %arg6[%c2_341, %c0_342, %c0_343] : memref<9x128x128xbf16, #tpu.memory_space<vmem>>, vector<1x128x128xbf16>
    %328 = vector.shape_cast %327 : vector<1x128x128xbf16> to vector<128x128xbf16>
    %cst_344 = arith.constant dense<0.000000e+00> : vector<32x128xf32>
    %329 = tpu.matmul %326, %328, %cst_344 {dimension_numbers = #tpu.dot_dimension_numbers<[1], [0], [0], [1], [0, 0, 1, 1], [], []>} : vector<32x128xbf16>, vector<128x128xbf16>, vector<32x128xf32> -> vector<32x128xf32>
    %330 = arith.addf %325, %329 : vector<32x128xf32>
    %c8_345 = arith.constant 8 : index
    %c0_346 = arith.constant 0 : index
    %331 = vector.load %arg14[%c8_345, %c0_346] : memref<56x128xbf16, #tpu.memory_space<vmem>>, vector<32x128xbf16>
    %c3_347 = arith.constant 3 : index
    %c0_348 = arith.constant 0 : index
    %c0_349 = arith.constant 0 : index
    %332 = vector.load %arg6[%c3_347, %c0_348, %c0_349] : memref<9x128x128xbf16, #tpu.memory_space<vmem>>, vector<1x128x128xbf16>
    %333 = vector.shape_cast %332 : vector<1x128x128xbf16> to vector<128x128xbf16>
    %cst_350 = arith.constant dense<0.000000e+00> : vector<32x128xf32>
    %334 = tpu.matmul %331, %333, %cst_350 {dimension_numbers = #tpu.dot_dimension_numbers<[1], [0], [0], [1], [0, 0, 1, 1], [], []>} : vector<32x128xbf16>, vector<128x128xbf16>, vector<32x128xf32> -> vector<32x128xf32>
    %335 = arith.addf %330, %334 : vector<32x128xf32>
    %c9_351 = arith.constant 9 : index
    %c0_352 = arith.constant 0 : index
    %336 = vector.load %arg14[%c9_351, %c0_352] : memref<56x128xbf16, #tpu.memory_space<vmem>>, vector<32x128xbf16>
    %c4_353 = arith.constant 4 : index
    %c0_354 = arith.constant 0 : index
    %c0_355 = arith.constant 0 : index
    %337 = vector.load %arg6[%c4_353, %c0_354, %c0_355] : memref<9x128x128xbf16, #tpu.memory_space<vmem>>, vector<1x128x128xbf16>
    %338 = vector.shape_cast %337 : vector<1x128x128xbf16> to vector<128x128xbf16>
    %cst_356 = arith.constant dense<0.000000e+00> : vector<32x128xf32>
    %339 = tpu.matmul %336, %338, %cst_356 {dimension_numbers = #tpu.dot_dimension_numbers<[1], [0], [0], [1], [0, 0, 1, 1], [], []>} : vector<32x128xbf16>, vector<128x128xbf16>, vector<32x128xf32> -> vector<32x128xf32>
    %340 = arith.addf %335, %339 : vector<32x128xf32>
    %c10_357 = arith.constant 10 : index
    %c0_358 = arith.constant 0 : index
    %341 = vector.load %arg14[%c10_357, %c0_358] : memref<56x128xbf16, #tpu.memory_space<vmem>>, vector<32x128xbf16>
    %c5_359 = arith.constant 5 : index
    %c0_360 = arith.constant 0 : index
    %c0_361 = arith.constant 0 : index
    %342 = vector.load %arg6[%c5_359, %c0_360, %c0_361] : memref<9x128x128xbf16, #tpu.memory_space<vmem>>, vector<1x128x128xbf16>
    %343 = vector.shape_cast %342 : vector<1x128x128xbf16> to vector<128x128xbf16>
    %cst_362 = arith.constant dense<0.000000e+00> : vector<32x128xf32>
    %344 = tpu.matmul %341, %343, %cst_362 {dimension_numbers = #tpu.dot_dimension_numbers<[1], [0], [0], [1], [0, 0, 1, 1], [], []>} : vector<32x128xbf16>, vector<128x128xbf16>, vector<32x128xf32> -> vector<32x128xf32>
    %345 = arith.addf %340, %344 : vector<32x128xf32>
    %c16_363 = arith.constant 16 : index
    %c0_364 = arith.constant 0 : index
    %346 = vector.load %arg14[%c16_363, %c0_364] : memref<56x128xbf16, #tpu.memory_space<vmem>>, vector<32x128xbf16>
    %c6_365 = arith.constant 6 : index
    %c0_366 = arith.constant 0 : index
    %c0_367 = arith.constant 0 : index
    %347 = vector.load %arg6[%c6_365, %c0_366, %c0_367] : memref<9x128x128xbf16, #tpu.memory_space<vmem>>, vector<1x128x128xbf16>
    %348 = vector.shape_cast %347 : vector<1x128x128xbf16> to vector<128x128xbf16>
    %cst_368 = arith.constant dense<0.000000e+00> : vector<32x128xf32>
    %349 = tpu.matmul %346, %348, %cst_368 {dimension_numbers = #tpu.dot_dimension_numbers<[1], [0], [0], [1], [0, 0, 1, 1], [], []>} : vector<32x128xbf16>, vector<128x128xbf16>, vector<32x128xf32> -> vector<32x128xf32>
    %350 = arith.addf %345, %349 : vector<32x128xf32>
    %c17_369 = arith.constant 17 : index
    %c0_370 = arith.constant 0 : index
    %351 = vector.load %arg14[%c17_369, %c0_370] : memref<56x128xbf16, #tpu.memory_space<vmem>>, vector<32x128xbf16>
    %c7_371 = arith.constant 7 : index
    %c0_372 = arith.constant 0 : index
    %c0_373 = arith.constant 0 : index
    %352 = vector.load %arg6[%c7_371, %c0_372, %c0_373] : memref<9x128x128xbf16, #tpu.memory_space<vmem>>, vector<1x128x128xbf16>
    %353 = vector.shape_cast %352 : vector<1x128x128xbf16> to vector<128x128xbf16>
    %cst_374 = arith.constant dense<0.000000e+00> : vector<32x128xf32>
    %354 = tpu.matmul %351, %353, %cst_374 {dimension_numbers = #tpu.dot_dimension_numbers<[1], [0], [0], [1], [0, 0, 1, 1], [], []>} : vector<32x128xbf16>, vector<128x128xbf16>, vector<32x128xf32> -> vector<32x128xf32>
    %355 = arith.addf %350, %354 : vector<32x128xf32>
    %c18_375 = arith.constant 18 : index
    %c0_376 = arith.constant 0 : index
    %356 = vector.load %arg14[%c18_375, %c0_376] : memref<56x128xbf16, #tpu.memory_space<vmem>>, vector<32x128xbf16>
    %c8_377 = arith.constant 8 : index
    %c0_378 = arith.constant 0 : index
    %c0_379 = arith.constant 0 : index
    %357 = vector.load %arg6[%c8_377, %c0_378, %c0_379] : memref<9x128x128xbf16, #tpu.memory_space<vmem>>, vector<1x128x128xbf16>
    %358 = vector.shape_cast %357 : vector<1x128x128xbf16> to vector<128x128xbf16>
    %cst_380 = arith.constant dense<0.000000e+00> : vector<32x128xf32>
    %359 = tpu.matmul %356, %358, %cst_380 {dimension_numbers = #tpu.dot_dimension_numbers<[1], [0], [0], [1], [0, 0, 1, 1], [], []>} : vector<32x128xbf16>, vector<128x128xbf16>, vector<32x128xf32> -> vector<32x128xf32>
    %360 = arith.addf %355, %359 : vector<32x128xf32>
    %c0_381 = arith.constant 0 : index
    %c0_382 = arith.constant 0 : index
    %361 = vector.load %arg7[%c0_381, %c0_382] : memref<1x128xf32, #tpu.memory_space<vmem>>, vector<1x128xf32>
    %362 = vector.broadcast %361 : vector<1x128xf32> to vector<32x128xf32>
    %363 = arith.addf %360, %362 : vector<32x128xf32>
    %cst_383 = arith.constant 0.000000e+00 : f32
    %364 = vector.broadcast %cst_383 : f32 to vector<32x128xf32>
    %365 = arith.maximumf %363, %364 : vector<32x128xf32>
    %366 = vector.extract_strided_slice %365 {offsets = [0, 0], sizes = [24, 128], strides = [1, 1]} : vector<32x128xf32> to vector<24x128xf32>
    %367 = vector.extract_strided_slice %365 {offsets = [8, 0], sizes = [24, 128], strides = [1, 1]} : vector<32x128xf32> to vector<24x128xf32>
    %368 = arith.maximumf %366, %367 : vector<24x128xf32>
    %c0_384 = arith.constant 0 : index
    %c0_385 = arith.constant 0 : index
    %369 = vector.load %arg15[%c0_384, %c0_385] : memref<240x128xf32, #tpu.memory_space<vmem>>, vector<24x128xf32>
    tpu.vector_store %arg15[%c0_384, %c0_385], %368 {strides = array<i32>} : memref<240x128xf32, #tpu.memory_space<vmem>>, vector<24x128xf32>,
    %c0_386 = arith.constant 0 : index
    %c0_387 = arith.constant 0 : index
    %370 = tpu.strided_load %arg15[%c0_386, %c0_387] {strides = array<i32: 2, 1>} : memref<240x128xf32, #tpu.memory_space<vmem>>, vector<2x128xf32>
    %c1_388 = arith.constant 1 : index
    %c0_389 = arith.constant 0 : index
    %371 = tpu.strided_load %arg15[%c1_388, %c0_389] {strides = array<i32: 2, 1>} : memref<240x128xf32, #tpu.memory_space<vmem>>, vector<2x128xf32>
    %372 = arith.maximumf %370, %371 : vector<2x128xf32>
    %c4_390 = arith.constant 4 : index
    %c0_391 = arith.constant 0 : index
    %373 = vector.load %arg16[%c4_390, %c0_391] : memref<8x128xf32, #tpu.memory_space<vmem>>, vector<2x128xf32>
    tpu.vector_store %arg16[%c4_390, %c0_391], %372 {strides = array<i32>} : memref<8x128xf32, #tpu.memory_space<vmem>>, vector<2x128xf32>,
    %c16_392 = arith.constant 16 : index
    %c0_393 = arith.constant 0 : index
    %374 = tpu.strided_load %arg15[%c16_392, %c0_393] {strides = array<i32: 2, 1>} : memref<240x128xf32, #tpu.memory_space<vmem>>, vector<2x128xf32>
    %c17_394 = arith.constant 17 : index
    %c0_395 = arith.constant 0 : index
    %375 = tpu.strided_load %arg15[%c17_394, %c0_395] {strides = array<i32: 2, 1>} : memref<240x128xf32, #tpu.memory_space<vmem>>, vector<2x128xf32>
    %376 = arith.maximumf %374, %375 : vector<2x128xf32>
    %c6_396 = arith.constant 6 : index
    %c0_397 = arith.constant 0 : index
    %377 = vector.load %arg16[%c6_396, %c0_397] : memref<8x128xf32, #tpu.memory_space<vmem>>, vector<2x128xf32>
    tpu.vector_store %arg16[%c6_396, %c0_397], %376 {strides = array<i32>} : memref<8x128xf32, #tpu.memory_space<vmem>>, vector<2x128xf32>,
    %c0_398 = arith.constant 0 : index
    %c0_399 = arith.constant 0 : index
    %378 = tpu.strided_load %arg16[%c0_398, %c0_399] {strides = array<i32: 4, 1>} : memref<8x128xf32, #tpu.memory_space<vmem>>, vector<2x128xf32>
    %379 = arith.truncf %378 : vector<2x128xf32> to vector<2x128xbf16>
    %c0_400 = arith.constant 0 : index
    %c0_401 = arith.constant 0 : index
    %380 = vector.load %arg8[%c0_400, %c0_401] : memref<512x256xbf16, #tpu.memory_space<vmem>>, vector<128x256xbf16>
    %cst_402 = arith.constant dense<0.000000e+00> : vector<2x256xf32>
    %381 = tpu.matmul %379, %380, %cst_402 {dimension_numbers = #tpu.dot_dimension_numbers<[1], [0], [0], [1], [0, 0, 1, 1], [], []>} : vector<2x128xbf16>, vector<128x256xbf16>, vector<2x256xf32> -> vector<2x256xf32>
    %c1_403 = arith.constant 1 : index
    %c0_404 = arith.constant 0 : index
    %382 = tpu.strided_load %arg16[%c1_403, %c0_404] {strides = array<i32: 4, 1>} : memref<8x128xf32, #tpu.memory_space<vmem>>, vector<2x128xf32>
    %383 = arith.truncf %382 : vector<2x128xf32> to vector<2x128xbf16>
    %c128_405 = arith.constant 128 : index
    %c0_406 = arith.constant 0 : index
    %384 = vector.load %arg8[%c128_405, %c0_406] : memref<512x256xbf16, #tpu.memory_space<vmem>>, vector<128x256xbf16>
    %cst_407 = arith.constant dense<0.000000e+00> : vector<2x256xf32>
    %385 = tpu.matmul %383, %384, %cst_407 {dimension_numbers = #tpu.dot_dimension_numbers<[1], [0], [0], [1], [0, 0, 1, 1], [], []>} : vector<2x128xbf16>, vector<128x256xbf16>, vector<2x256xf32> -> vector<2x256xf32>
    %386 = arith.addf %381, %385 : vector<2x256xf32>
    %c2_408 = arith.constant 2 : index
    %c0_409 = arith.constant 0 : index
    %387 = tpu.strided_load %arg16[%c2_408, %c0_409] {strides = array<i32: 4, 1>} : memref<8x128xf32, #tpu.memory_space<vmem>>, vector<2x128xf32>
    %388 = arith.truncf %387 : vector<2x128xf32> to vector<2x128xbf16>
    %c256 = arith.constant 256 : index
    %c0_410 = arith.constant 0 : index
    %389 = vector.load %arg8[%c256, %c0_410] : memref<512x256xbf16, #tpu.memory_space<vmem>>, vector<128x256xbf16>
    %cst_411 = arith.constant dense<0.000000e+00> : vector<2x256xf32>
    %390 = tpu.matmul %388, %389, %cst_411 {dimension_numbers = #tpu.dot_dimension_numbers<[1], [0], [0], [1], [0, 0, 1, 1], [], []>} : vector<2x128xbf16>, vector<128x256xbf16>, vector<2x256xf32> -> vector<2x256xf32>
    %391 = arith.addf %386, %390 : vector<2x256xf32>
    %c3_412 = arith.constant 3 : index
    %c0_413 = arith.constant 0 : index
    %392 = tpu.strided_load %arg16[%c3_412, %c0_413] {strides = array<i32: 4, 1>} : memref<8x128xf32, #tpu.memory_space<vmem>>, vector<2x128xf32>
    %393 = arith.truncf %392 : vector<2x128xf32> to vector<2x128xbf16>
    %c384 = arith.constant 384 : index
    %c0_414 = arith.constant 0 : index
    %394 = vector.load %arg8[%c384, %c0_414] : memref<512x256xbf16, #tpu.memory_space<vmem>>, vector<128x256xbf16>
    %cst_415 = arith.constant dense<0.000000e+00> : vector<2x256xf32>
    %395 = tpu.matmul %393, %394, %cst_415 {dimension_numbers = #tpu.dot_dimension_numbers<[1], [0], [0], [1], [0, 0, 1, 1], [], []>} : vector<2x128xbf16>, vector<128x256xbf16>, vector<2x256xf32> -> vector<2x256xf32>
    %396 = arith.addf %391, %395 : vector<2x256xf32>
    %c0_416 = arith.constant 0 : index
    %c0_417 = arith.constant 0 : index
    %397 = vector.load %arg9[%c0_416, %c0_417] : memref<1x256xf32, #tpu.memory_space<vmem>>, vector<1x256xf32>
    %398 = vector.broadcast %397 : vector<1x256xf32> to vector<2x256xf32>
    %399 = arith.addf %396, %398 : vector<2x256xf32>
    %cst_418 = arith.constant 0.000000e+00 : f32
    %400 = vector.broadcast %cst_418 : f32 to vector<2x256xf32>
    %401 = arith.maximumf %399, %400 : vector<2x256xf32>
    %402 = arith.truncf %401 : vector<2x256xf32> to vector<2x256xbf16>
    %c0_419 = arith.constant 0 : index
    %c0_420 = arith.constant 0 : index
    %403 = vector.load %arg10[%c0_419, %c0_420] : memref<256x128xbf16, #tpu.memory_space<vmem>>, vector<256x128xbf16>
    %cst_421 = arith.constant dense<0.000000e+00> : vector<2x128xf32>
    %404 = tpu.matmul %402, %403, %cst_421 {dimension_numbers = #tpu.dot_dimension_numbers<[1], [0], [0], [1], [0, 0, 1, 1], [], []>} : vector<2x256xbf16>, vector<256x128xbf16>, vector<2x128xf32> -> vector<2x128xf32>
    %c0_422 = arith.constant 0 : index
    %c0_423 = arith.constant 0 : index
    %405 = vector.load %arg11[%c0_422, %c0_423] : memref<1x128xf32, #tpu.memory_space<vmem>>, vector<1x128xf32>
    %406 = vector.broadcast %405 : vector<1x128xf32> to vector<2x128xf32>
    %407 = arith.addf %404, %406 : vector<2x128xf32>
    %c0_424 = arith.constant 0 : index
    %c0_425 = arith.constant 0 : index
    %408 = vector.load %arg12[%c0_424, %c0_425] : memref<2x128xf32, #tpu.memory_space<vmem>>, vector<2x128xf32>
    tpu.vector_store %arg12[%c0_424, %c0_425], %407 {strides = array<i32>} : memref<2x128xf32, #tpu.memory_space<vmem>>, vector<2x128xf32>,
    return
  }
  func.func @transform_0(%arg0: i32) -> (i32, i32, i32) {
    %c0_i32 = arith.constant 0 : i32
    %c0_i32_0 = arith.constant 0 : i32
    %c0_i32_1 = arith.constant 0 : i32
    return %arg0, %c0_i32, %c0_i32_0 : i32, i32, i32
  }
  func.func @transform_1(%arg0: i32) -> (i32, i32) {
    %c0_i32 = arith.constant 0 : i32
    %c0_i32_0 = arith.constant 0 : i32
    %c0_i32_1 = arith.constant 0 : i32
    return %c0_i32, %c0_i32_0 : i32, i32
  }
  func.func @transform_2(%arg0: i32) -> (i32, i32) {
    %c0_i32 = arith.constant 0 : i32
    %c0_i32_0 = arith.constant 0 : i32
    %c0_i32_1 = arith.constant 0 : i32
    return %c0_i32, %c0_i32_0 : i32, i32
  }
  func.func @transform_3(%arg0: i32) -> (i32, i32, i32) {
    %c0_i32 = arith.constant 0 : i32
    %c0_i32_0 = arith.constant 0 : i32
    %c0_i32_1 = arith.constant 0 : i32
    %c0_i32_2 = arith.constant 0 : i32
    return %c0_i32, %c0_i32_0, %c0_i32_1 : i32, i32, i32
  }
  func.func @transform_4(%arg0: i32) -> (i32, i32) {
    %c0_i32 = arith.constant 0 : i32
    %c0_i32_0 = arith.constant 0 : i32
    %c0_i32_1 = arith.constant 0 : i32
    return %c0_i32, %c0_i32_0 : i32, i32
  }
  func.func @transform_5(%arg0: i32) -> (i32, i32, i32) {
    %c0_i32 = arith.constant 0 : i32
    %c0_i32_0 = arith.constant 0 : i32
    %c0_i32_1 = arith.constant 0 : i32
    %c0_i32_2 = arith.constant 0 : i32
    return %c0_i32, %c0_i32_0, %c0_i32_1 : i32, i32, i32
  }
  func.func @transform_6(%arg0: i32) -> (i32, i32) {
    %c0_i32 = arith.constant 0 : i32
    %c0_i32_0 = arith.constant 0 : i32
    %c0_i32_1 = arith.constant 0 : i32
    return %c0_i32, %c0_i32_0 : i32, i32
  }
  func.func @transform_7(%arg0: i32) -> (i32, i32) {
    %c0_i32 = arith.constant 0 : i32
    %c0_i32_0 = arith.constant 0 : i32
    %c0_i32_1 = arith.constant 0 : i32
    return %c0_i32, %c0_i32_0 : i32, i32
  }
  func.func @transform_8(%arg0: i32) -> (i32, i32) {
    %c0_i32 = arith.constant 0 : i32
    %c0_i32_0 = arith.constant 0 : i32
    %c0_i32_1 = arith.constant 0 : i32
    return %c0_i32, %c0_i32_0 : i32, i32
  }
  func.func @transform_9(%arg0: i32) -> (i32, i32) {
    %c0_i32 = arith.constant 0 : i32
    %c0_i32_0 = arith.constant 0 : i32
    %c0_i32_1 = arith.constant 0 : i32
    return %c0_i32, %c0_i32_0 : i32, i32
  }
  func.func @transform_10(%arg0: i32) -> (i32, i32) {
    %c0_i32 = arith.constant 0 : i32
    %c0_i32_0 = arith.constant 0 : i32
    %c0_i32_1 = arith.constant 0 : i32
    return %c0_i32, %c0_i32_0 : i32, i32
  }
  func.func @transform_11(%arg0: i32) -> (i32, i32) {
    %c0_i32 = arith.constant 0 : i32
    %c0_i32_0 = arith.constant 0 : i32
    return %arg0, %c0_i32 : i32, i32
  }
}

</mosaic_0001>

<llo_original>
// kernel: _lambda_.1
$region0: #{_lambda_.1}
  #allocation0 [shape = 'u32[]', space=smem, size = 0x4, offset = 0x4, fixed_abs, tag = 'smem constant byte address 0x4 - core index']
  #allocation1 [shape = 'u32[144,128]{1,0:T(1,128)}', space=vmem, size = 0x12000, scoped, tag = 'internal scratch']
  #allocation2 [shape = 'bf16[176,128]{1,0:T(8,128)(2,1)}', space=vmem, size = 0xb000, scoped, tag = 'scratch operand']
  #allocation3 [shape = 'bf16[56,128]{1,0:T(8,128)(2,1)}', space=vmem, size = 0x3800, scoped, tag = 'scratch operand']
  #allocation4 [shape = 'f32[240,128]{1,0:T(8,128)}', space=vmem, size = 0x1e000, scoped, tag = 'scratch operand']
  #allocation5 [shape = 'f32[8,128]{1,0:T(8,128)}', space=vmem, size = 0x1000, scoped, tag = 'scratch operand']
  %s0 = inlined_call_operand.vmem [shape: bf16[2,256,32], index: 0, kind: input, shape index: {}]
  %s1 = inlined_call_operand.vmem [shape: bf16[32,128], index: 1, kind: input, shape index: {}]
  %s2 = inlined_call_operand.vmem [shape: f32[1,128], index: 2, kind: input, shape index: {}]
  %s3 = inlined_call_operand.vmem [shape: bf16[9,128,128], index: 3, kind: input, shape index: {}]
  %s4 = inlined_call_operand.vmem [shape: f32[1,128], index: 4, kind: input, shape index: {}]
  %s5 = inlined_call_operand.vmem [shape: bf16[9,128,128], index: 5, kind: input, shape index: {}]
  %s6 = inlined_call_operand.vmem [shape: f32[1,128], index: 6, kind: input, shape index: {}]
  %s7 = inlined_call_operand.vmem [shape: bf16[512,256], index: 7, kind: input, shape index: {}]
  %s8 = inlined_call_operand.vmem [shape: f32[1,256], index: 8, kind: input, shape index: {}]
  %s9 = inlined_call_operand.vmem [shape: bf16[256,128], index: 9, kind: input, shape index: {}]
  %s10 = inlined_call_operand.vmem [shape: f32[1,128], index: 10, kind: input, shape index: {}]
  %s11 = inlined_call_operand.hbm [shape: f32[2,128], index: 11, kind: output, shape index: {}]
  %s12 = sld [smem:[#allocation0]]
  $region54: #{_lambda_.1} parent=0
    _
  %s14 = ssub.s32 1, %s12
  %s15 = scalar_select 0, %s14, %s12
  $region1: #{_lambda_.1} parent=0
    #allocation6 [shape = 'u8[1024]{0}', space=vmem, size = 0x400, scoped, tag = 'output window, operand 0, single buffered']
    #allocation7 [shape = 's32[1]{0}', space=sflag, size = 0x4, scoped, tag = 'scoped memory for _lambda_.1']
    %16 = vsyncpa [#allocation7], 0
    // Predicated region
    $region2: #{_lambda_.1} parent=1 // pred_check
      _
    $region3: #{_lambda_.1} parent=1 // pred_check_branch
      %18 = sbr.rel (0) target = $region5
    $region4: #{_lambda_.1} parent=1 // pred_region
      _
    $region5: #{_lambda_.1} parent=1 // pred_fallthru
      _
    // Predicated region
    $region6: #{_lambda_.1} parent=1 // pred_check
      _
    $region7: #{_lambda_.1} parent=1 // pred_check_branch
      %20 = sbr.rel (0) target = $region9
    $region8: #{_lambda_.1} parent=1 // pred_region
      _
    $region9: #{_lambda_.1} parent=1 // pred_fallthru
      _
    // Predicated region
    $region10: #{_lambda_.1} parent=1 // pred_check
      _
    $region11: #{_lambda_.1} parent=1 // pred_check_branch
      %22 = sbr.rel (0) target = $region13
    $region12: #{_lambda_.1} parent=1 // pred_region
      _
    $region13: #{_lambda_.1} parent=1 // pred_fallthru
      _
    // Predicated region
    $region14: #{_lambda_.1} parent=1 // pred_check
      _
    $region15: #{_lambda_.1} parent=1 // pred_check_branch
      %24 = sbr.rel (0) target = $region17
    $region16: #{_lambda_.1} parent=1 // pred_region
      _
    $region17: #{_lambda_.1} parent=1 // pred_fallthru
      _
    // Predicated region
    $region18: #{_lambda_.1} parent=1 // pred_check
      _
    $region19: #{_lambda_.1} parent=1 // pred_check_branch
      %26 = sbr.rel (0) target = $region21
    $region20: #{_lambda_.1} parent=1 // pred_region
      _
    $region21: #{_lambda_.1} parent=1 // pred_fallthru
      _
    // Predicated region
    $region22: #{_lambda_.1} parent=1 // pred_check
      _
    $region23: #{_lambda_.1} parent=1 // pred_check_branch
      %28 = sbr.rel (0) target = $region25
    $region24: #{_lambda_.1} parent=1 // pred_region
      _
    $region25: #{_lambda_.1} parent=1 // pred_fallthru
      _
    // Predicated region
    $region26: #{_lambda_.1} parent=1 // pred_check
      _
    $region27: #{_lambda_.1} parent=1 // pred_check_branch
      %30 = sbr.rel (0) target = $region29
    $region28: #{_lambda_.1} parent=1 // pred_region
      _
    $region29: #{_lambda_.1} parent=1 // pred_fallthru
      _
    // Predicated region
    $region30: #{_lambda_.1} parent=1 // pred_check
      _
    $region31: #{_lambda_.1} parent=1 // pred_check_branch
      %32 = sbr.rel (0) target = $region33
    $region32: #{_lambda_.1} parent=1 // pred_region
      _
    $region33: #{_lambda_.1} parent=1 // pred_fallthru
      _
    // Predicated region
    $region34: #{_lambda_.1} parent=1 // pred_check
      _
    $region35: #{_lambda_.1} parent=1 // pred_check_branch
      %34 = sbr.rel (0) target = $region37
    $region36: #{_lambda_.1} parent=1 // pred_region
      _
    $region37: #{_lambda_.1} parent=1 // pred_fallthru
      _
    // Predicated region
    $region38: #{_lambda_.1} parent=1 // pred_check
      _
    $region39: #{_lambda_.1} parent=1 // pred_check_branch
      %36 = sbr.rel (0) target = $region41
    $region40: #{_lambda_.1} parent=1 // pred_region
      _
    $region41: #{_lambda_.1} parent=1 // pred_fallthru
      _
    // Predicated region
    $region42: #{_lambda_.1} parent=1 // pred_check
      _
    $region43: #{_lambda_.1} parent=1 // pred_check_branch
      %38 = sbr.rel (0) target = $region45
    $region44: #{_lambda_.1} parent=1 // pred_region
      _
    $region45: #{_lambda_.1} parent=1 // pred_fallthru
      _
    %40 = vst [vmem:[#allocation2] sm:$0xf] 0
    %41 = vst [vmem:[#allocation2 + $0x4] sm:$0xf] 0
    %42 = vst [vmem:[#allocation2 + $0x8] sm:$0xf] 0
    %43 = vst [vmem:[#allocation2 + $0xc] sm:$0xf] 0
    %44 = vst [vmem:[#allocation2 + $0x10] sm:$0xf] 0
    %45 = vst [vmem:[#allocation2 + $0x14] sm:$0xf] 0
    %46 = vst [vmem:[#allocation2 + $0x18] sm:$0xf] 0
    %47 = vst [vmem:[#allocation2 + $0x1c] sm:$0xf] 0
    %48 = vst [vmem:[#allocation2 + $0x20] sm:$0xf] 0
    %49 = vst [vmem:[#allocation2 + $0x24] sm:$0xf] 0
    %50 = vst [vmem:[#allocation2 + $0x28] sm:$0xf] 0
    %51 = vst [vmem:[#allocation2 + $0x2c] sm:$0xf] 0
    %52 = vst [vmem:[#allocation2 + $0x30] sm:$0xf] 0
    %53 = vst [vmem:[#allocation2 + $0x34] sm:$0xf] 0
    %54 = vst [vmem:[#allocation2 + $0x38] sm:$0xf] 0
    %55 = vst [vmem:[#allocation2 + $0x3c] sm:$0xf] 0
    %56 = vst [vmem:[#allocation2 + $0x40] sm:$0xf] 0
    %57 = vst [vmem:[#allocation2 + $0x44] sm:$0xf] 0
    %58 = vst [vmem:[#allocation2 + $0x48] sm:$0xf] 0
    %59 = vst [vmem:[#allocation2 + $0x4c] sm:$0xf] 0
    %60 = vst [vmem:[#allocation2 + $0x50] sm:$0xf] 0
    %61 = vst [vmem:[#allocation2 + $0x54] sm:$0xf] 0
    %62 = vst [vmem:[#allocation3] sm:$0xf] 0
    %63 = vst [vmem:[#allocation3 + $0x4] sm:$0xf] 0
    %64 = vst [vmem:[#allocation3 + $0x8] sm:$0xf] 0
    %65 = vst [vmem:[#allocation3 + $0xc] sm:$0xf] 0
    %66 = vst [vmem:[#allocation3 + $0x10] sm:$0xf] 0
    %67 = vst [vmem:[#allocation3 + $0x14] sm:$0xf] 0
    %68 = vst [vmem:[#allocation3 + $0x18] sm:$0xf] 0
    %v69 = vld [vmem:[%s0] sm:$0xf]
    %v70 = vld [vmem:[%s0 + $0x4] sm:$0xf]
    %v71 = vld [vmem:[%s0 + $0x8] sm:$0xf]
    %v72 = vld [vmem:[%s0 + $0xc] sm:$0xf]
    %v73 = vld [vmem:[%s0 + $0x10] sm:$0xf]
    %v74 = vld [vmem:[%s0 + $0x14] sm:$0xf]
    %v75 = vld [vmem:[%s0 + $0x18] sm:$0xf]
    %v76 = vld [vmem:[%s0 + $0x1c] sm:$0xf]
    %v77 = vld [vmem:[%s0 + $0x20] sm:$0xf]
    %v78 = vld [vmem:[%s0 + $0x24] sm:$0xf]
    %v79 = vld [vmem:[%s0 + $0x28] sm:$0xf]
    %v80 = vld [vmem:[%s0 + $0x2c] sm:$0xf]
    %v81 = vld [vmem:[%s0 + $0x30] sm:$0xf]
    %v82 = vld [vmem:[%s0 + $0x34] sm:$0xf]
    %v83 = vld [vmem:[%s0 + $0x38] sm:$0xf]
    %v84 = vld [vmem:[%s0 + $0x3c] sm:$0xf]
    %v85 = vld [vmem:[%s0 + $0x40] sm:$0xf]
    %v86 = vld [vmem:[%s0 + $0x44] sm:$0xf]
    %v87 = vld [vmem:[%s0 + $0x48] sm:$0xf]
    %v88 = vld [vmem:[%s0 + $0x4c] sm:$0xf]
    %v89 = vld [vmem:[%s0 + $0x50] sm:$0xf]
    %v90 = vld [vmem:[%s0 + $0x54] sm:$0xf]
    %v91 = vld [vmem:[%s0 + $0x58] sm:$0xf]
    %v92 = vld [vmem:[%s0 + $0x5c] sm:$0xf]
    %v93 = vld [vmem:[%s0 + $0x60] sm:$0xf]
    %v94 = vld [vmem:[%s0 + $0x64] sm:$0xf]
    %v95 = vld [vmem:[%s0 + $0x68] sm:$0xf]
    %v96 = vld [vmem:[%s0 + $0x6c] sm:$0xf]
    %v97 = vld [vmem:[%s0 + $0x70] sm:$0xf]
    %v98 = vld [vmem:[%s0 + $0x74] sm:$0xf]
    %v99 = vld [vmem:[%s0 + $0x78] sm:$0xf]
    %v100 = vld [vmem:[%s0 + $0x7c] sm:$0xf]
    %v101 = vld [vmem:[%s1] sm:$0xf]
    %v102 = vld [vmem:[%s1 + $0x4] sm:$0xf]
    %v103 = vld [vmem:[%s1 + $0x8] sm:$0xf]
    %v104 = vld [vmem:[%s1 + $0xc] sm:$0xf]
    %v105 = vld [vmem:[%s2] sm:$0x1]
    %v107 = vlaneseq
    %v108 = vshrl.u32 %v107, 7
    %v109 = vsub.s32 0, %v108
    %v110 = vrot.slane %v105, %v109
    %v144 = vunpack.c.l.b16 %v69
    %v145 = vunpack.c.l.b16 %v70
    %v146 = vunpack.c.l.b16 %v71
    %v147 = vunpack.c.l.b16 %v72
    %v148 = vunpack.c.l.b16 %v73
    %v149 = vunpack.c.l.b16 %v74
    %v150 = vunpack.c.l.b16 %v75
    %v151 = vunpack.c.l.b16 %v76
    %v152 = vunpack.c.l.b16 %v77
    %v153 = vunpack.c.l.b16 %v78
    %v154 = vunpack.c.l.b16 %v79
    %v155 = vunpack.c.l.b16 %v80
    %v156 = vunpack.c.l.b16 %v81
    %v157 = vunpack.c.l.b16 %v82
    %v158 = vunpack.c.l.b16 %v83
    %v159 = vunpack.c.l.b16 %v84
    %v160 = vunpack.c.l.b16 %v85
    %v161 = vunpack.c.l.b16 %v86
    %v162 = vunpack.c.l.b16 %v87
    %v163 = vunpack.c.l.b16 %v88
    %v164 = vunpack.c.l.b16 %v89
    %v165 = vunpack.c.l.b16 %v90
    %v166 = vunpack.c.l.b16 %v91
    %v167 = vunpack.c.l.b16 %v92
    %v168 = vunpack.c.l.b16 %v93
    %v169 = vunpack.c.l.b16 %v94
    %v170 = vunpack.c.l.b16 %v95
    %v171 = vunpack.c.l.b16 %v96
    %v172 = vunpack.c.l.b16 %v97
    %v173 = vunpack.c.l.b16 %v98
    %v174 = vunpack.c.l.b16 %v99
    %v175 = vunpack.c.l.b16 %v100
    %v176 = vpack.c.b16 %v145, %v144
    %v177 = vpack.c.b16 %v147, %v146
    %v178 = vpack.c.b16 %v149, %v148
    %v179 = vpack.c.b16 %v151, %v150
    %v180 = vpack.c.b16 %v153, %v152
    %v181 = vpack.c.b16 %v155, %v154
    %v182 = vpack.c.b16 %v157, %v156
    %v183 = vpack.c.b16 %v159, %v158
    %v184 = vpack.c.b16 %v161, %v160
    %v185 = vpack.c.b16 %v163, %v162
    %v186 = vpack.c.b16 %v165, %v164
    %v187 = vpack.c.b16 %v167, %v166
    %v188 = vpack.c.b16 %v169, %v168
    %v189 = vpack.c.b16 %v171, %v170
    %v190 = vpack.c.b16 %v173, %v172
    %v191 = vpack.c.b16 %v175, %v174
    %v196 = vunpack.c.l.b16 %v101
    %v197 = vunpack.c.l.b16 %v102
    %v198 = vunpack.c.l.b16 %v103
    %v199 = vunpack.c.l.b16 %v104
    %v200 = vpack.c.b16 %v197, %v196
    %v201 = vpack.c.b16 %v199, %v198
    %vm204 = vcmask 261120
    %v206 = vsel %vm204, %v176, 0
    %v209 = vsel %vm204, %v177, 0
    %v212 = vsel %vm204, %v178, 0
    %v215 = vsel %vm204, %v179, 0
    %v218 = vsel %vm204, %v180, 0
    %v221 = vsel %vm204, %v181, 0
    %v224 = vsel %vm204, %v182, 0
    %v227 = vsel %vm204, %v183, 0
    %v230 = vsel %vm204, %v184, 0
    %v233 = vsel %vm204, %v185, 0
    %v236 = vsel %vm204, %v186, 0
    %v239 = vsel %vm204, %v187, 0
    %v242 = vsel %vm204, %v188, 0
    %v245 = vsel %vm204, %v189, 0
    %v248 = vsel %vm204, %v190, 0
    %v251 = vsel %vm204, %v191, 0
    %253 = vmatprep.subr.bf16.mxu0 0
    %254 = vmatpush1.bf16.msra.mxu0 0
    %255 = vmatprep.subr.bf16.mxu0 0
    %256 = vmatpush1.bf16.msra.mxu0 0
    %257 = vmatprep.subr.bf16.mxu0 0
    %258 = vmatpush1.bf16.msra.mxu0 0
    %259 = vmatprep.subr.bf16.mxu0 0
    %260 = vmatpush1.bf16.msra.mxu0 0
    %261 = vmatprep.subr.bf16.mxu0 0
    %262 = vmatpush1.bf16.msra.mxu0 0
    %263 = vmatprep.subr.bf16.mxu0 0
    %264 = vmatpush1.bf16.msra.mxu0 0
    %265 = vmatprep.subr.bf16.mxu0 0
    %266 = vmatpush1.bf16.msra.mxu0 %v201
    %267 = vmatprep.subr.bf16.mxu0 0
    %268 = vmatpush1.bf16.msra.mxu0 %v200
    %269 = vmatprep.subr.bf16.mxu0 0
    %270 = vmatpush2.bf16.msra.mxu0 0
    %271 = vmatprep.subr.bf16.mxu0 0
    %272 = vmatpush2.bf16.msra.mxu0 0
    %273 = vmatprep.subr.bf16.mxu0 0
    %274 = vmatpush2.bf16.msra.mxu0 0
    %275 = vmatprep.subr.bf16.mxu0 0
    %276 = vmatpush2.bf16.msra.mxu0 0
    %277 = vmatprep.subr.bf16.mxu0 0
    %278 = vmatpush2.bf16.msra.mxu0 0
    %279 = vmatprep.subr.bf16.mxu0 0
    %280 = vmatpush2.bf16.msra.mxu0 0
    %281 = vmatprep.subr.bf16.mxu0 0
    %282 = vmatpush2.bf16.msra.mxu0 0
    %283 = vmatprep.subr.bf16.mxu0 0
    %284 = vmatpush2.bf16.msra.mxu0 0
    %285 = vmatprep.mubr.bf16.mxu0 0
    %286 = vmatmul.mubr.bf16.gmra.mxu0 %v206
    %v287 = vpop.f32.mrf.mxu0
    %v288 = vadd.f32 %v110, %v287
    %v289 = vpop.f32.mrf.mxu0
    %v290 = vpop.f32.mrf.mxu0
    %v291 = vadd.f32 %v110, %v290
    %v292 = vpop.f32.mrf.mxu0
    %293 = vmatprep.mubr.bf16.mxu0 0
    %294 = vmatmul.mubr.bf16.gmra.mxu0 %v209
    %v295 = vpop.f32.mrf.mxu0
    %v296 = vadd.f32 %v110, %v295
    %v297 = vpop.f32.mrf.mxu0
    %v298 = vpop.f32.mrf.mxu0
    %v299 = vadd.f32 %v110, %v298
    %v300 = vpop.f32.mrf.mxu0
    %301 = vmatprep.mubr.bf16.mxu0 0
    %302 = vmatmul.mubr.bf16.gmra.mxu0 %v212
    %v303 = vpop.f32.mrf.mxu0
    %v304 = vadd.f32 %v110, %v303
    %v305 = vpop.f32.mrf.mxu0
    %v306 = vpop.f32.mrf.mxu0
    %v307 = vadd.f32 %v110, %v306
    %v308 = vpop.f32.mrf.mxu0
    %309 = vmatprep.mubr.bf16.mxu0 0
    %310 = vmatmul.mubr.bf16.gmra.mxu0 %v215
    %v311 = vpop.f32.mrf.mxu0
    %v312 = vadd.f32 %v110, %v311
    %v313 = vpop.f32.mrf.mxu0
    %v314 = vpop.f32.mrf.mxu0
    %v315 = vadd.f32 %v110, %v314
    %v316 = vpop.f32.mrf.mxu0
    %317 = vmatprep.mubr.bf16.mxu0 0
    %318 = vmatmul.mubr.bf16.gmra.mxu0 %v218
    %v319 = vpop.f32.mrf.mxu0
    %v320 = vadd.f32 %v110, %v319
    %v321 = vpop.f32.mrf.mxu0
    %v322 = vpop.f32.mrf.mxu0
    %v323 = vadd.f32 %v110, %v322
    %v324 = vpop.f32.mrf.mxu0
    %325 = vmatprep.mubr.bf16.mxu0 0
    %326 = vmatmul.mubr.bf16.gmra.mxu0 %v221
    %v327 = vpop.f32.mrf.mxu0
    %v328 = vadd.f32 %v110, %v327
    %v329 = vpop.f32.mrf.mxu0
    %v330 = vpop.f32.mrf.mxu0
    %v331 = vadd.f32 %v110, %v330
    %v332 = vpop.f32.mrf.mxu0
    %333 = vmatprep.mubr.bf16.mxu0 0
    %334 = vmatmul.mubr.bf16.gmra.mxu0 %v224
    %v335 = vpop.f32.mrf.mxu0
    %v336 = vadd.f32 %v110, %v335
    %v337 = vpop.f32.mrf.mxu0
    %v338 = vpop.f32.mrf.mxu0
    %v339 = vadd.f32 %v110, %v338
    %v340 = vpop.f32.mrf.mxu0
    %341 = vmatprep.mubr.bf16.mxu0 0
    %342 = vmatmul.mubr.bf16.gmra.mxu0 %v227
    %v343 = vpop.f32.mrf.mxu0
    %v344 = vadd.f32 %v110, %v343
    %v345 = vpop.f32.mrf.mxu0
    %v346 = vpop.f32.mrf.mxu0
    %v347 = vadd.f32 %v110, %v346
    %v348 = vpop.f32.mrf.mxu0
    %349 = vmatprep.mubr.bf16.mxu0 0
    %350 = vmatmul.mubr.bf16.gmra.mxu0 %v230
    %v351 = vpop.f32.mrf.mxu0
    %v352 = vadd.f32 %v110, %v351
    %v353 = vpop.f32.mrf.mxu0
    %v354 = vpop.f32.mrf.mxu0
    %v355 = vadd.f32 %v110, %v354
    %v356 = vpop.f32.mrf.mxu0
    %357 = vmatprep.mubr.bf16.mxu0 0
    %358 = vmatmul.mubr.bf16.gmra.mxu0 %v233
    %v359 = vpop.f32.mrf.mxu0
    %v360 = vadd.f32 %v110, %v359
    %v361 = vpop.f32.mrf.mxu0
    %v362 = vpop.f32.mrf.mxu0
    %v363 = vadd.f32 %v110, %v362
    %v364 = vpop.f32.mrf.mxu0
    %365 = vmatprep.mubr.bf16.mxu0 0
    %366 = vmatmul.mubr.bf16.gmra.mxu0 %v236
    %v367 = vpop.f32.mrf.mxu0
    %v368 = vadd.f32 %v110, %v367
    %v369 = vpop.f32.mrf.mxu0
    %v370 = vpop.f32.mrf.mxu0
    %v371 = vadd.f32 %v110, %v370
    %v372 = vpop.f32.mrf.mxu0
    %373 = vmatprep.mubr.bf16.mxu0 0
    %374 = vmatmul.mubr.bf16.gmra.mxu0 %v239
    %v375 = vpop.f32.mrf.mxu0
    %v376 = vadd.f32 %v110, %v375
    %v377 = vpop.f32.mrf.mxu0
    %v378 = vpop.f32.mrf.mxu0
    %v379 = vadd.f32 %v110, %v378
    %v380 = vpop.f32.mrf.mxu0
    %381 = vmatprep.mubr.bf16.mxu0 0
    %382 = vmatmul.mubr.bf16.gmra.mxu0 %v242
    %v383 = vpop.f32.mrf.mxu0
    %v384 = vadd.f32 %v110, %v383
    %v385 = vpop.f32.mrf.mxu0
    %v386 = vpop.f32.mrf.mxu0
    %v387 = vadd.f32 %v110, %v386
    %v388 = vpop.f32.mrf.mxu0
    %389 = vmatprep.mubr.bf16.mxu0 0
    %390 = vmatmul.mubr.bf16.gmra.mxu0 %v245
    %v391 = vpop.f32.mrf.mxu0
    %v392 = vadd.f32 %v110, %v391
    %v393 = vpop.f32.mrf.mxu0
    %v394 = vpop.f32.mrf.mxu0
    %v395 = vadd.f32 %v110, %v394
    %v396 = vpop.f32.mrf.mxu0
    %397 = vmatprep.mubr.bf16.mxu0 0
    %398 = vmatmul.mubr.bf16.gmra.mxu0 %v248
    %v399 = vpop.f32.mrf.mxu0
    %v400 = vadd.f32 %v110, %v399
    %v401 = vpop.f32.mrf.mxu0
    %v402 = vpop.f32.mrf.mxu0
    %v403 = vadd.f32 %v110, %v402
    %v404 = vpop.f32.mrf.mxu0
    %405 = vmatprep.mubr.bf16.mxu0 0
    %406 = vmatmul.mubr.bf16.gmra.mxu0 %v251
    %v407 = vpop.f32.mrf.mxu0
    %v408 = vadd.f32 %v110, %v407
    %v409 = vpop.f32.mrf.mxu0
    %v410 = vpop.f32.mrf.mxu0
    %v411 = vadd.f32 %v110, %v410
    %v412 = vpop.f32.mrf.mxu0
    %413 = vdwg.mxu0
    %v414 = vmax.f32 %v288, 0.0
    %v415 = vmax.f32 %v291, 0.0
    %v416 = vmax.f32 %v296, 0.0
    %v417 = vmax.f32 %v299, 0.0
    %v418 = vmax.f32 %v304, 0.0
    %v419 = vmax.f32 %v307, 0.0
    %v420 = vmax.f32 %v312, 0.0
    %v421 = vmax.f32 %v315, 0.0
    %v422 = vmax.f32 %v320, 0.0
    %v423 = vmax.f32 %v323, 0.0
    %v424 = vmax.f32 %v328, 0.0
    %v425 = vmax.f32 %v331, 0.0
    %v426 = vmax.f32 %v336, 0.0
    %v427 = vmax.f32 %v339, 0.0
    %v428 = vmax.f32 %v344, 0.0
    %v429 = vmax.f32 %v347, 0.0
    %v430 = vmax.f32 %v352, 0.0
    %v431 = vmax.f32 %v355, 0.0
    %v432 = vmax.f32 %v360, 0.0
    %v433 = vmax.f32 %v363, 0.0
    %v434 = vmax.f32 %v368, 0.0
    %v435 = vmax.f32 %v371, 0.0
    %v436 = vmax.f32 %v376, 0.0
    %v437 = vmax.f32 %v379, 0.0
    %v438 = vmax.f32 %v384, 0.0
    %v439 = vmax.f32 %v387, 0.0
    %v440 = vmax.f32 %v392, 0.0
    %v441 = vmax.f32 %v395, 0.0
    %v442 = vmax.f32 %v400, 0.0
    %v443 = vmax.f32 %v403, 0.0
    %v444 = vmax.f32 %v408, 0.0
    %v445 = vmax.f32 %v411, 0.0
    %v446 = vmax.f32 %v414, %v416
    %v447 = vmax.f32 %v415, %v417
    %v448 = vmax.f32 %v416, %v418
    %v449 = vmax.f32 %v417, %v419
    %v450 = vmax.f32 %v418, %v420
    %v451 = vmax.f32 %v419, %v421
    %v452 = vmax.f32 %v420, %v422
    %v453 = vmax.f32 %v421, %v423
    %v454 = vmax.f32 %v422, %v424
    %v455 = vmax.f32 %v423, %v425
    %v456 = vmax.f32 %v424, %v426
    %v457 = vmax.f32 %v425, %v427
    %v458 = vmax.f32 %v426, %v428
    %v459 = vmax.f32 %v427, %v429
    %v460 = vmax.f32 %v428, %v430
    %v461 = vmax.f32 %v429, %v431
    %v462 = vmax.f32 %v430, %v432
    %v463 = vmax.f32 %v431, %v433
    %v464 = vmax.f32 %v432, %v434
    %v465 = vmax.f32 %v433, %v435
    %v466 = vmax.f32 %v434, %v436
    %v467 = vmax.f32 %v435, %v437
    %v468 = vmax.f32 %v436, %v438
    %v469 = vmax.f32 %v437, %v439
    %v470 = vmax.f32 %v438, %v440
    %v471 = vmax.f32 %v439, %v441
    %v472 = vmax.f32 %v440, %v442
    %v473 = vmax.f32 %v441, %v443
    %v474 = vmax.f32 %v442, %v444
    %v475 = vmax.f32 %v443, %v445
    %476 = vst [vmem:[#allocation4] sm:$0xff] %v446
    %477 = vst [vmem:[#allocation4 + $0x8] sm:$0xff] %v447
    %478 = vst [vmem:[#allocation4 + $0x10] sm:$0xff] %v448
    %479 = vst [vmem:[#allocation4 + $0x18] sm:$0xff] %v449
    %480 = vst [vmem:[#allocation4 + $0x20] sm:$0xff] %v450
    %481 = vst [vmem:[#allocation4 + $0x28] sm:$0xff] %v451
    %482 = vst [vmem:[#allocation4 + $0x30] sm:$0xff] %v452
    %483 = vst [vmem:[#allocation4 + $0x38] sm:$0xff] %v453
    %484 = vst [vmem:[#allocation4 + $0x40] sm:$0xff] %v454
    %485 = vst [vmem:[#allocation4 + $0x48] sm:$0xff] %v455
    %486 = vst [vmem:[#allocation4 + $0x50] sm:$0xff] %v456
    %487 = vst [vmem:[#allocation4 + $0x58] sm:$0xff] %v457
    %488 = vst [vmem:[#allocation4 + $0x60] sm:$0xff] %v458
    %489 = vst [vmem:[#allocation4 + $0x68] sm:$0xff] %v459
    %490 = vst [vmem:[#allocation4 + $0x70] sm:$0xff] %v460
    %491 = vst [vmem:[#allocation4 + $0x78] sm:$0xff] %v461
    %492 = vst [vmem:[#allocation4 + $0x80] sm:$0xff] %v462
    %493 = vst [vmem:[#allocation4 + $0x88] sm:$0xff] %v463
    %494 = vst [vmem:[#allocation4 + $0x90] sm:$0xff] %v464
    %495 = vst [vmem:[#allocation4 + $0x98] sm:$0xff] %v465
    %496 = vst [vmem:[#allocation4 + $0xa0] sm:$0xff] %v466
    %497 = vst [vmem:[#allocation4 + $0xa8] sm:$0xff] %v467
    %498 = vst [vmem:[#allocation4 + $0xb0] sm:$0xff] %v468
    %499 = vst [vmem:[#allocation4 + $0xb8] sm:$0xff] %v469
    %500 = vst [vmem:[#allocation4 + $0xc0] sm:$0xff] %v470
    %501 = vst [vmem:[#allocation4 + $0xc8] sm:$0xff] %v471
    %502 = vst [vmem:[#allocation4 + $0xd0] sm:$0xff] %v472
    %503 = vst [vmem:[#allocation4 + $0xd8] sm:$0xff] %v473
    %504 = vst [vmem:[#allocation4 + $0xe0] sm:$0xff] %v474
    %505 = vst [vmem:[#allocation4 + $0xe8] sm:$0xff] %v475
    %v506 = vld [vmem:[#allocation4] ss:$2 sm:$0xff]
    %s507 = scalar_lea.vmem [#allocation4], 1
    %v508 = vld [vmem:[%s507] ss:$2 sm:$0xff]
    %v509 = vmax.f32 %v506, %v508
    %v510 = vpack.c.bf16 %v509, %v509
    %v512 = vunpack.c.l.b16 %v510
    %v513 = vpack.c.b16 %v512, %v512
    %v515 = vshrl.u32 %v513, 16
    %v517 = vrot.slane %v515, 7
    %v518 = vshll.u32 %v513, 16
    %v520 = vor.u32 %v517, %v518
    %v521 = vrot.slane %v517, 4
    %vm524 = vcmask 1043456
    %vm525 = vsmask.f32 7938
    %vm526 = vmand %vm524, %vm525
    %v527 = vld [vmem:[#allocation2 + $0x8] sm:$0xf]
    %v528 = vsel %vm526, %v520, %v527
    %529 = vst [vmem:[#allocation2 + $0x8] sm:$0xf] %v528
    %vm530 = vcmask 1040384
    %vm531 = vsmask.f32 256
    %vm532 = vmand %vm530, %vm531
    %v533 = vld [vmem:[#allocation2 + $0xc] sm:$0x1]
    %v534 = vsel %vm532, %v521, %v533
    %535 = vst [vmem:[#allocation2 + $0xc] sm:$0x1] %v534
    %s536 = scalar_lea.vmem [#allocation4], 32
    %v537 = vld [vmem:[%s536] ss:$2 sm:$0xff]
    %s538 = scalar_lea.vmem [#allocation4], 33
    %v539 = vld [vmem:[%s538] ss:$2 sm:$0xff]
    %v540 = vmax.f32 %v537, %v539
    %v541 = vpack.c.bf16 %v540, %v540
    %v543 = vunpack.c.l.b16 %v541
    %v544 = vpack.c.b16 %v543, %v543
    %v546 = vshrl.u32 %v544, 16
    %v548 = vrot.slane %v546, 7
    %v549 = vshll.u32 %v544, 16
    %v551 = vor.u32 %v548, %v549
    %v552 = vrot.slane %v548, 4
    %v555 = vld [vmem:[#allocation2 + $0x10] sm:$0xf]
    %v556 = vsel %vm526, %v551, %v555
    %557 = vst [vmem:[#allocation2 + $0x10] sm:$0xf] %v556
    %v558 = vld [vmem:[#allocation2 + $0x14] sm:$0x1]
    %v559 = vsel %vm532, %v552, %v558
    %560 = vst [vmem:[#allocation2 + $0x14] sm:$0x1] %v559
    %s561 = scalar_lea.vmem [#allocation4], 64
    %v562 = vld [vmem:[%s561] ss:$2 sm:$0xff]
    %s563 = scalar_lea.vmem [#allocation4], 65
    %v564 = vld [vmem:[%s563] ss:$2 sm:$0xff]
    %v565 = vmax.f32 %v562, %v564
    %v566 = vpack.c.bf16 %v565, %v565
    %v568 = vunpack.c.l.b16 %v566
    %v569 = vpack.c.b16 %v568, %v568
    %v571 = vshrl.u32 %v569, 16
    %v573 = vrot.slane %v571, 7
    %v574 = vshll.u32 %v569, 16
    %v576 = vor.u32 %v573, %v574
    %v577 = vrot.slane %v573, 4
    %v580 = vld [vmem:[#allocation2 + $0x18] sm:$0xf]
    %v581 = vsel %vm526, %v576, %v580
    %582 = vst [vmem:[#allocation2 + $0x18] sm:$0xf] %v581
    %v583 = vld [vmem:[#allocation2 + $0x1c] sm:$0x1]
    %v584 = vsel %vm532, %v577, %v583
    %585 = vst [vmem:[#allocation2 + $0x1c] sm:$0x1] %v584
    %s586 = scalar_lea.vmem [#allocation4], 96
    %v587 = vld [vmem:[%s586] ss:$2 sm:$0xff]
    %s588 = scalar_lea.vmem [#allocation4], 97
    %v589 = vld [vmem:[%s588] ss:$2 sm:$0xff]
    %v590 = vmax.f32 %v587, %v589
    %v591 = vpack.c.bf16 %v590, %v590
    %v593 = vunpack.c.l.b16 %v591
    %v594 = vpack.c.b16 %v593, %v593
    %v596 = vshrl.u32 %v594, 16
    %v598 = vrot.slane %v596, 7
    %v599 = vshll.u32 %v594, 16
    %v601 = vor.u32 %v598, %v599
    %v602 = vrot.slane %v598, 4
    %v605 = vld [vmem:[#allocation2 + $0x20] sm:$0xf]
    %v606 = vsel %vm526, %v601, %v605
    %607 = vst [vmem:[#allocation2 + $0x20] sm:$0xf] %v606
    %v608 = vld [vmem:[#allocation2 + $0x24] sm:$0x1]
    %v609 = vsel %vm532, %v602, %v608
    %610 = vst [vmem:[#allocation2 + $0x24] sm:$0x1] %v609
    %s611 = scalar_lea.vmem [#allocation4], 128
    %v612 = vld [vmem:[%s611] ss:$2 sm:$0xff]
    %s613 = scalar_lea.vmem [#allocation4], 129
    %v614 = vld [vmem:[%s613] ss:$2 sm:$0xff]
    %v615 = vmax.f32 %v612, %v614
    %v616 = vpack.c.bf16 %v615, %v615
    %v618 = vunpack.c.l.b16 %v616
    %v619 = vpack.c.b16 %v618, %v618
    %v621 = vshrl.u32 %v619, 16
    %v623 = vrot.slane %v621, 7
    %v624 = vshll.u32 %v619, 16
    %v626 = vor.u32 %v623, %v624
    %v627 = vrot.slane %v623, 4
    %v630 = vld [vmem:[#allocation2 + $0x28] sm:$0xf]
    %v631 = vsel %vm526, %v626, %v630
    %632 = vst [vmem:[#allocation2 + $0x28] sm:$0xf] %v631
    %v633 = vld [vmem:[#allocation2 + $0x2c] sm:$0x1]
    %v634 = vsel %vm532, %v627, %v633
    %635 = vst [vmem:[#allocation2 + $0x2c] sm:$0x1] %v634
    %s636 = scalar_lea.vmem [#allocation4], 160
    %v637 = vld [vmem:[%s636] ss:$2 sm:$0xff]
    %s638 = scalar_lea.vmem [#allocation4], 161
    %v639 = vld [vmem:[%s638] ss:$2 sm:$0xff]
    %v640 = vmax.f32 %v637, %v639
    %v641 = vpack.c.bf16 %v640, %v640
    %v643 = vunpack.c.l.b16 %v641
    %v644 = vpack.c.b16 %v643, %v643
    %v646 = vshrl.u32 %v644, 16
    %v648 = vrot.slane %v646, 7
    %v649 = vshll.u32 %v644, 16
    %v651 = vor.u32 %v648, %v649
    %v652 = vrot.slane %v648, 4
    %v655 = vld [vmem:[#allocation2 + $0x30] sm:$0xf]
    %v656 = vsel %vm526, %v651, %v655
    %657 = vst [vmem:[#allocation2 + $0x30] sm:$0xf] %v656
    %v658 = vld [vmem:[#allocation2 + $0x34] sm:$0x1]
    %v659 = vsel %vm532, %v652, %v658
    %660 = vst [vmem:[#allocation2 + $0x34] sm:$0x1] %v659
    %s661 = scalar_lea.vmem [#allocation4], 192
    %v662 = vld [vmem:[%s661] ss:$2 sm:$0xff]
    %s663 = scalar_lea.vmem [#allocation4], 193
    %v664 = vld [vmem:[%s663] ss:$2 sm:$0xff]
    %v665 = vmax.f32 %v662, %v664
    %v666 = vpack.c.bf16 %v665, %v665
    %v668 = vunpack.c.l.b16 %v666
    %v669 = vpack.c.b16 %v668, %v668
    %v671 = vshrl.u32 %v669, 16
    %v673 = vrot.slane %v671, 7
    %v674 = vshll.u32 %v669, 16
    %v676 = vor.u32 %v673, %v674
    %v677 = vrot.slane %v673, 4
    %v680 = vld [vmem:[#allocation2 + $0x38] sm:$0xf]
    %v681 = vsel %vm526, %v676, %v680
    %682 = vst [vmem:[#allocation2 + $0x38] sm:$0xf] %v681
    %v683 = vld [vmem:[#allocation2 + $0x3c] sm:$0x1]
    %v684 = vsel %vm532, %v677, %v683
    %685 = vst [vmem:[#allocation2 + $0x3c] sm:$0x1] %v684
    %s686 = scalar_lea.vmem [#allocation4], 224
    %v687 = vld [vmem:[%s686] ss:$2 sm:$0xff]
    %s688 = scalar_lea.vmem [#allocation4], 225
    %v689 = vld [vmem:[%s688] ss:$2 sm:$0xff]
    %v690 = vmax.f32 %v687, %v689
    %v691 = vpack.c.bf16 %v690, %v690
    %v693 = vunpack.c.l.b16 %v691
    %v694 = vpack.c.b16 %v693, %v693
    %v696 = vshrl.u32 %v694, 16
    %v698 = vrot.slane %v696, 7
    %v699 = vshll.u32 %v694, 16
    %v701 = vor.u32 %v698, %v699
    %v702 = vrot.slane %v698, 4
    %v705 = vld [vmem:[#allocation2 + $0x40] sm:$0xf]
    %v706 = vsel %vm526, %v701, %v705
    %707 = vst [vmem:[#allocation2 + $0x40] sm:$0xf] %v706
    %v708 = vld [vmem:[#allocation2 + $0x44] sm:$0x1]
    %v709 = vsel %vm532, %v702, %v708
    %710 = vst [vmem:[#allocation2 + $0x44] sm:$0x1] %v709
    %v711 = vld [vmem:[#allocation2] sm:$0xf]
    %v712 = vld [vmem:[#allocation2 + $0x4] sm:$0xf]
    %v713 = vld [vmem:[#allocation2 + $0x8] sm:$0xf]
    %v714 = vld [vmem:[#allocation2 + $0xc] sm:$0xf]
    %v715 = vld [vmem:[#allocation2 + $0x10] sm:$0xf]
    %v716 = vld [vmem:[#allocation2 + $0x14] sm:$0xf]
    %v717 = vld [vmem:[#allocation2 + $0x18] sm:$0xf]
    %v718 = vld [vmem:[#allocation2 + $0x1c] sm:$0xf]
    %v719 = vld [vmem:[#allocation2 + $0x20] sm:$0xf]
    %v720 = vld [vmem:[#allocation2 + $0x24] sm:$0xf]
    %v721 = vld [vmem:[#allocation2 + $0x28] sm:$0xf]
    %v722 = vld [vmem:[#allocation2 + $0x2c] sm:$0xf]
    %v723 = vld [vmem:[#allocation2 + $0x30] sm:$0xf]
    %v724 = vld [vmem:[#allocation2 + $0x34] sm:$0xf]
    %v725 = vld [vmem:[#allocation2 + $0x38] sm:$0xf]
    %v726 = vld [vmem:[#allocation2 + $0x3c] sm:$0xf]
    %v727 = vld [vmem:[%s3] sm:$0xf]
    %v728 = vld [vmem:[%s3 + $0x4] sm:$0xf]
    %v729 = vld [vmem:[%s3 + $0x8] sm:$0xf]
    %v730 = vld [vmem:[%s3 + $0xc] sm:$0xf]
    %v731 = vld [vmem:[%s3 + $0x10] sm:$0xf]
    %v732 = vld [vmem:[%s3 + $0x14] sm:$0xf]
    %v733 = vld [vmem:[%s3 + $0x18] sm:$0xf]
    %v734 = vld [vmem:[%s3 + $0x1c] sm:$0xf]
    %v735 = vld [vmem:[%s3 + $0x20] sm:$0xf]
    %v736 = vld [vmem:[%s3 + $0x24] sm:$0xf]
    %v737 = vld [vmem:[%s3 + $0x28] sm:$0xf]
    %v738 = vld [vmem:[%s3 + $0x2c] sm:$0xf]
    %v739 = vld [vmem:[%s3 + $0x30] sm:$0xf]
    %v740 = vld [vmem:[%s3 + $0x34] sm:$0xf]
    %v741 = vld [vmem:[%s3 + $0x38] sm:$0xf]
    %v742 = vld [vmem:[%s3 + $0x3c] sm:$0xf]
    %v743 = vld [vmem:[#allocation2 + $0x40] sm:$0x1]
    %s744 = scalar_lea.vmem %s3, 64
    %v745 = vld [vmem:[%s744] sm:$0xf]
    %v746 = vld [vmem:[%s744 + $0x4] sm:$0xf]
    %v747 = vld [vmem:[%s744 + $0x8] sm:$0xf]
    %v748 = vld [vmem:[%s744 + $0xc] sm:$0xf]
    %v749 = vld [vmem:[%s744 + $0x10] sm:$0xf]
    %v750 = vld [vmem:[%s744 + $0x14] sm:$0xf]
    %v751 = vld [vmem:[%s744 + $0x18] sm:$0xf]
    %v752 = vld [vmem:[%s744 + $0x1c] sm:$0xf]
    %v753 = vld [vmem:[%s744 + $0x20] sm:$0xf]
    %v754 = vld [vmem:[%s744 + $0x24] sm:$0xf]
    %v755 = vld [vmem:[%s744 + $0x28] sm:$0xf]
    %v756 = vld [vmem:[%s744 + $0x2c] sm:$0xf]
    %v757 = vld [vmem:[%s744 + $0x30] sm:$0xf]
    %v758 = vld [vmem:[%s744 + $0x34] sm:$0xf]
    %v759 = vld [vmem:[%s744 + $0x38] sm:$0xf]
    %v760 = vld [vmem:[%s744 + $0x3c] sm:$0xf]
    %v778 = vunpack.c.l.b16 %v711
    %v779 = vunpack.c.l.b16 %v712
    %v780 = vunpack.c.l.b16 %v713
    %v781 = vunpack.c.l.b16 %v714
    %v782 = vunpack.c.l.b16 %v715
    %v783 = vunpack.c.l.b16 %v716
    %v784 = vunpack.c.l.b16 %v717
    %v785 = vunpack.c.l.b16 %v718
    %v786 = vunpack.c.l.b16 %v719
    %v787 = vunpack.c.l.b16 %v720
    %v788 = vunpack.c.l.b16 %v721
    %v789 = vunpack.c.l.b16 %v722
    %v790 = vunpack.c.l.b16 %v723
    %v791 = vunpack.c.l.b16 %v724
    %v792 = vunpack.c.l.b16 %v725
    %v793 = vunpack.c.l.b16 %v726
    %v794 = vunpack.c.l.b16 %v743
    %v795 = vpack.c.b16 %v779, %v778
    %v796 = vpack.c.b16 %v781, %v780
    %v797 = vpack.c.b16 %v783, %v782
    %v798 = vpack.c.b16 %v785, %v784
    %v799 = vpack.c.b16 %v787, %v786
    %v800 = vpack.c.b16 %v789, %v788
    %v801 = vpack.c.b16 %v791, %v790
    %v802 = vpack.c.b16 %v793, %v792
    %v803 = vpack.c.b16 %v794, %v794
    %vm804 = vsmask.f32 7424
    %v806 = vshrl.u32 %v795, 16
    %v808 = vshll.u32 %v795, 16
    %v810 = vrot.slane %v808, 1
    %v811 = vor.u32 %v806, %v810
    %v813 = vshll.u32 %v796, 16
    %v815 = vrot.slane %v813, 1
    %v816 = vsel %vm804, %v811, %v815
    %v817 = vshrl.u32 %v796, 16
    %v819 = vor.u32 %v817, %v815
    %v821 = vshll.u32 %v797, 16
    %v823 = vrot.slane %v821, 1
    %v824 = vsel %vm804, %v819, %v823
    %v825 = vshrl.u32 %v797, 16
    %v827 = vor.u32 %v825, %v823
    %v829 = vshll.u32 %v798, 16
    %v831 = vrot.slane %v829, 1
    %v832 = vsel %vm804, %v827, %v831
    %v833 = vshrl.u32 %v798, 16
    %v835 = vor.u32 %v833, %v831
    %v837 = vshll.u32 %v799, 16
    %v839 = vrot.slane %v837, 1
    %v840 = vsel %vm804, %v835, %v839
    %v841 = vshrl.u32 %v799, 16
    %v843 = vor.u32 %v841, %v839
    %v845 = vshll.u32 %v800, 16
    %v847 = vrot.slane %v845, 1
    %v848 = vsel %vm804, %v843, %v847
    %v849 = vshrl.u32 %v800, 16
    %v851 = vor.u32 %v849, %v847
    %v853 = vshll.u32 %v801, 16
    %v855 = vrot.slane %v853, 1
    %v856 = vsel %vm804, %v851, %v855
    %v857 = vshrl.u32 %v801, 16
    %v859 = vor.u32 %v857, %v855
    %v861 = vshll.u32 %v802, 16
    %v863 = vrot.slane %v861, 1
    %v864 = vsel %vm804, %v859, %v863
    %v865 = vshrl.u32 %v802, 16
    %v867 = vor.u32 %v865, %v863
    %v869 = vshll.u32 %v803, 16
    %v871 = vrot.slane %v869, 1
    %v872 = vsel %vm804, %v867, %v871
    %v897 = vunpack.c.l.b16 %v745
    %v898 = vunpack.c.l.b16 %v746
    %v899 = vunpack.c.l.b16 %v747
    %v900 = vunpack.c.l.b16 %v748
    %v901 = vunpack.c.l.b16 %v749
    %v902 = vunpack.c.l.b16 %v750
    %v903 = vunpack.c.l.b16 %v751
    %v904 = vunpack.c.l.b16 %v752
    %v905 = vunpack.c.l.b16 %v753
    %v906 = vunpack.c.l.b16 %v754
    %v907 = vunpack.c.l.b16 %v755
    %v908 = vunpack.c.l.b16 %v756
    %v909 = vunpack.c.l.b16 %v757
    %v910 = vunpack.c.l.b16 %v758
    %v911 = vunpack.c.l.b16 %v759
    %v912 = vunpack.c.l.b16 %v760
    %v913 = vpack.c.b16 %v898, %v897
    %v914 = vpack.c.b16 %v900, %v899
    %v915 = vpack.c.b16 %v902, %v901
    %v916 = vpack.c.b16 %v904, %v903
    %v917 = vpack.c.b16 %v906, %v905
    %v918 = vpack.c.b16 %v908, %v907
    %v919 = vpack.c.b16 %v910, %v909
    %v920 = vpack.c.b16 %v912, %v911
    %929 = vmatprep.subr.bf16.mxu0 0
    %930 = vmatpush1.bf16.msra.mxu0 %v920
    %931 = vmatprep.subr.bf16.mxu0 0
    %932 = vmatpush1.bf16.msra.mxu0 %v919
    %933 = vmatprep.subr.bf16.mxu0 0
    %934 = vmatpush1.bf16.msra.mxu0 %v918
    %935 = vmatprep.subr.bf16.mxu0 0
    %936 = vmatpush1.bf16.msra.mxu0 %v917
    %937 = vmatprep.subr.bf16.mxu0 0
    %938 = vmatpush1.bf16.msra.mxu0 %v916
    %939 = vmatprep.subr.bf16.mxu0 0
    %940 = vmatpush1.bf16.msra.mxu0 %v915
    %941 = vmatprep.subr.bf16.mxu0 0
    %942 = vmatpush1.bf16.msra.mxu0 %v914
    %943 = vmatprep.subr.bf16.mxu0 0
    %944 = vmatpush1.bf16.msra.mxu0 %v913
    %945 = vmatprep.subr.bf16.mxu0 0
    %946 = vmatpush2.bf16.msra.mxu0 0
    %947 = vmatprep.subr.bf16.mxu0 0
    %948 = vmatpush2.bf16.msra.mxu0 0
    %949 = vmatprep.subr.bf16.mxu0 0
    %950 = vmatpush2.bf16.msra.mxu0 0
    %951 = vmatprep.subr.bf16.mxu0 0
    %952 = vmatpush2.bf16.msra.mxu0 0
    %953 = vmatprep.subr.bf16.mxu0 0
    %954 = vmatpush2.bf16.msra.mxu0 0
    %955 = vmatprep.subr.bf16.mxu0 0
    %956 = vmatpush2.bf16.msra.mxu0 0
    %957 = vmatprep.subr.bf16.mxu0 0
    %958 = vmatpush2.bf16.msra.mxu0 0
    %959 = vmatprep.subr.bf16.mxu0 0
    %960 = vmatpush2.bf16.msra.mxu0 0
    %961 = vmatprep.mubr.bf16.mxu0 0
    %962 = vmatmul.mubr.bf16.gmra.mxu0 %v816
    %v963 = vpop.f32.mrf.mxu0
    %v964 = vadd.f32 0.0, %v963
    %v965 = vpop.f32.mrf.mxu0
    %v966 = vpop.f32.mrf.mxu0
    %v967 = vadd.f32 0.0, %v966
    %v968 = vpop.f32.mrf.mxu0
    %969 = vmatprep.mubr.bf16.mxu0 0
    %970 = vmatmul.mubr.bf16.gmra.mxu0 %v824
    %v971 = vpop.f32.mrf.mxu0
    %v972 = vadd.f32 0.0, %v971
    %v973 = vpop.f32.mrf.mxu0
    %v974 = vpop.f32.mrf.mxu0
    %v975 = vadd.f32 0.0, %v974
    %v976 = vpop.f32.mrf.mxu0
    %977 = vmatprep.mubr.bf16.mxu0 0
    %978 = vmatmul.mubr.bf16.gmra.mxu0 %v832
    %v979 = vpop.f32.mrf.mxu0
    %v980 = vadd.f32 0.0, %v979
    %v981 = vpop.f32.mrf.mxu0
    %v982 = vpop.f32.mrf.mxu0
    %v983 = vadd.f32 0.0, %v982
    %v984 = vpop.f32.mrf.mxu0
    %985 = vmatprep.mubr.bf16.mxu0 0
    %986 = vmatmul.mubr.bf16.gmra.mxu0 %v840
    %v987 = vpop.f32.mrf.mxu0
    %v988 = vadd.f32 0.0, %v987
    %v989 = vpop.f32.mrf.mxu0
    %v990 = vpop.f32.mrf.mxu0
    %v991 = vadd.f32 0.0, %v990
    %v992 = vpop.f32.mrf.mxu0
    %993 = vmatprep.mubr.bf16.mxu0 0
    %994 = vmatmul.mubr.bf16.gmra.mxu0 %v848
    %v995 = vpop.f32.mrf.mxu0
    %v996 = vadd.f32 0.0, %v995
    %v997 = vpop.f32.mrf.mxu0
    %v998 = vpop.f32.mrf.mxu0
    %v999 = vadd.f32 0.0, %v998
    %v1000 = vpop.f32.mrf.mxu0
    %1001 = vmatprep.mubr.bf16.mxu0 0
    %1002 = vmatmul.mubr.bf16.gmra.mxu0 %v856
    %v1003 = vpop.f32.mrf.mxu0
    %v1004 = vadd.f32 0.0, %v1003
    %v1005 = vpop.f32.mrf.mxu0
    %v1006 = vpop.f32.mrf.mxu0
    %v1007 = vadd.f32 0.0, %v1006
    %v1008 = vpop.f32.mrf.mxu0
    %1009 = vmatprep.mubr.bf16.mxu0 0
    %1010 = vmatmul.mubr.bf16.gmra.mxu0 %v864
    %v1011 = vpop.f32.mrf.mxu0
    %v1012 = vadd.f32 0.0, %v1011
    %v1013 = vpop.f32.mrf.mxu0
    %v1014 = vpop.f32.mrf.mxu0
    %v1015 = vadd.f32 0.0, %v1014
    %v1016 = vpop.f32.mrf.mxu0
    %1017 = vmatprep.mubr.bf16.mxu0 0
    %1018 = vmatmul.mubr.bf16.gmra.mxu0 %v872
    %v1019 = vpop.f32.mrf.mxu0
    %v1020 = vadd.f32 0.0, %v1019
    %v1021 = vpop.f32.mrf.mxu0
    %v1022 = vpop.f32.mrf.mxu0
    %v1023 = vadd.f32 0.0, %v1022
    %v1024 = vpop.f32.mrf.mxu0
    %1025 = vdwg.mxu0
    %v1050 = vunpack.c.l.b16 %v727
    %v1051 = vunpack.c.l.b16 %v728
    %v1052 = vunpack.c.l.b16 %v729
    %v1053 = vunpack.c.l.b16 %v730
    %v1054 = vunpack.c.l.b16 %v731
    %v1055 = vunpack.c.l.b16 %v732
    %v1056 = vunpack.c.l.b16 %v733
    %v1057 = vunpack.c.l.b16 %v734
    %v1058 = vunpack.c.l.b16 %v735
    %v1059 = vunpack.c.l.b16 %v736
    %v1060 = vunpack.c.l.b16 %v737
    %v1061 = vunpack.c.l.b16 %v738
    %v1062 = vunpack.c.l.b16 %v739
    %v1063 = vunpack.c.l.b16 %v740
    %v1064 = vunpack.c.l.b16 %v741
    %v1065 = vunpack.c.l.b16 %v742
    %v1066 = vpack.c.b16 %v1051, %v1050
    %v1067 = vpack.c.b16 %v1053, %v1052
    %v1068 = vpack.c.b16 %v1055, %v1054
    %v1069 = vpack.c.b16 %v1057, %v1056
    %v1070 = vpack.c.b16 %v1059, %v1058
    %v1071 = vpack.c.b16 %v1061, %v1060
    %v1072 = vpack.c.b16 %v1063, %v1062
    %v1073 = vpack.c.b16 %v1065, %v1064
    %1082 = vmatprep.subr.bf16.mxu0 0
    %1083 = vmatpush1.bf16.msra.mxu0 %v1073
    %1084 = vmatprep.subr.bf16.mxu0 0
    %1085 = vmatpush1.bf16.msra.mxu0 %v1072
    %1086 = vmatprep.subr.bf16.mxu0 0
    %1087 = vmatpush1.bf16.msra.mxu0 %v1071
    %1088 = vmatprep.subr.bf16.mxu0 0
    %1089 = vmatpush1.bf16.msra.mxu0 %v1070
    %1090 = vmatprep.subr.bf16.mxu0 0
    %1091 = vmatpush1.bf16.msra.mxu0 %v1069
    %1092 = vmatprep.subr.bf16.mxu0 0
    %1093 = vmatpush1.bf16.msra.mxu0 %v1068
    %1094 = vmatprep.subr.bf16.mxu0 0
    %1095 = vmatpush1.bf16.msra.mxu0 %v1067
    %1096 = vmatprep.subr.bf16.mxu0 0
    %1097 = vmatpush1.bf16.msra.mxu0 %v1066
    %1098 = vmatprep.subr.bf16.mxu0 0
    %1099 = vmatpush2.bf16.msra.mxu0 0
    %1100 = vmatprep.subr.bf16.mxu0 0
    %1101 = vmatpush2.bf16.msra.mxu0 0
    %1102 = vmatprep.subr.bf16.mxu0 0
    %1103 = vmatpush2.bf16.msra.mxu0 0
    %1104 = vmatprep.subr.bf16.mxu0 0
    %1105 = vmatpush2.bf16.msra.mxu0 0
    %1106 = vmatprep.subr.bf16.mxu0 0
    %1107 = vmatpush2.bf16.msra.mxu0 0
    %1108 = vmatprep.subr.bf16.mxu0 0
    %1109 = vmatpush2.bf16.msra.mxu0 0
    %1110 = vmatprep.subr.bf16.mxu0 0
    %1111 = vmatpush2.bf16.msra.mxu0 0
    %1112 = vmatprep.subr.bf16.mxu0 0
    %1113 = vmatpush2.bf16.msra.mxu0 0
    %1114 = vmatprep.mubr.bf16.mxu0 0
    %1115 = vmatmul.mubr.bf16.gmra.mxu0 %v795
    %v1116 = vpop.f32.mrf.mxu0
    %v1117 = vadd.f32 %v964, %v1116
    %v1118 = vpop.f32.mrf.mxu0
    %v1119 = vpop.f32.mrf.mxu0
    %v1120 = vadd.f32 %v967, %v1119
    %v1121 = vpop.f32.mrf.mxu0
    %1122 = vmatprep.mubr.bf16.mxu0 0
    %1123 = vmatmul.mubr.bf16.gmra.mxu0 %v796
    %v1124 = vpop.f32.mrf.mxu0
    %v1125 = vadd.f32 %v972, %v1124
    %v1126 = vpop.f32.mrf.mxu0
    %v1127 = vpop.f32.mrf.mxu0
    %v1128 = vadd.f32 %v975, %v1127
    %v1129 = vpop.f32.mrf.mxu0
    %1130 = vmatprep.mubr.bf16.mxu0 0
    %1131 = vmatmul.mubr.bf16.gmra.mxu0 %v797
    %v1132 = vpop.f32.mrf.mxu0
    %v1133 = vadd.f32 %v980, %v1132
    %v1134 = vpop.f32.mrf.mxu0
    %v1135 = vpop.f32.mrf.mxu0
    %v1136 = vadd.f32 %v983, %v1135
    %v1137 = vpop.f32.mrf.mxu0
    %1138 = vmatprep.mubr.bf16.mxu0 0
    %1139 = vmatmul.mubr.bf16.gmra.mxu0 %v798
    %v1140 = vpop.f32.mrf.mxu0
    %v1141 = vadd.f32 %v988, %v1140
    %v1142 = vpop.f32.mrf.mxu0
    %v1143 = vpop.f32.mrf.mxu0
    %v1144 = vadd.f32 %v991, %v1143
    %v1145 = vpop.f32.mrf.mxu0
    %1146 = vmatprep.mubr.bf16.mxu0 0
    %1147 = vmatmul.mubr.bf16.gmra.mxu0 %v799
    %v1148 = vpop.f32.mrf.mxu0
    %v1149 = vadd.f32 %v996, %v1148
    %v1150 = vpop.f32.mrf.mxu0
    %v1151 = vpop.f32.mrf.mxu0
    %v1152 = vadd.f32 %v999, %v1151
    %v1153 = vpop.f32.mrf.mxu0
    %1154 = vmatprep.mubr.bf16.mxu0 0
    %1155 = vmatmul.mubr.bf16.gmra.mxu0 %v800
    %v1156 = vpop.f32.mrf.mxu0
    %v1157 = vadd.f32 %v1004, %v1156
    %v1158 = vpop.f32.mrf.mxu0
    %v1159 = vpop.f32.mrf.mxu0
    %v1160 = vadd.f32 %v1007, %v1159
    %v1161 = vpop.f32.mrf.mxu0
    %1162 = vmatprep.mubr.bf16.mxu0 0
    %1163 = vmatmul.mubr.bf16.gmra.mxu0 %v801
    %v1164 = vpop.f32.mrf.mxu0
    %v1165 = vadd.f32 %v1012, %v1164
    %v1166 = vpop.f32.mrf.mxu0
    %v1167 = vpop.f32.mrf.mxu0
    %v1168 = vadd.f32 %v1015, %v1167
    %v1169 = vpop.f32.mrf.mxu0
    %1170 = vmatprep.mubr.bf16.mxu0 0
    %1171 = vmatmul.mubr.bf16.gmra.mxu0 %v802
    %v1172 = vpop.f32.mrf.mxu0
    %v1173 = vadd.f32 %v1020, %v1172
    %v1174 = vpop.f32.mrf.mxu0
    %v1175 = vpop.f32.mrf.mxu0
    %v1176 = vadd.f32 %v1023, %v1175
    %v1177 = vpop.f32.mrf.mxu0
    %1178 = vdwg.mxu0
    %v1179 = vld [vmem:[#allocation2] sm:$0xe]
    %s1180 = scalar_lea.vmem %s3, 128
    %v1181 = vld [vmem:[%s1180] sm:$0xf]
    %v1182 = vld [vmem:[%s1180 + $0x4] sm:$0xf]
    %v1183 = vld [vmem:[%s1180 + $0x8] sm:$0xf]
    %v1184 = vld [vmem:[%s1180 + $0xc] sm:$0xf]
    %v1185 = vld [vmem:[%s1180 + $0x10] sm:$0xf]
    %v1186 = vld [vmem:[%s1180 + $0x14] sm:$0xf]
    %v1187 = vld [vmem:[%s1180 + $0x18] sm:$0xf]
    %v1188 = vld [vmem:[%s1180 + $0x1c] sm:$0xf]
    %v1189 = vld [vmem:[%s1180 + $0x20] sm:$0xf]
    %v1190 = vld [vmem:[%s1180 + $0x24] sm:$0xf]
    %v1191 = vld [vmem:[%s1180 + $0x28] sm:$0xf]
    %v1192 = vld [vmem:[%s1180 + $0x2c] sm:$0xf]
    %v1193 = vld [vmem:[%s1180 + $0x30] sm:$0xf]
    %v1194 = vld [vmem:[%s1180 + $0x34] sm:$0xf]
    %v1195 = vld [vmem:[%s1180 + $0x38] sm:$0xf]
    %v1196 = vld [vmem:[%s1180 + $0x3c] sm:$0xf]
    %v1198 = vunpack.c.l.b16 %v1179
    %v1199 = vpack.c.b16 %v779, %v1198
    %vm1200 = vcmask 1046528
    %v1201 = vrot.slane %v1199, 1
    %v1202 = vrot.slane %v796, 1
    %v1203 = vsel %vm1200, %v1201, %v1202
    %v1204 = vrot.slane %v797, 1
    %v1205 = vsel %vm1200, %v1202, %v1204
    %v1206 = vrot.slane %v798, 1
    %v1207 = vsel %vm1200, %v1204, %v1206
    %v1208 = vrot.slane %v799, 1
    %v1209 = vsel %vm1200, %v1206, %v1208
    %v1210 = vrot.slane %v800, 1
    %v1211 = vsel %vm1200, %v1208, %v1210
    %v1212 = vrot.slane %v801, 1
    %v1213 = vsel %vm1200, %v1210, %v1212
    %v1214 = vrot.slane %v802, 1
    %v1215 = vsel %vm1200, %v1212, %v1214
    %v1216 = vrot.slane %v803, 1
    %v1217 = vsel %vm1200, %v1214, %v1216
    %v1242 = vunpack.c.l.b16 %v1181
    %v1243 = vunpack.c.l.b16 %v1182
    %v1244 = vunpack.c.l.b16 %v1183
    %v1245 = vunpack.c.l.b16 %v1184
    %v1246 = vunpack.c.l.b16 %v1185
    %v1247 = vunpack.c.l.b16 %v1186
    %v1248 = vunpack.c.l.b16 %v1187
    %v1249 = vunpack.c.l.b16 %v1188
    %v1250 = vunpack.c.l.b16 %v1189
    %v1251 = vunpack.c.l.b16 %v1190
    %v1252 = vunpack.c.l.b16 %v1191
    %v1253 = vunpack.c.l.b16 %v1192
    %v1254 = vunpack.c.l.b16 %v1193
    %v1255 = vunpack.c.l.b16 %v1194
    %v1256 = vunpack.c.l.b16 %v1195
    %v1257 = vunpack.c.l.b16 %v1196
    %v1258 = vpack.c.b16 %v1243, %v1242
    %v1259 = vpack.c.b16 %v1245, %v1244
    %v1260 = vpack.c.b16 %v1247, %v1246
    %v1261 = vpack.c.b16 %v1249, %v1248
    %v1262 = vpack.c.b16 %v1251, %v1250
    %v1263 = vpack.c.b16 %v1253, %v1252
    %v1264 = vpack.c.b16 %v1255, %v1254
    %v1265 = vpack.c.b16 %v1257, %v1256
    %1274 = vmatprep.subr.bf16.mxu0 0
    %1275 = vmatpush1.bf16.msra.mxu0 %v1265
    %1276 = vmatprep.subr.bf16.mxu0 0
    %1277 = vmatpush1.bf16.msra.mxu0 %v1264
    %1278 = vmatprep.subr.bf16.mxu0 0
    %1279 = vmatpush1.bf16.msra.mxu0 %v1263
    %1280 = vmatprep.subr.bf16.mxu0 0
    %1281 = vmatpush1.bf16.msra.mxu0 %v1262
    %1282 = vmatprep.subr.bf16.mxu0 0
    %1283 = vmatpush1.bf16.msra.mxu0 %v1261
    %1284 = vmatprep.subr.bf16.mxu0 0
    %1285 = vmatpush1.bf16.msra.mxu0 %v1260
    %1286 = vmatprep.subr.bf16.mxu0 0
    %1287 = vmatpush1.bf16.msra.mxu0 %v1259
    %1288 = vmatprep.subr.bf16.mxu0 0
    %1289 = vmatpush1.bf16.msra.mxu0 %v1258
    %1290 = vmatprep.subr.bf16.mxu0 0
    %1291 = vmatpush2.bf16.msra.mxu0 0
    %1292 = vmatprep.subr.bf16.mxu0 0
    %1293 = vmatpush2.bf16.msra.mxu0 0
    %1294 = vmatprep.subr.bf16.mxu0 0
    %1295 = vmatpush2.bf16.msra.mxu0 0
    %1296 = vmatprep.subr.bf16.mxu0 0
    %1297 = vmatpush2.bf16.msra.mxu0 0
    %1298 = vmatprep.subr.bf16.mxu0 0
    %1299 = vmatpush2.bf16.msra.mxu0 0
    %1300 = vmatprep.subr.bf16.mxu0 0
    %1301 = vmatpush2.bf16.msra.mxu0 0
    %1302 = vmatprep.subr.bf16.mxu0 0
    %1303 = vmatpush2.bf16.msra.mxu0 0
    %1304 = vmatprep.subr.bf16.mxu0 0
    %1305 = vmatpush2.bf16.msra.mxu0 0
    %1306 = vmatprep.mubr.bf16.mxu0 0
    %1307 = vmatmul.mubr.bf16.gmra.mxu0 %v1203
    %v1308 = vpop.f32.mrf.mxu0
    %v1309 = vadd.f32 0.0, %v1308
    %v1310 = vpop.f32.mrf.mxu0
    %v1311 = vpop.f32.mrf.mxu0
    %v1312 = vadd.f32 0.0, %v1311
    %v1313 = vpop.f32.mrf.mxu0
    %1314 = vmatprep.mubr.bf16.mxu0 0
    %1315 = vmatmul.mubr.bf16.gmra.mxu0 %v1205
    %v1316 = vpop.f32.mrf.mxu0
    %v1317 = vadd.f32 0.0, %v1316
    %v1318 = vpop.f32.mrf.mxu0
    %v1319 = vpop.f32.mrf.mxu0
    %v1320 = vadd.f32 0.0, %v1319
    %v1321 = vpop.f32.mrf.mxu0
    %1322 = vmatprep.mubr.bf16.mxu0 0
    %1323 = vmatmul.mubr.bf16.gmra.mxu0 %v1207
    %v1324 = vpop.f32.mrf.mxu0
    %v1325 = vadd.f32 0.0, %v1324
    %v1326 = vpop.f32.mrf.mxu0
    %v1327 = vpop.f32.mrf.mxu0
    %v1328 = vadd.f32 0.0, %v1327
    %v1329 = vpop.f32.mrf.mxu0
    %1330 = vmatprep.mubr.bf16.mxu0 0
    %1331 = vmatmul.mubr.bf16.gmra.mxu0 %v1209
    %v1332 = vpop.f32.mrf.mxu0
    %v1333 = vadd.f32 0.0, %v1332
    %v1334 = vpop.f32.mrf.mxu0
    %v1335 = vpop.f32.mrf.mxu0
    %v1336 = vadd.f32 0.0, %v1335
    %v1337 = vpop.f32.mrf.mxu0
    %1338 = vmatprep.mubr.bf16.mxu0 0
    %1339 = vmatmul.mubr.bf16.gmra.mxu0 %v1211
    %v1340 = vpop.f32.mrf.mxu0
    %v1341 = vadd.f32 0.0, %v1340
    %v1342 = vpop.f32.mrf.mxu0
    %v1343 = vpop.f32.mrf.mxu0
    %v1344 = vadd.f32 0.0, %v1343
    %v1345 = vpop.f32.mrf.mxu0
    %1346 = vmatprep.mubr.bf16.mxu0 0
    %1347 = vmatmul.mubr.bf16.gmra.mxu0 %v1213
    %v1348 = vpop.f32.mrf.mxu0
    %v1349 = vadd.f32 0.0, %v1348
    %v1350 = vpop.f32.mrf.mxu0
    %v1351 = vpop.f32.mrf.mxu0
    %v1352 = vadd.f32 0.0, %v1351
    %v1353 = vpop.f32.mrf.mxu0
    %1354 = vmatprep.mubr.bf16.mxu0 0
    %1355 = vmatmul.mubr.bf16.gmra.mxu0 %v1215
    %v1356 = vpop.f32.mrf.mxu0
    %v1357 = vadd.f32 0.0, %v1356
    %v1358 = vpop.f32.mrf.mxu0
    %v1359 = vpop.f32.mrf.mxu0
    %v1360 = vadd.f32 0.0, %v1359
    %v1361 = vpop.f32.mrf.mxu0
    %1362 = vmatprep.mubr.bf16.mxu0 0
    %1363 = vmatmul.mubr.bf16.gmra.mxu0 %v1217
    %v1364 = vpop.f32.mrf.mxu0
    %v1365 = vadd.f32 0.0, %v1364
    %v1366 = vpop.f32.mrf.mxu0
    %v1367 = vpop.f32.mrf.mxu0
    %v1368 = vadd.f32 0.0, %v1367
    %v1369 = vpop.f32.mrf.mxu0
    %1370 = vdwg.mxu0
    %v1371 = vadd.f32 %v1117, %v1309
    %v1372 = vadd.f32 %v1120, %v1312
    %v1373 = vadd.f32 %v1125, %v1317
    %v1374 = vadd.f32 %v1128, %v1320
    %v1375 = vadd.f32 %v1133, %v1325
    %v1376 = vadd.f32 %v1136, %v1328
    %v1377 = vadd.f32 %v1141, %v1333
    %v1378 = vadd.f32 %v1144, %v1336
    %v1379 = vadd.f32 %v1149, %v1341
    %v1380 = vadd.f32 %v1152, %v1344
    %v1381 = vadd.f32 %v1157, %v1349
    %v1382 = vadd.f32 %v1160, %v1352
    %v1383 = vadd.f32 %v1165, %v1357
    %v1384 = vadd.f32 %v1168, %v1360
    %v1385 = vadd.f32 %v1173, %v1365
    %v1386 = vadd.f32 %v1176, %v1368
    %v1387 = vld [vmem:[#allocation2 + $0x8] sm:$0xf]
    %v1388 = vld [vmem:[#allocation2 + $0xc] sm:$0xf]
    %v1389 = vld [vmem:[#allocation2 + $0x10] sm:$0xf]
    %v1390 = vld [vmem:[#allocation2 + $0x14] sm:$0xf]
    %v1391 = vld [vmem:[#allocation2 + $0x18] sm:$0xf]
    %v1392 = vld [vmem:[#allocation2 + $0x1c] sm:$0xf]
    %v1393 = vld [vmem:[#allocation2 + $0x20] sm:$0xf]
    %v1394 = vld [vmem:[#allocation2 + $0x24] sm:$0xf]
    %v1395 = vld [vmem:[#allocation2 + $0x28] sm:$0xf]
    %v1396 = vld [vmem:[#allocation2 + $0x2c] sm:$0xf]
    %v1397 = vld [vmem:[#allocation2 + $0x30] sm:$0xf]
    %v1398 = vld [vmem:[#allocation2 + $0x34] sm:$0xf]
    %v1399 = vld [vmem:[#allocation2 + $0x38] sm:$0xf]
    %v1400 = vld [vmem:[#allocation2 + $0x3c] sm:$0xf]
    %v1401 = vld [vmem:[#allocation2 + $0x40] sm:$0xf]
    %v1402 = vld [vmem:[#allocation2 + $0x44] sm:$0xf]
    %s1403 = scalar_lea.vmem %s3, 192
    %v1404 = vld [vmem:[%s1403] sm:$0xf]
    %v1405 = vld [vmem:[%s1403 + $0x4] sm:$0xf]
    %v1406 = vld [vmem:[%s1403 + $0x8] sm:$0xf]
    %v1407 = vld [vmem:[%s1403 + $0xc] sm:$0xf]
    %v1408 = vld [vmem:[%s1403 + $0x10] sm:$0xf]
    %v1409 = vld [vmem:[%s1403 + $0x14] sm:$0xf]
    %v1410 = vld [vmem:[%s1403 + $0x18] sm:$0xf]
    %v1411 = vld [vmem:[%s1403 + $0x1c] sm:$0xf]
    %v1412 = vld [vmem:[%s1403 + $0x20] sm:$0xf]
    %v1413 = vld [vmem:[%s1403 + $0x24] sm:$0xf]
    %v1414 = vld [vmem:[%s1403 + $0x28] sm:$0xf]
    %v1415 = vld [vmem:[%s1403 + $0x2c] sm:$0xf]
    %v1416 = vld [vmem:[%s1403 + $0x30] sm:$0xf]
    %v1417 = vld [vmem:[%s1403 + $0x34] sm:$0xf]
    %v1418 = vld [vmem:[%s1403 + $0x38] sm:$0xf]
    %v1419 = vld [vmem:[%s1403 + $0x3c] sm:$0xf]
    %v1436 = vunpack.c.l.b16 %v1387
    %v1437 = vunpack.c.l.b16 %v1388
    %v1438 = vunpack.c.l.b16 %v1389
    %v1439 = vunpack.c.l.b16 %v1390
    %v1440 = vunpack.c.l.b16 %v1391
    %v1441 = vunpack.c.l.b16 %v1392
    %v1442 = vunpack.c.l.b16 %v1393
    %v1443 = vunpack.c.l.b16 %v1394
    %v1444 = vunpack.c.l.b16 %v1395
    %v1445 = vunpack.c.l.b16 %v1396
    %v1446 = vunpack.c.l.b16 %v1397
    %v1447 = vunpack.c.l.b16 %v1398
    %v1448 = vunpack.c.l.b16 %v1399
    %v1449 = vunpack.c.l.b16 %v1400
    %v1450 = vunpack.c.l.b16 %v1401
    %v1451 = vunpack.c.l.b16 %v1402
    %v1452 = vpack.c.b16 %v1437, %v1436
    %v1453 = vpack.c.b16 %v1439, %v1438
    %v1454 = vpack.c.b16 %v1441, %v1440
    %v1455 = vpack.c.b16 %v1443, %v1442
    %v1456 = vpack.c.b16 %v1445, %v1444
    %v1457 = vpack.c.b16 %v1447, %v1446
    %v1458 = vpack.c.b16 %v1449, %v1448
    %v1459 = vpack.c.b16 %v1451, %v1450
    %v1484 = vunpack.c.l.b16 %v1404
    %v1485 = vunpack.c.l.b16 %v1405
    %v1486 = vunpack.c.l.b16 %v1406
    %v1487 = vunpack.c.l.b16 %v1407
    %v1488 = vunpack.c.l.b16 %v1408
    %v1489 = vunpack.c.l.b16 %v1409
    %v1490 = vunpack.c.l.b16 %v1410
    %v1491 = vunpack.c.l.b16 %v1411
    %v1492 = vunpack.c.l.b16 %v1412
    %v1493 = vunpack.c.l.b16 %v1413
    %v1494 = vunpack.c.l.b16 %v1414
    %v1495 = vunpack.c.l.b16 %v1415
    %v1496 = vunpack.c.l.b16 %v1416
    %v1497 = vunpack.c.l.b16 %v1417
    %v1498 = vunpack.c.l.b16 %v1418
    %v1499 = vunpack.c.l.b16 %v1419
    %v1500 = vpack.c.b16 %v1485, %v1484
    %v1501 = vpack.c.b16 %v1487, %v1486
    %v1502 = vpack.c.b16 %v1489, %v1488
    %v1503 = vpack.c.b16 %v1491, %v1490
    %v1504 = vpack.c.b16 %v1493, %v1492
    %v1505 = vpack.c.b16 %v1495, %v1494
    %v1506 = vpack.c.b16 %v1497, %v1496
    %v1507 = vpack.c.b16 %v1499, %v1498
    %1516 = vmatprep.subr.bf16.mxu0 0
    %1517 = vmatpush1.bf16.msra.mxu0 %v1507
    %1518 = vmatprep.subr.bf16.mxu0 0
    %1519 = vmatpush1.bf16.msra.mxu0 %v1506
    %1520 = vmatprep.subr.bf16.mxu0 0
    %1521 = vmatpush1.bf16.msra.mxu0 %v1505
    %1522 = vmatprep.subr.bf16.mxu0 0
    %1523 = vmatpush1.bf16.msra.mxu0 %v1504
    %1524 = vmatprep.subr.bf16.mxu0 0
    %1525 = vmatpush1.bf16.msra.mxu0 %v1503
    %1526 = vmatprep.subr.bf16.mxu0 0
    %1527 = vmatpush1.bf16.msra.mxu0 %v1502
    %1528 = vmatprep.subr.bf16.mxu0 0
    %1529 = vmatpush1.bf16.msra.mxu0 %v1501
    %1530 = vmatprep.subr.bf16.mxu0 0
    %1531 = vmatpush1.bf16.msra.mxu0 %v1500
    %1532 = vmatprep.subr.bf16.mxu0 0
    %1533 = vmatpush2.bf16.msra.mxu0 0
    %1534 = vmatprep.subr.bf16.mxu0 0
    %1535 = vmatpush2.bf16.msra.mxu0 0
    %1536 = vmatprep.subr.bf16.mxu0 0
    %1537 = vmatpush2.bf16.msra.mxu0 0
    %1538 = vmatprep.subr.bf16.mxu0 0
    %1539 = vmatpush2.bf16.msra.mxu0 0
    %1540 = vmatprep.subr.bf16.mxu0 0
    %1541 = vmatpush2.bf16.msra.mxu0 0
    %1542 = vmatprep.subr.bf16.mxu0 0
    %1543 = vmatpush2.bf16.msra.mxu0 0
    %1544 = vmatprep.subr.bf16.mxu0 0
    %1545 = vmatpush2.bf16.msra.mxu0 0
    %1546 = vmatprep.subr.bf16.mxu0 0
    %1547 = vmatpush2.bf16.msra.mxu0 0
    %1548 = vmatprep.mubr.bf16.mxu0 0
    %1549 = vmatmul.mubr.bf16.gmra.mxu0 %v1452
    %v1550 = vpop.f32.mrf.mxu0
    %v1551 = vadd.f32 0.0, %v1550
    %v1552 = vpop.f32.mrf.mxu0
    %v1553 = vpop.f32.mrf.mxu0
    %v1554 = vadd.f32 0.0, %v1553
    %v1555 = vpop.f32.mrf.mxu0
    %1556 = vmatprep.mubr.bf16.mxu0 0
    %1557 = vmatmul.mubr.bf16.gmra.mxu0 %v1453
    %v1558 = vpop.f32.mrf.mxu0
    %v1559 = vadd.f32 0.0, %v1558
    %v1560 = vpop.f32.mrf.mxu0
    %v1561 = vpop.f32.mrf.mxu0
    %v1562 = vadd.f32 0.0, %v1561
    %v1563 = vpop.f32.mrf.mxu0
    %1564 = vmatprep.mubr.bf16.mxu0 0
    %1565 = vmatmul.mubr.bf16.gmra.mxu0 %v1454
    %v1566 = vpop.f32.mrf.mxu0
    %v1567 = vadd.f32 0.0, %v1566
    %v1568 = vpop.f32.mrf.mxu0
    %v1569 = vpop.f32.mrf.mxu0
    %v1570 = vadd.f32 0.0, %v1569
    %v1571 = vpop.f32.mrf.mxu0
    %1572 = vmatprep.mubr.bf16.mxu0 0
    %1573 = vmatmul.mubr.bf16.gmra.mxu0 %v1455
    %v1574 = vpop.f32.mrf.mxu0
    %v1575 = vadd.f32 0.0, %v1574
    %v1576 = vpop.f32.mrf.mxu0
    %v1577 = vpop.f32.mrf.mxu0
    %v1578 = vadd.f32 0.0, %v1577
    %v1579 = vpop.f32.mrf.mxu0
    %1580 = vmatprep.mubr.bf16.mxu0 0
    %1581 = vmatmul.mubr.bf16.gmra.mxu0 %v1456
    %v1582 = vpop.f32.mrf.mxu0
    %v1583 = vadd.f32 0.0, %v1582
    %v1584 = vpop.f32.mrf.mxu0
    %v1585 = vpop.f32.mrf.mxu0
    %v1586 = vadd.f32 0.0, %v1585
    %v1587 = vpop.f32.mrf.mxu0
    %1588 = vmatprep.mubr.bf16.mxu0 0
    %1589 = vmatmul.mubr.bf16.gmra.mxu0 %v1457
    %v1590 = vpop.f32.mrf.mxu0
    %v1591 = vadd.f32 0.0, %v1590
    %v1592 = vpop.f32.mrf.mxu0
    %v1593 = vpop.f32.mrf.mxu0
    %v1594 = vadd.f32 0.0, %v1593
    %v1595 = vpop.f32.mrf.mxu0
    %1596 = vmatprep.mubr.bf16.mxu0 0
    %1597 = vmatmul.mubr.bf16.gmra.mxu0 %v1458
    %v1598 = vpop.f32.mrf.mxu0
    %v1599 = vadd.f32 0.0, %v1598
    %v1600 = vpop.f32.mrf.mxu0
    %v1601 = vpop.f32.mrf.mxu0
    %v1602 = vadd.f32 0.0, %v1601
    %v1603 = vpop.f32.mrf.mxu0
    %1604 = vmatprep.mubr.bf16.mxu0 0
    %1605 = vmatmul.mubr.bf16.gmra.mxu0 %v1459
    %v1606 = vpop.f32.mrf.mxu0
    %v1607 = vadd.f32 0.0, %v1606
    %v1608 = vpop.f32.mrf.mxu0
    %v1609 = vpop.f32.mrf.mxu0
    %v1610 = vadd.f32 0.0, %v1609
    %v1611 = vpop.f32.mrf.mxu0
    %1612 = vdwg.mxu0
    %v1613 = vadd.f32 %v1371, %v1551
    %v1614 = vadd.f32 %v1372, %v1554
    %v1615 = vadd.f32 %v1373, %v1559
    %v1616 = vadd.f32 %v1374, %v1562
    %v1617 = vadd.f32 %v1375, %v1567
    %v1618 = vadd.f32 %v1376, %v1570
    %v1619 = vadd.f32 %v1377, %v1575
    %v1620 = vadd.f32 %v1378, %v1578
    %v1621 = vadd.f32 %v1379, %v1583
    %v1622 = vadd.f32 %v1380, %v1586
    %v1623 = vadd.f32 %v1381, %v1591
    %v1624 = vadd.f32 %v1382, %v1594
    %v1625 = vadd.f32 %v1383, %v1599
    %v1626 = vadd.f32 %v1384, %v1602
    %v1627 = vadd.f32 %v1385, %v1607
    %v1628 = vadd.f32 %v1386, %v1610
    %v1629 = vld [vmem:[#allocation2 + $0x8] sm:$0xf]
    %v1630 = vld [vmem:[#allocation2 + $0xc] sm:$0xf]
    %v1631 = vld [vmem:[#allocation2 + $0x10] sm:$0xf]
    %v1632 = vld [vmem:[#allocation2 + $0x14] sm:$0xf]
    %v1633 = vld [vmem:[#allocation2 + $0x18] sm:$0xf]
    %v1634 = vld [vmem:[#allocation2 + $0x1c] sm:$0xf]
    %v1635 = vld [vmem:[#allocation2 + $0x20] sm:$0xf]
    %v1636 = vld [vmem:[#allocation2 + $0x24] sm:$0xf]
    %v1637 = vld [vmem:[#allocation2 + $0x28] sm:$0xf]
    %v1638 = vld [vmem:[#allocation2 + $0x2c] sm:$0xf]
    %v1639 = vld [vmem:[#allocation2 + $0x30] sm:$0xf]
    %v1640 = vld [vmem:[#allocation2 + $0x34] sm:$0xf]
    %v1641 = vld [vmem:[#allocation2 + $0x38] sm:$0xf]
    %v1642 = vld [vmem:[#allocation2 + $0x3c] sm:$0xf]
    %v1643 = vld [vmem:[#allocation2 + $0x40] sm:$0xf]
    %v1644 = vld [vmem:[#allocation2 + $0x44] sm:$0xf]
    %v1645 = vld [vmem:[#allocation2 + $0x48] sm:$0x1]
    %s1646 = scalar_lea.vmem %s3, 256
    %v1647 = vld [vmem:[%s1646] sm:$0xf]
    %v1648 = vld [vmem:[%s1646 + $0x4] sm:$0xf]
    %v1649 = vld [vmem:[%s1646 + $0x8] sm:$0xf]
    %v1650 = vld [vmem:[%s1646 + $0xc] sm:$0xf]
    %v1651 = vld [vmem:[%s1646 + $0x10] sm:$0xf]
    %v1652 = vld [vmem:[%s1646 + $0x14] sm:$0xf]
    %v1653 = vld [vmem:[%s1646 + $0x18] sm:$0xf]
    %v1654 = vld [vmem:[%s1646 + $0x1c] sm:$0xf]
    %v1655 = vld [vmem:[%s1646 + $0x20] sm:$0xf]
    %v1656 = vld [vmem:[%s1646 + $0x24] sm:$0xf]
    %v1657 = vld [vmem:[%s1646 + $0x28] sm:$0xf]
    %v1658 = vld [vmem:[%s1646 + $0x2c] sm:$0xf]
    %v1659 = vld [vmem:[%s1646 + $0x30] sm:$0xf]
    %v1660 = vld [vmem:[%s1646 + $0x34] sm:$0xf]
    %v1661 = vld [vmem:[%s1646 + $0x38] sm:$0xf]
    %v1662 = vld [vmem:[%s1646 + $0x3c] sm:$0xf]
    %v1680 = vunpack.c.l.b16 %v1629
    %v1681 = vunpack.c.l.b16 %v1630
    %v1682 = vunpack.c.l.b16 %v1631
    %v1683 = vunpack.c.l.b16 %v1632
    %v1684 = vunpack.c.l.b16 %v1633
    %v1685 = vunpack.c.l.b16 %v1634
    %v1686 = vunpack.c.l.b16 %v1635
    %v1687 = vunpack.c.l.b16 %v1636
    %v1688 = vunpack.c.l.b16 %v1637
    %v1689 = vunpack.c.l.b16 %v1638
    %v1690 = vunpack.c.l.b16 %v1639
    %v1691 = vunpack.c.l.b16 %v1640
    %v1692 = vunpack.c.l.b16 %v1641
    %v1693 = vunpack.c.l.b16 %v1642
    %v1694 = vunpack.c.l.b16 %v1643
    %v1695 = vunpack.c.l.b16 %v1644
    %v1696 = vunpack.c.l.b16 %v1645
    %v1697 = vpack.c.b16 %v1681, %v1680
    %v1698 = vpack.c.b16 %v1683, %v1682
    %v1699 = vpack.c.b16 %v1685, %v1684
    %v1700 = vpack.c.b16 %v1687, %v1686
    %v1701 = vpack.c.b16 %v1689, %v1688
    %v1702 = vpack.c.b16 %v1691, %v1690
    %v1703 = vpack.c.b16 %v1693, %v1692
    %v1704 = vpack.c.b16 %v1695, %v1694
    %v1705 = vpack.c.b16 %v1696, %v1696
    %v1707 = vshrl.u32 %v1697, 16
    %v1709 = vshll.u32 %v1697, 16
    %v1711 = vrot.slane %v1709, 1
    %v1712 = vor.u32 %v1707, %v1711
    %v1714 = vshll.u32 %v1698, 16
    %v1716 = vrot.slane %v1714, 1
    %v1717 = vsel %vm804, %v1712, %v1716
    %v1718 = vshrl.u32 %v1698, 16
    %v1720 = vor.u32 %v1718, %v1716
    %v1722 = vshll.u32 %v1699, 16
    %v1724 = vrot.slane %v1722, 1
    %v1725 = vsel %vm804, %v1720, %v1724
    %v1726 = vshrl.u32 %v1699, 16
    %v1728 = vor.u32 %v1726, %v1724
    %v1730 = vshll.u32 %v1700, 16
    %v1732 = vrot.slane %v1730, 1
    %v1733 = vsel %vm804, %v1728, %v1732
    %v1734 = vshrl.u32 %v1700, 16
    %v1736 = vor.u32 %v1734, %v1732
    %v1738 = vshll.u32 %v1701, 16
    %v1740 = vrot.slane %v1738, 1
    %v1741 = vsel %vm804, %v1736, %v1740
    %v1742 = vshrl.u32 %v1701, 16
    %v1744 = vor.u32 %v1742, %v1740
    %v1746 = vshll.u32 %v1702, 16
    %v1748 = vrot.slane %v1746, 1
    %v1749 = vsel %vm804, %v1744, %v1748
    %v1750 = vshrl.u32 %v1702, 16
    %v1752 = vor.u32 %v1750, %v1748
    %v1754 = vshll.u32 %v1703, 16
    %v1756 = vrot.slane %v1754, 1
    %v1757 = vsel %vm804, %v1752, %v1756
    %v1758 = vshrl.u32 %v1703, 16
    %v1760 = vor.u32 %v1758, %v1756
    %v1762 = vshll.u32 %v1704, 16
    %v1764 = vrot.slane %v1762, 1
    %v1765 = vsel %vm804, %v1760, %v1764
    %v1766 = vshrl.u32 %v1704, 16
    %v1768 = vor.u32 %v1766, %v1764
    %v1770 = vshll.u32 %v1705, 16
    %v1772 = vrot.slane %v1770, 1
    %v1773 = vsel %vm804, %v1768, %v1772
    %v1798 = vunpack.c.l.b16 %v1647
    %v1799 = vunpack.c.l.b16 %v1648
    %v1800 = vunpack.c.l.b16 %v1649
    %v1801 = vunpack.c.l.b16 %v1650
    %v1802 = vunpack.c.l.b16 %v1651
    %v1803 = vunpack.c.l.b16 %v1652
    %v1804 = vunpack.c.l.b16 %v1653
    %v1805 = vunpack.c.l.b16 %v1654
    %v1806 = vunpack.c.l.b16 %v1655
    %v1807 = vunpack.c.l.b16 %v1656
    %v1808 = vunpack.c.l.b16 %v1657
    %v1809 = vunpack.c.l.b16 %v1658
    %v1810 = vunpack.c.l.b16 %v1659
    %v1811 = vunpack.c.l.b16 %v1660
    %v1812 = vunpack.c.l.b16 %v1661
    %v1813 = vunpack.c.l.b16 %v1662
    %v1814 = vpack.c.b16 %v1799, %v1798
    %v1815 = vpack.c.b16 %v1801, %v1800
    %v1816 = vpack.c.b16 %v1803, %v1802
    %v1817 = vpack.c.b16 %v1805, %v1804
    %v1818 = vpack.c.b16 %v1807, %v1806
    %v1819 = vpack.c.b16 %v1809, %v1808
    %v1820 = vpack.c.b16 %v1811, %v1810
    %v1821 = vpack.c.b16 %v1813, %v1812
    %1830 = vmatprep.subr.bf16.mxu0 0
    %1831 = vmatpush1.bf16.msra.mxu0 %v1821
    %1832 = vmatprep.subr.bf16.mxu0 0
    %1833 = vmatpush1.bf16.msra.mxu0 %v1820
    %1834 = vmatprep.subr.bf16.mxu0 0
    %1835 = vmatpush1.bf16.msra.mxu0 %v1819
    %1836 = vmatprep.subr.bf16.mxu0 0
    %1837 = vmatpush1.bf16.msra.mxu0 %v1818
    %1838 = vmatprep.subr.bf16.mxu0 0
    %1839 = vmatpush1.bf16.msra.mxu0 %v1817
    %1840 = vmatprep.subr.bf16.mxu0 0
    %1841 = vmatpush1.bf16.msra.mxu0 %v1816
    %1842 = vmatprep.subr.bf16.mxu0 0
    %1843 = vmatpush1.bf16.msra.mxu0 %v1815
    %1844 = vmatprep.subr.bf16.mxu0 0
    %1845 = vmatpush1.bf16.msra.mxu0 %v1814
    %1846 = vmatprep.subr.bf16.mxu0 0
    %1847 = vmatpush2.bf16.msra.mxu0 0
    %1848 = vmatprep.subr.bf16.mxu0 0
    %1849 = vmatpush2.bf16.msra.mxu0 0
    %1850 = vmatprep.subr.bf16.mxu0 0
    %1851 = vmatpush2.bf16.msra.mxu0 0
    %1852 = vmatprep.subr.bf16.mxu0 0
    %1853 = vmatpush2.bf16.msra.mxu0 0
    %1854 = vmatprep.subr.bf16.mxu0 0
    %1855 = vmatpush2.bf16.msra.mxu0 0
    %1856 = vmatprep.subr.bf16.mxu0 0
    %1857 = vmatpush2.bf16.msra.mxu0 0
    %1858 = vmatprep.subr.bf16.mxu0 0
    %1859 = vmatpush2.bf16.msra.mxu0 0
    %1860 = vmatprep.subr.bf16.mxu0 0
    %1861 = vmatpush2.bf16.msra.mxu0 0
    %1862 = vmatprep.mubr.bf16.mxu0 0
    %1863 = vmatmul.mubr.bf16.gmra.mxu0 %v1717
    %v1864 = vpop.f32.mrf.mxu0
    %v1865 = vadd.f32 0.0, %v1864
    %v1866 = vpop.f32.mrf.mxu0
    %v1867 = vpop.f32.mrf.mxu0
    %v1868 = vadd.f32 0.0, %v1867
    %v1869 = vpop.f32.mrf.mxu0
    %1870 = vmatprep.mubr.bf16.mxu0 0
    %1871 = vmatmul.mubr.bf16.gmra.mxu0 %v1725
    %v1872 = vpop.f32.mrf.mxu0
    %v1873 = vadd.f32 0.0, %v1872
    %v1874 = vpop.f32.mrf.mxu0
    %v1875 = vpop.f32.mrf.mxu0
    %v1876 = vadd.f32 0.0, %v1875
    %v1877 = vpop.f32.mrf.mxu0
    %1878 = vmatprep.mubr.bf16.mxu0 0
    %1879 = vmatmul.mubr.bf16.gmra.mxu0 %v1733
    %v1880 = vpop.f32.mrf.mxu0
    %v1881 = vadd.f32 0.0, %v1880
    %v1882 = vpop.f32.mrf.mxu0
    %v1883 = vpop.f32.mrf.mxu0
    %v1884 = vadd.f32 0.0, %v1883
    %v1885 = vpop.f32.mrf.mxu0
    %1886 = vmatprep.mubr.bf16.mxu0 0
    %1887 = vmatmul.mubr.bf16.gmra.mxu0 %v1741
    %v1888 = vpop.f32.mrf.mxu0
    %v1889 = vadd.f32 0.0, %v1888
    %v1890 = vpop.f32.mrf.mxu0
    %v1891 = vpop.f32.mrf.mxu0
    %v1892 = vadd.f32 0.0, %v1891
    %v1893 = vpop.f32.mrf.mxu0
    %1894 = vmatprep.mubr.bf16.mxu0 0
    %1895 = vmatmul.mubr.bf16.gmra.mxu0 %v1749
    %v1896 = vpop.f32.mrf.mxu0
    %v1897 = vadd.f32 0.0, %v1896
    %v1898 = vpop.f32.mrf.mxu0
    %v1899 = vpop.f32.mrf.mxu0
    %v1900 = vadd.f32 0.0, %v1899
    %v1901 = vpop.f32.mrf.mxu0
    %1902 = vmatprep.mubr.bf16.mxu0 0
    %1903 = vmatmul.mubr.bf16.gmra.mxu0 %v1757
    %v1904 = vpop.f32.mrf.mxu0
    %v1905 = vadd.f32 0.0, %v1904
    %v1906 = vpop.f32.mrf.mxu0
    %v1907 = vpop.f32.mrf.mxu0
    %v1908 = vadd.f32 0.0, %v1907
    %v1909 = vpop.f32.mrf.mxu0
    %1910 = vmatprep.mubr.bf16.mxu0 0
    %1911 = vmatmul.mubr.bf16.gmra.mxu0 %v1765
    %v1912 = vpop.f32.mrf.mxu0
    %v1913 = vadd.f32 0.0, %v1912
    %v1914 = vpop.f32.mrf.mxu0
    %v1915 = vpop.f32.mrf.mxu0
    %v1916 = vadd.f32 0.0, %v1915
    %v1917 = vpop.f32.mrf.mxu0
    %1918 = vmatprep.mubr.bf16.mxu0 0
    %1919 = vmatmul.mubr.bf16.gmra.mxu0 %v1773
    %v1920 = vpop.f32.mrf.mxu0
    %v1921 = vadd.f32 0.0, %v1920
    %v1922 = vpop.f32.mrf.mxu0
    %v1923 = vpop.f32.mrf.mxu0
    %v1924 = vadd.f32 0.0, %v1923
    %v1925 = vpop.f32.mrf.mxu0
    %1926 = vdwg.mxu0
    %v1927 = vadd.f32 %v1613, %v1865
    %v1928 = vadd.f32 %v1614, %v1868
    %v1929 = vadd.f32 %v1615, %v1873
    %v1930 = vadd.f32 %v1616, %v1876
    %v1931 = vadd.f32 %v1617, %v1881
    %v1932 = vadd.f32 %v1618, %v1884
    %v1933 = vadd.f32 %v1619, %v1889
    %v1934 = vadd.f32 %v1620, %v1892
    %v1935 = vadd.f32 %v1621, %v1897
    %v1936 = vadd.f32 %v1622, %v1900
    %v1937 = vadd.f32 %v1623, %v1905
    %v1938 = vadd.f32 %v1624, %v1908
    %v1939 = vadd.f32 %v1625, %v1913
    %v1940 = vadd.f32 %v1626, %v1916
    %v1941 = vadd.f32 %v1627, %v1921
    %v1942 = vadd.f32 %v1628, %v1924
    %v1943 = vld [vmem:[#allocation2 + $0x8] sm:$0xe]
    %s1944 = scalar_lea.vmem %s3, 320
    %v1945 = vld [vmem:[%s1944] sm:$0xf]
    %v1946 = vld [vmem:[%s1944 + $0x4] sm:$0xf]
    %v1947 = vld [vmem:[%s1944 + $0x8] sm:$0xf]
    %v1948 = vld [vmem:[%s1944 + $0xc] sm:$0xf]
    %v1949 = vld [vmem:[%s1944 + $0x10] sm:$0xf]
    %v1950 = vld [vmem:[%s1944 + $0x14] sm:$0xf]
    %v1951 = vld [vmem:[%s1944 + $0x18] sm:$0xf]
    %v1952 = vld [vmem:[%s1944 + $0x1c] sm:$0xf]
    %v1953 = vld [vmem:[%s1944 + $0x20] sm:$0xf]
    %v1954 = vld [vmem:[%s1944 + $0x24] sm:$0xf]
    %v1955 = vld [vmem:[%s1944 + $0x28] sm:$0xf]
    %v1956 = vld [vmem:[%s1944 + $0x2c] sm:$0xf]
    %v1957 = vld [vmem:[%s1944 + $0x30] sm:$0xf]
    %v1958 = vld [vmem:[%s1944 + $0x34] sm:$0xf]
    %v1959 = vld [vmem:[%s1944 + $0x38] sm:$0xf]
    %v1960 = vld [vmem:[%s1944 + $0x3c] sm:$0xf]
    %v1962 = vunpack.c.l.b16 %v1943
    %v1963 = vpack.c.b16 %v1681, %v1962
    %v1964 = vrot.slane %v1963, 1
    %v1965 = vrot.slane %v1698, 1
    %v1966 = vsel %vm1200, %v1964, %v1965
    %v1967 = vrot.slane %v1699, 1
    %v1968 = vsel %vm1200, %v1965, %v1967
    %v1969 = vrot.slane %v1700, 1
    %v1970 = vsel %vm1200, %v1967, %v1969
    %v1971 = vrot.slane %v1701, 1
    %v1972 = vsel %vm1200, %v1969, %v1971
    %v1973 = vrot.slane %v1702, 1
    %v1974 = vsel %vm1200, %v1971, %v1973
    %v1975 = vrot.slane %v1703, 1
    %v1976 = vsel %vm1200, %v1973, %v1975
    %v1977 = vrot.slane %v1704, 1
    %v1978 = vsel %vm1200, %v1975, %v1977
    %v1979 = vrot.slane %v1705, 1
    %v1980 = vsel %vm1200, %v1977, %v1979
    %v2005 = vunpack.c.l.b16 %v1945
    %v2006 = vunpack.c.l.b16 %v1946
    %v2007 = vunpack.c.l.b16 %v1947
    %v2008 = vunpack.c.l.b16 %v1948
    %v2009 = vunpack.c.l.b16 %v1949
    %v2010 = vunpack.c.l.b16 %v1950
    %v2011 = vunpack.c.l.b16 %v1951
    %v2012 = vunpack.c.l.b16 %v1952
    %v2013 = vunpack.c.l.b16 %v1953
    %v2014 = vunpack.c.l.b16 %v1954
    %v2015 = vunpack.c.l.b16 %v1955
    %v2016 = vunpack.c.l.b16 %v1956
    %v2017 = vunpack.c.l.b16 %v1957
    %v2018 = vunpack.c.l.b16 %v1958
    %v2019 = vunpack.c.l.b16 %v1959
    %v2020 = vunpack.c.l.b16 %v1960
    %v2021 = vpack.c.b16 %v2006, %v2005
    %v2022 = vpack.c.b16 %v2008, %v2007
    %v2023 = vpack.c.b16 %v2010, %v2009
    %v2024 = vpack.c.b16 %v2012, %v2011
    %v2025 = vpack.c.b16 %v2014, %v2013
    %v2026 = vpack.c.b16 %v2016, %v2015
    %v2027 = vpack.c.b16 %v2018, %v2017
    %v2028 = vpack.c.b16 %v2020, %v2019
    %2037 = vmatprep.subr.bf16.mxu0 0
    %2038 = vmatpush1.bf16.msra.mxu0 %v2028
    %2039 = vmatprep.subr.bf16.mxu0 0
    %2040 = vmatpush1.bf16.msra.mxu0 %v2027
    %2041 = vmatprep.subr.bf16.mxu0 0
    %2042 = vmatpush1.bf16.msra.mxu0 %v2026
    %2043 = vmatprep.subr.bf16.mxu0 0
    %2044 = vmatpush1.bf16.msra.mxu0 %v2025
    %2045 = vmatprep.subr.bf16.mxu0 0
    %2046 = vmatpush1.bf16.msra.mxu0 %v2024
    %2047 = vmatprep.subr.bf16.mxu0 0
    %2048 = vmatpush1.bf16.msra.mxu0 %v2023
    %2049 = vmatprep.subr.bf16.mxu0 0
    %2050 = vmatpush1.bf16.msra.mxu0 %v2022
    %2051 = vmatprep.subr.bf16.mxu0 0
    %2052 = vmatpush1.bf16.msra.mxu0 %v2021
    %2053 = vmatprep.subr.bf16.mxu0 0
    %2054 = vmatpush2.bf16.msra.mxu0 0
    %2055 = vmatprep.subr.bf16.mxu0 0
    %2056 = vmatpush2.bf16.msra.mxu0 0
    %2057 = vmatprep.subr.bf16.mxu0 0
    %2058 = vmatpush2.bf16.msra.mxu0 0
    %2059 = vmatprep.subr.bf16.mxu0 0
    %2060 = vmatpush2.bf16.msra.mxu0 0
    %2061 = vmatprep.subr.bf16.mxu0 0
    %2062 = vmatpush2.bf16.msra.mxu0 0
    %2063 = vmatprep.subr.bf16.mxu0 0
    %2064 = vmatpush2.bf16.msra.mxu0 0
    %2065 = vmatprep.subr.bf16.mxu0 0
    %2066 = vmatpush2.bf16.msra.mxu0 0
    %2067 = vmatprep.subr.bf16.mxu0 0
    %2068 = vmatpush2.bf16.msra.mxu0 0
    %2069 = vmatprep.mubr.bf16.mxu0 0
    %2070 = vmatmul.mubr.bf16.gmra.mxu0 %v1966
    %v2071 = vpop.f32.mrf.mxu0
    %v2072 = vadd.f32 0.0, %v2071
    %v2073 = vpop.f32.mrf.mxu0
    %v2074 = vpop.f32.mrf.mxu0
    %v2075 = vadd.f32 0.0, %v2074
    %v2076 = vpop.f32.mrf.mxu0
    %2077 = vmatprep.mubr.bf16.mxu0 0
    %2078 = vmatmul.mubr.bf16.gmra.mxu0 %v1968
    %v2079 = vpop.f32.mrf.mxu0
    %v2080 = vadd.f32 0.0, %v2079
    %v2081 = vpop.f32.mrf.mxu0
    %v2082 = vpop.f32.mrf.mxu0
    %v2083 = vadd.f32 0.0, %v2082
    %v2084 = vpop.f32.mrf.mxu0
    %2085 = vmatprep.mubr.bf16.mxu0 0
    %2086 = vmatmul.mubr.bf16.gmra.mxu0 %v1970
    %v2087 = vpop.f32.mrf.mxu0
    %v2088 = vadd.f32 0.0, %v2087
    %v2089 = vpop.f32.mrf.mxu0
    %v2090 = vpop.f32.mrf.mxu0
    %v2091 = vadd.f32 0.0, %v2090
    %v2092 = vpop.f32.mrf.mxu0
    %2093 = vmatprep.mubr.bf16.mxu0 0
    %2094 = vmatmul.mubr.bf16.gmra.mxu0 %v1972
    %v2095 = vpop.f32.mrf.mxu0
    %v2096 = vadd.f32 0.0, %v2095
    %v2097 = vpop.f32.mrf.mxu0
    %v2098 = vpop.f32.mrf.mxu0
    %v2099 = vadd.f32 0.0, %v2098
    %v2100 = vpop.f32.mrf.mxu0
    %2101 = vmatprep.mubr.bf16.mxu0 0
    %2102 = vmatmul.mubr.bf16.gmra.mxu0 %v1974
    %v2103 = vpop.f32.mrf.mxu0
    %v2104 = vadd.f32 0.0, %v2103
    %v2105 = vpop.f32.mrf.mxu0
    %v2106 = vpop.f32.mrf.mxu0
    %v2107 = vadd.f32 0.0, %v2106
    %v2108 = vpop.f32.mrf.mxu0
    %2109 = vmatprep.mubr.bf16.mxu0 0
    %2110 = vmatmul.mubr.bf16.gmra.mxu0 %v1976
    %v2111 = vpop.f32.mrf.mxu0
    %v2112 = vadd.f32 0.0, %v2111
    %v2113 = vpop.f32.mrf.mxu0
    %v2114 = vpop.f32.mrf.mxu0
    %v2115 = vadd.f32 0.0, %v2114
    %v2116 = vpop.f32.mrf.mxu0
    %2117 = vmatprep.mubr.bf16.mxu0 0
    %2118 = vmatmul.mubr.bf16.gmra.mxu0 %v1978
    %v2119 = vpop.f32.mrf.mxu0
    %v2120 = vadd.f32 0.0, %v2119
    %v2121 = vpop.f32.mrf.mxu0
    %v2122 = vpop.f32.mrf.mxu0
    %v2123 = vadd.f32 0.0, %v2122
    %v2124 = vpop.f32.mrf.mxu0
    %2125 = vmatprep.mubr.bf16.mxu0 0
    %2126 = vmatmul.mubr.bf16.gmra.mxu0 %v1980
    %v2127 = vpop.f32.mrf.mxu0
    %v2128 = vadd.f32 0.0, %v2127
    %v2129 = vpop.f32.mrf.mxu0
    %v2130 = vpop.f32.mrf.mxu0
    %v2131 = vadd.f32 0.0, %v2130
    %v2132 = vpop.f32.mrf.mxu0
    %2133 = vdwg.mxu0
    %v2134 = vadd.f32 %v1927, %v2072
    %v2135 = vadd.f32 %v1928, %v2075
    %v2136 = vadd.f32 %v1929, %v2080
    %v2137 = vadd.f32 %v1930, %v2083
    %v2138 = vadd.f32 %v1931, %v2088
    %v2139 = vadd.f32 %v1932, %v2091
    %v2140 = vadd.f32 %v1933, %v2096
    %v2141 = vadd.f32 %v1934, %v2099
    %v2142 = vadd.f32 %v1935, %v2104
    %v2143 = vadd.f32 %v1936, %v2107
    %v2144 = vadd.f32 %v1937, %v2112
    %v2145 = vadd.f32 %v1938, %v2115
    %v2146 = vadd.f32 %v1939, %v2120
    %v2147 = vadd.f32 %v1940, %v2123
    %v2148 = vadd.f32 %v1941, %v2128
    %v2149 = vadd.f32 %v1942, %v2131
    %v2150 = vld [vmem:[#allocation2 + $0x10] sm:$0xf]
    %v2151 = vld [vmem:[#allocation2 + $0x14] sm:$0xf]
    %v2152 = vld [vmem:[#allocation2 + $0x18] sm:$0xf]
    %v2153 = vld [vmem:[#allocation2 + $0x1c] sm:$0xf]
    %v2154 = vld [vmem:[#allocation2 + $0x20] sm:$0xf]
    %v2155 = vld [vmem:[#allocation2 + $0x24] sm:$0xf]
    %v2156 = vld [vmem:[#allocation2 + $0x28] sm:$0xf]
    %v2157 = vld [vmem:[#allocation2 + $0x2c] sm:$0xf]
    %v2158 = vld [vmem:[#allocation2 + $0x30] sm:$0xf]
    %v2159 = vld [vmem:[#allocation2 + $0x34] sm:$0xf]
    %v2160 = vld [vmem:[#allocation2 + $0x38] sm:$0xf]
    %v2161 = vld [vmem:[#allocation2 + $0x3c] sm:$0xf]
    %v2162 = vld [vmem:[#allocation2 + $0x40] sm:$0xf]
    %v2163 = vld [vmem:[#allocation2 + $0x44] sm:$0xf]
    %v2164 = vld [vmem:[#allocation2 + $0x48] sm:$0xf]
    %v2165 = vld [vmem:[#allocation2 + $0x4c] sm:$0xf]
    %s2166 = scalar_lea.vmem %s3, 384
    %v2167 = vld [vmem:[%s2166] sm:$0xf]
    %v2168 = vld [vmem:[%s2166 + $0x4] sm:$0xf]
    %v2169 = vld [vmem:[%s2166 + $0x8] sm:$0xf]
    %v2170 = vld [vmem:[%s2166 + $0xc] sm:$0xf]
    %v2171 = vld [vmem:[%s2166 + $0x10] sm:$0xf]
    %v2172 = vld [vmem:[%s2166 + $0x14] sm:$0xf]
    %v2173 = vld [vmem:[%s2166 + $0x18] sm:$0xf]
    %v2174 = vld [vmem:[%s2166 + $0x1c] sm:$0xf]
    %v2175 = vld [vmem:[%s2166 + $0x20] sm:$0xf]
    %v2176 = vld [vmem:[%s2166 + $0x24] sm:$0xf]
    %v2177 = vld [vmem:[%s2166 + $0x28] sm:$0xf]
    %v2178 = vld [vmem:[%s2166 + $0x2c] sm:$0xf]
    %v2179 = vld [vmem:[%s2166 + $0x30] sm:$0xf]
    %v2180 = vld [vmem:[%s2166 + $0x34] sm:$0xf]
    %v2181 = vld [vmem:[%s2166 + $0x38] sm:$0xf]
    %v2182 = vld [vmem:[%s2166 + $0x3c] sm:$0xf]
    %v2199 = vunpack.c.l.b16 %v2150
    %v2200 = vunpack.c.l.b16 %v2151
    %v2201 = vunpack.c.l.b16 %v2152
    %v2202 = vunpack.c.l.b16 %v2153
    %v2203 = vunpack.c.l.b16 %v2154
    %v2204 = vunpack.c.l.b16 %v2155
    %v2205 = vunpack.c.l.b16 %v2156
    %v2206 = vunpack.c.l.b16 %v2157
    %v2207 = vunpack.c.l.b16 %v2158
    %v2208 = vunpack.c.l.b16 %v2159
    %v2209 = vunpack.c.l.b16 %v2160
    %v2210 = vunpack.c.l.b16 %v2161
    %v2211 = vunpack.c.l.b16 %v2162
    %v2212 = vunpack.c.l.b16 %v2163
    %v2213 = vunpack.c.l.b16 %v2164
    %v2214 = vunpack.c.l.b16 %v2165
    %v2215 = vpack.c.b16 %v2200, %v2199
    %v2216 = vpack.c.b16 %v2202, %v2201
    %v2217 = vpack.c.b16 %v2204, %v2203
    %v2218 = vpack.c.b16 %v2206, %v2205
    %v2219 = vpack.c.b16 %v2208, %v2207
    %v2220 = vpack.c.b16 %v2210, %v2209
    %v2221 = vpack.c.b16 %v2212, %v2211
    %v2222 = vpack.c.b16 %v2214, %v2213
    %v2247 = vunpack.c.l.b16 %v2167
    %v2248 = vunpack.c.l.b16 %v2168
    %v2249 = vunpack.c.l.b16 %v2169
    %v2250 = vunpack.c.l.b16 %v2170
    %v2251 = vunpack.c.l.b16 %v2171
    %v2252 = vunpack.c.l.b16 %v2172
    %v2253 = vunpack.c.l.b16 %v2173
    %v2254 = vunpack.c.l.b16 %v2174
    %v2255 = vunpack.c.l.b16 %v2175
    %v2256 = vunpack.c.l.b16 %v2176
    %v2257 = vunpack.c.l.b16 %v2177
    %v2258 = vunpack.c.l.b16 %v2178
    %v2259 = vunpack.c.l.b16 %v2179
    %v2260 = vunpack.c.l.b16 %v2180
    %v2261 = vunpack.c.l.b16 %v2181
    %v2262 = vunpack.c.l.b16 %v2182
    %v2263 = vpack.c.b16 %v2248, %v2247
    %v2264 = vpack.c.b16 %v2250, %v2249
    %v2265 = vpack.c.b16 %v2252, %v2251
    %v2266 = vpack.c.b16 %v2254, %v2253
    %v2267 = vpack.c.b16 %v2256, %v2255
    %v2268 = vpack.c.b16 %v2258, %v2257
    %v2269 = vpack.c.b16 %v2260, %v2259
    %v2270 = vpack.c.b16 %v2262, %v2261
    %2279 = vmatprep.subr.bf16.mxu0 0
    %2280 = vmatpush1.bf16.msra.mxu0 %v2270
    %2281 = vmatprep.subr.bf16.mxu0 0
    %2282 = vmatpush1.bf16.msra.mxu0 %v2269
    %2283 = vmatprep.subr.bf16.mxu0 0
    %2284 = vmatpush1.bf16.msra.mxu0 %v2268
    %2285 = vmatprep.subr.bf16.mxu0 0
    %2286 = vmatpush1.bf16.msra.mxu0 %v2267
    %2287 = vmatprep.subr.bf16.mxu0 0
    %2288 = vmatpush1.bf16.msra.mxu0 %v2266
    %2289 = vmatprep.subr.bf16.mxu0 0
    %2290 = vmatpush1.bf16.msra.mxu0 %v2265
    %2291 = vmatprep.subr.bf16.mxu0 0
    %2292 = vmatpush1.bf16.msra.mxu0 %v2264
    %2293 = vmatprep.subr.bf16.mxu0 0
    %2294 = vmatpush1.bf16.msra.mxu0 %v2263
    %2295 = vmatprep.subr.bf16.mxu0 0
    %2296 = vmatpush2.bf16.msra.mxu0 0
    %2297 = vmatprep.subr.bf16.mxu0 0
    %2298 = vmatpush2.bf16.msra.mxu0 0
    %2299 = vmatprep.subr.bf16.mxu0 0
    %2300 = vmatpush2.bf16.msra.mxu0 0
    %2301 = vmatprep.subr.bf16.mxu0 0
    %2302 = vmatpush2.bf16.msra.mxu0 0
    %2303 = vmatprep.subr.bf16.mxu0 0
    %2304 = vmatpush2.bf16.msra.mxu0 0
    %2305 = vmatprep.subr.bf16.mxu0 0
    %2306 = vmatpush2.bf16.msra.mxu0 0
    %2307 = vmatprep.subr.bf16.mxu0 0
    %2308 = vmatpush2.bf16.msra.mxu0 0
    %2309 = vmatprep.subr.bf16.mxu0 0
    %2310 = vmatpush2.bf16.msra.mxu0 0
    %2311 = vmatprep.mubr.bf16.mxu0 0
    %2312 = vmatmul.mubr.bf16.gmra.mxu0 %v2215
    %v2313 = vpop.f32.mrf.mxu0
    %v2314 = vadd.f32 0.0, %v2313
    %v2315 = vpop.f32.mrf.mxu0
    %v2316 = vpop.f32.mrf.mxu0
    %v2317 = vadd.f32 0.0, %v2316
    %v2318 = vpop.f32.mrf.mxu0
    %2319 = vmatprep.mubr.bf16.mxu0 0
    %2320 = vmatmul.mubr.bf16.gmra.mxu0 %v2216
    %v2321 = vpop.f32.mrf.mxu0
    %v2322 = vadd.f32 0.0, %v2321
    %v2323 = vpop.f32.mrf.mxu0
    %v2324 = vpop.f32.mrf.mxu0
    %v2325 = vadd.f32 0.0, %v2324
    %v2326 = vpop.f32.mrf.mxu0
    %2327 = vmatprep.mubr.bf16.mxu0 0
    %2328 = vmatmul.mubr.bf16.gmra.mxu0 %v2217
    %v2329 = vpop.f32.mrf.mxu0
    %v2330 = vadd.f32 0.0, %v2329
    %v2331 = vpop.f32.mrf.mxu0
    %v2332 = vpop.f32.mrf.mxu0
    %v2333 = vadd.f32 0.0, %v2332
    %v2334 = vpop.f32.mrf.mxu0
    %2335 = vmatprep.mubr.bf16.mxu0 0
    %2336 = vmatmul.mubr.bf16.gmra.mxu0 %v2218
    %v2337 = vpop.f32.mrf.mxu0
    %v2338 = vadd.f32 0.0, %v2337
    %v2339 = vpop.f32.mrf.mxu0
    %v2340 = vpop.f32.mrf.mxu0
    %v2341 = vadd.f32 0.0, %v2340
    %v2342 = vpop.f32.mrf.mxu0
    %2343 = vmatprep.mubr.bf16.mxu0 0
    %2344 = vmatmul.mubr.bf16.gmra.mxu0 %v2219
    %v2345 = vpop.f32.mrf.mxu0
    %v2346 = vadd.f32 0.0, %v2345
    %v2347 = vpop.f32.mrf.mxu0
    %v2348 = vpop.f32.mrf.mxu0
    %v2349 = vadd.f32 0.0, %v2348
    %v2350 = vpop.f32.mrf.mxu0
    %2351 = vmatprep.mubr.bf16.mxu0 0
    %2352 = vmatmul.mubr.bf16.gmra.mxu0 %v2220
    %v2353 = vpop.f32.mrf.mxu0
    %v2354 = vadd.f32 0.0, %v2353
    %v2355 = vpop.f32.mrf.mxu0
    %v2356 = vpop.f32.mrf.mxu0
    %v2357 = vadd.f32 0.0, %v2356
    %v2358 = vpop.f32.mrf.mxu0
    %2359 = vmatprep.mubr.bf16.mxu0 0
    %2360 = vmatmul.mubr.bf16.gmra.mxu0 %v2221
    %v2361 = vpop.f32.mrf.mxu0
    %v2362 = vadd.f32 0.0, %v2361
    %v2363 = vpop.f32.mrf.mxu0
    %v2364 = vpop.f32.mrf.mxu0
    %v2365 = vadd.f32 0.0, %v2364
    %v2366 = vpop.f32.mrf.mxu0
    %2367 = vmatprep.mubr.bf16.mxu0 0
    %2368 = vmatmul.mubr.bf16.gmra.mxu0 %v2222
    %v2369 = vpop.f32.mrf.mxu0
    %v2370 = vadd.f32 0.0, %v2369
    %v2371 = vpop.f32.mrf.mxu0
    %v2372 = vpop.f32.mrf.mxu0
    %v2373 = vadd.f32 0.0, %v2372
    %v2374 = vpop.f32.mrf.mxu0
    %2375 = vdwg.mxu0
    %v2376 = vadd.f32 %v2134, %v2314
    %v2377 = vadd.f32 %v2135, %v2317
    %v2378 = vadd.f32 %v2136, %v2322
    %v2379 = vadd.f32 %v2137, %v2325
    %v2380 = vadd.f32 %v2138, %v2330
    %v2381 = vadd.f32 %v2139, %v2333
    %v2382 = vadd.f32 %v2140, %v2338
    %v2383 = vadd.f32 %v2141, %v2341
    %v2384 = vadd.f32 %v2142, %v2346
    %v2385 = vadd.f32 %v2143, %v2349
    %v2386 = vadd.f32 %v2144, %v2354
    %v2387 = vadd.f32 %v2145, %v2357
    %v2388 = vadd.f32 %v2146, %v2362
    %v2389 = vadd.f32 %v2147, %v2365
    %v2390 = vadd.f32 %v2148, %v2370
    %v2391 = vadd.f32 %v2149, %v2373
    %v2392 = vld [vmem:[#allocation2 + $0x10] sm:$0xf]
    %v2393 = vld [vmem:[#allocation2 + $0x14] sm:$0xf]
    %v2394 = vld [vmem:[#allocation2 + $0x18] sm:$0xf]
    %v2395 = vld [vmem:[#allocation2 + $0x1c] sm:$0xf]
    %v2396 = vld [vmem:[#allocation2 + $0x20] sm:$0xf]
    %v2397 = vld [vmem:[#allocation2 + $0x24] sm:$0xf]
    %v2398 = vld [vmem:[#allocation2 + $0x28] sm:$0xf]
    %v2399 = vld [vmem:[#allocation2 + $0x2c] sm:$0xf]
    %v2400 = vld [vmem:[#allocation2 + $0x30] sm:$0xf]
    %v2401 = vld [vmem:[#allocation2 + $0x34] sm:$0xf]
    %v2402 = vld [vmem:[#allocation2 + $0x38] sm:$0xf]
    %v2403 = vld [vmem:[#allocation2 + $0x3c] sm:$0xf]
    %v2404 = vld [vmem:[#allocation2 + $0x40] sm:$0xf]
    %v2405 = vld [vmem:[#allocation2 + $0x44] sm:$0xf]
    %v2406 = vld [vmem:[#allocation2 + $0x48] sm:$0xf]
    %v2407 = vld [vmem:[#allocation2 + $0x4c] sm:$0xf]
    %v2408 = vld [vmem:[#allocation2 + $0x50] sm:$0x1]
    %s2409 = scalar_lea.vmem %s3, 448
    %v2410 = vld [vmem:[%s2409] sm:$0xf]
    %v2411 = vld [vmem:[%s2409 + $0x4] sm:$0xf]
    %v2412 = vld [vmem:[%s2409 + $0x8] sm:$0xf]
    %v2413 = vld [vmem:[%s2409 + $0xc] sm:$0xf]
    %v2414 = vld [vmem:[%s2409 + $0x10] sm:$0xf]
    %v2415 = vld [vmem:[%s2409 + $0x14] sm:$0xf]
    %v2416 = vld [vmem:[%s2409 + $0x18] sm:$0xf]
    %v2417 = vld [vmem:[%s2409 + $0x1c] sm:$0xf]
    %v2418 = vld [vmem:[%s2409 + $0x20] sm:$0xf]
    %v2419 = vld [vmem:[%s2409 + $0x24] sm:$0xf]
    %v2420 = vld [vmem:[%s2409 + $0x28] sm:$0xf]
    %v2421 = vld [vmem:[%s2409 + $0x2c] sm:$0xf]
    %v2422 = vld [vmem:[%s2409 + $0x30] sm:$0xf]
    %v2423 = vld [vmem:[%s2409 + $0x34] sm:$0xf]
    %v2424 = vld [vmem:[%s2409 + $0x38] sm:$0xf]
    %v2425 = vld [vmem:[%s2409 + $0x3c] sm:$0xf]
    %v2443 = vunpack.c.l.b16 %v2392
    %v2444 = vunpack.c.l.b16 %v2393
    %v2445 = vunpack.c.l.b16 %v2394
    %v2446 = vunpack.c.l.b16 %v2395
    %v2447 = vunpack.c.l.b16 %v2396
    %v2448 = vunpack.c.l.b16 %v2397
    %v2449 = vunpack.c.l.b16 %v2398
    %v2450 = vunpack.c.l.b16 %v2399
    %v2451 = vunpack.c.l.b16 %v2400
    %v2452 = vunpack.c.l.b16 %v2401
    %v2453 = vunpack.c.l.b16 %v2402
    %v2454 = vunpack.c.l.b16 %v2403
    %v2455 = vunpack.c.l.b16 %v2404
    %v2456 = vunpack.c.l.b16 %v2405
    %v2457 = vunpack.c.l.b16 %v2406
    %v2458 = vunpack.c.l.b16 %v2407
    %v2459 = vunpack.c.l.b16 %v2408
    %v2460 = vpack.c.b16 %v2444, %v2443
    %v2461 = vpack.c.b16 %v2446, %v2445
    %v2462 = vpack.c.b16 %v2448, %v2447
    %v2463 = vpack.c.b16 %v2450, %v2449
    %v2464 = vpack.c.b16 %v2452, %v2451
    %v2465 = vpack.c.b16 %v2454, %v2453
    %v2466 = vpack.c.b16 %v2456, %v2455
    %v2467 = vpack.c.b16 %v2458, %v2457
    %v2468 = vpack.c.b16 %v2459, %v2459
    %v2470 = vshrl.u32 %v2460, 16
    %v2472 = vshll.u32 %v2460, 16
    %v2474 = vrot.slane %v2472, 1
    %v2475 = vor.u32 %v2470, %v2474
    %v2477 = vshll.u32 %v2461, 16
    %v2479 = vrot.slane %v2477, 1
    %v2480 = vsel %vm804, %v2475, %v2479
    %v2481 = vshrl.u32 %v2461, 16
    %v2483 = vor.u32 %v2481, %v2479
    %v2485 = vshll.u32 %v2462, 16
    %v2487 = vrot.slane %v2485, 1
    %v2488 = vsel %vm804, %v2483, %v2487
    %v2489 = vshrl.u32 %v2462, 16
    %v2491 = vor.u32 %v2489, %v2487
    %v2493 = vshll.u32 %v2463, 16
    %v2495 = vrot.slane %v2493, 1
    %v2496 = vsel %vm804, %v2491, %v2495
    %v2497 = vshrl.u32 %v2463, 16
    %v2499 = vor.u32 %v2497, %v2495
    %v2501 = vshll.u32 %v2464, 16
    %v2503 = vrot.slane %v2501, 1
    %v2504 = vsel %vm804, %v2499, %v2503
    %v2505 = vshrl.u32 %v2464, 16
    %v2507 = vor.u32 %v2505, %v2503
    %v2509 = vshll.u32 %v2465, 16
    %v2511 = vrot.slane %v2509, 1
    %v2512 = vsel %vm804, %v2507, %v2511
    %v2513 = vshrl.u32 %v2465, 16
    %v2515 = vor.u32 %v2513, %v2511
    %v2517 = vshll.u32 %v2466, 16
    %v2519 = vrot.slane %v2517, 1
    %v2520 = vsel %vm804, %v2515, %v2519
    %v2521 = vshrl.u32 %v2466, 16
    %v2523 = vor.u32 %v2521, %v2519
    %v2525 = vshll.u32 %v2467, 16
    %v2527 = vrot.slane %v2525, 1
    %v2528 = vsel %vm804, %v2523, %v2527
    %v2529 = vshrl.u32 %v2467, 16
    %v2531 = vor.u32 %v2529, %v2527
    %v2533 = vshll.u32 %v2468, 16
    %v2535 = vrot.slane %v2533, 1
    %v2536 = vsel %vm804, %v2531, %v2535
    %v2561 = vunpack.c.l.b16 %v2410
    %v2562 = vunpack.c.l.b16 %v2411
    %v2563 = vunpack.c.l.b16 %v2412
    %v2564 = vunpack.c.l.b16 %v2413
    %v2565 = vunpack.c.l.b16 %v2414
    %v2566 = vunpack.c.l.b16 %v2415
    %v2567 = vunpack.c.l.b16 %v2416
    %v2568 = vunpack.c.l.b16 %v2417
    %v2569 = vunpack.c.l.b16 %v2418
    %v2570 = vunpack.c.l.b16 %v2419
    %v2571 = vunpack.c.l.b16 %v2420
    %v2572 = vunpack.c.l.b16 %v2421
    %v2573 = vunpack.c.l.b16 %v2422
    %v2574 = vunpack.c.l.b16 %v2423
    %v2575 = vunpack.c.l.b16 %v2424
    %v2576 = vunpack.c.l.b16 %v2425
    %v2577 = vpack.c.b16 %v2562, %v2561
    %v2578 = vpack.c.b16 %v2564, %v2563
    %v2579 = vpack.c.b16 %v2566, %v2565
    %v2580 = vpack.c.b16 %v2568, %v2567
    %v2581 = vpack.c.b16 %v2570, %v2569
    %v2582 = vpack.c.b16 %v2572, %v2571
    %v2583 = vpack.c.b16 %v2574, %v2573
    %v2584 = vpack.c.b16 %v2576, %v2575
    %2593 = vmatprep.subr.bf16.mxu0 0
    %2594 = vmatpush1.bf16.msra.mxu0 %v2584
    %2595 = vmatprep.subr.bf16.mxu0 0
    %2596 = vmatpush1.bf16.msra.mxu0 %v2583
    %2597 = vmatprep.subr.bf16.mxu0 0
    %2598 = vmatpush1.bf16.msra.mxu0 %v2582
    %2599 = vmatprep.subr.bf16.mxu0 0
    %2600 = vmatpush1.bf16.msra.mxu0 %v2581
    %2601 = vmatprep.subr.bf16.mxu0 0
    %2602 = vmatpush1.bf16.msra.mxu0 %v2580
    %2603 = vmatprep.subr.bf16.mxu0 0
    %2604 = vmatpush1.bf16.msra.mxu0 %v2579
    %2605 = vmatprep.subr.bf16.mxu0 0
    %2606 = vmatpush1.bf16.msra.mxu0 %v2578
    %2607 = vmatprep.subr.bf16.mxu0 0
    %2608 = vmatpush1.bf16.msra.mxu0 %v2577
    %2609 = vmatprep.subr.bf16.mxu0 0
    %2610 = vmatpush2.bf16.msra.mxu0 0
    %2611 = vmatprep.subr.bf16.mxu0 0
    %2612 = vmatpush2.bf16.msra.mxu0 0
    %2613 = vmatprep.subr.bf16.mxu0 0
    %2614 = vmatpush2.bf16.msra.mxu0 0
    %2615 = vmatprep.subr.bf16.mxu0 0
    %2616 = vmatpush2.bf16.msra.mxu0 0
    %2617 = vmatprep.subr.bf16.mxu0 0
    %2618 = vmatpush2.bf16.msra.mxu0 0
    %2619 = vmatprep.subr.bf16.mxu0 0
    %2620 = vmatpush2.bf16.msra.mxu0 0
    %2621 = vmatprep.subr.bf16.mxu0 0
    %2622 = vmatpush2.bf16.msra.mxu0 0
    %2623 = vmatprep.subr.bf16.mxu0 0
    %2624 = vmatpush2.bf16.msra.mxu0 0
    %2625 = vmatprep.mubr.bf16.mxu0 0
    %2626 = vmatmul.mubr.bf16.gmra.mxu0 %v2480
    %v2627 = vpop.f32.mrf.mxu0
    %v2628 = vadd.f32 0.0, %v2627
    %v2629 = vpop.f32.mrf.mxu0
    %v2630 = vpop.f32.mrf.mxu0
    %v2631 = vadd.f32 0.0, %v2630
    %v2632 = vpop.f32.mrf.mxu0
    %2633 = vmatprep.mubr.bf16.mxu0 0
    %2634 = vmatmul.mubr.bf16.gmra.mxu0 %v2488
    %v2635 = vpop.f32.mrf.mxu0
    %v2636 = vadd.f32 0.0, %v2635
    %v2637 = vpop.f32.mrf.mxu0
    %v2638 = vpop.f32.mrf.mxu0
    %v2639 = vadd.f32 0.0, %v2638
    %v2640 = vpop.f32.mrf.mxu0
    %2641 = vmatprep.mubr.bf16.mxu0 0
    %2642 = vmatmul.mubr.bf16.gmra.mxu0 %v2496
    %v2643 = vpop.f32.mrf.mxu0
    %v2644 = vadd.f32 0.0, %v2643
    %v2645 = vpop.f32.mrf.mxu0
    %v2646 = vpop.f32.mrf.mxu0
    %v2647 = vadd.f32 0.0, %v2646
    %v2648 = vpop.f32.mrf.mxu0
    %2649 = vmatprep.mubr.bf16.mxu0 0
    %2650 = vmatmul.mubr.bf16.gmra.mxu0 %v2504
    %v2651 = vpop.f32.mrf.mxu0
    %v2652 = vadd.f32 0.0, %v2651
    %v2653 = vpop.f32.mrf.mxu0
    %v2654 = vpop.f32.mrf.mxu0
    %v2655 = vadd.f32 0.0, %v2654
    %v2656 = vpop.f32.mrf.mxu0
    %2657 = vmatprep.mubr.bf16.mxu0 0
    %2658 = vmatmul.mubr.bf16.gmra.mxu0 %v2512
    %v2659 = vpop.f32.mrf.mxu0
    %v2660 = vadd.f32 0.0, %v2659
    %v2661 = vpop.f32.mrf.mxu0
    %v2662 = vpop.f32.mrf.mxu0
    %v2663 = vadd.f32 0.0, %v2662
    %v2664 = vpop.f32.mrf.mxu0
    %2665 = vmatprep.mubr.bf16.mxu0 0
    %2666 = vmatmul.mubr.bf16.gmra.mxu0 %v2520
    %v2667 = vpop.f32.mrf.mxu0
    %v2668 = vadd.f32 0.0, %v2667
    %v2669 = vpop.f32.mrf.mxu0
    %v2670 = vpop.f32.mrf.mxu0
    %v2671 = vadd.f32 0.0, %v2670
    %v2672 = vpop.f32.mrf.mxu0
    %2673 = vmatprep.mubr.bf16.mxu0 0
    %2674 = vmatmul.mubr.bf16.gmra.mxu0 %v2528
    %v2675 = vpop.f32.mrf.mxu0
    %v2676 = vadd.f32 0.0, %v2675
    %v2677 = vpop.f32.mrf.mxu0
    %v2678 = vpop.f32.mrf.mxu0
    %v2679 = vadd.f32 0.0, %v2678
    %v2680 = vpop.f32.mrf.mxu0
    %2681 = vmatprep.mubr.bf16.mxu0 0
    %2682 = vmatmul.mubr.bf16.gmra.mxu0 %v2536
    %v2683 = vpop.f32.mrf.mxu0
    %v2684 = vadd.f32 0.0, %v2683
    %v2685 = vpop.f32.mrf.mxu0
    %v2686 = vpop.f32.mrf.mxu0
    %v2687 = vadd.f32 0.0, %v2686
    %v2688 = vpop.f32.mrf.mxu0
    %2689 = vdwg.mxu0
    %v2690 = vadd.f32 %v2376, %v2628
    %v2691 = vadd.f32 %v2377, %v2631
    %v2692 = vadd.f32 %v2378, %v2636
    %v2693 = vadd.f32 %v2379, %v2639
    %v2694 = vadd.f32 %v2380, %v2644
    %v2695 = vadd.f32 %v2381, %v2647
    %v2696 = vadd.f32 %v2382, %v2652
    %v2697 = vadd.f32 %v2383, %v2655
    %v2698 = vadd.f32 %v2384, %v2660
    %v2699 = vadd.f32 %v2385, %v2663
    %v2700 = vadd.f32 %v2386, %v2668
    %v2701 = vadd.f32 %v2387, %v2671
    %v2702 = vadd.f32 %v2388, %v2676
    %v2703 = vadd.f32 %v2389, %v2679
    %v2704 = vadd.f32 %v2390, %v2684
    %v2705 = vadd.f32 %v2391, %v2687
    %v2706 = vld [vmem:[#allocation2 + $0x10] sm:$0xe]
    %s2707 = scalar_lea.vmem %s3, 512
    %v2708 = vld [vmem:[%s2707] sm:$0xf]
    %v2709 = vld [vmem:[%s2707 + $0x4] sm:$0xf]
    %v2710 = vld [vmem:[%s2707 + $0x8] sm:$0xf]
    %v2711 = vld [vmem:[%s2707 + $0xc] sm:$0xf]
    %v2712 = vld [vmem:[%s2707 + $0x10] sm:$0xf]
    %v2713 = vld [vmem:[%s2707 + $0x14] sm:$0xf]
    %v2714 = vld [vmem:[%s2707 + $0x18] sm:$0xf]
    %v2715 = vld [vmem:[%s2707 + $0x1c] sm:$0xf]
    %v2716 = vld [vmem:[%s2707 + $0x20] sm:$0xf]
    %v2717 = vld [vmem:[%s2707 + $0x24] sm:$0xf]
    %v2718 = vld [vmem:[%s2707 + $0x28] sm:$0xf]
    %v2719 = vld [vmem:[%s2707 + $0x2c] sm:$0xf]
    %v2720 = vld [vmem:[%s2707 + $0x30] sm:$0xf]
    %v2721 = vld [vmem:[%s2707 + $0x34] sm:$0xf]
    %v2722 = vld [vmem:[%s2707 + $0x38] sm:$0xf]
    %v2723 = vld [vmem:[%s2707 + $0x3c] sm:$0xf]
    %v2725 = vunpack.c.l.b16 %v2706
    %v2726 = vpack.c.b16 %v2444, %v2725
    %v2727 = vrot.slane %v2726, 1
    %v2728 = vrot.slane %v2461, 1
    %v2729 = vsel %vm1200, %v2727, %v2728
    %v2730 = vrot.slane %v2462, 1
    %v2731 = vsel %vm1200, %v2728, %v2730
    %v2732 = vrot.slane %v2463, 1
    %v2733 = vsel %vm1200, %v2730, %v2732
    %v2734 = vrot.slane %v2464, 1
    %v2735 = vsel %vm1200, %v2732, %v2734
    %v2736 = vrot.slane %v2465, 1
    %v2737 = vsel %vm1200, %v2734, %v2736
    %v2738 = vrot.slane %v2466, 1
    %v2739 = vsel %vm1200, %v2736, %v2738
    %v2740 = vrot.slane %v2467, 1
    %v2741 = vsel %vm1200, %v2738, %v2740
    %v2742 = vrot.slane %v2468, 1
    %v2743 = vsel %vm1200, %v2740, %v2742
    %v2768 = vunpack.c.l.b16 %v2708
    %v2769 = vunpack.c.l.b16 %v2709
    %v2770 = vunpack.c.l.b16 %v2710
    %v2771 = vunpack.c.l.b16 %v2711
    %v2772 = vunpack.c.l.b16 %v2712
    %v2773 = vunpack.c.l.b16 %v2713
    %v2774 = vunpack.c.l.b16 %v2714
    %v2775 = vunpack.c.l.b16 %v2715
    %v2776 = vunpack.c.l.b16 %v2716
    %v2777 = vunpack.c.l.b16 %v2717
    %v2778 = vunpack.c.l.b16 %v2718
    %v2779 = vunpack.c.l.b16 %v2719
    %v2780 = vunpack.c.l.b16 %v2720
    %v2781 = vunpack.c.l.b16 %v2721
    %v2782 = vunpack.c.l.b16 %v2722
    %v2783 = vunpack.c.l.b16 %v2723
    %v2784 = vpack.c.b16 %v2769, %v2768
    %v2785 = vpack.c.b16 %v2771, %v2770
    %v2786 = vpack.c.b16 %v2773, %v2772
    %v2787 = vpack.c.b16 %v2775, %v2774
    %v2788 = vpack.c.b16 %v2777, %v2776
    %v2789 = vpack.c.b16 %v2779, %v2778
    %v2790 = vpack.c.b16 %v2781, %v2780
    %v2791 = vpack.c.b16 %v2783, %v2782
    %2800 = vmatprep.subr.bf16.mxu0 0
    %2801 = vmatpush1.bf16.msra.mxu0 %v2791
    %2802 = vmatprep.subr.bf16.mxu0 0
    %2803 = vmatpush1.bf16.msra.mxu0 %v2790
    %2804 = vmatprep.subr.bf16.mxu0 0
    %2805 = vmatpush1.bf16.msra.mxu0 %v2789
    %2806 = vmatprep.subr.bf16.mxu0 0
    %2807 = vmatpush1.bf16.msra.mxu0 %v2788
    %2808 = vmatprep.subr.bf16.mxu0 0
    %2809 = vmatpush1.bf16.msra.mxu0 %v2787
    %2810 = vmatprep.subr.bf16.mxu0 0
    %2811 = vmatpush1.bf16.msra.mxu0 %v2786
    %2812 = vmatprep.subr.bf16.mxu0 0
    %2813 = vmatpush1.bf16.msra.mxu0 %v2785
    %2814 = vmatprep.subr.bf16.mxu0 0
    %2815 = vmatpush1.bf16.msra.mxu0 %v2784
    %2816 = vmatprep.subr.bf16.mxu0 0
    %2817 = vmatpush2.bf16.msra.mxu0 0
    %2818 = vmatprep.subr.bf16.mxu0 0
    %2819 = vmatpush2.bf16.msra.mxu0 0
    %2820 = vmatprep.subr.bf16.mxu0 0
    %2821 = vmatpush2.bf16.msra.mxu0 0
    %2822 = vmatprep.subr.bf16.mxu0 0
    %2823 = vmatpush2.bf16.msra.mxu0 0
    %2824 = vmatprep.subr.bf16.mxu0 0
    %2825 = vmatpush2.bf16.msra.mxu0 0
    %2826 = vmatprep.subr.bf16.mxu0 0
    %2827 = vmatpush2.bf16.msra.mxu0 0
    %2828 = vmatprep.subr.bf16.mxu0 0
    %2829 = vmatpush2.bf16.msra.mxu0 0
    %2830 = vmatprep.subr.bf16.mxu0 0
    %2831 = vmatpush2.bf16.msra.mxu0 0
    %2832 = vmatprep.mubr.bf16.mxu0 0
    %2833 = vmatmul.mubr.bf16.gmra.mxu0 %v2729
    %v2834 = vpop.f32.mrf.mxu0
    %v2835 = vadd.f32 0.0, %v2834
    %v2836 = vpop.f32.mrf.mxu0
    %v2837 = vpop.f32.mrf.mxu0
    %v2838 = vadd.f32 0.0, %v2837
    %v2839 = vpop.f32.mrf.mxu0
    %2840 = vmatprep.mubr.bf16.mxu0 0
    %2841 = vmatmul.mubr.bf16.gmra.mxu0 %v2731
    %v2842 = vpop.f32.mrf.mxu0
    %v2843 = vadd.f32 0.0, %v2842
    %v2844 = vpop.f32.mrf.mxu0
    %v2845 = vpop.f32.mrf.mxu0
    %v2846 = vadd.f32 0.0, %v2845
    %v2847 = vpop.f32.mrf.mxu0
    %2848 = vmatprep.mubr.bf16.mxu0 0
    %2849 = vmatmul.mubr.bf16.gmra.mxu0 %v2733
    %v2850 = vpop.f32.mrf.mxu0
    %v2851 = vadd.f32 0.0, %v2850
    %v2852 = vpop.f32.mrf.mxu0
    %v2853 = vpop.f32.mrf.mxu0
    %v2854 = vadd.f32 0.0, %v2853
    %v2855 = vpop.f32.mrf.mxu0
    %2856 = vmatprep.mubr.bf16.mxu0 0
    %2857 = vmatmul.mubr.bf16.gmra.mxu0 %v2735
    %v2858 = vpop.f32.mrf.mxu0
    %v2859 = vadd.f32 0.0, %v2858
    %v2860 = vpop.f32.mrf.mxu0
    %v2861 = vpop.f32.mrf.mxu0
    %v2862 = vadd.f32 0.0, %v2861
    %v2863 = vpop.f32.mrf.mxu0
    %2864 = vmatprep.mubr.bf16.mxu0 0
    %2865 = vmatmul.mubr.bf16.gmra.mxu0 %v2737
    %v2866 = vpop.f32.mrf.mxu0
    %v2867 = vadd.f32 0.0, %v2866
    %v2868 = vpop.f32.mrf.mxu0
    %v2869 = vpop.f32.mrf.mxu0
    %v2870 = vadd.f32 0.0, %v2869
    %v2871 = vpop.f32.mrf.mxu0
    %2872 = vmatprep.mubr.bf16.mxu0 0
    %2873 = vmatmul.mubr.bf16.gmra.mxu0 %v2739
    %v2874 = vpop.f32.mrf.mxu0
    %v2875 = vadd.f32 0.0, %v2874
    %v2876 = vpop.f32.mrf.mxu0
    %v2877 = vpop.f32.mrf.mxu0
    %v2878 = vadd.f32 0.0, %v2877
    %v2879 = vpop.f32.mrf.mxu0
    %2880 = vmatprep.mubr.bf16.mxu0 0
    %2881 = vmatmul.mubr.bf16.gmra.mxu0 %v2741
    %v2882 = vpop.f32.mrf.mxu0
    %v2883 = vadd.f32 0.0, %v2882
    %v2884 = vpop.f32.mrf.mxu0
    %v2885 = vpop.f32.mrf.mxu0
    %v2886 = vadd.f32 0.0, %v2885
    %v2887 = vpop.f32.mrf.mxu0
    %2888 = vmatprep.mubr.bf16.mxu0 0
    %2889 = vmatmul.mubr.bf16.gmra.mxu0 %v2743
    %v2890 = vpop.f32.mrf.mxu0
    %v2891 = vadd.f32 0.0, %v2890
    %v2892 = vpop.f32.mrf.mxu0
    %v2893 = vpop.f32.mrf.mxu0
    %v2894 = vadd.f32 0.0, %v2893
    %v2895 = vpop.f32.mrf.mxu0
    %2896 = vdwg.mxu0
    %v2897 = vadd.f32 %v2690, %v2835
    %v2898 = vadd.f32 %v2691, %v2838
    %v2899 = vadd.f32 %v2692, %v2843
    %v2900 = vadd.f32 %v2693, %v2846
    %v2901 = vadd.f32 %v2694, %v2851
    %v2902 = vadd.f32 %v2695, %v2854
    %v2903 = vadd.f32 %v2696, %v2859
    %v2904 = vadd.f32 %v2697, %v2862
    %v2905 = vadd.f32 %v2698, %v2867
    %v2906 = vadd.f32 %v2699, %v2870
    %v2907 = vadd.f32 %v2700, %v2875
    %v2908 = vadd.f32 %v2701, %v2878
    %v2909 = vadd.f32 %v2702, %v2883
    %v2910 = vadd.f32 %v2703, %v2886
    %v2911 = vadd.f32 %v2704, %v2891
    %v2912 = vadd.f32 %v2705, %v2894
    %v2913 = vld [vmem:[%s4] sm:$0x1]
    %v2915 = vlaneseq
    %v2916 = vshrl.u32 %v2915, 7
    %v2917 = vsub.s32 0, %v2916
    %v2918 = vrot.slane %v2913, %v2917
    %v2920 = vadd.f32 %v2897, %v2918
    %v2921 = vadd.f32 %v2898, %v2918
    %v2922 = vadd.f32 %v2899, %v2918
    %v2923 = vadd.f32 %v2900, %v2918
    %v2924 = vadd.f32 %v2901, %v2918
    %v2925 = vadd.f32 %v2902, %v2918
    %v2926 = vadd.f32 %v2903, %v2918
    %v2927 = vadd.f32 %v2904, %v2918
    %v2928 = vadd.f32 %v2905, %v2918
    %v2929 = vadd.f32 %v2906, %v2918
    %v2930 = vadd.f32 %v2907, %v2918
    %v2931 = vadd.f32 %v2908, %v2918
    %v2932 = vadd.f32 %v2909, %v2918
    %v2933 = vadd.f32 %v2910, %v2918
    %v2934 = vadd.f32 %v2911, %v2918
    %v2935 = vadd.f32 %v2912, %v2918
    %v2936 = vmax.f32 %v2920, 0.0
    %v2937 = vmax.f32 %v2921, 0.0
    %v2938 = vmax.f32 %v2922, 0.0
    %v2939 = vmax.f32 %v2923, 0.0
    %v2940 = vmax.f32 %v2924, 0.0
    %v2941 = vmax.f32 %v2925, 0.0
    %v2942 = vmax.f32 %v2926, 0.0
    %v2943 = vmax.f32 %v2927, 0.0
    %v2944 = vmax.f32 %v2928, 0.0
    %v2945 = vmax.f32 %v2929, 0.0
    %v2946 = vmax.f32 %v2930, 0.0
    %v2947 = vmax.f32 %v2931, 0.0
    %v2948 = vmax.f32 %v2932, 0.0
    %v2949 = vmax.f32 %v2933, 0.0
    %v2950 = vmax.f32 %v2934, 0.0
    %v2951 = vmax.f32 %v2935, 0.0
    %v2952 = vmax.f32 %v2936, %v2938
    %v2953 = vmax.f32 %v2937, %v2939
    %v2954 = vmax.f32 %v2938, %v2940
    %v2955 = vmax.f32 %v2939, %v2941
    %v2956 = vmax.f32 %v2940, %v2942
    %v2957 = vmax.f32 %v2941, %v2943
    %v2958 = vmax.f32 %v2942, %v2944
    %v2959 = vmax.f32 %v2943, %v2945
    %v2960 = vmax.f32 %v2944, %v2946
    %v2961 = vmax.f32 %v2945, %v2947
    %v2962 = vmax.f32 %v2946, %v2948
    %v2963 = vmax.f32 %v2947, %v2949
    %v2964 = vmax.f32 %v2948, %v2950
    %v2965 = vmax.f32 %v2949, %v2951
    %2966 = vst [vmem:[#allocation4] sm:$0xff] %v2952
    %2967 = vst [vmem:[#allocation4 + $0x8] sm:$0xff] %v2953
    %2968 = vst [vmem:[#allocation4 + $0x10] sm:$0xff] %v2954
    %2969 = vst [vmem:[#allocation4 + $0x18] sm:$0xff] %v2955
    %2970 = vst [vmem:[#allocation4 + $0x20] sm:$0xff] %v2956
    %2971 = vst [vmem:[#allocation4 + $0x28] sm:$0xff] %v2957
    %2972 = vst [vmem:[#allocation4 + $0x30] sm:$0xff] %v2958
    %2973 = vst [vmem:[#allocation4 + $0x38] sm:$0xff] %v2959
    %2974 = vst [vmem:[#allocation4 + $0x40] sm:$0xff] %v2960
    %2975 = vst [vmem:[#allocation4 + $0x48] sm:$0xff] %v2961
    %2976 = vst [vmem:[#allocation4 + $0x50] sm:$0xff] %v2962
    %2977 = vst [vmem:[#allocation4 + $0x58] sm:$0xff] %v2963
    %2978 = vst [vmem:[#allocation4 + $0x60] sm:$0xff] %v2964
    %2979 = vst [vmem:[#allocation4 + $0x68] sm:$0xff] %v2965
    %v2980 = vld [vmem:[#allocation4] ss:$2 sm:$0xf]
    %v2981 = vld [vmem:[%s507] ss:$2 sm:$0xf]
    %v2982 = vmax.f32 %v2980, %v2981
    %v2983 = vpack.c.bf16 %v2982, %v2982
    %v2985 = vunpack.c.l.b16 %v2983
    %v2986 = vpack.c.b16 %v2985, %v2985
    %v2988 = vshrl.u32 %v2986, 16
    %v2990 = vrot.slane %v2988, 7
    %v2991 = vshll.u32 %v2986, 16
    %v2993 = vor.u32 %v2990, %v2991
    %vm2995 = vcmask 1042432
    %vm2996 = vsmask.f32 2306
    %vm2997 = vmand %vm2995, %vm2996
    %v2998 = vld [vmem:[#allocation3 + $0x4] sm:$0x7]
    %v2999 = vsel %vm2997, %v2993, %v2998
    %3000 = vst [vmem:[#allocation3 + $0x4] sm:$0x7] %v2999
    %v3001 = vld [vmem:[%s536] ss:$2 sm:$0xf]
    %v3002 = vld [vmem:[%s538] ss:$2 sm:$0xf]
    %v3003 = vmax.f32 %v3001, %v3002
    %v3004 = vpack.c.bf16 %v3003, %v3003
    %v3006 = vunpack.c.l.b16 %v3004
    %v3007 = vpack.c.b16 %v3006, %v3006
    %v3009 = vshrl.u32 %v3007, 16
    %v3011 = vrot.slane %v3009, 7
    %v3012 = vshll.u32 %v3007, 16
    %v3014 = vor.u32 %v3011, %v3012
    %v3016 = vld [vmem:[#allocation3 + $0x8] sm:$0x7]
    %v3017 = vsel %vm2997, %v3014, %v3016
    %3018 = vst [vmem:[#allocation3 + $0x8] sm:$0x7] %v3017
    %v3019 = vld [vmem:[%s561] ss:$2 sm:$0xf]
    %v3020 = vld [vmem:[%s563] ss:$2 sm:$0xf]
    %v3021 = vmax.f32 %v3019, %v3020
    %v3022 = vpack.c.bf16 %v3021, %v3021
    %v3024 = vunpack.c.l.b16 %v3022
    %v3025 = vpack.c.b16 %v3024, %v3024
    %v3027 = vshrl.u32 %v3025, 16
    %v3029 = vrot.slane %v3027, 7
    %v3030 = vshll.u32 %v3025, 16
    %v3032 = vor.u32 %v3029, %v3030
    %v3034 = vld [vmem:[#allocation3 + $0xc] sm:$0x7]
    %v3035 = vsel %vm2997, %v3032, %v3034
    %3036 = vst [vmem:[#allocation3 + $0xc] sm:$0x7] %v3035
    %v3037 = vld [vmem:[%s586] ss:$2 sm:$0xf]
    %v3038 = vld [vmem:[%s588] ss:$2 sm:$0xf]
    %v3039 = vmax.f32 %v3037, %v3038
    %v3040 = vpack.c.bf16 %v3039, %v3039
    %v3042 = vunpack.c.l.b16 %v3040
    %v3043 = vpack.c.b16 %v3042, %v3042
    %v3045 = vshrl.u32 %v3043, 16
    %v3047 = vrot.slane %v3045, 7
    %v3048 = vshll.u32 %v3043, 16
    %v3050 = vor.u32 %v3047, %v3048
    %v3052 = vld [vmem:[#allocation3 + $0x10] sm:$0x7]
    %v3053 = vsel %vm2997, %v3050, %v3052
    %3054 = vst [vmem:[#allocation3 + $0x10] sm:$0x7] %v3053
    %v3055 = vld [vmem:[#allocation3] sm:$0xf]
    %v3056 = vld [vmem:[#allocation3 + $0x4] sm:$0xf]
    %v3057 = vld [vmem:[#allocation3 + $0x8] sm:$0xf]
    %v3058 = vld [vmem:[#allocation3 + $0xc] sm:$0xf]
    %v3059 = vld [vmem:[%s5] sm:$0xf]
    %v3060 = vld [vmem:[%s5 + $0x4] sm:$0xf]
    %v3061 = vld [vmem:[%s5 + $0x8] sm:$0xf]
    %v3062 = vld [vmem:[%s5 + $0xc] sm:$0xf]
    %v3063 = vld [vmem:[%s5 + $0x10] sm:$0xf]
    %v3064 = vld [vmem:[%s5 + $0x14] sm:$0xf]
    %v3065 = vld [vmem:[%s5 + $0x18] sm:$0xf]
    %v3066 = vld [vmem:[%s5 + $0x1c] sm:$0xf]
    %v3067 = vld [vmem:[%s5 + $0x20] sm:$0xf]
    %v3068 = vld [vmem:[%s5 + $0x24] sm:$0xf]
    %v3069 = vld [vmem:[%s5 + $0x28] sm:$0xf]
    %v3070 = vld [vmem:[%s5 + $0x2c] sm:$0xf]
    %v3071 = vld [vmem:[%s5 + $0x30] sm:$0xf]
    %v3072 = vld [vmem:[%s5 + $0x34] sm:$0xf]
    %v3073 = vld [vmem:[%s5 + $0x38] sm:$0xf]
    %v3074 = vld [vmem:[%s5 + $0x3c] sm:$0xf]
    %v3075 = vld [vmem:[#allocation3 + $0x10] sm:$0x1]
    %s3076 = scalar_lea.vmem %s5, 64
    %v3077 = vld [vmem:[%s3076] sm:$0xf]
    %v3078 = vld [vmem:[%s3076 + $0x4] sm:$0xf]
    %v3079 = vld [vmem:[%s3076 + $0x8] sm:$0xf]
    %v3080 = vld [vmem:[%s3076 + $0xc] sm:$0xf]
    %v3081 = vld [vmem:[%s3076 + $0x10] sm:$0xf]
    %v3082 = vld [vmem:[%s3076 + $0x14] sm:$0xf]
    %v3083 = vld [vmem:[%s3076 + $0x18] sm:$0xf]
    %v3084 = vld [vmem:[%s3076 + $0x1c] sm:$0xf]
    %v3085 = vld [vmem:[%s3076 + $0x20] sm:$0xf]
    %v3086 = vld [vmem:[%s3076 + $0x24] sm:$0xf]
    %v3087 = vld [vmem:[%s3076 + $0x28] sm:$0xf]
    %v3088 = vld [vmem:[%s3076 + $0x2c] sm:$0xf]
    %v3089 = vld [vmem:[%s3076 + $0x30] sm:$0xf]
    %v3090 = vld [vmem:[%s3076 + $0x34] sm:$0xf]
    %v3091 = vld [vmem:[%s3076 + $0x38] sm:$0xf]
    %v3092 = vld [vmem:[%s3076 + $0x3c] sm:$0xf]
    %v3098 = vunpack.c.l.b16 %v3055
    %v3099 = vunpack.c.l.b16 %v3056
    %v3100 = vunpack.c.l.b16 %v3057
    %v3101 = vunpack.c.l.b16 %v3058
    %v3102 = vunpack.c.l.b16 %v3075
    %v3103 = vpack.c.b16 %v3099, %v3098
    %v3104 = vpack.c.b16 %v3101, %v3100
    %v3105 = vpack.c.b16 %v3102, %v3102
    %v3107 = vshrl.u32 %v3103, 16
    %v3109 = vshll.u32 %v3103, 16
    %v3111 = vrot.slane %v3109, 1
    %v3112 = vor.u32 %v3107, %v3111
    %v3114 = vshll.u32 %v3104, 16
    %v3116 = vrot.slane %v3114, 1
    %v3117 = vsel %vm804, %v3112, %v3116
    %v3118 = vshrl.u32 %v3104, 16
    %v3120 = vor.u32 %v3118, %v3116
    %v3122 = vshll.u32 %v3105, 16
    %v3124 = vrot.slane %v3122, 1
    %v3125 = vsel %vm804, %v3120, %v3124
    %v3144 = vunpack.c.l.b16 %v3077
    %v3145 = vunpack.c.l.b16 %v3078
    %v3146 = vunpack.c.l.b16 %v3079
    %v3147 = vunpack.c.l.b16 %v3080
    %v3148 = vunpack.c.l.b16 %v3081
    %v3149 = vunpack.c.l.b16 %v3082
    %v3150 = vunpack.c.l.b16 %v3083
    %v3151 = vunpack.c.l.b16 %v3084
    %v3152 = vunpack.c.l.b16 %v3085
    %v3153 = vunpack.c.l.b16 %v3086
    %v3154 = vunpack.c.l.b16 %v3087
    %v3155 = vunpack.c.l.b16 %v3088
    %v3156 = vunpack.c.l.b16 %v3089
    %v3157 = vunpack.c.l.b16 %v3090
    %v3158 = vunpack.c.l.b16 %v3091
    %v3159 = vunpack.c.l.b16 %v3092
    %v3160 = vpack.c.b16 %v3145, %v3144
    %v3161 = vpack.c.b16 %v3147, %v3146
    %v3162 = vpack.c.b16 %v3149, %v3148
    %v3163 = vpack.c.b16 %v3151, %v3150
    %v3164 = vpack.c.b16 %v3153, %v3152
    %v3165 = vpack.c.b16 %v3155, %v3154
    %v3166 = vpack.c.b16 %v3157, %v3156
    %v3167 = vpack.c.b16 %v3159, %v3158
    %3176 = vmatprep.subr.bf16.mxu0 0
    %3177 = vmatpush1.bf16.msra.mxu0 %v3167
    %3178 = vmatprep.subr.bf16.mxu0 0
    %3179 = vmatpush1.bf16.msra.mxu0 %v3166
    %3180 = vmatprep.subr.bf16.mxu0 0
    %3181 = vmatpush1.bf16.msra.mxu0 %v3165
    %3182 = vmatprep.subr.bf16.mxu0 0
    %3183 = vmatpush1.bf16.msra.mxu0 %v3164
    %3184 = vmatprep.subr.bf16.mxu0 0
    %3185 = vmatpush1.bf16.msra.mxu0 %v3163
    %3186 = vmatprep.subr.bf16.mxu0 0
    %3187 = vmatpush1.bf16.msra.mxu0 %v3162
    %3188 = vmatprep.subr.bf16.mxu0 0
    %3189 = vmatpush1.bf16.msra.mxu0 %v3161
    %3190 = vmatprep.subr.bf16.mxu0 0
    %3191 = vmatpush1.bf16.msra.mxu0 %v3160
    %3192 = vmatprep.subr.bf16.mxu0 0
    %3193 = vmatpush2.bf16.msra.mxu0 0
    %3194 = vmatprep.subr.bf16.mxu0 0
    %3195 = vmatpush2.bf16.msra.mxu0 0
    %3196 = vmatprep.subr.bf16.mxu0 0
    %3197 = vmatpush2.bf16.msra.mxu0 0
    %3198 = vmatprep.subr.bf16.mxu0 0
    %3199 = vmatpush2.bf16.msra.mxu0 0
    %3200 = vmatprep.subr.bf16.mxu0 0
    %3201 = vmatpush2.bf16.msra.mxu0 0
    %3202 = vmatprep.subr.bf16.mxu0 0
    %3203 = vmatpush2.bf16.msra.mxu0 0
    %3204 = vmatprep.subr.bf16.mxu0 0
    %3205 = vmatpush2.bf16.msra.mxu0 0
    %3206 = vmatprep.subr.bf16.mxu0 0
    %3207 = vmatpush2.bf16.msra.mxu0 0
    %3208 = vmatprep.mubr.bf16.mxu0 0
    %3209 = vmatmul.mubr.bf16.gmra.mxu0 %v3117
    %v3210 = vpop.f32.mrf.mxu0
    %v3211 = vadd.f32 0.0, %v3210
    %v3212 = vpop.f32.mrf.mxu0
    %v3213 = vpop.f32.mrf.mxu0
    %v3214 = vadd.f32 0.0, %v3213
    %v3215 = vpop.f32.mrf.mxu0
    %3216 = vmatprep.mubr.bf16.mxu0 0
    %3217 = vmatmul.mubr.bf16.gmra.mxu0 %v3125
    %v3218 = vpop.f32.mrf.mxu0
    %v3219 = vadd.f32 0.0, %v3218
    %v3220 = vpop.f32.mrf.mxu0
    %v3221 = vpop.f32.mrf.mxu0
    %v3222 = vadd.f32 0.0, %v3221
    %v3223 = vpop.f32.mrf.mxu0
    %3224 = vdwg.mxu0
    %v3243 = vunpack.c.l.b16 %v3059
    %v3244 = vunpack.c.l.b16 %v3060
    %v3245 = vunpack.c.l.b16 %v3061
    %v3246 = vunpack.c.l.b16 %v3062
    %v3247 = vunpack.c.l.b16 %v3063
    %v3248 = vunpack.c.l.b16 %v3064
    %v3249 = vunpack.c.l.b16 %v3065
    %v3250 = vunpack.c.l.b16 %v3066
    %v3251 = vunpack.c.l.b16 %v3067
    %v3252 = vunpack.c.l.b16 %v3068
    %v3253 = vunpack.c.l.b16 %v3069
    %v3254 = vunpack.c.l.b16 %v3070
    %v3255 = vunpack.c.l.b16 %v3071
    %v3256 = vunpack.c.l.b16 %v3072
    %v3257 = vunpack.c.l.b16 %v3073
    %v3258 = vunpack.c.l.b16 %v3074
    %v3259 = vpack.c.b16 %v3244, %v3243
    %v3260 = vpack.c.b16 %v3246, %v3245
    %v3261 = vpack.c.b16 %v3248, %v3247
    %v3262 = vpack.c.b16 %v3250, %v3249
    %v3263 = vpack.c.b16 %v3252, %v3251
    %v3264 = vpack.c.b16 %v3254, %v3253
    %v3265 = vpack.c.b16 %v3256, %v3255
    %v3266 = vpack.c.b16 %v3258, %v3257
    %3275 = vmatprep.subr.bf16.mxu0 0
    %3276 = vmatpush1.bf16.msra.mxu0 %v3266
    %3277 = vmatprep.subr.bf16.mxu0 0
    %3278 = vmatpush1.bf16.msra.mxu0 %v3265
    %3279 = vmatprep.subr.bf16.mxu0 0
    %3280 = vmatpush1.bf16.msra.mxu0 %v3264
    %3281 = vmatprep.subr.bf16.mxu0 0
    %3282 = vmatpush1.bf16.msra.mxu0 %v3263
    %3283 = vmatprep.subr.bf16.mxu0 0
    %3284 = vmatpush1.bf16.msra.mxu0 %v3262
    %3285 = vmatprep.subr.bf16.mxu0 0
    %3286 = vmatpush1.bf16.msra.mxu0 %v3261
    %3287 = vmatprep.subr.bf16.mxu0 0
    %3288 = vmatpush1.bf16.msra.mxu0 %v3260
    %3289 = vmatprep.subr.bf16.mxu0 0
    %3290 = vmatpush1.bf16.msra.mxu0 %v3259
    %3291 = vmatprep.subr.bf16.mxu0 0
    %3292 = vmatpush2.bf16.msra.mxu0 0
    %3293 = vmatprep.subr.bf16.mxu0 0
    %3294 = vmatpush2.bf16.msra.mxu0 0
    %3295 = vmatprep.subr.bf16.mxu0 0
    %3296 = vmatpush2.bf16.msra.mxu0 0
    %3297 = vmatprep.subr.bf16.mxu0 0
    %3298 = vmatpush2.bf16.msra.mxu0 0
    %3299 = vmatprep.subr.bf16.mxu0 0
    %3300 = vmatpush2.bf16.msra.mxu0 0
    %3301 = vmatprep.subr.bf16.mxu0 0
    %3302 = vmatpush2.bf16.msra.mxu0 0
    %3303 = vmatprep.subr.bf16.mxu0 0
    %3304 = vmatpush2.bf16.msra.mxu0 0
    %3305 = vmatprep.subr.bf16.mxu0 0
    %3306 = vmatpush2.bf16.msra.mxu0 0
    %3307 = vmatprep.mubr.bf16.mxu0 0
    %3308 = vmatmul.mubr.bf16.gmra.mxu0 %v3103
    %v3309 = vpop.f32.mrf.mxu0
    %v3310 = vadd.f32 %v3211, %v3309
    %v3311 = vpop.f32.mrf.mxu0
    %v3312 = vpop.f32.mrf.mxu0
    %v3313 = vadd.f32 %v3214, %v3312
    %v3314 = vpop.f32.mrf.mxu0
    %3315 = vmatprep.mubr.bf16.mxu0 0
    %3316 = vmatmul.mubr.bf16.gmra.mxu0 %v3104
    %v3317 = vpop.f32.mrf.mxu0
    %v3318 = vadd.f32 %v3219, %v3317
    %v3319 = vpop.f32.mrf.mxu0
    %v3320 = vpop.f32.mrf.mxu0
    %v3321 = vadd.f32 %v3222, %v3320
    %v3322 = vpop.f32.mrf.mxu0
    %3323 = vdwg.mxu0
    %v3324 = vld [vmem:[#allocation3] sm:$0xe]
    %s3325 = scalar_lea.vmem %s5, 128
    %v3326 = vld [vmem:[%s3325] sm:$0xf]
    %v3327 = vld [vmem:[%s3325 + $0x4] sm:$0xf]
    %v3328 = vld [vmem:[%s3325 + $0x8] sm:$0xf]
    %v3329 = vld [vmem:[%s3325 + $0xc] sm:$0xf]
    %v3330 = vld [vmem:[%s3325 + $0x10] sm:$0xf]
    %v3331 = vld [vmem:[%s3325 + $0x14] sm:$0xf]
    %v3332 = vld [vmem:[%s3325 + $0x18] sm:$0xf]
    %v3333 = vld [vmem:[%s3325 + $0x1c] sm:$0xf]
    %v3334 = vld [vmem:[%s3325 + $0x20] sm:$0xf]
    %v3335 = vld [vmem:[%s3325 + $0x24] sm:$0xf]
    %v3336 = vld [vmem:[%s3325 + $0x28] sm:$0xf]
    %v3337 = vld [vmem:[%s3325 + $0x2c] sm:$0xf]
    %v3338 = vld [vmem:[%s3325 + $0x30] sm:$0xf]
    %v3339 = vld [vmem:[%s3325 + $0x34] sm:$0xf]
    %v3340 = vld [vmem:[%s3325 + $0x38] sm:$0xf]
    %v3341 = vld [vmem:[%s3325 + $0x3c] sm:$0xf]
    %v3343 = vunpack.c.l.b16 %v3324
    %v3344 = vpack.c.b16 %v3099, %v3343
    %v3345 = vrot.slane %v3344, 1
    %v3346 = vrot.slane %v3104, 1
    %v3347 = vsel %vm1200, %v3345, %v3346
    %v3348 = vrot.slane %v3105, 1
    %v3349 = vsel %vm1200, %v3346, %v3348
    %v3368 = vunpack.c.l.b16 %v3326
    %v3369 = vunpack.c.l.b16 %v3327
    %v3370 = vunpack.c.l.b16 %v3328
    %v3371 = vunpack.c.l.b16 %v3329
    %v3372 = vunpack.c.l.b16 %v3330
    %v3373 = vunpack.c.l.b16 %v3331
    %v3374 = vunpack.c.l.b16 %v3332
    %v3375 = vunpack.c.l.b16 %v3333
    %v3376 = vunpack.c.l.b16 %v3334
    %v3377 = vunpack.c.l.b16 %v3335
    %v3378 = vunpack.c.l.b16 %v3336
    %v3379 = vunpack.c.l.b16 %v3337
    %v3380 = vunpack.c.l.b16 %v3338
    %v3381 = vunpack.c.l.b16 %v3339
    %v3382 = vunpack.c.l.b16 %v3340
    %v3383 = vunpack.c.l.b16 %v3341
    %v3384 = vpack.c.b16 %v3369, %v3368
    %v3385 = vpack.c.b16 %v3371, %v3370
    %v3386 = vpack.c.b16 %v3373, %v3372
    %v3387 = vpack.c.b16 %v3375, %v3374
    %v3388 = vpack.c.b16 %v3377, %v3376
    %v3389 = vpack.c.b16 %v3379, %v3378
    %v3390 = vpack.c.b16 %v3381, %v3380
    %v3391 = vpack.c.b16 %v3383, %v3382
    %3400 = vmatprep.subr.bf16.mxu0 0
    %3401 = vmatpush1.bf16.msra.mxu0 %v3391
    %3402 = vmatprep.subr.bf16.mxu0 0
    %3403 = vmatpush1.bf16.msra.mxu0 %v3390
    %3404 = vmatprep.subr.bf16.mxu0 0
    %3405 = vmatpush1.bf16.msra.mxu0 %v3389
    %3406 = vmatprep.subr.bf16.mxu0 0
    %3407 = vmatpush1.bf16.msra.mxu0 %v3388
    %3408 = vmatprep.subr.bf16.mxu0 0
    %3409 = vmatpush1.bf16.msra.mxu0 %v3387
    %3410 = vmatprep.subr.bf16.mxu0 0
    %3411 = vmatpush1.bf16.msra.mxu0 %v3386
    %3412 = vmatprep.subr.bf16.mxu0 0
    %3413 = vmatpush1.bf16.msra.mxu0 %v3385
    %3414 = vmatprep.subr.bf16.mxu0 0
    %3415 = vmatpush1.bf16.msra.mxu0 %v3384
    %3416 = vmatprep.subr.bf16.mxu0 0
    %3417 = vmatpush2.bf16.msra.mxu0 0
    %3418 = vmatprep.subr.bf16.mxu0 0
    %3419 = vmatpush2.bf16.msra.mxu0 0
    %3420 = vmatprep.subr.bf16.mxu0 0
    %3421 = vmatpush2.bf16.msra.mxu0 0
    %3422 = vmatprep.subr.bf16.mxu0 0
    %3423 = vmatpush2.bf16.msra.mxu0 0
    %3424 = vmatprep.subr.bf16.mxu0 0
    %3425 = vmatpush2.bf16.msra.mxu0 0
    %3426 = vmatprep.subr.bf16.mxu0 0
    %3427 = vmatpush2.bf16.msra.mxu0 0
    %3428 = vmatprep.subr.bf16.mxu0 0
    %3429 = vmatpush2.bf16.msra.mxu0 0
    %3430 = vmatprep.subr.bf16.mxu0 0
    %3431 = vmatpush2.bf16.msra.mxu0 0
    %3432 = vmatprep.mubr.bf16.mxu0 0
    %3433 = vmatmul.mubr.bf16.gmra.mxu0 %v3347
    %v3434 = vpop.f32.mrf.mxu0
    %v3435 = vadd.f32 0.0, %v3434
    %v3436 = vpop.f32.mrf.mxu0
    %v3437 = vpop.f32.mrf.mxu0
    %v3438 = vadd.f32 0.0, %v3437
    %v3439 = vpop.f32.mrf.mxu0
    %3440 = vmatprep.mubr.bf16.mxu0 0
    %3441 = vmatmul.mubr.bf16.gmra.mxu0 %v3349
    %v3442 = vpop.f32.mrf.mxu0
    %v3443 = vadd.f32 0.0, %v3442
    %v3444 = vpop.f32.mrf.mxu0
    %v3445 = vpop.f32.mrf.mxu0
    %v3446 = vadd.f32 0.0, %v3445
    %v3447 = vpop.f32.mrf.mxu0
    %3448 = vdwg.mxu0
    %v3449 = vadd.f32 %v3310, %v3435
    %v3450 = vadd.f32 %v3313, %v3438
    %v3451 = vadd.f32 %v3318, %v3443
    %v3452 = vadd.f32 %v3321, %v3446
    %v3453 = vld [vmem:[#allocation3 + $0x10] sm:$0xf]
    %s3454 = scalar_lea.vmem %s5, 192
    %v3455 = vld [vmem:[%s3454] sm:$0xf]
    %v3456 = vld [vmem:[%s3454 + $0x4] sm:$0xf]
    %v3457 = vld [vmem:[%s3454 + $0x8] sm:$0xf]
    %v3458 = vld [vmem:[%s3454 + $0xc] sm:$0xf]
    %v3459 = vld [vmem:[%s3454 + $0x10] sm:$0xf]
    %v3460 = vld [vmem:[%s3454 + $0x14] sm:$0xf]
    %v3461 = vld [vmem:[%s3454 + $0x18] sm:$0xf]
    %v3462 = vld [vmem:[%s3454 + $0x1c] sm:$0xf]
    %v3463 = vld [vmem:[%s3454 + $0x20] sm:$0xf]
    %v3464 = vld [vmem:[%s3454 + $0x24] sm:$0xf]
    %v3465 = vld [vmem:[%s3454 + $0x28] sm:$0xf]
    %v3466 = vld [vmem:[%s3454 + $0x2c] sm:$0xf]
    %v3467 = vld [vmem:[%s3454 + $0x30] sm:$0xf]
    %v3468 = vld [vmem:[%s3454 + $0x34] sm:$0xf]
    %v3469 = vld [vmem:[%s3454 + $0x38] sm:$0xf]
    %v3470 = vld [vmem:[%s3454 + $0x3c] sm:$0xf]
    %v3472 = vunpack.c.l.b16 %v3453
    %v3473 = vpack.c.b16 %v3100, %v3099
    %v3474 = vpack.c.b16 %v3472, %v3101
    %v3493 = vunpack.c.l.b16 %v3455
    %v3494 = vunpack.c.l.b16 %v3456
    %v3495 = vunpack.c.l.b16 %v3457
    %v3496 = vunpack.c.l.b16 %v3458
    %v3497 = vunpack.c.l.b16 %v3459
    %v3498 = vunpack.c.l.b16 %v3460
    %v3499 = vunpack.c.l.b16 %v3461
    %v3500 = vunpack.c.l.b16 %v3462
    %v3501 = vunpack.c.l.b16 %v3463
    %v3502 = vunpack.c.l.b16 %v3464
    %v3503 = vunpack.c.l.b16 %v3465
    %v3504 = vunpack.c.l.b16 %v3466
    %v3505 = vunpack.c.l.b16 %v3467
    %v3506 = vunpack.c.l.b16 %v3468
    %v3507 = vunpack.c.l.b16 %v3469
    %v3508 = vunpack.c.l.b16 %v3470
    %v3509 = vpack.c.b16 %v3494, %v3493
    %v3510 = vpack.c.b16 %v3496, %v3495
    %v3511 = vpack.c.b16 %v3498, %v3497
    %v3512 = vpack.c.b16 %v3500, %v3499
    %v3513 = vpack.c.b16 %v3502, %v3501
    %v3514 = vpack.c.b16 %v3504, %v3503
    %v3515 = vpack.c.b16 %v3506, %v3505
    %v3516 = vpack.c.b16 %v3508, %v3507
    %3525 = vmatprep.subr.bf16.mxu0 0
    %3526 = vmatpush1.bf16.msra.mxu0 %v3516
    %3527 = vmatprep.subr.bf16.mxu0 0
    %3528 = vmatpush1.bf16.msra.mxu0 %v3515
    %3529 = vmatprep.subr.bf16.mxu0 0
    %3530 = vmatpush1.bf16.msra.mxu0 %v3514
    %3531 = vmatprep.subr.bf16.mxu0 0
    %3532 = vmatpush1.bf16.msra.mxu0 %v3513
    %3533 = vmatprep.subr.bf16.mxu0 0
    %3534 = vmatpush1.bf16.msra.mxu0 %v3512
    %3535 = vmatprep.subr.bf16.mxu0 0
    %3536 = vmatpush1.bf16.msra.mxu0 %v3511
    %3537 = vmatprep.subr.bf16.mxu0 0
    %3538 = vmatpush1.bf16.msra.mxu0 %v3510
    %3539 = vmatprep.subr.bf16.mxu0 0
    %3540 = vmatpush1.bf16.msra.mxu0 %v3509
    %3541 = vmatprep.subr.bf16.mxu0 0
    %3542 = vmatpush2.bf16.msra.mxu0 0
    %3543 = vmatprep.subr.bf16.mxu0 0
    %3544 = vmatpush2.bf16.msra.mxu0 0
    %3545 = vmatprep.subr.bf16.mxu0 0
    %3546 = vmatpush2.bf16.msra.mxu0 0
    %3547 = vmatprep.subr.bf16.mxu0 0
    %3548 = vmatpush2.bf16.msra.mxu0 0
    %3549 = vmatprep.subr.bf16.mxu0 0
    %3550 = vmatpush2.bf16.msra.mxu0 0
    %3551 = vmatprep.subr.bf16.mxu0 0
    %3552 = vmatpush2.bf16.msra.mxu0 0
    %3553 = vmatprep.subr.bf16.mxu0 0
    %3554 = vmatpush2.bf16.msra.mxu0 0
    %3555 = vmatprep.subr.bf16.mxu0 0
    %3556 = vmatpush2.bf16.msra.mxu0 0
    %3557 = vmatprep.mubr.bf16.mxu0 0
    %3558 = vmatmul.mubr.bf16.gmra.mxu0 %v3473
    %v3559 = vpop.f32.mrf.mxu0
    %v3560 = vadd.f32 0.0, %v3559
    %v3561 = vpop.f32.mrf.mxu0
    %v3562 = vpop.f32.mrf.mxu0
    %v3563 = vadd.f32 0.0, %v3562
    %v3564 = vpop.f32.mrf.mxu0
    %3565 = vmatprep.mubr.bf16.mxu0 0
    %3566 = vmatmul.mubr.bf16.gmra.mxu0 %v3474
    %v3567 = vpop.f32.mrf.mxu0
    %v3568 = vadd.f32 0.0, %v3567
    %v3569 = vpop.f32.mrf.mxu0
    %v3570 = vpop.f32.mrf.mxu0
    %v3571 = vadd.f32 0.0, %v3570
    %v3572 = vpop.f32.mrf.mxu0
    %3573 = vdwg.mxu0
    %v3574 = vadd.f32 %v3449, %v3560
    %v3575 = vadd.f32 %v3450, %v3563
    %v3576 = vadd.f32 %v3451, %v3568
    %v3577 = vadd.f32 %v3452, %v3571
    %v3578 = vld [vmem:[#allocation3 + $0x4] sm:$0xf]
    %v3579 = vld [vmem:[#allocation3 + $0x8] sm:$0xf]
    %v3580 = vld [vmem:[#allocation3 + $0xc] sm:$0xf]
    %v3581 = vld [vmem:[#allocation3 + $0x10] sm:$0xf]
    %v3582 = vld [vmem:[#allocation3 + $0x14] sm:$0x1]
    %s3583 = scalar_lea.vmem %s5, 256
    %v3584 = vld [vmem:[%s3583] sm:$0xf]
    %v3585 = vld [vmem:[%s3583 + $0x4] sm:$0xf]
    %v3586 = vld [vmem:[%s3583 + $0x8] sm:$0xf]
    %v3587 = vld [vmem:[%s3583 + $0xc] sm:$0xf]
    %v3588 = vld [vmem:[%s3583 + $0x10] sm:$0xf]
    %v3589 = vld [vmem:[%s3583 + $0x14] sm:$0xf]
    %v3590 = vld [vmem:[%s3583 + $0x18] sm:$0xf]
    %v3591 = vld [vmem:[%s3583 + $0x1c] sm:$0xf]
    %v3592 = vld [vmem:[%s3583 + $0x20] sm:$0xf]
    %v3593 = vld [vmem:[%s3583 + $0x24] sm:$0xf]
    %v3594 = vld [vmem:[%s3583 + $0x28] sm:$0xf]
    %v3595 = vld [vmem:[%s3583 + $0x2c] sm:$0xf]
    %v3596 = vld [vmem:[%s3583 + $0x30] sm:$0xf]
    %v3597 = vld [vmem:[%s3583 + $0x34] sm:$0xf]
    %v3598 = vld [vmem:[%s3583 + $0x38] sm:$0xf]
    %v3599 = vld [vmem:[%s3583 + $0x3c] sm:$0xf]
    %v3605 = vunpack.c.l.b16 %v3578
    %v3606 = vunpack.c.l.b16 %v3579
    %v3607 = vunpack.c.l.b16 %v3580
    %v3608 = vunpack.c.l.b16 %v3581
    %v3609 = vunpack.c.l.b16 %v3582
    %v3610 = vpack.c.b16 %v3606, %v3605
    %v3611 = vpack.c.b16 %v3608, %v3607
    %v3612 = vpack.c.b16 %v3609, %v3609
    %v3614 = vshrl.u32 %v3610, 16
    %v3616 = vshll.u32 %v3610, 16
    %v3618 = vrot.slane %v3616, 1
    %v3619 = vor.u32 %v3614, %v3618
    %v3621 = vshll.u32 %v3611, 16
    %v3623 = vrot.slane %v3621, 1
    %v3624 = vsel %vm804, %v3619, %v3623
    %v3625 = vshrl.u32 %v3611, 16
    %v3627 = vor.u32 %v3625, %v3623
    %v3629 = vshll.u32 %v3612, 16
    %v3631 = vrot.slane %v3629, 1
    %v3632 = vsel %vm804, %v3627, %v3631
    %v3651 = vunpack.c.l.b16 %v3584
    %v3652 = vunpack.c.l.b16 %v3585
    %v3653 = vunpack.c.l.b16 %v3586
    %v3654 = vunpack.c.l.b16 %v3587
    %v3655 = vunpack.c.l.b16 %v3588
    %v3656 = vunpack.c.l.b16 %v3589
    %v3657 = vunpack.c.l.b16 %v3590
    %v3658 = vunpack.c.l.b16 %v3591
    %v3659 = vunpack.c.l.b16 %v3592
    %v3660 = vunpack.c.l.b16 %v3593
    %v3661 = vunpack.c.l.b16 %v3594
    %v3662 = vunpack.c.l.b16 %v3595
    %v3663 = vunpack.c.l.b16 %v3596
    %v3664 = vunpack.c.l.b16 %v3597
    %v3665 = vunpack.c.l.b16 %v3598
    %v3666 = vunpack.c.l.b16 %v3599
    %v3667 = vpack.c.b16 %v3652, %v3651
    %v3668 = vpack.c.b16 %v3654, %v3653
    %v3669 = vpack.c.b16 %v3656, %v3655
    %v3670 = vpack.c.b16 %v3658, %v3657
    %v3671 = vpack.c.b16 %v3660, %v3659
    %v3672 = vpack.c.b16 %v3662, %v3661
    %v3673 = vpack.c.b16 %v3664, %v3663
    %v3674 = vpack.c.b16 %v3666, %v3665
    %3683 = vmatprep.subr.bf16.mxu0 0
    %3684 = vmatpush1.bf16.msra.mxu0 %v3674
    %3685 = vmatprep.subr.bf16.mxu0 0
    %3686 = vmatpush1.bf16.msra.mxu0 %v3673
    %3687 = vmatprep.subr.bf16.mxu0 0
    %3688 = vmatpush1.bf16.msra.mxu0 %v3672
    %3689 = vmatprep.subr.bf16.mxu0 0
    %3690 = vmatpush1.bf16.msra.mxu0 %v3671
    %3691 = vmatprep.subr.bf16.mxu0 0
    %3692 = vmatpush1.bf16.msra.mxu0 %v3670
    %3693 = vmatprep.subr.bf16.mxu0 0
    %3694 = vmatpush1.bf16.msra.mxu0 %v3669
    %3695 = vmatprep.subr.bf16.mxu0 0
    %3696 = vmatpush1.bf16.msra.mxu0 %v3668
    %3697 = vmatprep.subr.bf16.mxu0 0
    %3698 = vmatpush1.bf16.msra.mxu0 %v3667
    %3699 = vmatprep.subr.bf16.mxu0 0
    %3700 = vmatpush2.bf16.msra.mxu0 0
    %3701 = vmatprep.subr.bf16.mxu0 0
    %3702 = vmatpush2.bf16.msra.mxu0 0
    %3703 = vmatprep.subr.bf16.mxu0 0
    %3704 = vmatpush2.bf16.msra.mxu0 0
    %3705 = vmatprep.subr.bf16.mxu0 0
    %3706 = vmatpush2.bf16.msra.mxu0 0
    %3707 = vmatprep.subr.bf16.mxu0 0
    %3708 = vmatpush2.bf16.msra.mxu0 0
    %3709 = vmatprep.subr.bf16.mxu0 0
    %3710 = vmatpush2.bf16.msra.mxu0 0
    %3711 = vmatprep.subr.bf16.mxu0 0
    %3712 = vmatpush2.bf16.msra.mxu0 0
    %3713 = vmatprep.subr.bf16.mxu0 0
    %3714 = vmatpush2.bf16.msra.mxu0 0
    %3715 = vmatprep.mubr.bf16.mxu0 0
    %3716 = vmatmul.mubr.bf16.gmra.mxu0 %v3624
    %v3717 = vpop.f32.mrf.mxu0
    %v3718 = vadd.f32 0.0, %v3717
    %v3719 = vpop.f32.mrf.mxu0
    %v3720 = vpop.f32.mrf.mxu0
    %v3721 = vadd.f32 0.0, %v3720
    %v3722 = vpop.f32.mrf.mxu0
    %3723 = vmatprep.mubr.bf16.mxu0 0
    %3724 = vmatmul.mubr.bf16.gmra.mxu0 %v3632
    %v3725 = vpop.f32.mrf.mxu0
    %v3726 = vadd.f32 0.0, %v3725
    %v3727 = vpop.f32.mrf.mxu0
    %v3728 = vpop.f32.mrf.mxu0
    %v3729 = vadd.f32 0.0, %v3728
    %v3730 = vpop.f32.mrf.mxu0
    %3731 = vdwg.mxu0
    %v3732 = vadd.f32 %v3574, %v3718
    %v3733 = vadd.f32 %v3575, %v3721
    %v3734 = vadd.f32 %v3576, %v3726
    %v3735 = vadd.f32 %v3577, %v3729
    %v3736 = vld [vmem:[#allocation3 + $0x4] sm:$0xe]
    %s3737 = scalar_lea.vmem %s5, 320
    %v3738 = vld [vmem:[%s3737] sm:$0xf]
    %v3739 = vld [vmem:[%s3737 + $0x4] sm:$0xf]
    %v3740 = vld [vmem:[%s3737 + $0x8] sm:$0xf]
    %v3741 = vld [vmem:[%s3737 + $0xc] sm:$0xf]
    %v3742 = vld [vmem:[%s3737 + $0x10] sm:$0xf]
    %v3743 = vld [vmem:[%s3737 + $0x14] sm:$0xf]
    %v3744 = vld [vmem:[%s3737 + $0x18] sm:$0xf]
    %v3745 = vld [vmem:[%s3737 + $0x1c] sm:$0xf]
    %v3746 = vld [vmem:[%s3737 + $0x20] sm:$0xf]
    %v3747 = vld [vmem:[%s3737 + $0x24] sm:$0xf]
    %v3748 = vld [vmem:[%s3737 + $0x28] sm:$0xf]
    %v3749 = vld [vmem:[%s3737 + $0x2c] sm:$0xf]
    %v3750 = vld [vmem:[%s3737 + $0x30] sm:$0xf]
    %v3751 = vld [vmem:[%s3737 + $0x34] sm:$0xf]
    %v3752 = vld [vmem:[%s3737 + $0x38] sm:$0xf]
    %v3753 = vld [vmem:[%s3737 + $0x3c] sm:$0xf]
    %v3755 = vunpack.c.l.b16 %v3736
    %v3756 = vpack.c.b16 %v3606, %v3755
    %v3757 = vrot.slane %v3756, 1
    %v3758 = vrot.slane %v3611, 1
    %v3759 = vsel %vm1200, %v3757, %v3758
    %v3760 = vrot.slane %v3612, 1
    %v3761 = vsel %vm1200, %v3758, %v3760
    %v3780 = vunpack.c.l.b16 %v3738
    %v3781 = vunpack.c.l.b16 %v3739
    %v3782 = vunpack.c.l.b16 %v3740
    %v3783 = vunpack.c.l.b16 %v3741
    %v3784 = vunpack.c.l.b16 %v3742
    %v3785 = vunpack.c.l.b16 %v3743
    %v3786 = vunpack.c.l.b16 %v3744
    %v3787 = vunpack.c.l.b16 %v3745
    %v3788 = vunpack.c.l.b16 %v3746
    %v3789 = vunpack.c.l.b16 %v3747
    %v3790 = vunpack.c.l.b16 %v3748
    %v3791 = vunpack.c.l.b16 %v3749
    %v3792 = vunpack.c.l.b16 %v3750
    %v3793 = vunpack.c.l.b16 %v3751
    %v3794 = vunpack.c.l.b16 %v3752
    %v3795 = vunpack.c.l.b16 %v3753
    %v3796 = vpack.c.b16 %v3781, %v3780
    %v3797 = vpack.c.b16 %v3783, %v3782
    %v3798 = vpack.c.b16 %v3785, %v3784
    %v3799 = vpack.c.b16 %v3787, %v3786
    %v3800 = vpack.c.b16 %v3789, %v3788
    %v3801 = vpack.c.b16 %v3791, %v3790
    %v3802 = vpack.c.b16 %v3793, %v3792
    %v3803 = vpack.c.b16 %v3795, %v3794
    %3812 = vmatprep.subr.bf16.mxu0 0
    %3813 = vmatpush1.bf16.msra.mxu0 %v3803
    %3814 = vmatprep.subr.bf16.mxu0 0
    %3815 = vmatpush1.bf16.msra.mxu0 %v3802
    %3816 = vmatprep.subr.bf16.mxu0 0
    %3817 = vmatpush1.bf16.msra.mxu0 %v3801
    %3818 = vmatprep.subr.bf16.mxu0 0
    %3819 = vmatpush1.bf16.msra.mxu0 %v3800
    %3820 = vmatprep.subr.bf16.mxu0 0
    %3821 = vmatpush1.bf16.msra.mxu0 %v3799
    %3822 = vmatprep.subr.bf16.mxu0 0
    %3823 = vmatpush1.bf16.msra.mxu0 %v3798
    %3824 = vmatprep.subr.bf16.mxu0 0
    %3825 = vmatpush1.bf16.msra.mxu0 %v3797
    %3826 = vmatprep.subr.bf16.mxu0 0
    %3827 = vmatpush1.bf16.msra.mxu0 %v3796
    %3828 = vmatprep.subr.bf16.mxu0 0
    %3829 = vmatpush2.bf16.msra.mxu0 0
    %3830 = vmatprep.subr.bf16.mxu0 0
    %3831 = vmatpush2.bf16.msra.mxu0 0
    %3832 = vmatprep.subr.bf16.mxu0 0
    %3833 = vmatpush2.bf16.msra.mxu0 0
    %3834 = vmatprep.subr.bf16.mxu0 0
    %3835 = vmatpush2.bf16.msra.mxu0 0
    %3836 = vmatprep.subr.bf16.mxu0 0
    %3837 = vmatpush2.bf16.msra.mxu0 0
    %3838 = vmatprep.subr.bf16.mxu0 0
    %3839 = vmatpush2.bf16.msra.mxu0 0
    %3840 = vmatprep.subr.bf16.mxu0 0
    %3841 = vmatpush2.bf16.msra.mxu0 0
    %3842 = vmatprep.subr.bf16.mxu0 0
    %3843 = vmatpush2.bf16.msra.mxu0 0
    %3844 = vmatprep.mubr.bf16.mxu0 0
    %3845 = vmatmul.mubr.bf16.gmra.mxu0 %v3759
    %v3846 = vpop.f32.mrf.mxu0
    %v3847 = vadd.f32 0.0, %v3846
    %v3848 = vpop.f32.mrf.mxu0
    %v3849 = vpop.f32.mrf.mxu0
    %v3850 = vadd.f32 0.0, %v3849
    %v3851 = vpop.f32.mrf.mxu0
    %3852 = vmatprep.mubr.bf16.mxu0 0
    %3853 = vmatmul.mubr.bf16.gmra.mxu0 %v3761
    %v3854 = vpop.f32.mrf.mxu0
    %v3855 = vadd.f32 0.0, %v3854
    %v3856 = vpop.f32.mrf.mxu0
    %v3857 = vpop.f32.mrf.mxu0
    %v3858 = vadd.f32 0.0, %v3857
    %v3859 = vpop.f32.mrf.mxu0
    %3860 = vdwg.mxu0
    %v3861 = vadd.f32 %v3732, %v3847
    %v3862 = vadd.f32 %v3733, %v3850
    %v3863 = vadd.f32 %v3734, %v3855
    %v3864 = vadd.f32 %v3735, %v3858
    %v3865 = vld [vmem:[#allocation3 + $0x14] sm:$0xf]
    %s3866 = scalar_lea.vmem %s5, 384
    %v3867 = vld [vmem:[%s3866] sm:$0xf]
    %v3868 = vld [vmem:[%s3866 + $0x4] sm:$0xf]
    %v3869 = vld [vmem:[%s3866 + $0x8] sm:$0xf]
    %v3870 = vld [vmem:[%s3866 + $0xc] sm:$0xf]
    %v3871 = vld [vmem:[%s3866 + $0x10] sm:$0xf]
    %v3872 = vld [vmem:[%s3866 + $0x14] sm:$0xf]
    %v3873 = vld [vmem:[%s3866 + $0x18] sm:$0xf]
    %v3874 = vld [vmem:[%s3866 + $0x1c] sm:$0xf]
    %v3875 = vld [vmem:[%s3866 + $0x20] sm:$0xf]
    %v3876 = vld [vmem:[%s3866 + $0x24] sm:$0xf]
    %v3877 = vld [vmem:[%s3866 + $0x28] sm:$0xf]
    %v3878 = vld [vmem:[%s3866 + $0x2c] sm:$0xf]
    %v3879 = vld [vmem:[%s3866 + $0x30] sm:$0xf]
    %v3880 = vld [vmem:[%s3866 + $0x34] sm:$0xf]
    %v3881 = vld [vmem:[%s3866 + $0x38] sm:$0xf]
    %v3882 = vld [vmem:[%s3866 + $0x3c] sm:$0xf]
    %v3884 = vunpack.c.l.b16 %v3865
    %v3885 = vpack.c.b16 %v3607, %v3606
    %v3886 = vpack.c.b16 %v3884, %v3608
    %v3905 = vunpack.c.l.b16 %v3867
    %v3906 = vunpack.c.l.b16 %v3868
    %v3907 = vunpack.c.l.b16 %v3869
    %v3908 = vunpack.c.l.b16 %v3870
    %v3909 = vunpack.c.l.b16 %v3871
    %v3910 = vunpack.c.l.b16 %v3872
    %v3911 = vunpack.c.l.b16 %v3873
    %v3912 = vunpack.c.l.b16 %v3874
    %v3913 = vunpack.c.l.b16 %v3875
    %v3914 = vunpack.c.l.b16 %v3876
    %v3915 = vunpack.c.l.b16 %v3877
    %v3916 = vunpack.c.l.b16 %v3878
    %v3917 = vunpack.c.l.b16 %v3879
    %v3918 = vunpack.c.l.b16 %v3880
    %v3919 = vunpack.c.l.b16 %v3881
    %v3920 = vunpack.c.l.b16 %v3882
    %v3921 = vpack.c.b16 %v3906, %v3905
    %v3922 = vpack.c.b16 %v3908, %v3907
    %v3923 = vpack.c.b16 %v3910, %v3909
    %v3924 = vpack.c.b16 %v3912, %v3911
    %v3925 = vpack.c.b16 %v3914, %v3913
    %v3926 = vpack.c.b16 %v3916, %v3915
    %v3927 = vpack.c.b16 %v3918, %v3917
    %v3928 = vpack.c.b16 %v3920, %v3919
    %3937 = vmatprep.subr.bf16.mxu0 0
    %3938 = vmatpush1.bf16.msra.mxu0 %v3928
    %3939 = vmatprep.subr.bf16.mxu0 0
    %3940 = vmatpush1.bf16.msra.mxu0 %v3927
    %3941 = vmatprep.subr.bf16.mxu0 0
    %3942 = vmatpush1.bf16.msra.mxu0 %v3926
    %3943 = vmatprep.subr.bf16.mxu0 0
    %3944 = vmatpush1.bf16.msra.mxu0 %v3925
    %3945 = vmatprep.subr.bf16.mxu0 0
    %3946 = vmatpush1.bf16.msra.mxu0 %v3924
    %3947 = vmatprep.subr.bf16.mxu0 0
    %3948 = vmatpush1.bf16.msra.mxu0 %v3923
    %3949 = vmatprep.subr.bf16.mxu0 0
    %3950 = vmatpush1.bf16.msra.mxu0 %v3922
    %3951 = vmatprep.subr.bf16.mxu0 0
    %3952 = vmatpush1.bf16.msra.mxu0 %v3921
    %3953 = vmatprep.subr.bf16.mxu0 0
    %3954 = vmatpush2.bf16.msra.mxu0 0
    %3955 = vmatprep.subr.bf16.mxu0 0
    %3956 = vmatpush2.bf16.msra.mxu0 0
    %3957 = vmatprep.subr.bf16.mxu0 0
    %3958 = vmatpush2.bf16.msra.mxu0 0
    %3959 = vmatprep.subr.bf16.mxu0 0
    %3960 = vmatpush2.bf16.msra.mxu0 0
    %3961 = vmatprep.subr.bf16.mxu0 0
    %3962 = vmatpush2.bf16.msra.mxu0 0
    %3963 = vmatprep.subr.bf16.mxu0 0
    %3964 = vmatpush2.bf16.msra.mxu0 0
    %3965 = vmatprep.subr.bf16.mxu0 0
    %3966 = vmatpush2.bf16.msra.mxu0 0
    %3967 = vmatprep.subr.bf16.mxu0 0
    %3968 = vmatpush2.bf16.msra.mxu0 0
    %3969 = vmatprep.mubr.bf16.mxu0 0
    %3970 = vmatmul.mubr.bf16.gmra.mxu0 %v3885
    %v3971 = vpop.f32.mrf.mxu0
    %v3972 = vadd.f32 0.0, %v3971
    %v3973 = vpop.f32.mrf.mxu0
    %v3974 = vpop.f32.mrf.mxu0
    %v3975 = vadd.f32 0.0, %v3974
    %v3976 = vpop.f32.mrf.mxu0
    %3977 = vmatprep.mubr.bf16.mxu0 0
    %3978 = vmatmul.mubr.bf16.gmra.mxu0 %v3886
    %v3979 = vpop.f32.mrf.mxu0
    %v3980 = vadd.f32 0.0, %v3979
    %v3981 = vpop.f32.mrf.mxu0
    %v3982 = vpop.f32.mrf.mxu0
    %v3983 = vadd.f32 0.0, %v3982
    %v3984 = vpop.f32.mrf.mxu0
    %3985 = vdwg.mxu0
    %v3986 = vadd.f32 %v3861, %v3972
    %v3987 = vadd.f32 %v3862, %v3975
    %v3988 = vadd.f32 %v3863, %v3980
    %v3989 = vadd.f32 %v3864, %v3983
    %v3990 = vld [vmem:[#allocation3 + $0x8] sm:$0xf]
    %v3991 = vld [vmem:[#allocation3 + $0xc] sm:$0xf]
    %v3992 = vld [vmem:[#allocation3 + $0x10] sm:$0xf]
    %v3993 = vld [vmem:[#allocation3 + $0x14] sm:$0xf]
    %v3994 = vld [vmem:[#allocation3 + $0x18] sm:$0x1]
    %s3995 = scalar_lea.vmem %s5, 448
    %v3996 = vld [vmem:[%s3995] sm:$0xf]
    %v3997 = vld [vmem:[%s3995 + $0x4] sm:$0xf]
    %v3998 = vld [vmem:[%s3995 + $0x8] sm:$0xf]
    %v3999 = vld [vmem:[%s3995 + $0xc] sm:$0xf]
    %v4000 = vld [vmem:[%s3995 + $0x10] sm:$0xf]
    %v4001 = vld [vmem:[%s3995 + $0x14] sm:$0xf]
    %v4002 = vld [vmem:[%s3995 + $0x18] sm:$0xf]
    %v4003 = vld [vmem:[%s3995 + $0x1c] sm:$0xf]
    %v4004 = vld [vmem:[%s3995 + $0x20] sm:$0xf]
    %v4005 = vld [vmem:[%s3995 + $0x24] sm:$0xf]
    %v4006 = vld [vmem:[%s3995 + $0x28] sm:$0xf]
    %v4007 = vld [vmem:[%s3995 + $0x2c] sm:$0xf]
    %v4008 = vld [vmem:[%s3995 + $0x30] sm:$0xf]
    %v4009 = vld [vmem:[%s3995 + $0x34] sm:$0xf]
    %v4010 = vld [vmem:[%s3995 + $0x38] sm:$0xf]
    %v4011 = vld [vmem:[%s3995 + $0x3c] sm:$0xf]
    %v4017 = vunpack.c.l.b16 %v3990
    %v4018 = vunpack.c.l.b16 %v3991
    %v4019 = vunpack.c.l.b16 %v3992
    %v4020 = vunpack.c.l.b16 %v3993
    %v4021 = vunpack.c.l.b16 %v3994
    %v4022 = vpack.c.b16 %v4018, %v4017
    %v4023 = vpack.c.b16 %v4020, %v4019
    %v4024 = vpack.c.b16 %v4021, %v4021
    %v4026 = vshrl.u32 %v4022, 16
    %v4028 = vshll.u32 %v4022, 16
    %v4030 = vrot.slane %v4028, 1
    %v4031 = vor.u32 %v4026, %v4030
    %v4033 = vshll.u32 %v4023, 16
    %v4035 = vrot.slane %v4033, 1
    %v4036 = vsel %vm804, %v4031, %v4035
    %v4037 = vshrl.u32 %v4023, 16
    %v4039 = vor.u32 %v4037, %v4035
    %v4041 = vshll.u32 %v4024, 16
    %v4043 = vrot.slane %v4041, 1
    %v4044 = vsel %vm804, %v4039, %v4043
    %v4063 = vunpack.c.l.b16 %v3996
    %v4064 = vunpack.c.l.b16 %v3997
    %v4065 = vunpack.c.l.b16 %v3998
    %v4066 = vunpack.c.l.b16 %v3999
    %v4067 = vunpack.c.l.b16 %v4000
    %v4068 = vunpack.c.l.b16 %v4001
    %v4069 = vunpack.c.l.b16 %v4002
    %v4070 = vunpack.c.l.b16 %v4003
    %v4071 = vunpack.c.l.b16 %v4004
    %v4072 = vunpack.c.l.b16 %v4005
    %v4073 = vunpack.c.l.b16 %v4006
    %v4074 = vunpack.c.l.b16 %v4007
    %v4075 = vunpack.c.l.b16 %v4008
    %v4076 = vunpack.c.l.b16 %v4009
    %v4077 = vunpack.c.l.b16 %v4010
    %v4078 = vunpack.c.l.b16 %v4011
    %v4079 = vpack.c.b16 %v4064, %v4063
    %v4080 = vpack.c.b16 %v4066, %v4065
    %v4081 = vpack.c.b16 %v4068, %v4067
    %v4082 = vpack.c.b16 %v4070, %v4069
    %v4083 = vpack.c.b16 %v4072, %v4071
    %v4084 = vpack.c.b16 %v4074, %v4073
    %v4085 = vpack.c.b16 %v4076, %v4075
    %v4086 = vpack.c.b16 %v4078, %v4077
    %4095 = vmatprep.subr.bf16.mxu0 0
    %4096 = vmatpush1.bf16.msra.mxu0 %v4086
    %4097 = vmatprep.subr.bf16.mxu0 0
    %4098 = vmatpush1.bf16.msra.mxu0 %v4085
    %4099 = vmatprep.subr.bf16.mxu0 0
    %4100 = vmatpush1.bf16.msra.mxu0 %v4084
    %4101 = vmatprep.subr.bf16.mxu0 0
    %4102 = vmatpush1.bf16.msra.mxu0 %v4083
    %4103 = vmatprep.subr.bf16.mxu0 0
    %4104 = vmatpush1.bf16.msra.mxu0 %v4082
    %4105 = vmatprep.subr.bf16.mxu0 0
    %4106 = vmatpush1.bf16.msra.mxu0 %v4081
    %4107 = vmatprep.subr.bf16.mxu0 0
    %4108 = vmatpush1.bf16.msra.mxu0 %v4080
    %4109 = vmatprep.subr.bf16.mxu0 0
    %4110 = vmatpush1.bf16.msra.mxu0 %v4079
    %4111 = vmatprep.subr.bf16.mxu0 0
    %4112 = vmatpush2.bf16.msra.mxu0 0
    %4113 = vmatprep.subr.bf16.mxu0 0
    %4114 = vmatpush2.bf16.msra.mxu0 0
    %4115 = vmatprep.subr.bf16.mxu0 0
    %4116 = vmatpush2.bf16.msra.mxu0 0
    %4117 = vmatprep.subr.bf16.mxu0 0
    %4118 = vmatpush2.bf16.msra.mxu0 0
    %4119 = vmatprep.subr.bf16.mxu0 0
    %4120 = vmatpush2.bf16.msra.mxu0 0
    %4121 = vmatprep.subr.bf16.mxu0 0
    %4122 = vmatpush2.bf16.msra.mxu0 0
    %4123 = vmatprep.subr.bf16.mxu0 0
    %4124 = vmatpush2.bf16.msra.mxu0 0
    %4125 = vmatprep.subr.bf16.mxu0 0
    %4126 = vmatpush2.bf16.msra.mxu0 0
    %4127 = vmatprep.mubr.bf16.mxu0 0
    %4128 = vmatmul.mubr.bf16.gmra.mxu0 %v4036
    %v4129 = vpop.f32.mrf.mxu0
    %v4130 = vadd.f32 0.0, %v4129
    %v4131 = vpop.f32.mrf.mxu0
    %v4132 = vpop.f32.mrf.mxu0
    %v4133 = vadd.f32 0.0, %v4132
    %v4134 = vpop.f32.mrf.mxu0
    %4135 = vmatprep.mubr.bf16.mxu0 0
    %4136 = vmatmul.mubr.bf16.gmra.mxu0 %v4044
    %v4137 = vpop.f32.mrf.mxu0
    %v4138 = vadd.f32 0.0, %v4137
    %v4139 = vpop.f32.mrf.mxu0
    %v4140 = vpop.f32.mrf.mxu0
    %v4141 = vadd.f32 0.0, %v4140
    %v4142 = vpop.f32.mrf.mxu0
    %4143 = vdwg.mxu0
    %v4144 = vadd.f32 %v3986, %v4130
    %v4145 = vadd.f32 %v3987, %v4133
    %v4146 = vadd.f32 %v3988, %v4138
    %v4147 = vadd.f32 %v3989, %v4141
    %v4148 = vld [vmem:[#allocation3 + $0x8] sm:$0xe]
    %s4149 = scalar_lea.vmem %s5, 512
    %v4150 = vld [vmem:[%s4149] sm:$0xf]
    %v4151 = vld [vmem:[%s4149 + $0x4] sm:$0xf]
    %v4152 = vld [vmem:[%s4149 + $0x8] sm:$0xf]
    %v4153 = vld [vmem:[%s4149 + $0xc] sm:$0xf]
    %v4154 = vld [vmem:[%s4149 + $0x10] sm:$0xf]
    %v4155 = vld [vmem:[%s4149 + $0x14] sm:$0xf]
    %v4156 = vld [vmem:[%s4149 + $0x18] sm:$0xf]
    %v4157 = vld [vmem:[%s4149 + $0x1c] sm:$0xf]
    %v4158 = vld [vmem:[%s4149 + $0x20] sm:$0xf]
    %v4159 = vld [vmem:[%s4149 + $0x24] sm:$0xf]
    %v4160 = vld [vmem:[%s4149 + $0x28] sm:$0xf]
    %v4161 = vld [vmem:[%s4149 + $0x2c] sm:$0xf]
    %v4162 = vld [vmem:[%s4149 + $0x30] sm:$0xf]
    %v4163 = vld [vmem:[%s4149 + $0x34] sm:$0xf]
    %v4164 = vld [vmem:[%s4149 + $0x38] sm:$0xf]
    %v4165 = vld [vmem:[%s4149 + $0x3c] sm:$0xf]
    %v4167 = vunpack.c.l.b16 %v4148
    %v4168 = vpack.c.b16 %v4018, %v4167
    %v4169 = vrot.slane %v4168, 1
    %v4170 = vrot.slane %v4023, 1
    %v4171 = vsel %vm1200, %v4169, %v4170
    %v4172 = vrot.slane %v4024, 1
    %v4173 = vsel %vm1200, %v4170, %v4172
    %v4192 = vunpack.c.l.b16 %v4150
    %v4193 = vunpack.c.l.b16 %v4151
    %v4194 = vunpack.c.l.b16 %v4152
    %v4195 = vunpack.c.l.b16 %v4153
    %v4196 = vunpack.c.l.b16 %v4154
    %v4197 = vunpack.c.l.b16 %v4155
    %v4198 = vunpack.c.l.b16 %v4156
    %v4199 = vunpack.c.l.b16 %v4157
    %v4200 = vunpack.c.l.b16 %v4158
    %v4201 = vunpack.c.l.b16 %v4159
    %v4202 = vunpack.c.l.b16 %v4160
    %v4203 = vunpack.c.l.b16 %v4161
    %v4204 = vunpack.c.l.b16 %v4162
    %v4205 = vunpack.c.l.b16 %v4163
    %v4206 = vunpack.c.l.b16 %v4164
    %v4207 = vunpack.c.l.b16 %v4165
    %v4208 = vpack.c.b16 %v4193, %v4192
    %v4209 = vpack.c.b16 %v4195, %v4194
    %v4210 = vpack.c.b16 %v4197, %v4196
    %v4211 = vpack.c.b16 %v4199, %v4198
    %v4212 = vpack.c.b16 %v4201, %v4200
    %v4213 = vpack.c.b16 %v4203, %v4202
    %v4214 = vpack.c.b16 %v4205, %v4204
    %v4215 = vpack.c.b16 %v4207, %v4206
    %4224 = vmatprep.subr.bf16.mxu0 0
    %4225 = vmatpush1.bf16.msra.mxu0 %v4215
    %4226 = vmatprep.subr.bf16.mxu0 0
    %4227 = vmatpush1.bf16.msra.mxu0 %v4214
    %4228 = vmatprep.subr.bf16.mxu0 0
    %4229 = vmatpush1.bf16.msra.mxu0 %v4213
    %4230 = vmatprep.subr.bf16.mxu0 0
    %4231 = vmatpush1.bf16.msra.mxu0 %v4212
    %4232 = vmatprep.subr.bf16.mxu0 0
    %4233 = vmatpush1.bf16.msra.mxu0 %v4211
    %4234 = vmatprep.subr.bf16.mxu0 0
    %4235 = vmatpush1.bf16.msra.mxu0 %v4210
    %4236 = vmatprep.subr.bf16.mxu0 0
    %4237 = vmatpush1.bf16.msra.mxu0 %v4209
    %4238 = vmatprep.subr.bf16.mxu0 0
    %4239 = vmatpush1.bf16.msra.mxu0 %v4208
    %4240 = vmatprep.subr.bf16.mxu0 0
    %4241 = vmatpush2.bf16.msra.mxu0 0
    %4242 = vmatprep.subr.bf16.mxu0 0
    %4243 = vmatpush2.bf16.msra.mxu0 0
    %4244 = vmatprep.subr.bf16.mxu0 0
    %4245 = vmatpush2.bf16.msra.mxu0 0
    %4246 = vmatprep.subr.bf16.mxu0 0
    %4247 = vmatpush2.bf16.msra.mxu0 0
    %4248 = vmatprep.subr.bf16.mxu0 0
    %4249 = vmatpush2.bf16.msra.mxu0 0
    %4250 = vmatprep.subr.bf16.mxu0 0
    %4251 = vmatpush2.bf16.msra.mxu0 0
    %4252 = vmatprep.subr.bf16.mxu0 0
    %4253 = vmatpush2.bf16.msra.mxu0 0
    %4254 = vmatprep.subr.bf16.mxu0 0
    %4255 = vmatpush2.bf16.msra.mxu0 0
    %4256 = vmatprep.mubr.bf16.mxu0 0
    %4257 = vmatmul.mubr.bf16.gmra.mxu0 %v4171
    %v4258 = vpop.f32.mrf.mxu0
    %v4259 = vadd.f32 0.0, %v4258
    %v4260 = vpop.f32.mrf.mxu0
    %v4261 = vpop.f32.mrf.mxu0
    %v4262 = vadd.f32 0.0, %v4261
    %v4263 = vpop.f32.mrf.mxu0
    %4264 = vmatprep.mubr.bf16.mxu0 0
    %4265 = vmatmul.mubr.bf16.gmra.mxu0 %v4173
    %v4266 = vpop.f32.mrf.mxu0
    %v4267 = vadd.f32 0.0, %v4266
    %v4268 = vpop.f32.mrf.mxu0
    %v4269 = vpop.f32.mrf.mxu0
    %v4270 = vadd.f32 0.0, %v4269
    %v4271 = vpop.f32.mrf.mxu0
    %4272 = vdwg.mxu0
    %v4273 = vadd.f32 %v4144, %v4259
    %v4274 = vadd.f32 %v4145, %v4262
    %v4275 = vadd.f32 %v4146, %v4267
    %v4276 = vadd.f32 %v4147, %v4270
    %v4277 = vld [vmem:[%s6] sm:$0x1]
    %v4279 = vlaneseq
    %v4280 = vshrl.u32 %v4279, 7
    %v4281 = vsub.s32 0, %v4280
    %v4282 = vrot.slane %v4277, %v4281
    %v4284 = vadd.f32 %v4273, %v4282
    %v4285 = vadd.f32 %v4274, %v4282
    %v4286 = vadd.f32 %v4275, %v4282
    %v4287 = vadd.f32 %v4276, %v4282
    %v4288 = vmax.f32 %v4284, 0.0
    %v4289 = vmax.f32 %v4285, 0.0
    %v4290 = vmax.f32 %v4286, 0.0
    %v4291 = vmax.f32 %v4287, 0.0
    %v4292 = vmax.f32 %v4288, %v4289
    %v4293 = vmax.f32 %v4289, %v4290
    %v4294 = vmax.f32 %v4290, %v4291
    %4295 = vst [vmem:[#allocation4] sm:$0xff] %v4292
    %4296 = vst [vmem:[#allocation4 + $0x8] sm:$0xff] %v4293
    %4297 = vst [vmem:[#allocation4 + $0x10] sm:$0xff] %v4294
    %v4298 = vld [vmem:[#allocation4] ss:$2 sm:$0x3]
    %v4299 = vld [vmem:[%s507] ss:$2 sm:$0x3]
    %v4300 = vmax.f32 %v4298, %v4299
    %4301 = vst [vmem:[#allocation5] sm:$0x3] %v4300
    %s4302 = scalar_lea.vmem [#allocation4], 16
    %v4303 = vld [vmem:[%s4302] ss:$2 sm:$0x3]
    %s4304 = scalar_lea.vmem [#allocation4], 17
    %v4305 = vld [vmem:[%s4304] ss:$2 sm:$0x3]
    %v4306 = vmax.f32 %v4303, %v4305
    %4307 = vst [vmem:[#allocation5 + $0x2] sm:$0x3] %v4306
    %s4308 = scalar_lea.vmem %s0, 128
    %v4309 = vld [vmem:[%s4308] sm:$0xf]
    %v4310 = vld [vmem:[%s4308 + $0x4] sm:$0xf]
    %v4311 = vld [vmem:[%s4308 + $0x8] sm:$0xf]
    %v4312 = vld [vmem:[%s4308 + $0xc] sm:$0xf]
    %v4313 = vld [vmem:[%s4308 + $0x10] sm:$0xf]
    %v4314 = vld [vmem:[%s4308 + $0x14] sm:$0xf]
    %v4315 = vld [vmem:[%s4308 + $0x18] sm:$0xf]
    %v4316 = vld [vmem:[%s4308 + $0x1c] sm:$0xf]
    %v4317 = vld [vmem:[%s4308 + $0x20] sm:$0xf]
    %v4318 = vld [vmem:[%s4308 + $0x24] sm:$0xf]
    %v4319 = vld [vmem:[%s4308 + $0x28] sm:$0xf]
    %v4320 = vld [vmem:[%s4308 + $0x2c] sm:$0xf]
    %v4321 = vld [vmem:[%s4308 + $0x30] sm:$0xf]
    %v4322 = vld [vmem:[%s4308 + $0x34] sm:$0xf]
    %v4323 = vld [vmem:[%s4308 + $0x38] sm:$0xf]
    %v4324 = vld [vmem:[%s4308 + $0x3c] sm:$0xf]
    %v4325 = vld [vmem:[%s4308 + $0x40] sm:$0xf]
    %v4326 = vld [vmem:[%s4308 + $0x44] sm:$0xf]
    %v4327 = vld [vmem:[%s4308 + $0x48] sm:$0xf]
    %v4328 = vld [vmem:[%s4308 + $0x4c] sm:$0xf]
    %v4329 = vld [vmem:[%s4308 + $0x50] sm:$0xf]
    %v4330 = vld [vmem:[%s4308 + $0x54] sm:$0xf]
    %v4331 = vld [vmem:[%s4308 + $0x58] sm:$0xf]
    %v4332 = vld [vmem:[%s4308 + $0x5c] sm:$0xf]
    %v4333 = vld [vmem:[%s4308 + $0x60] sm:$0xf]
    %v4334 = vld [vmem:[%s4308 + $0x64] sm:$0xf]
    %v4335 = vld [vmem:[%s4308 + $0x68] sm:$0xf]
    %v4336 = vld [vmem:[%s4308 + $0x6c] sm:$0xf]
    %v4337 = vld [vmem:[%s4308 + $0x70] sm:$0xf]
    %v4338 = vld [vmem:[%s4308 + $0x74] sm:$0xf]
    %v4339 = vld [vmem:[%s4308 + $0x78] sm:$0xf]
    %v4340 = vld [vmem:[%s4308 + $0x7c] sm:$0xf]
    %v4341 = vld [vmem:[%s1] sm:$0xf]
    %v4342 = vld [vmem:[%s1 + $0x4] sm:$0xf]
    %v4343 = vld [vmem:[%s1 + $0x8] sm:$0xf]
    %v4344 = vld [vmem:[%s1 + $0xc] sm:$0xf]
    %v4345 = vld [vmem:[%s2] sm:$0x1]
    %v4347 = vlaneseq
    %v4348 = vshrl.u32 %v4347, 7
    %v4349 = vsub.s32 0, %v4348
    %v4350 = vrot.slane %v4345, %v4349
    %v4384 = vunpack.c.l.b16 %v4309
    %v4385 = vunpack.c.l.b16 %v4310
    %v4386 = vunpack.c.l.b16 %v4311
    %v4387 = vunpack.c.l.b16 %v4312
    %v4388 = vunpack.c.l.b16 %v4313
    %v4389 = vunpack.c.l.b16 %v4314
    %v4390 = vunpack.c.l.b16 %v4315
    %v4391 = vunpack.c.l.b16 %v4316
    %v4392 = vunpack.c.l.b16 %v4317
    %v4393 = vunpack.c.l.b16 %v4318
    %v4394 = vunpack.c.l.b16 %v4319
    %v4395 = vunpack.c.l.b16 %v4320
    %v4396 = vunpack.c.l.b16 %v4321
    %v4397 = vunpack.c.l.b16 %v4322
    %v4398 = vunpack.c.l.b16 %v4323
    %v4399 = vunpack.c.l.b16 %v4324
    %v4400 = vunpack.c.l.b16 %v4325
    %v4401 = vunpack.c.l.b16 %v4326
    %v4402 = vunpack.c.l.b16 %v4327
    %v4403 = vunpack.c.l.b16 %v4328
    %v4404 = vunpack.c.l.b16 %v4329
    %v4405 = vunpack.c.l.b16 %v4330
    %v4406 = vunpack.c.l.b16 %v4331
    %v4407 = vunpack.c.l.b16 %v4332
    %v4408 = vunpack.c.l.b16 %v4333
    %v4409 = vunpack.c.l.b16 %v4334
    %v4410 = vunpack.c.l.b16 %v4335
    %v4411 = vunpack.c.l.b16 %v4336
    %v4412 = vunpack.c.l.b16 %v4337
    %v4413 = vunpack.c.l.b16 %v4338
    %v4414 = vunpack.c.l.b16 %v4339
    %v4415 = vunpack.c.l.b16 %v4340
    %v4416 = vpack.c.b16 %v4385, %v4384
    %v4417 = vpack.c.b16 %v4387, %v4386
    %v4418 = vpack.c.b16 %v4389, %v4388
    %v4419 = vpack.c.b16 %v4391, %v4390
    %v4420 = vpack.c.b16 %v4393, %v4392
    %v4421 = vpack.c.b16 %v4395, %v4394
    %v4422 = vpack.c.b16 %v4397, %v4396
    %v4423 = vpack.c.b16 %v4399, %v4398
    %v4424 = vpack.c.b16 %v4401, %v4400
    %v4425 = vpack.c.b16 %v4403, %v4402
    %v4426 = vpack.c.b16 %v4405, %v4404
    %v4427 = vpack.c.b16 %v4407, %v4406
    %v4428 = vpack.c.b16 %v4409, %v4408
    %v4429 = vpack.c.b16 %v4411, %v4410
    %v4430 = vpack.c.b16 %v4413, %v4412
    %v4431 = vpack.c.b16 %v4415, %v4414
    %v4436 = vunpack.c.l.b16 %v4341
    %v4437 = vunpack.c.l.b16 %v4342
    %v4438 = vunpack.c.l.b16 %v4343
    %v4439 = vunpack.c.l.b16 %v4344
    %v4440 = vpack.c.b16 %v4437, %v4436
    %v4441 = vpack.c.b16 %v4439, %v4438
    %v4445 = vsel %vm204, %v4416, 0
    %v4448 = vsel %vm204, %v4417, 0
    %v4451 = vsel %vm204, %v4418, 0
    %v4454 = vsel %vm204, %v4419, 0
    %v4457 = vsel %vm204, %v4420, 0
    %v4460 = vsel %vm204, %v4421, 0
    %v4463 = vsel %vm204, %v4422, 0
    %v4466 = vsel %vm204, %v4423, 0
    %v4469 = vsel %vm204, %v4424, 0
    %v4472 = vsel %vm204, %v4425, 0
    %v4475 = vsel %vm204, %v4426, 0
    %v4478 = vsel %vm204, %v4427, 0
    %v4481 = vsel %vm204, %v4428, 0
    %v4484 = vsel %vm204, %v4429, 0
    %v4487 = vsel %vm204, %v4430, 0
    %v4490 = vsel %vm204, %v4431, 0
    %4492 = vmatprep.subr.bf16.mxu0 0
    %4493 = vmatpush1.bf16.msra.mxu0 0
    %4494 = vmatprep.subr.bf16.mxu0 0
    %4495 = vmatpush1.bf16.msra.mxu0 0
    %4496 = vmatprep.subr.bf16.mxu0 0
    %4497 = vmatpush1.bf16.msra.mxu0 0
    %4498 = vmatprep.subr.bf16.mxu0 0
    %4499 = vmatpush1.bf16.msra.mxu0 0
    %4500 = vmatprep.subr.bf16.mxu0 0
    %4501 = vmatpush1.bf16.msra.mxu0 0
    %4502 = vmatprep.subr.bf16.mxu0 0
    %4503 = vmatpush1.bf16.msra.mxu0 0
    %4504 = vmatprep.subr.bf16.mxu0 0
    %4505 = vmatpush1.bf16.msra.mxu0 %v4441
    %4506 = vmatprep.subr.bf16.mxu0 0
    %4507 = vmatpush1.bf16.msra.mxu0 %v4440
    %4508 = vmatprep.subr.bf16.mxu0 0
    %4509 = vmatpush2.bf16.msra.mxu0 0
    %4510 = vmatprep.subr.bf16.mxu0 0
    %4511 = vmatpush2.bf16.msra.mxu0 0
    %4512 = vmatprep.subr.bf16.mxu0 0
    %4513 = vmatpush2.bf16.msra.mxu0 0
    %4514 = vmatprep.subr.bf16.mxu0 0
    %4515 = vmatpush2.bf16.msra.mxu0 0
    %4516 = vmatprep.subr.bf16.mxu0 0
    %4517 = vmatpush2.bf16.msra.mxu0 0
    %4518 = vmatprep.subr.bf16.mxu0 0
    %4519 = vmatpush2.bf16.msra.mxu0 0
    %4520 = vmatprep.subr.bf16.mxu0 0
    %4521 = vmatpush2.bf16.msra.mxu0 0
    %4522 = vmatprep.subr.bf16.mxu0 0
    %4523 = vmatpush2.bf16.msra.mxu0 0
    %4524 = vmatprep.mubr.bf16.mxu0 0
    %4525 = vmatmul.mubr.bf16.gmra.mxu0 %v4445
    %v4526 = vpop.f32.mrf.mxu0
    %v4527 = vadd.f32 %v4350, %v4526
    %v4528 = vpop.f32.mrf.mxu0
    %v4529 = vpop.f32.mrf.mxu0
    %v4530 = vadd.f32 %v4350, %v4529
    %v4531 = vpop.f32.mrf.mxu0
    %4532 = vmatprep.mubr.bf16.mxu0 0
    %4533 = vmatmul.mubr.bf16.gmra.mxu0 %v4448
    %v4534 = vpop.f32.mrf.mxu0
    %v4535 = vadd.f32 %v4350, %v4534
    %v4536 = vpop.f32.mrf.mxu0
    %v4537 = vpop.f32.mrf.mxu0
    %v4538 = vadd.f32 %v4350, %v4537
    %v4539 = vpop.f32.mrf.mxu0
    %4540 = vmatprep.mubr.bf16.mxu0 0
    %4541 = vmatmul.mubr.bf16.gmra.mxu0 %v4451
    %v4542 = vpop.f32.mrf.mxu0
    %v4543 = vadd.f32 %v4350, %v4542
    %v4544 = vpop.f32.mrf.mxu0
    %v4545 = vpop.f32.mrf.mxu0
    %v4546 = vadd.f32 %v4350, %v4545
    %v4547 = vpop.f32.mrf.mxu0
    %4548 = vmatprep.mubr.bf16.mxu0 0
    %4549 = vmatmul.mubr.bf16.gmra.mxu0 %v4454
    %v4550 = vpop.f32.mrf.mxu0
    %v4551 = vadd.f32 %v4350, %v4550
    %v4552 = vpop.f32.mrf.mxu0
    %v4553 = vpop.f32.mrf.mxu0
    %v4554 = vadd.f32 %v4350, %v4553
    %v4555 = vpop.f32.mrf.mxu0
    %4556 = vmatprep.mubr.bf16.mxu0 0
    %4557 = vmatmul.mubr.bf16.gmra.mxu0 %v4457
    %v4558 = vpop.f32.mrf.mxu0
    %v4559 = vadd.f32 %v4350, %v4558
    %v4560 = vpop.f32.mrf.mxu0
    %v4561 = vpop.f32.mrf.mxu0
    %v4562 = vadd.f32 %v4350, %v4561
    %v4563 = vpop.f32.mrf.mxu0
    %4564 = vmatprep.mubr.bf16.mxu0 0
    %4565 = vmatmul.mubr.bf16.gmra.mxu0 %v4460
    %v4566 = vpop.f32.mrf.mxu0
    %v4567 = vadd.f32 %v4350, %v4566
    %v4568 = vpop.f32.mrf.mxu0
    %v4569 = vpop.f32.mrf.mxu0
    %v4570 = vadd.f32 %v4350, %v4569
    %v4571 = vpop.f32.mrf.mxu0
    %4572 = vmatprep.mubr.bf16.mxu0 0
    %4573 = vmatmul.mubr.bf16.gmra.mxu0 %v4463
    %v4574 = vpop.f32.mrf.mxu0
    %v4575 = vadd.f32 %v4350, %v4574
    %v4576 = vpop.f32.mrf.mxu0
    %v4577 = vpop.f32.mrf.mxu0
    %v4578 = vadd.f32 %v4350, %v4577
    %v4579 = vpop.f32.mrf.mxu0
    %4580 = vmatprep.mubr.bf16.mxu0 0
    %4581 = vmatmul.mubr.bf16.gmra.mxu0 %v4466
    %v4582 = vpop.f32.mrf.mxu0
    %v4583 = vadd.f32 %v4350, %v4582
    %v4584 = vpop.f32.mrf.mxu0
    %v4585 = vpop.f32.mrf.mxu0
    %v4586 = vadd.f32 %v4350, %v4585
    %v4587 = vpop.f32.mrf.mxu0
    %4588 = vmatprep.mubr.bf16.mxu0 0
    %4589 = vmatmul.mubr.bf16.gmra.mxu0 %v4469
    %v4590 = vpop.f32.mrf.mxu0
    %v4591 = vadd.f32 %v4350, %v4590
    %v4592 = vpop.f32.mrf.mxu0
    %v4593 = vpop.f32.mrf.mxu0
    %v4594 = vadd.f32 %v4350, %v4593
    %v4595 = vpop.f32.mrf.mxu0
    %4596 = vmatprep.mubr.bf16.mxu0 0
    %4597 = vmatmul.mubr.bf16.gmra.mxu0 %v4472
    %v4598 = vpop.f32.mrf.mxu0
    %v4599 = vadd.f32 %v4350, %v4598
    %v4600 = vpop.f32.mrf.mxu0
    %v4601 = vpop.f32.mrf.mxu0
    %v4602 = vadd.f32 %v4350, %v4601
    %v4603 = vpop.f32.mrf.mxu0
    %4604 = vmatprep.mubr.bf16.mxu0 0
    %4605 = vmatmul.mubr.bf16.gmra.mxu0 %v4475
    %v4606 = vpop.f32.mrf.mxu0
    %v4607 = vadd.f32 %v4350, %v4606
    %v4608 = vpop.f32.mrf.mxu0
    %v4609 = vpop.f32.mrf.mxu0
    %v4610 = vadd.f32 %v4350, %v4609
    %v4611 = vpop.f32.mrf.mxu0
    %4612 = vmatprep.mubr.bf16.mxu0 0
    %4613 = vmatmul.mubr.bf16.gmra.mxu0 %v4478
    %v4614 = vpop.f32.mrf.mxu0
    %v4615 = vadd.f32 %v4350, %v4614
    %v4616 = vpop.f32.mrf.mxu0
    %v4617 = vpop.f32.mrf.mxu0
    %v4618 = vadd.f32 %v4350, %v4617
    %v4619 = vpop.f32.mrf.mxu0
    %4620 = vmatprep.mubr.bf16.mxu0 0
    %4621 = vmatmul.mubr.bf16.gmra.mxu0 %v4481
    %v4622 = vpop.f32.mrf.mxu0
    %v4623 = vadd.f32 %v4350, %v4622
    %v4624 = vpop.f32.mrf.mxu0
    %v4625 = vpop.f32.mrf.mxu0
    %v4626 = vadd.f32 %v4350, %v4625
    %v4627 = vpop.f32.mrf.mxu0
    %4628 = vmatprep.mubr.bf16.mxu0 0
    %4629 = vmatmul.mubr.bf16.gmra.mxu0 %v4484
    %v4630 = vpop.f32.mrf.mxu0
    %v4631 = vadd.f32 %v4350, %v4630
    %v4632 = vpop.f32.mrf.mxu0
    %v4633 = vpop.f32.mrf.mxu0
    %v4634 = vadd.f32 %v4350, %v4633
    %v4635 = vpop.f32.mrf.mxu0
    %4636 = vmatprep.mubr.bf16.mxu0 0
    %4637 = vmatmul.mubr.bf16.gmra.mxu0 %v4487
    %v4638 = vpop.f32.mrf.mxu0
    %v4639 = vadd.f32 %v4350, %v4638
    %v4640 = vpop.f32.mrf.mxu0
    %v4641 = vpop.f32.mrf.mxu0
    %v4642 = vadd.f32 %v4350, %v4641
    %v4643 = vpop.f32.mrf.mxu0
    %4644 = vmatprep.mubr.bf16.mxu0 0
    %4645 = vmatmul.mubr.bf16.gmra.mxu0 %v4490
    %v4646 = vpop.f32.mrf.mxu0
    %v4647 = vadd.f32 %v4350, %v4646
    %v4648 = vpop.f32.mrf.mxu0
    %v4649 = vpop.f32.mrf.mxu0
    %v4650 = vadd.f32 %v4350, %v4649
    %v4651 = vpop.f32.mrf.mxu0
    %4652 = vdwg.mxu0
    %v4653 = vmax.f32 %v4527, 0.0
    %v4654 = vmax.f32 %v4530, 0.0
    %v4655 = vmax.f32 %v4535, 0.0
    %v4656 = vmax.f32 %v4538, 0.0
    %v4657 = vmax.f32 %v4543, 0.0
    %v4658 = vmax.f32 %v4546, 0.0
    %v4659 = vmax.f32 %v4551, 0.0
    %v4660 = vmax.f32 %v4554, 0.0
    %v4661 = vmax.f32 %v4559, 0.0
    %v4662 = vmax.f32 %v4562, 0.0
    %v4663 = vmax.f32 %v4567, 0.0
    %v4664 = vmax.f32 %v4570, 0.0
    %v4665 = vmax.f32 %v4575, 0.0
    %v4666 = vmax.f32 %v4578, 0.0
    %v4667 = vmax.f32 %v4583, 0.0
    %v4668 = vmax.f32 %v4586, 0.0
    %v4669 = vmax.f32 %v4591, 0.0
    %v4670 = vmax.f32 %v4594, 0.0
    %v4671 = vmax.f32 %v4599, 0.0
    %v4672 = vmax.f32 %v4602, 0.0
    %v4673 = vmax.f32 %v4607, 0.0
    %v4674 = vmax.f32 %v4610, 0.0
    %v4675 = vmax.f32 %v4615, 0.0
    %v4676 = vmax.f32 %v4618, 0.0
    %v4677 = vmax.f32 %v4623, 0.0
    %v4678 = vmax.f32 %v4626, 0.0
    %v4679 = vmax.f32 %v4631, 0.0
    %v4680 = vmax.f32 %v4634, 0.0
    %v4681 = vmax.f32 %v4639, 0.0
    %v4682 = vmax.f32 %v4642, 0.0
    %v4683 = vmax.f32 %v4647, 0.0
    %v4684 = vmax.f32 %v4650, 0.0
    %v4685 = vmax.f32 %v4653, %v4655
    %v4686 = vmax.f32 %v4654, %v4656
    %v4687 = vmax.f32 %v4655, %v4657
    %v4688 = vmax.f32 %v4656, %v4658
    %v4689 = vmax.f32 %v4657, %v4659
    %v4690 = vmax.f32 %v4658, %v4660
    %v4691 = vmax.f32 %v4659, %v4661
    %v4692 = vmax.f32 %v4660, %v4662
    %v4693 = vmax.f32 %v4661, %v4663
    %v4694 = vmax.f32 %v4662, %v4664
    %v4695 = vmax.f32 %v4663, %v4665
    %v4696 = vmax.f32 %v4664, %v4666
    %v4697 = vmax.f32 %v4665, %v4667
    %v4698 = vmax.f32 %v4666, %v4668
    %v4699 = vmax.f32 %v4667, %v4669
    %v4700 = vmax.f32 %v4668, %v4670
    %v4701 = vmax.f32 %v4669, %v4671
    %v4702 = vmax.f32 %v4670, %v4672
    %v4703 = vmax.f32 %v4671, %v4673
    %v4704 = vmax.f32 %v4672, %v4674
    %v4705 = vmax.f32 %v4673, %v4675
    %v4706 = vmax.f32 %v4674, %v4676
    %v4707 = vmax.f32 %v4675, %v4677
    %v4708 = vmax.f32 %v4676, %v4678
    %v4709 = vmax.f32 %v4677, %v4679
    %v4710 = vmax.f32 %v4678, %v4680
    %v4711 = vmax.f32 %v4679, %v4681
    %v4712 = vmax.f32 %v4680, %v4682
    %v4713 = vmax.f32 %v4681, %v4683
    %v4714 = vmax.f32 %v4682, %v4684
    %4715 = vst [vmem:[#allocation4] sm:$0xff] %v4685
    %4716 = vst [vmem:[#allocation4 + $0x8] sm:$0xff] %v4686
    %4717 = vst [vmem:[#allocation4 + $0x10] sm:$0xff] %v4687
    %4718 = vst [vmem:[#allocation4 + $0x18] sm:$0xff] %v4688
    %4719 = vst [vmem:[#allocation4 + $0x20] sm:$0xff] %v4689
    %4720 = vst [vmem:[#allocation4 + $0x28] sm:$0xff] %v4690
    %4721 = vst [vmem:[#allocation4 + $0x30] sm:$0xff] %v4691
    %4722 = vst [vmem:[#allocation4 + $0x38] sm:$0xff] %v4692
    %4723 = vst [vmem:[#allocation4 + $0x40] sm:$0xff] %v4693
    %4724 = vst [vmem:[#allocation4 + $0x48] sm:$0xff] %v4694
    %4725 = vst [vmem:[#allocation4 + $0x50] sm:$0xff] %v4695
    %4726 = vst [vmem:[#allocation4 + $0x58] sm:$0xff] %v4696
    %4727 = vst [vmem:[#allocation4 + $0x60] sm:$0xff] %v4697
    %4728 = vst [vmem:[#allocation4 + $0x68] sm:$0xff] %v4698
    %4729 = vst [vmem:[#allocation4 + $0x70] sm:$0xff] %v4699
    %4730 = vst [vmem:[#allocation4 + $0x78] sm:$0xff] %v4700
    %4731 = vst [vmem:[#allocation4 + $0x80] sm:$0xff] %v4701
    %4732 = vst [vmem:[#allocation4 + $0x88] sm:$0xff] %v4702
    %4733 = vst [vmem:[#allocation4 + $0x90] sm:$0xff] %v4703
    %4734 = vst [vmem:[#allocation4 + $0x98] sm:$0xff] %v4704
    %4735 = vst [vmem:[#allocation4 + $0xa0] sm:$0xff] %v4705
    %4736 = vst [vmem:[#allocation4 + $0xa8] sm:$0xff] %v4706
    %4737 = vst [vmem:[#allocation4 + $0xb0] sm:$0xff] %v4707
    %4738 = vst [vmem:[#allocation4 + $0xb8] sm:$0xff] %v4708
    %4739 = vst [vmem:[#allocation4 + $0xc0] sm:$0xff] %v4709
    %4740 = vst [vmem:[#allocation4 + $0xc8] sm:$0xff] %v4710
    %4741 = vst [vmem:[#allocation4 + $0xd0] sm:$0xff] %v4711
    %4742 = vst [vmem:[#allocation4 + $0xd8] sm:$0xff] %v4712
    %4743 = vst [vmem:[#allocation4 + $0xe0] sm:$0xff] %v4713
    %4744 = vst [vmem:[#allocation4 + $0xe8] sm:$0xff] %v4714
    %v4745 = vld [vmem:[#allocation4] ss:$2 sm:$0xff]
    %v4746 = vld [vmem:[%s507] ss:$2 sm:$0xff]
    %v4747 = vmax.f32 %v4745, %v4746
    %v4748 = vpack.c.bf16 %v4747, %v4747
    %v4750 = vunpack.c.l.b16 %v4748
    %v4751 = vpack.c.b16 %v4750, %v4750
    %v4753 = vshrl.u32 %v4751, 16
    %v4755 = vrot.slane %v4753, 7
    %v4756 = vshll.u32 %v4751, 16
    %v4758 = vor.u32 %v4755, %v4756
    %v4759 = vrot.slane %v4755, 4
    %v4762 = vld [vmem:[#allocation2 + $0x8] sm:$0xf]
    %v4763 = vsel %vm526, %v4758, %v4762
    %4764 = vst [vmem:[#allocation2 + $0x8] sm:$0xf] %v4763
    %v4765 = vld [vmem:[#allocation2 + $0xc] sm:$0x1]
    %v4766 = vsel %vm532, %v4759, %v4765
    %4767 = vst [vmem:[#allocation2 + $0xc] sm:$0x1] %v4766
    %v4768 = vld [vmem:[%s536] ss:$2 sm:$0xff]
    %v4769 = vld [vmem:[%s538] ss:$2 sm:$0xff]
    %v4770 = vmax.f32 %v4768, %v4769
    %v4771 = vpack.c.bf16 %v4770, %v4770
    %v4773 = vunpack.c.l.b16 %v4771
    %v4774 = vpack.c.b16 %v4773, %v4773
    %v4776 = vshrl.u32 %v4774, 16
    %v4778 = vrot.slane %v4776, 7
    %v4779 = vshll.u32 %v4774, 16
    %v4781 = vor.u32 %v4778, %v4779
    %v4782 = vrot.slane %v4778, 4
    %v4785 = vld [vmem:[#allocation2 + $0x10] sm:$0xf]
    %v4786 = vsel %vm526, %v4781, %v4785
    %4787 = vst [vmem:[#allocation2 + $0x10] sm:$0xf] %v4786
    %v4788 = vld [vmem:[#allocation2 + $0x14] sm:$0x1]
    %v4789 = vsel %vm532, %v4782, %v4788
    %4790 = vst [vmem:[#allocation2 + $0x14] sm:$0x1] %v4789
    %v4791 = vld [vmem:[%s561] ss:$2 sm:$0xff]
    %v4792 = vld [vmem:[%s563] ss:$2 sm:$0xff]
    %v4793 = vmax.f32 %v4791, %v4792
    %v4794 = vpack.c.bf16 %v4793, %v4793
    %v4796 = vunpack.c.l.b16 %v4794
    %v4797 = vpack.c.b16 %v4796, %v4796
    %v4799 = vshrl.u32 %v4797, 16
    %v4801 = vrot.slane %v4799, 7
    %v4802 = vshll.u32 %v4797, 16
    %v4804 = vor.u32 %v4801, %v4802
    %v4805 = vrot.slane %v4801, 4
    %v4808 = vld [vmem:[#allocation2 + $0x18] sm:$0xf]
    %v4809 = vsel %vm526, %v4804, %v4808
    %4810 = vst [vmem:[#allocation2 + $0x18] sm:$0xf] %v4809
    %v4811 = vld [vmem:[#allocation2 + $0x1c] sm:$0x1]
    %v4812 = vsel %vm532, %v4805, %v4811
    %4813 = vst [vmem:[#allocation2 + $0x1c] sm:$0x1] %v4812
    %v4814 = vld [vmem:[%s586] ss:$2 sm:$0xff]
    %v4815 = vld [vmem:[%s588] ss:$2 sm:$0xff]
    %v4816 = vmax.f32 %v4814, %v4815
    %v4817 = vpack.c.bf16 %v4816, %v4816
    %v4819 = vunpack.c.l.b16 %v4817
    %v4820 = vpack.c.b16 %v4819, %v4819
    %v4822 = vshrl.u32 %v4820, 16
    %v4824 = vrot.slane %v4822, 7
    %v4825 = vshll.u32 %v4820, 16
    %v4827 = vor.u32 %v4824, %v4825
    %v4828 = vrot.slane %v4824, 4
    %v4831 = vld [vmem:[#allocation2 + $0x20] sm:$0xf]
    %v4832 = vsel %vm526, %v4827, %v4831
    %4833 = vst [vmem:[#allocation2 + $0x20] sm:$0xf] %v4832
    %v4834 = vld [vmem:[#allocation2 + $0x24] sm:$0x1]
    %v4835 = vsel %vm532, %v4828, %v4834
    %4836 = vst [vmem:[#allocation2 + $0x24] sm:$0x1] %v4835
    %v4837 = vld [vmem:[%s611] ss:$2 sm:$0xff]
    %v4838 = vld [vmem:[%s613] ss:$2 sm:$0xff]
    %v4839 = vmax.f32 %v4837, %v4838
    %v4840 = vpack.c.bf16 %v4839, %v4839
    %v4842 = vunpack.c.l.b16 %v4840
    %v4843 = vpack.c.b16 %v4842, %v4842
    %v4845 = vshrl.u32 %v4843, 16
    %v4847 = vrot.slane %v4845, 7
    %v4848 = vshll.u32 %v4843, 16
    %v4850 = vor.u32 %v4847, %v4848
    %v4851 = vrot.slane %v4847, 4
    %v4854 = vld [vmem:[#allocation2 + $0x28] sm:$0xf]
    %v4855 = vsel %vm526, %v4850, %v4854
    %4856 = vst [vmem:[#allocation2 + $0x28] sm:$0xf] %v4855
    %v4857 = vld [vmem:[#allocation2 + $0x2c] sm:$0x1]
    %v4858 = vsel %vm532, %v4851, %v4857
    %4859 = vst [vmem:[#allocation2 + $0x2c] sm:$0x1] %v4858
    %v4860 = vld [vmem:[%s636] ss:$2 sm:$0xff]
    %v4861 = vld [vmem:[%s638] ss:$2 sm:$0xff]
    %v4862 = vmax.f32 %v4860, %v4861
    %v4863 = vpack.c.bf16 %v4862, %v4862
    %v4865 = vunpack.c.l.b16 %v4863
    %v4866 = vpack.c.b16 %v4865, %v4865
    %v4868 = vshrl.u32 %v4866, 16
    %v4870 = vrot.slane %v4868, 7
    %v4871 = vshll.u32 %v4866, 16
    %v4873 = vor.u32 %v4870, %v4871
    %v4874 = vrot.slane %v4870, 4
    %v4877 = vld [vmem:[#allocation2 + $0x30] sm:$0xf]
    %v4878 = vsel %vm526, %v4873, %v4877
    %4879 = vst [vmem:[#allocation2 + $0x30] sm:$0xf] %v4878
    %v4880 = vld [vmem:[#allocation2 + $0x34] sm:$0x1]
    %v4881 = vsel %vm532, %v4874, %v4880
    %4882 = vst [vmem:[#allocation2 + $0x34] sm:$0x1] %v4881
    %v4883 = vld [vmem:[%s661] ss:$2 sm:$0xff]
    %v4884 = vld [vmem:[%s663] ss:$2 sm:$0xff]
    %v4885 = vmax.f32 %v4883, %v4884
    %v4886 = vpack.c.bf16 %v4885, %v4885
    %v4888 = vunpack.c.l.b16 %v4886
    %v4889 = vpack.c.b16 %v4888, %v4888
    %v4891 = vshrl.u32 %v4889, 16
    %v4893 = vrot.slane %v4891, 7
    %v4894 = vshll.u32 %v4889, 16
    %v4896 = vor.u32 %v4893, %v4894
    %v4897 = vrot.slane %v4893, 4
    %v4900 = vld [vmem:[#allocation2 + $0x38] sm:$0xf]
    %v4901 = vsel %vm526, %v4896, %v4900
    %4902 = vst [vmem:[#allocation2 + $0x38] sm:$0xf] %v4901
    %v4903 = vld [vmem:[#allocation2 + $0x3c] sm:$0x1]
    %v4904 = vsel %vm532, %v4897, %v4903
    %4905 = vst [vmem:[#allocation2 + $0x3c] sm:$0x1] %v4904
    %v4906 = vld [vmem:[%s686] ss:$2 sm:$0xff]
    %v4907 = vld [vmem:[%s688] ss:$2 sm:$0xff]
    %v4908 = vmax.f32 %v4906, %v4907
    %v4909 = vpack.c.bf16 %v4908, %v4908
    %v4911 = vunpack.c.l.b16 %v4909
    %v4912 = vpack.c.b16 %v4911, %v4911
    %v4914 = vshrl.u32 %v4912, 16
    %v4916 = vrot.slane %v4914, 7
    %v4917 = vshll.u32 %v4912, 16
    %v4919 = vor.u32 %v4916, %v4917
    %v4920 = vrot.slane %v4916, 4
    %v4923 = vld [vmem:[#allocation2 + $0x40] sm:$0xf]
    %v4924 = vsel %vm526, %v4919, %v4923
    %4925 = vst [vmem:[#allocation2 + $0x40] sm:$0xf] %v4924
    %v4926 = vld [vmem:[#allocation2 + $0x44] sm:$0x1]
    %v4927 = vsel %vm532, %v4920, %v4926
    %4928 = vst [vmem:[#allocation2 + $0x44] sm:$0x1] %v4927
    %v4929 = vld [vmem:[#allocation2] sm:$0xf]
    %v4930 = vld [vmem:[#allocation2 + $0x4] sm:$0xf]
    %v4931 = vld [vmem:[#allocation2 + $0x8] sm:$0xf]
    %v4932 = vld [vmem:[#allocation2 + $0xc] sm:$0xf]
    %v4933 = vld [vmem:[#allocation2 + $0x10] sm:$0xf]
    %v4934 = vld [vmem:[#allocation2 + $0x14] sm:$0xf]
    %v4935 = vld [vmem:[#allocation2 + $0x18] sm:$0xf]
    %v4936 = vld [vmem:[#allocation2 + $0x1c] sm:$0xf]
    %v4937 = vld [vmem:[#allocation2 + $0x20] sm:$0xf]
    %v4938 = vld [vmem:[#allocation2 + $0x24] sm:$0xf]
    %v4939 = vld [vmem:[#allocation2 + $0x28] sm:$0xf]
    %v4940 = vld [vmem:[#allocation2 + $0x2c] sm:$0xf]
    %v4941 = vld [vmem:[#allocation2 + $0x30] sm:$0xf]
    %v4942 = vld [vmem:[#allocation2 + $0x34] sm:$0xf]
    %v4943 = vld [vmem:[#allocation2 + $0x38] sm:$0xf]
    %v4944 = vld [vmem:[#allocation2 + $0x3c] sm:$0xf]
    %v4945 = vld [vmem:[%s3] sm:$0xf]
    %v4946 = vld [vmem:[%s3 + $0x4] sm:$0xf]
    %v4947 = vld [vmem:[%s3 + $0x8] sm:$0xf]
    %v4948 = vld [vmem:[%s3 + $0xc] sm:$0xf]
    %v4949 = vld [vmem:[%s3 + $0x10] sm:$0xf]
    %v4950 = vld [vmem:[%s3 + $0x14] sm:$0xf]
    %v4951 = vld [vmem:[%s3 + $0x18] sm:$0xf]
    %v4952 = vld [vmem:[%s3 + $0x1c] sm:$0xf]
    %v4953 = vld [vmem:[%s3 + $0x20] sm:$0xf]
    %v4954 = vld [vmem:[%s3 + $0x24] sm:$0xf]
    %v4955 = vld [vmem:[%s3 + $0x28] sm:$0xf]
    %v4956 = vld [vmem:[%s3 + $0x2c] sm:$0xf]
    %v4957 = vld [vmem:[%s3 + $0x30] sm:$0xf]
    %v4958 = vld [vmem:[%s3 + $0x34] sm:$0xf]
    %v4959 = vld [vmem:[%s3 + $0x38] sm:$0xf]
    %v4960 = vld [vmem:[%s3 + $0x3c] sm:$0xf]
    %v4961 = vld [vmem:[#allocation2 + $0x40] sm:$0x1]
    %v4962 = vld [vmem:[%s744] sm:$0xf]
    %v4963 = vld [vmem:[%s744 + $0x4] sm:$0xf]
    %v4964 = vld [vmem:[%s744 + $0x8] sm:$0xf]
    %v4965 = vld [vmem:[%s744 + $0xc] sm:$0xf]
    %v4966 = vld [vmem:[%s744 + $0x10] sm:$0xf]
    %v4967 = vld [vmem:[%s744 + $0x14] sm:$0xf]
    %v4968 = vld [vmem:[%s744 + $0x18] sm:$0xf]
    %v4969 = vld [vmem:[%s744 + $0x1c] sm:$0xf]
    %v4970 = vld [vmem:[%s744 + $0x20] sm:$0xf]
    %v4971 = vld [vmem:[%s744 + $0x24] sm:$0xf]
    %v4972 = vld [vmem:[%s744 + $0x28] sm:$0xf]
    %v4973 = vld [vmem:[%s744 + $0x2c] sm:$0xf]
    %v4974 = vld [vmem:[%s744 + $0x30] sm:$0xf]
    %v4975 = vld [vmem:[%s744 + $0x34] sm:$0xf]
    %v4976 = vld [vmem:[%s744 + $0x38] sm:$0xf]
    %v4977 = vld [vmem:[%s744 + $0x3c] sm:$0xf]
    %v4995 = vunpack.c.l.b16 %v4929
    %v4996 = vunpack.c.l.b16 %v4930
    %v4997 = vunpack.c.l.b16 %v4931
    %v4998 = vunpack.c.l.b16 %v4932
    %v4999 = vunpack.c.l.b16 %v4933
    %v5000 = vunpack.c.l.b16 %v4934
    %v5001 = vunpack.c.l.b16 %v4935
    %v5002 = vunpack.c.l.b16 %v4936
    %v5003 = vunpack.c.l.b16 %v4937
    %v5004 = vunpack.c.l.b16 %v4938
    %v5005 = vunpack.c.l.b16 %v4939
    %v5006 = vunpack.c.l.b16 %v4940
    %v5007 = vunpack.c.l.b16 %v4941
    %v5008 = vunpack.c.l.b16 %v4942
    %v5009 = vunpack.c.l.b16 %v4943
    %v5010 = vunpack.c.l.b16 %v4944
    %v5011 = vunpack.c.l.b16 %v4961
    %v5012 = vpack.c.b16 %v4996, %v4995
    %v5013 = vpack.c.b16 %v4998, %v4997
    %v5014 = vpack.c.b16 %v5000, %v4999
    %v5015 = vpack.c.b16 %v5002, %v5001
    %v5016 = vpack.c.b16 %v5004, %v5003
    %v5017 = vpack.c.b16 %v5006, %v5005
    %v5018 = vpack.c.b16 %v5008, %v5007
    %v5019 = vpack.c.b16 %v5010, %v5009
    %v5020 = vpack.c.b16 %v5011, %v5011
    %v5022 = vshrl.u32 %v5012, 16
    %v5024 = vshll.u32 %v5012, 16
    %v5026 = vrot.slane %v5024, 1
    %v5027 = vor.u32 %v5022, %v5026
    %v5029 = vshll.u32 %v5013, 16
    %v5031 = vrot.slane %v5029, 1
    %v5032 = vsel %vm804, %v5027, %v5031
    %v5033 = vshrl.u32 %v5013, 16
    %v5035 = vor.u32 %v5033, %v5031
    %v5037 = vshll.u32 %v5014, 16
    %v5039 = vrot.slane %v5037, 1
    %v5040 = vsel %vm804, %v5035, %v5039
    %v5041 = vshrl.u32 %v5014, 16
    %v5043 = vor.u32 %v5041, %v5039
    %v5045 = vshll.u32 %v5015, 16
    %v5047 = vrot.slane %v5045, 1
    %v5048 = vsel %vm804, %v5043, %v5047
    %v5049 = vshrl.u32 %v5015, 16
    %v5051 = vor.u32 %v5049, %v5047
    %v5053 = vshll.u32 %v5016, 16
    %v5055 = vrot.slane %v5053, 1
    %v5056 = vsel %vm804, %v5051, %v5055
    %v5057 = vshrl.u32 %v5016, 16
    %v5059 = vor.u32 %v5057, %v5055
    %v5061 = vshll.u32 %v5017, 16
    %v5063 = vrot.slane %v5061, 1
    %v5064 = vsel %vm804, %v5059, %v5063
    %v5065 = vshrl.u32 %v5017, 16
    %v5067 = vor.u32 %v5065, %v5063
    %v5069 = vshll.u32 %v5018, 16
    %v5071 = vrot.slane %v5069, 1
    %v5072 = vsel %vm804, %v5067, %v5071
    %v5073 = vshrl.u32 %v5018, 16
    %v5075 = vor.u32 %v5073, %v5071
    %v5077 = vshll.u32 %v5019, 16
    %v5079 = vrot.slane %v5077, 1
    %v5080 = vsel %vm804, %v5075, %v5079
    %v5081 = vshrl.u32 %v5019, 16
    %v5083 = vor.u32 %v5081, %v5079
    %v5085 = vshll.u32 %v5020, 16
    %v5087 = vrot.slane %v5085, 1
    %v5088 = vsel %vm804, %v5083, %v5087
    %v5113 = vunpack.c.l.b16 %v4962
    %v5114 = vunpack.c.l.b16 %v4963
    %v5115 = vunpack.c.l.b16 %v4964
    %v5116 = vunpack.c.l.b16 %v4965
    %v5117 = vunpack.c.l.b16 %v4966
    %v5118 = vunpack.c.l.b16 %v4967
    %v5119 = vunpack.c.l.b16 %v4968
    %v5120 = vunpack.c.l.b16 %v4969
    %v5121 = vunpack.c.l.b16 %v4970
    %v5122 = vunpack.c.l.b16 %v4971
    %v5123 = vunpack.c.l.b16 %v4972
    %v5124 = vunpack.c.l.b16 %v4973
    %v5125 = vunpack.c.l.b16 %v4974
    %v5126 = vunpack.c.l.b16 %v4975
    %v5127 = vunpack.c.l.b16 %v4976
    %v5128 = vunpack.c.l.b16 %v4977
    %v5129 = vpack.c.b16 %v5114, %v5113
    %v5130 = vpack.c.b16 %v5116, %v5115
    %v5131 = vpack.c.b16 %v5118, %v5117
    %v5132 = vpack.c.b16 %v5120, %v5119
    %v5133 = vpack.c.b16 %v5122, %v5121
    %v5134 = vpack.c.b16 %v5124, %v5123
    %v5135 = vpack.c.b16 %v5126, %v5125
    %v5136 = vpack.c.b16 %v5128, %v5127
    %5145 = vmatprep.subr.bf16.mxu0 0
    %5146 = vmatpush1.bf16.msra.mxu0 %v5136
    %5147 = vmatprep.subr.bf16.mxu0 0
    %5148 = vmatpush1.bf16.msra.mxu0 %v5135
    %5149 = vmatprep.subr.bf16.mxu0 0
    %5150 = vmatpush1.bf16.msra.mxu0 %v5134
    %5151 = vmatprep.subr.bf16.mxu0 0
    %5152 = vmatpush1.bf16.msra.mxu0 %v5133
    %5153 = vmatprep.subr.bf16.mxu0 0
    %5154 = vmatpush1.bf16.msra.mxu0 %v5132
    %5155 = vmatprep.subr.bf16.mxu0 0
    %5156 = vmatpush1.bf16.msra.mxu0 %v5131
    %5157 = vmatprep.subr.bf16.mxu0 0
    %5158 = vmatpush1.bf16.msra.mxu0 %v5130
    %5159 = vmatprep.subr.bf16.mxu0 0
    %5160 = vmatpush1.bf16.msra.mxu0 %v5129
    %5161 = vmatprep.subr.bf16.mxu0 0
    %5162 = vmatpush2.bf16.msra.mxu0 0
    %5163 = vmatprep.subr.bf16.mxu0 0
    %5164 = vmatpush2.bf16.msra.mxu0 0
    %5165 = vmatprep.subr.bf16.mxu0 0
    %5166 = vmatpush2.bf16.msra.mxu0 0
    %5167 = vmatprep.subr.bf16.mxu0 0
    %5168 = vmatpush2.bf16.msra.mxu0 0
    %5169 = vmatprep.subr.bf16.mxu0 0
    %5170 = vmatpush2.bf16.msra.mxu0 0
    %5171 = vmatprep.subr.bf16.mxu0 0
    %5172 = vmatpush2.bf16.msra.mxu0 0
    %5173 = vmatprep.subr.bf16.mxu0 0
    %5174 = vmatpush2.bf16.msra.mxu0 0
    %5175 = vmatprep.subr.bf16.mxu0 0
    %5176 = vmatpush2.bf16.msra.mxu0 0
    %5177 = vmatprep.mubr.bf16.mxu0 0
    %5178 = vmatmul.mubr.bf16.gmra.mxu0 %v5032
    %v5179 = vpop.f32.mrf.mxu0
    %v5180 = vadd.f32 0.0, %v5179
    %v5181 = vpop.f32.mrf.mxu0
    %v5182 = vpop.f32.mrf.mxu0
    %v5183 = vadd.f32 0.0, %v5182
    %v5184 = vpop.f32.mrf.mxu0
    %5185 = vmatprep.mubr.bf16.mxu0 0
    %5186 = vmatmul.mubr.bf16.gmra.mxu0 %v5040
    %v5187 = vpop.f32.mrf.mxu0
    %v5188 = vadd.f32 0.0, %v5187
    %v5189 = vpop.f32.mrf.mxu0
    %v5190 = vpop.f32.mrf.mxu0
    %v5191 = vadd.f32 0.0, %v5190
    %v5192 = vpop.f32.mrf.mxu0
    %5193 = vmatprep.mubr.bf16.mxu0 0
    %5194 = vmatmul.mubr.bf16.gmra.mxu0 %v5048
    %v5195 = vpop.f32.mrf.mxu0
    %v5196 = vadd.f32 0.0, %v5195
    %v5197 = vpop.f32.mrf.mxu0
    %v5198 = vpop.f32.mrf.mxu0
    %v5199 = vadd.f32 0.0, %v5198
    %v5200 = vpop.f32.mrf.mxu0
    %5201 = vmatprep.mubr.bf16.mxu0 0
    %5202 = vmatmul.mubr.bf16.gmra.mxu0 %v5056
    %v5203 = vpop.f32.mrf.mxu0
    %v5204 = vadd.f32 0.0, %v5203
    %v5205 = vpop.f32.mrf.mxu0
    %v5206 = vpop.f32.mrf.mxu0
    %v5207 = vadd.f32 0.0, %v5206
    %v5208 = vpop.f32.mrf.mxu0
    %5209 = vmatprep.mubr.bf16.mxu0 0
    %5210 = vmatmul.mubr.bf16.gmra.mxu0 %v5064
    %v5211 = vpop.f32.mrf.mxu0
    %v5212 = vadd.f32 0.0, %v5211
    %v5213 = vpop.f32.mrf.mxu0
    %v5214 = vpop.f32.mrf.mxu0
    %v5215 = vadd.f32 0.0, %v5214
    %v5216 = vpop.f32.mrf.mxu0
    %5217 = vmatprep.mubr.bf16.mxu0 0
    %5218 = vmatmul.mubr.bf16.gmra.mxu0 %v5072
    %v5219 = vpop.f32.mrf.mxu0
    %v5220 = vadd.f32 0.0, %v5219
    %v5221 = vpop.f32.mrf.mxu0
    %v5222 = vpop.f32.mrf.mxu0
    %v5223 = vadd.f32 0.0, %v5222
    %v5224 = vpop.f32.mrf.mxu0
    %5225 = vmatprep.mubr.bf16.mxu0 0
    %5226 = vmatmul.mubr.bf16.gmra.mxu0 %v5080
    %v5227 = vpop.f32.mrf.mxu0
    %v5228 = vadd.f32 0.0, %v5227
    %v5229 = vpop.f32.mrf.mxu0
    %v5230 = vpop.f32.mrf.mxu0
    %v5231 = vadd.f32 0.0, %v5230
    %v5232 = vpop.f32.mrf.mxu0
    %5233 = vmatprep.mubr.bf16.mxu0 0
    %5234 = vmatmul.mubr.bf16.gmra.mxu0 %v5088
    %v5235 = vpop.f32.mrf.mxu0
    %v5236 = vadd.f32 0.0, %v5235
    %v5237 = vpop.f32.mrf.mxu0
    %v5238 = vpop.f32.mrf.mxu0
    %v5239 = vadd.f32 0.0, %v5238
    %v5240 = vpop.f32.mrf.mxu0
    %5241 = vdwg.mxu0
    %v5266 = vunpack.c.l.b16 %v4945
    %v5267 = vunpack.c.l.b16 %v4946
    %v5268 = vunpack.c.l.b16 %v4947
    %v5269 = vunpack.c.l.b16 %v4948
    %v5270 = vunpack.c.l.b16 %v4949
    %v5271 = vunpack.c.l.b16 %v4950
    %v5272 = vunpack.c.l.b16 %v4951
    %v5273 = vunpack.c.l.b16 %v4952
    %v5274 = vunpack.c.l.b16 %v4953
    %v5275 = vunpack.c.l.b16 %v4954
    %v5276 = vunpack.c.l.b16 %v4955
    %v5277 = vunpack.c.l.b16 %v4956
    %v5278 = vunpack.c.l.b16 %v4957
    %v5279 = vunpack.c.l.b16 %v4958
    %v5280 = vunpack.c.l.b16 %v4959
    %v5281 = vunpack.c.l.b16 %v4960
    %v5282 = vpack.c.b16 %v5267, %v5266
    %v5283 = vpack.c.b16 %v5269, %v5268
    %v5284 = vpack.c.b16 %v5271, %v5270
    %v5285 = vpack.c.b16 %v5273, %v5272
    %v5286 = vpack.c.b16 %v5275, %v5274
    %v5287 = vpack.c.b16 %v5277, %v5276
    %v5288 = vpack.c.b16 %v5279, %v5278
    %v5289 = vpack.c.b16 %v5281, %v5280
    %5298 = vmatprep.subr.bf16.mxu0 0
    %5299 = vmatpush1.bf16.msra.mxu0 %v5289
    %5300 = vmatprep.subr.bf16.mxu0 0
    %5301 = vmatpush1.bf16.msra.mxu0 %v5288
    %5302 = vmatprep.subr.bf16.mxu0 0
    %5303 = vmatpush1.bf16.msra.mxu0 %v5287
    %5304 = vmatprep.subr.bf16.mxu0 0
    %5305 = vmatpush1.bf16.msra.mxu0 %v5286
    %5306 = vmatprep.subr.bf16.mxu0 0
    %5307 = vmatpush1.bf16.msra.mxu0 %v5285
    %5308 = vmatprep.subr.bf16.mxu0 0
    %5309 = vmatpush1.bf16.msra.mxu0 %v5284
    %5310 = vmatprep.subr.bf16.mxu0 0
    %5311 = vmatpush1.bf16.msra.mxu0 %v5283
    %5312 = vmatprep.subr.bf16.mxu0 0
    %5313 = vmatpush1.bf16.msra.mxu0 %v5282
    %5314 = vmatprep.subr.bf16.mxu0 0
    %5315 = vmatpush2.bf16.msra.mxu0 0
    %5316 = vmatprep.subr.bf16.mxu0 0
    %5317 = vmatpush2.bf16.msra.mxu0 0
    %5318 = vmatprep.subr.bf16.mxu0 0
    %5319 = vmatpush2.bf16.msra.mxu0 0
    %5320 = vmatprep.subr.bf16.mxu0 0
    %5321 = vmatpush2.bf16.msra.mxu0 0
    %5322 = vmatprep.subr.bf16.mxu0 0
    %5323 = vmatpush2.bf16.msra.mxu0 0
    %5324 = vmatprep.subr.bf16.mxu0 0
    %5325 = vmatpush2.bf16.msra.mxu0 0
    %5326 = vmatprep.subr.bf16.mxu0 0
    %5327 = vmatpush2.bf16.msra.mxu0 0
    %5328 = vmatprep.subr.bf16.mxu0 0
    %5329 = vmatpush2.bf16.msra.mxu0 0
    %5330 = vmatprep.mubr.bf16.mxu0 0
    %5331 = vmatmul.mubr.bf16.gmra.mxu0 %v5012
    %v5332 = vpop.f32.mrf.mxu0
    %v5333 = vadd.f32 %v5180, %v5332
    %v5334 = vpop.f32.mrf.mxu0
    %v5335 = vpop.f32.mrf.mxu0
    %v5336 = vadd.f32 %v5183, %v5335
    %v5337 = vpop.f32.mrf.mxu0
    %5338 = vmatprep.mubr.bf16.mxu0 0
    %5339 = vmatmul.mubr.bf16.gmra.mxu0 %v5013
    %v5340 = vpop.f32.mrf.mxu0
    %v5341 = vadd.f32 %v5188, %v5340
    %v5342 = vpop.f32.mrf.mxu0
    %v5343 = vpop.f32.mrf.mxu0
    %v5344 = vadd.f32 %v5191, %v5343
    %v5345 = vpop.f32.mrf.mxu0
    %5346 = vmatprep.mubr.bf16.mxu0 0
    %5347 = vmatmul.mubr.bf16.gmra.mxu0 %v5014
    %v5348 = vpop.f32.mrf.mxu0
    %v5349 = vadd.f32 %v5196, %v5348
    %v5350 = vpop.f32.mrf.mxu0
    %v5351 = vpop.f32.mrf.mxu0
    %v5352 = vadd.f32 %v5199, %v5351
    %v5353 = vpop.f32.mrf.mxu0
    %5354 = vmatprep.mubr.bf16.mxu0 0
    %5355 = vmatmul.mubr.bf16.gmra.mxu0 %v5015
    %v5356 = vpop.f32.mrf.mxu0
    %v5357 = vadd.f32 %v5204, %v5356
    %v5358 = vpop.f32.mrf.mxu0
    %v5359 = vpop.f32.mrf.mxu0
    %v5360 = vadd.f32 %v5207, %v5359
    %v5361 = vpop.f32.mrf.mxu0
    %5362 = vmatprep.mubr.bf16.mxu0 0
    %5363 = vmatmul.mubr.bf16.gmra.mxu0 %v5016
    %v5364 = vpop.f32.mrf.mxu0
    %v5365 = vadd.f32 %v5212, %v5364
    %v5366 = vpop.f32.mrf.mxu0
    %v5367 = vpop.f32.mrf.mxu0
    %v5368 = vadd.f32 %v5215, %v5367
    %v5369 = vpop.f32.mrf.mxu0
    %5370 = vmatprep.mubr.bf16.mxu0 0
    %5371 = vmatmul.mubr.bf16.gmra.mxu0 %v5017
    %v5372 = vpop.f32.mrf.mxu0
    %v5373 = vadd.f32 %v5220, %v5372
    %v5374 = vpop.f32.mrf.mxu0
    %v5375 = vpop.f32.mrf.mxu0
    %v5376 = vadd.f32 %v5223, %v5375
    %v5377 = vpop.f32.mrf.mxu0
    %5378 = vmatprep.mubr.bf16.mxu0 0
    %5379 = vmatmul.mubr.bf16.gmra.mxu0 %v5018
    %v5380 = vpop.f32.mrf.mxu0
    %v5381 = vadd.f32 %v5228, %v5380
    %v5382 = vpop.f32.mrf.mxu0
    %v5383 = vpop.f32.mrf.mxu0
    %v5384 = vadd.f32 %v5231, %v5383
    %v5385 = vpop.f32.mrf.mxu0
    %5386 = vmatprep.mubr.bf16.mxu0 0
    %5387 = vmatmul.mubr.bf16.gmra.mxu0 %v5019
    %v5388 = vpop.f32.mrf.mxu0
    %v5389 = vadd.f32 %v5236, %v5388
    %v5390 = vpop.f32.mrf.mxu0
    %v5391 = vpop.f32.mrf.mxu0
    %v5392 = vadd.f32 %v5239, %v5391
    %v5393 = vpop.f32.mrf.mxu0
    %5394 = vdwg.mxu0
    %v5395 = vld [vmem:[#allocation2] sm:$0xe]
    %v5396 = vld [vmem:[%s1180] sm:$0xf]
    %v5397 = vld [vmem:[%s1180 + $0x4] sm:$0xf]
    %v5398 = vld [vmem:[%s1180 + $0x8] sm:$0xf]
    %v5399 = vld [vmem:[%s1180 + $0xc] sm:$0xf]
    %v5400 = vld [vmem:[%s1180 + $0x10] sm:$0xf]
    %v5401 = vld [vmem:[%s1180 + $0x14] sm:$0xf]
    %v5402 = vld [vmem:[%s1180 + $0x18] sm:$0xf]
    %v5403 = vld [vmem:[%s1180 + $0x1c] sm:$0xf]
    %v5404 = vld [vmem:[%s1180 + $0x20] sm:$0xf]
    %v5405 = vld [vmem:[%s1180 + $0x24] sm:$0xf]
    %v5406 = vld [vmem:[%s1180 + $0x28] sm:$0xf]
    %v5407 = vld [vmem:[%s1180 + $0x2c] sm:$0xf]
    %v5408 = vld [vmem:[%s1180 + $0x30] sm:$0xf]
    %v5409 = vld [vmem:[%s1180 + $0x34] sm:$0xf]
    %v5410 = vld [vmem:[%s1180 + $0x38] sm:$0xf]
    %v5411 = vld [vmem:[%s1180 + $0x3c] sm:$0xf]
    %v5413 = vunpack.c.l.b16 %v5395
    %v5414 = vpack.c.b16 %v4996, %v5413
    %v5415 = vrot.slane %v5414, 1
    %v5416 = vrot.slane %v5013, 1
    %v5417 = vsel %vm1200, %v5415, %v5416
    %v5418 = vrot.slane %v5014, 1
    %v5419 = vsel %vm1200, %v5416, %v5418
    %v5420 = vrot.slane %v5015, 1
    %v5421 = vsel %vm1200, %v5418, %v5420
    %v5422 = vrot.slane %v5016, 1
    %v5423 = vsel %vm1200, %v5420, %v5422
    %v5424 = vrot.slane %v5017, 1
    %v5425 = vsel %vm1200, %v5422, %v5424
    %v5426 = vrot.slane %v5018, 1
    %v5427 = vsel %vm1200, %v5424, %v5426
    %v5428 = vrot.slane %v5019, 1
    %v5429 = vsel %vm1200, %v5426, %v5428
    %v5430 = vrot.slane %v5020, 1
    %v5431 = vsel %vm1200, %v5428, %v5430
    %v5456 = vunpack.c.l.b16 %v5396
    %v5457 = vunpack.c.l.b16 %v5397
    %v5458 = vunpack.c.l.b16 %v5398
    %v5459 = vunpack.c.l.b16 %v5399
    %v5460 = vunpack.c.l.b16 %v5400
    %v5461 = vunpack.c.l.b16 %v5401
    %v5462 = vunpack.c.l.b16 %v5402
    %v5463 = vunpack.c.l.b16 %v5403
    %v5464 = vunpack.c.l.b16 %v5404
    %v5465 = vunpack.c.l.b16 %v5405
    %v5466 = vunpack.c.l.b16 %v5406
    %v5467 = vunpack.c.l.b16 %v5407
    %v5468 = vunpack.c.l.b16 %v5408
    %v5469 = vunpack.c.l.b16 %v5409
    %v5470 = vunpack.c.l.b16 %v5410
    %v5471 = vunpack.c.l.b16 %v5411
    %v5472 = vpack.c.b16 %v5457, %v5456
    %v5473 = vpack.c.b16 %v5459, %v5458
    %v5474 = vpack.c.b16 %v5461, %v5460
    %v5475 = vpack.c.b16 %v5463, %v5462
    %v5476 = vpack.c.b16 %v5465, %v5464
    %v5477 = vpack.c.b16 %v5467, %v5466
    %v5478 = vpack.c.b16 %v5469, %v5468
    %v5479 = vpack.c.b16 %v5471, %v5470
    %5488 = vmatprep.subr.bf16.mxu0 0
    %5489 = vmatpush1.bf16.msra.mxu0 %v5479
    %5490 = vmatprep.subr.bf16.mxu0 0
    %5491 = vmatpush1.bf16.msra.mxu0 %v5478
    %5492 = vmatprep.subr.bf16.mxu0 0
    %5493 = vmatpush1.bf16.msra.mxu0 %v5477
    %5494 = vmatprep.subr.bf16.mxu0 0
    %5495 = vmatpush1.bf16.msra.mxu0 %v5476
    %5496 = vmatprep.subr.bf16.mxu0 0
    %5497 = vmatpush1.bf16.msra.mxu0 %v5475
    %5498 = vmatprep.subr.bf16.mxu0 0
    %5499 = vmatpush1.bf16.msra.mxu0 %v5474
    %5500 = vmatprep.subr.bf16.mxu0 0
    %5501 = vmatpush1.bf16.msra.mxu0 %v5473
    %5502 = vmatprep.subr.bf16.mxu0 0
    %5503 = vmatpush1.bf16.msra.mxu0 %v5472
    %5504 = vmatprep.subr.bf16.mxu0 0
    %5505 = vmatpush2.bf16.msra.mxu0 0
    %5506 = vmatprep.subr.bf16.mxu0 0
    %5507 = vmatpush2.bf16.msra.mxu0 0
    %5508 = vmatprep.subr.bf16.mxu0 0
    %5509 = vmatpush2.bf16.msra.mxu0 0
    %5510 = vmatprep.subr.bf16.mxu0 0
    %5511 = vmatpush2.bf16.msra.mxu0 0
    %5512 = vmatprep.subr.bf16.mxu0 0
    %5513 = vmatpush2.bf16.msra.mxu0 0
    %5514 = vmatprep.subr.bf16.mxu0 0
    %5515 = vmatpush2.bf16.msra.mxu0 0
    %5516 = vmatprep.subr.bf16.mxu0 0
    %5517 = vmatpush2.bf16.msra.mxu0 0
    %5518 = vmatprep.subr.bf16.mxu0 0
    %5519 = vmatpush2.bf16.msra.mxu0 0
    %5520 = vmatprep.mubr.bf16.mxu0 0
    %5521 = vmatmul.mubr.bf16.gmra.mxu0 %v5417
    %v5522 = vpop.f32.mrf.mxu0
    %v5523 = vadd.f32 0.0, %v5522
    %v5524 = vpop.f32.mrf.mxu0
    %v5525 = vpop.f32.mrf.mxu0
    %v5526 = vadd.f32 0.0, %v5525
    %v5527 = vpop.f32.mrf.mxu0
    %5528 = vmatprep.mubr.bf16.mxu0 0
    %5529 = vmatmul.mubr.bf16.gmra.mxu0 %v5419
    %v5530 = vpop.f32.mrf.mxu0
    %v5531 = vadd.f32 0.0, %v5530
    %v5532 = vpop.f32.mrf.mxu0
    %v5533 = vpop.f32.mrf.mxu0
    %v5534 = vadd.f32 0.0, %v5533
    %v5535 = vpop.f32.mrf.mxu0
    %5536 = vmatprep.mubr.bf16.mxu0 0
    %5537 = vmatmul.mubr.bf16.gmra.mxu0 %v5421
    %v5538 = vpop.f32.mrf.mxu0
    %v5539 = vadd.f32 0.0, %v5538
    %v5540 = vpop.f32.mrf.mxu0
    %v5541 = vpop.f32.mrf.mxu0
    %v5542 = vadd.f32 0.0, %v5541
    %v5543 = vpop.f32.mrf.mxu0
    %5544 = vmatprep.mubr.bf16.mxu0 0
    %5545 = vmatmul.mubr.bf16.gmra.mxu0 %v5423
    %v5546 = vpop.f32.mrf.mxu0
    %v5547 = vadd.f32 0.0, %v5546
    %v5548 = vpop.f32.mrf.mxu0
    %v5549 = vpop.f32.mrf.mxu0
    %v5550 = vadd.f32 0.0, %v5549
    %v5551 = vpop.f32.mrf.mxu0
    %5552 = vmatprep.mubr.bf16.mxu0 0
    %5553 = vmatmul.mubr.bf16.gmra.mxu0 %v5425
    %v5554 = vpop.f32.mrf.mxu0
    %v5555 = vadd.f32 0.0, %v5554
    %v5556 = vpop.f32.mrf.mxu0
    %v5557 = vpop.f32.mrf.mxu0
    %v5558 = vadd.f32 0.0, %v5557
    %v5559 = vpop.f32.mrf.mxu0
    %5560 = vmatprep.mubr.bf16.mxu0 0
    %5561 = vmatmul.mubr.bf16.gmra.mxu0 %v5427
    %v5562 = vpop.f32.mrf.mxu0
    %v5563 = vadd.f32 0.0, %v5562
    %v5564 = vpop.f32.mrf.mxu0
    %v5565 = vpop.f32.mrf.mxu0
    %v5566 = vadd.f32 0.0, %v5565
    %v5567 = vpop.f32.mrf.mxu0
    %5568 = vmatprep.mubr.bf16.mxu0 0
    %5569 = vmatmul.mubr.bf16.gmra.mxu0 %v5429
    %v5570 = vpop.f32.mrf.mxu0
    %v5571 = vadd.f32 0.0, %v5570
    %v5572 = vpop.f32.mrf.mxu0
    %v5573 = vpop.f32.mrf.mxu0
    %v5574 = vadd.f32 0.0, %v5573
    %v5575 = vpop.f32.mrf.mxu0
    %5576 = vmatprep.mubr.bf16.mxu0 0
    %5577 = vmatmul.mubr.bf16.gmra.mxu0 %v5431
    %v5578 = vpop.f32.mrf.mxu0
    %v5579 = vadd.f32 0.0, %v5578
    %v5580 = vpop.f32.mrf.mxu0
    %v5581 = vpop.f32.mrf.mxu0
    %v5582 = vadd.f32 0.0, %v5581
    %v5583 = vpop.f32.mrf.mxu0
    %5584 = vdwg.mxu0
    %v5585 = vadd.f32 %v5333, %v5523
    %v5586 = vadd.f32 %v5336, %v5526
    %v5587 = vadd.f32 %v5341, %v5531
    %v5588 = vadd.f32 %v5344, %v5534
    %v5589 = vadd.f32 %v5349, %v5539
    %v5590 = vadd.f32 %v5352, %v5542
    %v5591 = vadd.f32 %v5357, %v5547
    %v5592 = vadd.f32 %v5360, %v5550
    %v5593 = vadd.f32 %v5365, %v5555
    %v5594 = vadd.f32 %v5368, %v5558
    %v5595 = vadd.f32 %v5373, %v5563
    %v5596 = vadd.f32 %v5376, %v5566
    %v5597 = vadd.f32 %v5381, %v5571
    %v5598 = vadd.f32 %v5384, %v5574
    %v5599 = vadd.f32 %v5389, %v5579
    %v5600 = vadd.f32 %v5392, %v5582
    %v5601 = vld [vmem:[#allocation2 + $0x8] sm:$0xf]
    %v5602 = vld [vmem:[#allocation2 + $0xc] sm:$0xf]
    %v5603 = vld [vmem:[#allocation2 + $0x10] sm:$0xf]
    %v5604 = vld [vmem:[#allocation2 + $0x14] sm:$0xf]
    %v5605 = vld [vmem:[#allocation2 + $0x18] sm:$0xf]
    %v5606 = vld [vmem:[#allocation2 + $0x1c] sm:$0xf]
    %v5607 = vld [vmem:[#allocation2 + $0x20] sm:$0xf]
    %v5608 = vld [vmem:[#allocation2 + $0x24] sm:$0xf]
    %v5609 = vld [vmem:[#allocation2 + $0x28] sm:$0xf]
    %v5610 = vld [vmem:[#allocation2 + $0x2c] sm:$0xf]
    %v5611 = vld [vmem:[#allocation2 + $0x30] sm:$0xf]
    %v5612 = vld [vmem:[#allocation2 + $0x34] sm:$0xf]
    %v5613 = vld [vmem:[#allocation2 + $0x38] sm:$0xf]
    %v5614 = vld [vmem:[#allocation2 + $0x3c] sm:$0xf]
    %v5615 = vld [vmem:[#allocation2 + $0x40] sm:$0xf]
    %v5616 = vld [vmem:[#allocation2 + $0x44] sm:$0xf]
    %v5617 = vld [vmem:[%s1403] sm:$0xf]
    %v5618 = vld [vmem:[%s1403 + $0x4] sm:$0xf]
    %v5619 = vld [vmem:[%s1403 + $0x8] sm:$0xf]
    %v5620 = vld [vmem:[%s1403 + $0xc] sm:$0xf]
    %v5621 = vld [vmem:[%s1403 + $0x10] sm:$0xf]
    %v5622 = vld [vmem:[%s1403 + $0x14] sm:$0xf]
    %v5623 = vld [vmem:[%s1403 + $0x18] sm:$0xf]
    %v5624 = vld [vmem:[%s1403 + $0x1c] sm:$0xf]
    %v5625 = vld [vmem:[%s1403 + $0x20] sm:$0xf]
    %v5626 = vld [vmem:[%s1403 + $0x24] sm:$0xf]
    %v5627 = vld [vmem:[%s1403 + $0x28] sm:$0xf]
    %v5628 = vld [vmem:[%s1403 + $0x2c] sm:$0xf]
    %v5629 = vld [vmem:[%s1403 + $0x30] sm:$0xf]
    %v5630 = vld [vmem:[%s1403 + $0x34] sm:$0xf]
    %v5631 = vld [vmem:[%s1403 + $0x38] sm:$0xf]
    %v5632 = vld [vmem:[%s1403 + $0x3c] sm:$0xf]
    %v5649 = vunpack.c.l.b16 %v5601
    %v5650 = vunpack.c.l.b16 %v5602
    %v5651 = vunpack.c.l.b16 %v5603
    %v5652 = vunpack.c.l.b16 %v5604
    %v5653 = vunpack.c.l.b16 %v5605
    %v5654 = vunpack.c.l.b16 %v5606
    %v5655 = vunpack.c.l.b16 %v5607
    %v5656 = vunpack.c.l.b16 %v5608
    %v5657 = vunpack.c.l.b16 %v5609
    %v5658 = vunpack.c.l.b16 %v5610
    %v5659 = vunpack.c.l.b16 %v5611
    %v5660 = vunpack.c.l.b16 %v5612
    %v5661 = vunpack.c.l.b16 %v5613
    %v5662 = vunpack.c.l.b16 %v5614
    %v5663 = vunpack.c.l.b16 %v5615
    %v5664 = vunpack.c.l.b16 %v5616
    %v5665 = vpack.c.b16 %v5650, %v5649
    %v5666 = vpack.c.b16 %v5652, %v5651
    %v5667 = vpack.c.b16 %v5654, %v5653
    %v5668 = vpack.c.b16 %v5656, %v5655
    %v5669 = vpack.c.b16 %v5658, %v5657
    %v5670 = vpack.c.b16 %v5660, %v5659
    %v5671 = vpack.c.b16 %v5662, %v5661
    %v5672 = vpack.c.b16 %v5664, %v5663
    %v5697 = vunpack.c.l.b16 %v5617
    %v5698 = vunpack.c.l.b16 %v5618
    %v5699 = vunpack.c.l.b16 %v5619
    %v5700 = vunpack.c.l.b16 %v5620
    %v5701 = vunpack.c.l.b16 %v5621
    %v5702 = vunpack.c.l.b16 %v5622
    %v5703 = vunpack.c.l.b16 %v5623
    %v5704 = vunpack.c.l.b16 %v5624
    %v5705 = vunpack.c.l.b16 %v5625
    %v5706 = vunpack.c.l.b16 %v5626
    %v5707 = vunpack.c.l.b16 %v5627
    %v5708 = vunpack.c.l.b16 %v5628
    %v5709 = vunpack.c.l.b16 %v5629
    %v5710 = vunpack.c.l.b16 %v5630
    %v5711 = vunpack.c.l.b16 %v5631
    %v5712 = vunpack.c.l.b16 %v5632
    %v5713 = vpack.c.b16 %v5698, %v5697
    %v5714 = vpack.c.b16 %v5700, %v5699
    %v5715 = vpack.c.b16 %v5702, %v5701
    %v5716 = vpack.c.b16 %v5704, %v5703
    %v5717 = vpack.c.b16 %v5706, %v5705
    %v5718 = vpack.c.b16 %v5708, %v5707
    %v5719 = vpack.c.b16 %v5710, %v5709
    %v5720 = vpack.c.b16 %v5712, %v5711
    %5729 = vmatprep.subr.bf16.mxu0 0
    %5730 = vmatpush1.bf16.msra.mxu0 %v5720
    %5731 = vmatprep.subr.bf16.mxu0 0
    %5732 = vmatpush1.bf16.msra.mxu0 %v5719
    %5733 = vmatprep.subr.bf16.mxu0 0
    %5734 = vmatpush1.bf16.msra.mxu0 %v5718
    %5735 = vmatprep.subr.bf16.mxu0 0
    %5736 = vmatpush1.bf16.msra.mxu0 %v5717
    %5737 = vmatprep.subr.bf16.mxu0 0
    %5738 = vmatpush1.bf16.msra.mxu0 %v5716
    %5739 = vmatprep.subr.bf16.mxu0 0
    %5740 = vmatpush1.bf16.msra.mxu0 %v5715
    %5741 = vmatprep.subr.bf16.mxu0 0
    %5742 = vmatpush1.bf16.msra.mxu0 %v5714
    %5743 = vmatprep.subr.bf16.mxu0 0
    %5744 = vmatpush1.bf16.msra.mxu0 %v5713
    %5745 = vmatprep.subr.bf16.mxu0 0
    %5746 = vmatpush2.bf16.msra.mxu0 0
    %5747 = vmatprep.subr.bf16.mxu0 0
    %5748 = vmatpush2.bf16.msra.mxu0 0
    %5749 = vmatprep.subr.bf16.mxu0 0
    %5750 = vmatpush2.bf16.msra.mxu0 0
    %5751 = vmatprep.subr.bf16.mxu0 0
    %5752 = vmatpush2.bf16.msra.mxu0 0
    %5753 = vmatprep.subr.bf16.mxu0 0
    %5754 = vmatpush2.bf16.msra.mxu0 0
    %5755 = vmatprep.subr.bf16.mxu0 0
    %5756 = vmatpush2.bf16.msra.mxu0 0
    %5757 = vmatprep.subr.bf16.mxu0 0
    %5758 = vmatpush2.bf16.msra.mxu0 0
    %5759 = vmatprep.subr.bf16.mxu0 0
    %5760 = vmatpush2.bf16.msra.mxu0 0
    %5761 = vmatprep.mubr.bf16.mxu0 0
    %5762 = vmatmul.mubr.bf16.gmra.mxu0 %v5665
    %v5763 = vpop.f32.mrf.mxu0
    %v5764 = vadd.f32 0.0, %v5763
    %v5765 = vpop.f32.mrf.mxu0
    %v5766 = vpop.f32.mrf.mxu0
    %v5767 = vadd.f32 0.0, %v5766
    %v5768 = vpop.f32.mrf.mxu0
    %5769 = vmatprep.mubr.bf16.mxu0 0
    %5770 = vmatmul.mubr.bf16.gmra.mxu0 %v5666
    %v5771 = vpop.f32.mrf.mxu0
    %v5772 = vadd.f32 0.0, %v5771
    %v5773 = vpop.f32.mrf.mxu0
    %v5774 = vpop.f32.mrf.mxu0
    %v5775 = vadd.f32 0.0, %v5774
    %v5776 = vpop.f32.mrf.mxu0
    %5777 = vmatprep.mubr.bf16.mxu0 0
    %5778 = vmatmul.mubr.bf16.gmra.mxu0 %v5667
    %v5779 = vpop.f32.mrf.mxu0
    %v5780 = vadd.f32 0.0, %v5779
    %v5781 = vpop.f32.mrf.mxu0
    %v5782 = vpop.f32.mrf.mxu0
    %v5783 = vadd.f32 0.0, %v5782
    %v5784 = vpop.f32.mrf.mxu0
    %5785 = vmatprep.mubr.bf16.mxu0 0
    %5786 = vmatmul.mubr.bf16.gmra.mxu0 %v5668
    %v5787 = vpop.f32.mrf.mxu0
    %v5788 = vadd.f32 0.0, %v5787
    %v5789 = vpop.f32.mrf.mxu0
    %v5790 = vpop.f32.mrf.mxu0
    %v5791 = vadd.f32 0.0, %v5790
    %v5792 = vpop.f32.mrf.mxu0
    %5793 = vmatprep.mubr.bf16.mxu0 0
    %5794 = vmatmul.mubr.bf16.gmra.mxu0 %v5669
    %v5795 = vpop.f32.mrf.mxu0
    %v5796 = vadd.f32 0.0, %v5795
    %v5797 = vpop.f32.mrf.mxu0
    %v5798 = vpop.f32.mrf.mxu0
    %v5799 = vadd.f32 0.0, %v5798
    %v5800 = vpop.f32.mrf.mxu0
    %5801 = vmatprep.mubr.bf16.mxu0 0
    %5802 = vmatmul.mubr.bf16.gmra.mxu0 %v5670
    %v5803 = vpop.f32.mrf.mxu0
    %v5804 = vadd.f32 0.0, %v5803
    %v5805 = vpop.f32.mrf.mxu0
    %v5806 = vpop.f32.mrf.mxu0
    %v5807 = vadd.f32 0.0, %v5806
    %v5808 = vpop.f32.mrf.mxu0
    %5809 = vmatprep.mubr.bf16.mxu0 0
    %5810 = vmatmul.mubr.bf16.gmra.mxu0 %v5671
    %v5811 = vpop.f32.mrf.mxu0
    %v5812 = vadd.f32 0.0, %v5811
    %v5813 = vpop.f32.mrf.mxu0
    %v5814 = vpop.f32.mrf.mxu0
    %v5815 = vadd.f32 0.0, %v5814
    %v5816 = vpop.f32.mrf.mxu0
    %5817 = vmatprep.mubr.bf16.mxu0 0
    %5818 = vmatmul.mubr.bf16.gmra.mxu0 %v5672
    %v5819 = vpop.f32.mrf.mxu0
    %v5820 = vadd.f32 0.0, %v5819
    %v5821 = vpop.f32.mrf.mxu0
    %v5822 = vpop.f32.mrf.mxu0
    %v5823 = vadd.f32 0.0, %v5822
    %v5824 = vpop.f32.mrf.mxu0
    %5825 = vdwg.mxu0
    %v5826 = vadd.f32 %v5585, %v5764
    %v5827 = vadd.f32 %v5586, %v5767
    %v5828 = vadd.f32 %v5587, %v5772
    %v5829 = vadd.f32 %v5588, %v5775
    %v5830 = vadd.f32 %v5589, %v5780
    %v5831 = vadd.f32 %v5590, %v5783
    %v5832 = vadd.f32 %v5591, %v5788
    %v5833 = vadd.f32 %v5592, %v5791
    %v5834 = vadd.f32 %v5593, %v5796
    %v5835 = vadd.f32 %v5594, %v5799
    %v5836 = vadd.f32 %v5595, %v5804
    %v5837 = vadd.f32 %v5596, %v5807
    %v5838 = vadd.f32 %v5597, %v5812
    %v5839 = vadd.f32 %v5598, %v5815
    %v5840 = vadd.f32 %v5599, %v5820
    %v5841 = vadd.f32 %v5600, %v5823
    %v5842 = vld [vmem:[#allocation2 + $0x8] sm:$0xf]
    %v5843 = vld [vmem:[#allocation2 + $0xc] sm:$0xf]
    %v5844 = vld [vmem:[#allocation2 + $0x10] sm:$0xf]
    %v5845 = vld [vmem:[#allocation2 + $0x14] sm:$0xf]
    %v5846 = vld [vmem:[#allocation2 + $0x18] sm:$0xf]
    %v5847 = vld [vmem:[#allocation2 + $0x1c] sm:$0xf]
    %v5848 = vld [vmem:[#allocation2 + $0x20] sm:$0xf]
    %v5849 = vld [vmem:[#allocation2 + $0x24] sm:$0xf]
    %v5850 = vld [vmem:[#allocation2 + $0x28] sm:$0xf]
    %v5851 = vld [vmem:[#allocation2 + $0x2c] sm:$0xf]
    %v5852 = vld [vmem:[#allocation2 + $0x30] sm:$0xf]
    %v5853 = vld [vmem:[#allocation2 + $0x34] sm:$0xf]
    %v5854 = vld [vmem:[#allocation2 + $0x38] sm:$0xf]
    %v5855 = vld [vmem:[#allocation2 + $0x3c] sm:$0xf]
    %v5856 = vld [vmem:[#allocation2 + $0x40] sm:$0xf]
    %v5857 = vld [vmem:[#allocation2 + $0x44] sm:$0xf]
    %v5858 = vld [vmem:[#allocation2 + $0x48] sm:$0x1]
    %v5859 = vld [vmem:[%s1646] sm:$0xf]
    %v5860 = vld [vmem:[%s1646 + $0x4] sm:$0xf]
    %v5861 = vld [vmem:[%s1646 + $0x8] sm:$0xf]
    %v5862 = vld [vmem:[%s1646 + $0xc] sm:$0xf]
    %v5863 = vld [vmem:[%s1646 + $0x10] sm:$0xf]
    %v5864 = vld [vmem:[%s1646 + $0x14] sm:$0xf]
    %v5865 = vld [vmem:[%s1646 + $0x18] sm:$0xf]
    %v5866 = vld [vmem:[%s1646 + $0x1c] sm:$0xf]
    %v5867 = vld [vmem:[%s1646 + $0x20] sm:$0xf]
    %v5868 = vld [vmem:[%s1646 + $0x24] sm:$0xf]
    %v5869 = vld [vmem:[%s1646 + $0x28] sm:$0xf]
    %v5870 = vld [vmem:[%s1646 + $0x2c] sm:$0xf]
    %v5871 = vld [vmem:[%s1646 + $0x30] sm:$0xf]
    %v5872 = vld [vmem:[%s1646 + $0x34] sm:$0xf]
    %v5873 = vld [vmem:[%s1646 + $0x38] sm:$0xf]
    %v5874 = vld [vmem:[%s1646 + $0x3c] sm:$0xf]
    %v5892 = vunpack.c.l.b16 %v5842
    %v5893 = vunpack.c.l.b16 %v5843
    %v5894 = vunpack.c.l.b16 %v5844
    %v5895 = vunpack.c.l.b16 %v5845
    %v5896 = vunpack.c.l.b16 %v5846
    %v5897 = vunpack.c.l.b16 %v5847
    %v5898 = vunpack.c.l.b16 %v5848
    %v5899 = vunpack.c.l.b16 %v5849
    %v5900 = vunpack.c.l.b16 %v5850
    %v5901 = vunpack.c.l.b16 %v5851
    %v5902 = vunpack.c.l.b16 %v5852
    %v5903 = vunpack.c.l.b16 %v5853
    %v5904 = vunpack.c.l.b16 %v5854
    %v5905 = vunpack.c.l.b16 %v5855
    %v5906 = vunpack.c.l.b16 %v5856
    %v5907 = vunpack.c.l.b16 %v5857
    %v5908 = vunpack.c.l.b16 %v5858
    %v5909 = vpack.c.b16 %v5893, %v5892
    %v5910 = vpack.c.b16 %v5895, %v5894
    %v5911 = vpack.c.b16 %v5897, %v5896
    %v5912 = vpack.c.b16 %v5899, %v5898
    %v5913 = vpack.c.b16 %v5901, %v5900
    %v5914 = vpack.c.b16 %v5903, %v5902
    %v5915 = vpack.c.b16 %v5905, %v5904
    %v5916 = vpack.c.b16 %v5907, %v5906
    %v5917 = vpack.c.b16 %v5908, %v5908
    %v5919 = vshrl.u32 %v5909, 16
    %v5921 = vshll.u32 %v5909, 16
    %v5923 = vrot.slane %v5921, 1
    %v5924 = vor.u32 %v5919, %v5923
    %v5926 = vshll.u32 %v5910, 16
    %v5928 = vrot.slane %v5926, 1
    %v5929 = vsel %vm804, %v5924, %v5928
    %v5930 = vshrl.u32 %v5910, 16
    %v5932 = vor.u32 %v5930, %v5928
    %v5934 = vshll.u32 %v5911, 16
    %v5936 = vrot.slane %v5934, 1
    %v5937 = vsel %vm804, %v5932, %v5936
    %v5938 = vshrl.u32 %v5911, 16
    %v5940 = vor.u32 %v5938, %v5936
    %v5942 = vshll.u32 %v5912, 16
    %v5944 = vrot.slane %v5942, 1
    %v5945 = vsel %vm804, %v5940, %v5944
    %v5946 = vshrl.u32 %v5912, 16
    %v5948 = vor.u32 %v5946, %v5944
    %v5950 = vshll.u32 %v5913, 16
    %v5952 = vrot.slane %v5950, 1
    %v5953 = vsel %vm804, %v5948, %v5952
    %v5954 = vshrl.u32 %v5913, 16
    %v5956 = vor.u32 %v5954, %v5952
    %v5958 = vshll.u32 %v5914, 16
    %v5960 = vrot.slane %v5958, 1
    %v5961 = vsel %vm804, %v5956, %v5960
    %v5962 = vshrl.u32 %v5914, 16
    %v5964 = vor.u32 %v5962, %v5960
    %v5966 = vshll.u32 %v5915, 16
    %v5968 = vrot.slane %v5966, 1
    %v5969 = vsel %vm804, %v5964, %v5968
    %v5970 = vshrl.u32 %v5915, 16
    %v5972 = vor.u32 %v5970, %v5968
    %v5974 = vshll.u32 %v5916, 16
    %v5976 = vrot.slane %v5974, 1
    %v5977 = vsel %vm804, %v5972, %v5976
    %v5978 = vshrl.u32 %v5916, 16
    %v5980 = vor.u32 %v5978, %v5976
    %v5982 = vshll.u32 %v5917, 16
    %v5984 = vrot.slane %v5982, 1
    %v5985 = vsel %vm804, %v5980, %v5984
    %v6010 = vunpack.c.l.b16 %v5859
    %v6011 = vunpack.c.l.b16 %v5860
    %v6012 = vunpack.c.l.b16 %v5861
    %v6013 = vunpack.c.l.b16 %v5862
    %v6014 = vunpack.c.l.b16 %v5863
    %v6015 = vunpack.c.l.b16 %v5864
    %v6016 = vunpack.c.l.b16 %v5865
    %v6017 = vunpack.c.l.b16 %v5866
    %v6018 = vunpack.c.l.b16 %v5867
    %v6019 = vunpack.c.l.b16 %v5868
    %v6020 = vunpack.c.l.b16 %v5869
    %v6021 = vunpack.c.l.b16 %v5870
    %v6022 = vunpack.c.l.b16 %v5871
    %v6023 = vunpack.c.l.b16 %v5872
    %v6024 = vunpack.c.l.b16 %v5873
    %v6025 = vunpack.c.l.b16 %v5874
    %v6026 = vpack.c.b16 %v6011, %v6010
    %v6027 = vpack.c.b16 %v6013, %v6012
    %v6028 = vpack.c.b16 %v6015, %v6014
    %v6029 = vpack.c.b16 %v6017, %v6016
    %v6030 = vpack.c.b16 %v6019, %v6018
    %v6031 = vpack.c.b16 %v6021, %v6020
    %v6032 = vpack.c.b16 %v6023, %v6022
    %v6033 = vpack.c.b16 %v6025, %v6024
    %6042 = vmatprep.subr.bf16.mxu0 0
    %6043 = vmatpush1.bf16.msra.mxu0 %v6033
    %6044 = vmatprep.subr.bf16.mxu0 0
    %6045 = vmatpush1.bf16.msra.mxu0 %v6032
    %6046 = vmatprep.subr.bf16.mxu0 0
    %6047 = vmatpush1.bf16.msra.mxu0 %v6031
    %6048 = vmatprep.subr.bf16.mxu0 0
    %6049 = vmatpush1.bf16.msra.mxu0 %v6030
    %6050 = vmatprep.subr.bf16.mxu0 0
    %6051 = vmatpush1.bf16.msra.mxu0 %v6029
    %6052 = vmatprep.subr.bf16.mxu0 0
    %6053 = vmatpush1.bf16.msra.mxu0 %v6028
    %6054 = vmatprep.subr.bf16.mxu0 0
    %6055 = vmatpush1.bf16.msra.mxu0 %v6027
    %6056 = vmatprep.subr.bf16.mxu0 0
    %6057 = vmatpush1.bf16.msra.mxu0 %v6026
    %6058 = vmatprep.subr.bf16.mxu0 0
    %6059 = vmatpush2.bf16.msra.mxu0 0
    %6060 = vmatprep.subr.bf16.mxu0 0
    %6061 = vmatpush2.bf16.msra.mxu0 0
    %6062 = vmatprep.subr.bf16.mxu0 0
    %6063 = vmatpush2.bf16.msra.mxu0 0
    %6064 = vmatprep.subr.bf16.mxu0 0
    %6065 = vmatpush2.bf16.msra.mxu0 0
    %6066 = vmatprep.subr.bf16.mxu0 0
    %6067 = vmatpush2.bf16.msra.mxu0 0
    %6068 = vmatprep.subr.bf16.mxu0 0
    %6069 = vmatpush2.bf16.msra.mxu0 0
    %6070 = vmatprep.subr.bf16.mxu0 0
    %6071 = vmatpush2.bf16.msra.mxu0 0
    %6072 = vmatprep.subr.bf16.mxu0 0
    %6073 = vmatpush2.bf16.msra.mxu0 0
    %6074 = vmatprep.mubr.bf16.mxu0 0
    %6075 = vmatmul.mubr.bf16.gmra.mxu0 %v5929
    %v6076 = vpop.f32.mrf.mxu0
    %v6077 = vadd.f32 0.0, %v6076
    %v6078 = vpop.f32.mrf.mxu0
    %v6079 = vpop.f32.mrf.mxu0
    %v6080 = vadd.f32 0.0, %v6079
    %v6081 = vpop.f32.mrf.mxu0
    %6082 = vmatprep.mubr.bf16.mxu0 0
    %6083 = vmatmul.mubr.bf16.gmra.mxu0 %v5937
    %v6084 = vpop.f32.mrf.mxu0
    %v6085 = vadd.f32 0.0, %v6084
    %v6086 = vpop.f32.mrf.mxu0
    %v6087 = vpop.f32.mrf.mxu0
    %v6088 = vadd.f32 0.0, %v6087
    %v6089 = vpop.f32.mrf.mxu0
    %6090 = vmatprep.mubr.bf16.mxu0 0
    %6091 = vmatmul.mubr.bf16.gmra.mxu0 %v5945
    %v6092 = vpop.f32.mrf.mxu0
    %v6093 = vadd.f32 0.0, %v6092
    %v6094 = vpop.f32.mrf.mxu0
    %v6095 = vpop.f32.mrf.mxu0
    %v6096 = vadd.f32 0.0, %v6095
    %v6097 = vpop.f32.mrf.mxu0
    %6098 = vmatprep.mubr.bf16.mxu0 0
    %6099 = vmatmul.mubr.bf16.gmra.mxu0 %v5953
    %v6100 = vpop.f32.mrf.mxu0
    %v6101 = vadd.f32 0.0, %v6100
    %v6102 = vpop.f32.mrf.mxu0
    %v6103 = vpop.f32.mrf.mxu0
    %v6104 = vadd.f32 0.0, %v6103
    %v6105 = vpop.f32.mrf.mxu0
    %6106 = vmatprep.mubr.bf16.mxu0 0
    %6107 = vmatmul.mubr.bf16.gmra.mxu0 %v5961
    %v6108 = vpop.f32.mrf.mxu0
    %v6109 = vadd.f32 0.0, %v6108
    %v6110 = vpop.f32.mrf.mxu0
    %v6111 = vpop.f32.mrf.mxu0
    %v6112 = vadd.f32 0.0, %v6111
    %v6113 = vpop.f32.mrf.mxu0
    %6114 = vmatprep.mubr.bf16.mxu0 0
    %6115 = vmatmul.mubr.bf16.gmra.mxu0 %v5969
    %v6116 = vpop.f32.mrf.mxu0
    %v6117 = vadd.f32 0.0, %v6116
    %v6118 = vpop.f32.mrf.mxu0
    %v6119 = vpop.f32.mrf.mxu0
    %v6120 = vadd.f32 0.0, %v6119
    %v6121 = vpop.f32.mrf.mxu0
    %6122 = vmatprep.mubr.bf16.mxu0 0
    %6123 = vmatmul.mubr.bf16.gmra.mxu0 %v5977
    %v6124 = vpop.f32.mrf.mxu0
    %v6125 = vadd.f32 0.0, %v6124
    %v6126 = vpop.f32.mrf.mxu0
    %v6127 = vpop.f32.mrf.mxu0
    %v6128 = vadd.f32 0.0, %v6127
    %v6129 = vpop.f32.mrf.mxu0
    %6130 = vmatprep.mubr.bf16.mxu0 0
    %6131 = vmatmul.mubr.bf16.gmra.mxu0 %v5985
    %v6132 = vpop.f32.mrf.mxu0
    %v6133 = vadd.f32 0.0, %v6132
    %v6134 = vpop.f32.mrf.mxu0
    %v6135 = vpop.f32.mrf.mxu0
    %v6136 = vadd.f32 0.0, %v6135
    %v6137 = vpop.f32.mrf.mxu0
    %6138 = vdwg.mxu0
    %v6139 = vadd.f32 %v5826, %v6077
    %v6140 = vadd.f32 %v5827, %v6080
    %v6141 = vadd.f32 %v5828, %v6085
    %v6142 = vadd.f32 %v5829, %v6088
    %v6143 = vadd.f32 %v5830, %v6093
    %v6144 = vadd.f32 %v5831, %v6096
    %v6145 = vadd.f32 %v5832, %v6101
    %v6146 = vadd.f32 %v5833, %v6104
    %v6147 = vadd.f32 %v5834, %v6109
    %v6148 = vadd.f32 %v5835, %v6112
    %v6149 = vadd.f32 %v5836, %v6117
    %v6150 = vadd.f32 %v5837, %v6120
    %v6151 = vadd.f32 %v5838, %v6125
    %v6152 = vadd.f32 %v5839, %v6128
    %v6153 = vadd.f32 %v5840, %v6133
    %v6154 = vadd.f32 %v5841, %v6136
    %v6155 = vld [vmem:[#allocation2 + $0x8] sm:$0xe]
    %v6156 = vld [vmem:[%s1944] sm:$0xf]
    %v6157 = vld [vmem:[%s1944 + $0x4] sm:$0xf]
    %v6158 = vld [vmem:[%s1944 + $0x8] sm:$0xf]
    %v6159 = vld [vmem:[%s1944 + $0xc] sm:$0xf]
    %v6160 = vld [vmem:[%s1944 + $0x10] sm:$0xf]
    %v6161 = vld [vmem:[%s1944 + $0x14] sm:$0xf]
    %v6162 = vld [vmem:[%s1944 + $0x18] sm:$0xf]
    %v6163 = vld [vmem:[%s1944 + $0x1c] sm:$0xf]
    %v6164 = vld [vmem:[%s1944 + $0x20] sm:$0xf]
    %v6165 = vld [vmem:[%s1944 + $0x24] sm:$0xf]
    %v6166 = vld [vmem:[%s1944 + $0x28] sm:$0xf]
    %v6167 = vld [vmem:[%s1944 + $0x2c] sm:$0xf]
    %v6168 = vld [vmem:[%s1944 + $0x30] sm:$0xf]
    %v6169 = vld [vmem:[%s1944 + $0x34] sm:$0xf]
    %v6170 = vld [vmem:[%s1944 + $0x38] sm:$0xf]
    %v6171 = vld [vmem:[%s1944 + $0x3c] sm:$0xf]
    %v6173 = vunpack.c.l.b16 %v6155
    %v6174 = vpack.c.b16 %v5893, %v6173
    %v6175 = vrot.slane %v6174, 1
    %v6176 = vrot.slane %v5910, 1
    %v6177 = vsel %vm1200, %v6175, %v6176
    %v6178 = vrot.slane %v5911, 1
    %v6179 = vsel %vm1200, %v6176, %v6178
    %v6180 = vrot.slane %v5912, 1
    %v6181 = vsel %vm1200, %v6178, %v6180
    %v6182 = vrot.slane %v5913, 1
    %v6183 = vsel %vm1200, %v6180, %v6182
    %v6184 = vrot.slane %v5914, 1
    %v6185 = vsel %vm1200, %v6182, %v6184
    %v6186 = vrot.slane %v5915, 1
    %v6187 = vsel %vm1200, %v6184, %v6186
    %v6188 = vrot.slane %v5916, 1
    %v6189 = vsel %vm1200, %v6186, %v6188
    %v6190 = vrot.slane %v5917, 1
    %v6191 = vsel %vm1200, %v6188, %v6190
    %v6216 = vunpack.c.l.b16 %v6156
    %v6217 = vunpack.c.l.b16 %v6157
    %v6218 = vunpack.c.l.b16 %v6158
    %v6219 = vunpack.c.l.b16 %v6159
    %v6220 = vunpack.c.l.b16 %v6160
    %v6221 = vunpack.c.l.b16 %v6161
    %v6222 = vunpack.c.l.b16 %v6162
    %v6223 = vunpack.c.l.b16 %v6163
    %v6224 = vunpack.c.l.b16 %v6164
    %v6225 = vunpack.c.l.b16 %v6165
    %v6226 = vunpack.c.l.b16 %v6166
    %v6227 = vunpack.c.l.b16 %v6167
    %v6228 = vunpack.c.l.b16 %v6168
    %v6229 = vunpack.c.l.b16 %v6169
    %v6230 = vunpack.c.l.b16 %v6170
    %v6231 = vunpack.c.l.b16 %v6171
    %v6232 = vpack.c.b16 %v6217, %v6216
    %v6233 = vpack.c.b16 %v6219, %v6218
    %v6234 = vpack.c.b16 %v6221, %v6220
    %v6235 = vpack.c.b16 %v6223, %v6222
    %v6236 = vpack.c.b16 %v6225, %v6224
    %v6237 = vpack.c.b16 %v6227, %v6226
    %v6238 = vpack.c.b16 %v6229, %v6228
    %v6239 = vpack.c.b16 %v6231, %v6230
    %6248 = vmatprep.subr.bf16.mxu0 0
    %6249 = vmatpush1.bf16.msra.mxu0 %v6239
    %6250 = vmatprep.subr.bf16.mxu0 0
    %6251 = vmatpush1.bf16.msra.mxu0 %v6238
    %6252 = vmatprep.subr.bf16.mxu0 0
    %6253 = vmatpush1.bf16.msra.mxu0 %v6237
    %6254 = vmatprep.subr.bf16.mxu0 0
    %6255 = vmatpush1.bf16.msra.mxu0 %v6236
    %6256 = vmatprep.subr.bf16.mxu0 0
    %6257 = vmatpush1.bf16.msra.mxu0 %v6235
    %6258 = vmatprep.subr.bf16.mxu0 0
    %6259 = vmatpush1.bf16.msra.mxu0 %v6234
    %6260 = vmatprep.subr.bf16.mxu0 0
    %6261 = vmatpush1.bf16.msra.mxu0 %v6233
    %6262 = vmatprep.subr.bf16.mxu0 0
    %6263 = vmatpush1.bf16.msra.mxu0 %v6232
    %6264 = vmatprep.subr.bf16.mxu0 0
    %6265 = vmatpush2.bf16.msra.mxu0 0
    %6266 = vmatprep.subr.bf16.mxu0 0
    %6267 = vmatpush2.bf16.msra.mxu0 0
    %6268 = vmatprep.subr.bf16.mxu0 0
    %6269 = vmatpush2.bf16.msra.mxu0 0
    %6270 = vmatprep.subr.bf16.mxu0 0
    %6271 = vmatpush2.bf16.msra.mxu0 0
    %6272 = vmatprep.subr.bf16.mxu0 0
    %6273 = vmatpush2.bf16.msra.mxu0 0
    %6274 = vmatprep.subr.bf16.mxu0 0
    %6275 = vmatpush2.bf16.msra.mxu0 0
    %6276 = vmatprep.subr.bf16.mxu0 0
    %6277 = vmatpush2.bf16.msra.mxu0 0
    %6278 = vmatprep.subr.bf16.mxu0 0
    %6279 = vmatpush2.bf16.msra.mxu0 0
    %6280 = vmatprep.mubr.bf16.mxu0 0
    %6281 = vmatmul.mubr.bf16.gmra.mxu0 %v6177
    %v6282 = vpop.f32.mrf.mxu0
    %v6283 = vadd.f32 0.0, %v6282
    %v6284 = vpop.f32.mrf.mxu0
    %v6285 = vpop.f32.mrf.mxu0
    %v6286 = vadd.f32 0.0, %v6285
    %v6287 = vpop.f32.mrf.mxu0
    %6288 = vmatprep.mubr.bf16.mxu0 0
    %6289 = vmatmul.mubr.bf16.gmra.mxu0 %v6179
    %v6290 = vpop.f32.mrf.mxu0
    %v6291 = vadd.f32 0.0, %v6290
    %v6292 = vpop.f32.mrf.mxu0
    %v6293 = vpop.f32.mrf.mxu0
    %v6294 = vadd.f32 0.0, %v6293
    %v6295 = vpop.f32.mrf.mxu0
    %6296 = vmatprep.mubr.bf16.mxu0 0
    %6297 = vmatmul.mubr.bf16.gmra.mxu0 %v6181
    %v6298 = vpop.f32.mrf.mxu0
    %v6299 = vadd.f32 0.0, %v6298
    %v6300 = vpop.f32.mrf.mxu0
    %v6301 = vpop.f32.mrf.mxu0
    %v6302 = vadd.f32 0.0, %v6301
    %v6303 = vpop.f32.mrf.mxu0
    %6304 = vmatprep.mubr.bf16.mxu0 0
    %6305 = vmatmul.mubr.bf16.gmra.mxu0 %v6183
    %v6306 = vpop.f32.mrf.mxu0
    %v6307 = vadd.f32 0.0, %v6306
    %v6308 = vpop.f32.mrf.mxu0
    %v6309 = vpop.f32.mrf.mxu0
    %v6310 = vadd.f32 0.0, %v6309
    %v6311 = vpop.f32.mrf.mxu0
    %6312 = vmatprep.mubr.bf16.mxu0 0
    %6313 = vmatmul.mubr.bf16.gmra.mxu0 %v6185
    %v6314 = vpop.f32.mrf.mxu0
    %v6315 = vadd.f32 0.0, %v6314
    %v6316 = vpop.f32.mrf.mxu0
    %v6317 = vpop.f32.mrf.mxu0
    %v6318 = vadd.f32 0.0, %v6317
    %v6319 = vpop.f32.mrf.mxu0
    %6320 = vmatprep.mubr.bf16.mxu0 0
    %6321 = vmatmul.mubr.bf16.gmra.mxu0 %v6187
    %v6322 = vpop.f32.mrf.mxu0
    %v6323 = vadd.f32 0.0, %v6322
    %v6324 = vpop.f32.mrf.mxu0
    %v6325 = vpop.f32.mrf.mxu0
    %v6326 = vadd.f32 0.0, %v6325
    %v6327 = vpop.f32.mrf.mxu0
    %6328 = vmatprep.mubr.bf16.mxu0 0
    %6329 = vmatmul.mubr.bf16.gmra.mxu0 %v6189
    %v6330 = vpop.f32.mrf.mxu0
    %v6331 = vadd.f32 0.0, %v6330
    %v6332 = vpop.f32.mrf.mxu0
    %v6333 = vpop.f32.mrf.mxu0
    %v6334 = vadd.f32 0.0, %v6333
    %v6335 = vpop.f32.mrf.mxu0
    %6336 = vmatprep.mubr.bf16.mxu0 0
    %6337 = vmatmul.mubr.bf16.gmra.mxu0 %v6191
    %v6338 = vpop.f32.mrf.mxu0
    %v6339 = vadd.f32 0.0, %v6338
    %v6340 = vpop.f32.mrf.mxu0
    %v6341 = vpop.f32.mrf.mxu0
    %v6342 = vadd.f32 0.0, %v6341
    %v6343 = vpop.f32.mrf.mxu0
    %6344 = vdwg.mxu0
    %v6345 = vadd.f32 %v6139, %v6283
    %v6346 = vadd.f32 %v6140, %v6286
    %v6347 = vadd.f32 %v6141, %v6291
    %v6348 = vadd.f32 %v6142, %v6294
    %v6349 = vadd.f32 %v6143, %v6299
    %v6350 = vadd.f32 %v6144, %v6302
    %v6351 = vadd.f32 %v6145, %v6307
    %v6352 = vadd.f32 %v6146, %v6310
    %v6353 = vadd.f32 %v6147, %v6315
    %v6354 = vadd.f32 %v6148, %v6318
    %v6355 = vadd.f32 %v6149, %v6323
    %v6356 = vadd.f32 %v6150, %v6326
    %v6357 = vadd.f32 %v6151, %v6331
    %v6358 = vadd.f32 %v6152, %v6334
    %v6359 = vadd.f32 %v6153, %v6339
    %v6360 = vadd.f32 %v6154, %v6342
    %v6361 = vld [vmem:[#allocation2 + $0x10] sm:$0xf]
    %v6362 = vld [vmem:[#allocation2 + $0x14] sm:$0xf]
    %v6363 = vld [vmem:[#allocation2 + $0x18] sm:$0xf]
    %v6364 = vld [vmem:[#allocation2 + $0x1c] sm:$0xf]
    %v6365 = vld [vmem:[#allocation2 + $0x20] sm:$0xf]
    %v6366 = vld [vmem:[#allocation2 + $0x24] sm:$0xf]
    %v6367 = vld [vmem:[#allocation2 + $0x28] sm:$0xf]
    %v6368 = vld [vmem:[#allocation2 + $0x2c] sm:$0xf]
    %v6369 = vld [vmem:[#allocation2 + $0x30] sm:$0xf]
    %v6370 = vld [vmem:[#allocation2 + $0x34] sm:$0xf]
    %v6371 = vld [vmem:[#allocation2 + $0x38] sm:$0xf]
    %v6372 = vld [vmem:[#allocation2 + $0x3c] sm:$0xf]
    %v6373 = vld [vmem:[#allocation2 + $0x40] sm:$0xf]
    %v6374 = vld [vmem:[#allocation2 + $0x44] sm:$0xf]
    %v6375 = vld [vmem:[#allocation2 + $0x48] sm:$0xf]
    %v6376 = vld [vmem:[#allocation2 + $0x4c] sm:$0xf]
    %v6377 = vld [vmem:[%s2166] sm:$0xf]
    %v6378 = vld [vmem:[%s2166 + $0x4] sm:$0xf]
    %v6379 = vld [vmem:[%s2166 + $0x8] sm:$0xf]
    %v6380 = vld [vmem:[%s2166 + $0xc] sm:$0xf]
    %v6381 = vld [vmem:[%s2166 + $0x10] sm:$0xf]
    %v6382 = vld [vmem:[%s2166 + $0x14] sm:$0xf]
    %v6383 = vld [vmem:[%s2166 + $0x18] sm:$0xf]
    %v6384 = vld [vmem:[%s2166 + $0x1c] sm:$0xf]
    %v6385 = vld [vmem:[%s2166 + $0x20] sm:$0xf]
    %v6386 = vld [vmem:[%s2166 + $0x24] sm:$0xf]
    %v6387 = vld [vmem:[%s2166 + $0x28] sm:$0xf]
    %v6388 = vld [vmem:[%s2166 + $0x2c] sm:$0xf]
    %v6389 = vld [vmem:[%s2166 + $0x30] sm:$0xf]
    %v6390 = vld [vmem:[%s2166 + $0x34] sm:$0xf]
    %v6391 = vld [vmem:[%s2166 + $0x38] sm:$0xf]
    %v6392 = vld [vmem:[%s2166 + $0x3c] sm:$0xf]
    %v6409 = vunpack.c.l.b16 %v6361
    %v6410 = vunpack.c.l.b16 %v6362
    %v6411 = vunpack.c.l.b16 %v6363
    %v6412 = vunpack.c.l.b16 %v6364
    %v6413 = vunpack.c.l.b16 %v6365
    %v6414 = vunpack.c.l.b16 %v6366
    %v6415 = vunpack.c.l.b16 %v6367
    %v6416 = vunpack.c.l.b16 %v6368
    %v6417 = vunpack.c.l.b16 %v6369
    %v6418 = vunpack.c.l.b16 %v6370
    %v6419 = vunpack.c.l.b16 %v6371
    %v6420 = vunpack.c.l.b16 %v6372
    %v6421 = vunpack.c.l.b16 %v6373
    %v6422 = vunpack.c.l.b16 %v6374
    %v6423 = vunpack.c.l.b16 %v6375
    %v6424 = vunpack.c.l.b16 %v6376
    %v6425 = vpack.c.b16 %v6410, %v6409
    %v6426 = vpack.c.b16 %v6412, %v6411
    %v6427 = vpack.c.b16 %v6414, %v6413
    %v6428 = vpack.c.b16 %v6416, %v6415
    %v6429 = vpack.c.b16 %v6418, %v6417
    %v6430 = vpack.c.b16 %v6420, %v6419
    %v6431 = vpack.c.b16 %v6422, %v6421
    %v6432 = vpack.c.b16 %v6424, %v6423
    %v6457 = vunpack.c.l.b16 %v6377
    %v6458 = vunpack.c.l.b16 %v6378
    %v6459 = vunpack.c.l.b16 %v6379
    %v6460 = vunpack.c.l.b16 %v6380
    %v6461 = vunpack.c.l.b16 %v6381
    %v6462 = vunpack.c.l.b16 %v6382
    %v6463 = vunpack.c.l.b16 %v6383
    %v6464 = vunpack.c.l.b16 %v6384
    %v6465 = vunpack.c.l.b16 %v6385
    %v6466 = vunpack.c.l.b16 %v6386
    %v6467 = vunpack.c.l.b16 %v6387
    %v6468 = vunpack.c.l.b16 %v6388
    %v6469 = vunpack.c.l.b16 %v6389
    %v6470 = vunpack.c.l.b16 %v6390
    %v6471 = vunpack.c.l.b16 %v6391
    %v6472 = vunpack.c.l.b16 %v6392
    %v6473 = vpack.c.b16 %v6458, %v6457
    %v6474 = vpack.c.b16 %v6460, %v6459
    %v6475 = vpack.c.b16 %v6462, %v6461
    %v6476 = vpack.c.b16 %v6464, %v6463
    %v6477 = vpack.c.b16 %v6466, %v6465
    %v6478 = vpack.c.b16 %v6468, %v6467
    %v6479 = vpack.c.b16 %v6470, %v6469
    %v6480 = vpack.c.b16 %v6472, %v6471
    %6489 = vmatprep.subr.bf16.mxu0 0
    %6490 = vmatpush1.bf16.msra.mxu0 %v6480
    %6491 = vmatprep.subr.bf16.mxu0 0
    %6492 = vmatpush1.bf16.msra.mxu0 %v6479
    %6493 = vmatprep.subr.bf16.mxu0 0
    %6494 = vmatpush1.bf16.msra.mxu0 %v6478
    %6495 = vmatprep.subr.bf16.mxu0 0
    %6496 = vmatpush1.bf16.msra.mxu0 %v6477
    %6497 = vmatprep.subr.bf16.mxu0 0
    %6498 = vmatpush1.bf16.msra.mxu0 %v6476
    %6499 = vmatprep.subr.bf16.mxu0 0
    %6500 = vmatpush1.bf16.msra.mxu0 %v6475
    %6501 = vmatprep.subr.bf16.mxu0 0
    %6502 = vmatpush1.bf16.msra.mxu0 %v6474
    %6503 = vmatprep.subr.bf16.mxu0 0
    %6504 = vmatpush1.bf16.msra.mxu0 %v6473
    %6505 = vmatprep.subr.bf16.mxu0 0
    %6506 = vmatpush2.bf16.msra.mxu0 0
    %6507 = vmatprep.subr.bf16.mxu0 0
    %6508 = vmatpush2.bf16.msra.mxu0 0
    %6509 = vmatprep.subr.bf16.mxu0 0
    %6510 = vmatpush2.bf16.msra.mxu0 0
    %6511 = vmatprep.subr.bf16.mxu0 0
    %6512 = vmatpush2.bf16.msra.mxu0 0
    %6513 = vmatprep.subr.bf16.mxu0 0
    %6514 = vmatpush2.bf16.msra.mxu0 0
    %6515 = vmatprep.subr.bf16.mxu0 0
    %6516 = vmatpush2.bf16.msra.mxu0 0
    %6517 = vmatprep.subr.bf16.mxu0 0
    %6518 = vmatpush2.bf16.msra.mxu0 0
    %6519 = vmatprep.subr.bf16.mxu0 0
    %6520 = vmatpush2.bf16.msra.mxu0 0
    %6521 = vmatprep.mubr.bf16.mxu0 0
    %6522 = vmatmul.mubr.bf16.gmra.mxu0 %v6425
    %v6523 = vpop.f32.mrf.mxu0
    %v6524 = vadd.f32 0.0, %v6523
    %v6525 = vpop.f32.mrf.mxu0
    %v6526 = vpop.f32.mrf.mxu0
    %v6527 = vadd.f32 0.0, %v6526
    %v6528 = vpop.f32.mrf.mxu0
    %6529 = vmatprep.mubr.bf16.mxu0 0
    %6530 = vmatmul.mubr.bf16.gmra.mxu0 %v6426
    %v6531 = vpop.f32.mrf.mxu0
    %v6532 = vadd.f32 0.0, %v6531
    %v6533 = vpop.f32.mrf.mxu0
    %v6534 = vpop.f32.mrf.mxu0
    %v6535 = vadd.f32 0.0, %v6534
    %v6536 = vpop.f32.mrf.mxu0
    %6537 = vmatprep.mubr.bf16.mxu0 0
    %6538 = vmatmul.mubr.bf16.gmra.mxu0 %v6427
    %v6539 = vpop.f32.mrf.mxu0
    %v6540 = vadd.f32 0.0, %v6539
    %v6541 = vpop.f32.mrf.mxu0
    %v6542 = vpop.f32.mrf.mxu0
    %v6543 = vadd.f32 0.0, %v6542
    %v6544 = vpop.f32.mrf.mxu0
    %6545 = vmatprep.mubr.bf16.mxu0 0
    %6546 = vmatmul.mubr.bf16.gmra.mxu0 %v6428
    %v6547 = vpop.f32.mrf.mxu0
    %v6548 = vadd.f32 0.0, %v6547
    %v6549 = vpop.f32.mrf.mxu0
    %v6550 = vpop.f32.mrf.mxu0
    %v6551 = vadd.f32 0.0, %v6550
    %v6552 = vpop.f32.mrf.mxu0
    %6553 = vmatprep.mubr.bf16.mxu0 0
    %6554 = vmatmul.mubr.bf16.gmra.mxu0 %v6429
    %v6555 = vpop.f32.mrf.mxu0
    %v6556 = vadd.f32 0.0, %v6555
    %v6557 = vpop.f32.mrf.mxu0
    %v6558 = vpop.f32.mrf.mxu0
    %v6559 = vadd.f32 0.0, %v6558
    %v6560 = vpop.f32.mrf.mxu0
    %6561 = vmatprep.mubr.bf16.mxu0 0
    %6562 = vmatmul.mubr.bf16.gmra.mxu0 %v6430
    %v6563 = vpop.f32.mrf.mxu0
    %v6564 = vadd.f32 0.0, %v6563
    %v6565 = vpop.f32.mrf.mxu0
    %v6566 = vpop.f32.mrf.mxu0
    %v6567 = vadd.f32 0.0, %v6566
    %v6568 = vpop.f32.mrf.mxu0
    %6569 = vmatprep.mubr.bf16.mxu0 0
    %6570 = vmatmul.mubr.bf16.gmra.mxu0 %v6431
    %v6571 = vpop.f32.mrf.mxu0
    %v6572 = vadd.f32 0.0, %v6571
    %v6573 = vpop.f32.mrf.mxu0
    %v6574 = vpop.f32.mrf.mxu0
    %v6575 = vadd.f32 0.0, %v6574
    %v6576 = vpop.f32.mrf.mxu0
    %6577 = vmatprep.mubr.bf16.mxu0 0
    %6578 = vmatmul.mubr.bf16.gmra.mxu0 %v6432
    %v6579 = vpop.f32.mrf.mxu0
    %v6580 = vadd.f32 0.0, %v6579
    %v6581 = vpop.f32.mrf.mxu0
    %v6582 = vpop.f32.mrf.mxu0
    %v6583 = vadd.f32 0.0, %v6582
    %v6584 = vpop.f32.mrf.mxu0
    %6585 = vdwg.mxu0
    %v6586 = vadd.f32 %v6345, %v6524
    %v6587 = vadd.f32 %v6346, %v6527
    %v6588 = vadd.f32 %v6347, %v6532
    %v6589 = vadd.f32 %v6348, %v6535
    %v6590 = vadd.f32 %v6349, %v6540
    %v6591 = vadd.f32 %v6350, %v6543
    %v6592 = vadd.f32 %v6351, %v6548
    %v6593 = vadd.f32 %v6352, %v6551
    %v6594 = vadd.f32 %v6353, %v6556
    %v6595 = vadd.f32 %v6354, %v6559
    %v6596 = vadd.f32 %v6355, %v6564
    %v6597 = vadd.f32 %v6356, %v6567
    %v6598 = vadd.f32 %v6357, %v6572
    %v6599 = vadd.f32 %v6358, %v6575
    %v6600 = vadd.f32 %v6359, %v6580
    %v6601 = vadd.f32 %v6360, %v6583
    %v6602 = vld [vmem:[#allocation2 + $0x10] sm:$0xf]
    %v6603 = vld [vmem:[#allocation2 + $0x14] sm:$0xf]
    %v6604 = vld [vmem:[#allocation2 + $0x18] sm:$0xf]
    %v6605 = vld [vmem:[#allocation2 + $0x1c] sm:$0xf]
    %v6606 = vld [vmem:[#allocation2 + $0x20] sm:$0xf]
    %v6607 = vld [vmem:[#allocation2 + $0x24] sm:$0xf]
    %v6608 = vld [vmem:[#allocation2 + $0x28] sm:$0xf]
    %v6609 = vld [vmem:[#allocation2 + $0x2c] sm:$0xf]
    %v6610 = vld [vmem:[#allocation2 + $0x30] sm:$0xf]
    %v6611 = vld [vmem:[#allocation2 + $0x34] sm:$0xf]
    %v6612 = vld [vmem:[#allocation2 + $0x38] sm:$0xf]
    %v6613 = vld [vmem:[#allocation2 + $0x3c] sm:$0xf]
    %v6614 = vld [vmem:[#allocation2 + $0x40] sm:$0xf]
    %v6615 = vld [vmem:[#allocation2 + $0x44] sm:$0xf]
    %v6616 = vld [vmem:[#allocation2 + $0x48] sm:$0xf]
    %v6617 = vld [vmem:[#allocation2 + $0x4c] sm:$0xf]
    %v6618 = vld [vmem:[#allocation2 + $0x50] sm:$0x1]
    %v6619 = vld [vmem:[%s2409] sm:$0xf]
    %v6620 = vld [vmem:[%s2409 + $0x4] sm:$0xf]
    %v6621 = vld [vmem:[%s2409 + $0x8] sm:$0xf]
    %v6622 = vld [vmem:[%s2409 + $0xc] sm:$0xf]
    %v6623 = vld [vmem:[%s2409 + $0x10] sm:$0xf]
    %v6624 = vld [vmem:[%s2409 + $0x14] sm:$0xf]
    %v6625 = vld [vmem:[%s2409 + $0x18] sm:$0xf]
    %v6626 = vld [vmem:[%s2409 + $0x1c] sm:$0xf]
    %v6627 = vld [vmem:[%s2409 + $0x20] sm:$0xf]
    %v6628 = vld [vmem:[%s2409 + $0x24] sm:$0xf]
    %v6629 = vld [vmem:[%s2409 + $0x28] sm:$0xf]
    %v6630 = vld [vmem:[%s2409 + $0x2c] sm:$0xf]
    %v6631 = vld [vmem:[%s2409 + $0x30] sm:$0xf]
    %v6632 = vld [vmem:[%s2409 + $0x34] sm:$0xf]
    %v6633 = vld [vmem:[%s2409 + $0x38] sm:$0xf]
    %v6634 = vld [vmem:[%s2409 + $0x3c] sm:$0xf]
    %v6652 = vunpack.c.l.b16 %v6602
    %v6653 = vunpack.c.l.b16 %v6603
    %v6654 = vunpack.c.l.b16 %v6604
    %v6655 = vunpack.c.l.b16 %v6605
    %v6656 = vunpack.c.l.b16 %v6606
    %v6657 = vunpack.c.l.b16 %v6607
    %v6658 = vunpack.c.l.b16 %v6608
    %v6659 = vunpack.c.l.b16 %v6609
    %v6660 = vunpack.c.l.b16 %v6610
    %v6661 = vunpack.c.l.b16 %v6611
    %v6662 = vunpack.c.l.b16 %v6612
    %v6663 = vunpack.c.l.b16 %v6613
    %v6664 = vunpack.c.l.b16 %v6614
    %v6665 = vunpack.c.l.b16 %v6615
    %v6666 = vunpack.c.l.b16 %v6616
    %v6667 = vunpack.c.l.b16 %v6617
    %v6668 = vunpack.c.l.b16 %v6618
    %v6669 = vpack.c.b16 %v6653, %v6652
    %v6670 = vpack.c.b16 %v6655, %v6654
    %v6671 = vpack.c.b16 %v6657, %v6656
    %v6672 = vpack.c.b16 %v6659, %v6658
    %v6673 = vpack.c.b16 %v6661, %v6660
    %v6674 = vpack.c.b16 %v6663, %v6662
    %v6675 = vpack.c.b16 %v6665, %v6664
    %v6676 = vpack.c.b16 %v6667, %v6666
    %v6677 = vpack.c.b16 %v6668, %v6668
    %v6679 = vshrl.u32 %v6669, 16
    %v6681 = vshll.u32 %v6669, 16
    %v6683 = vrot.slane %v6681, 1
    %v6684 = vor.u32 %v6679, %v6683
    %v6686 = vshll.u32 %v6670, 16
    %v6688 = vrot.slane %v6686, 1
    %v6689 = vsel %vm804, %v6684, %v6688
    %v6690 = vshrl.u32 %v6670, 16
    %v6692 = vor.u32 %v6690, %v6688
    %v6694 = vshll.u32 %v6671, 16
    %v6696 = vrot.slane %v6694, 1
    %v6697 = vsel %vm804, %v6692, %v6696
    %v6698 = vshrl.u32 %v6671, 16
    %v6700 = vor.u32 %v6698, %v6696
    %v6702 = vshll.u32 %v6672, 16
    %v6704 = vrot.slane %v6702, 1
    %v6705 = vsel %vm804, %v6700, %v6704
    %v6706 = vshrl.u32 %v6672, 16
    %v6708 = vor.u32 %v6706, %v6704
    %v6710 = vshll.u32 %v6673, 16
    %v6712 = vrot.slane %v6710, 1
    %v6713 = vsel %vm804, %v6708, %v6712
    %v6714 = vshrl.u32 %v6673, 16
    %v6716 = vor.u32 %v6714, %v6712
    %v6718 = vshll.u32 %v6674, 16
    %v6720 = vrot.slane %v6718, 1
    %v6721 = vsel %vm804, %v6716, %v6720
    %v6722 = vshrl.u32 %v6674, 16
    %v6724 = vor.u32 %v6722, %v6720
    %v6726 = vshll.u32 %v6675, 16
    %v6728 = vrot.slane %v6726, 1
    %v6729 = vsel %vm804, %v6724, %v6728
    %v6730 = vshrl.u32 %v6675, 16
    %v6732 = vor.u32 %v6730, %v6728
    %v6734 = vshll.u32 %v6676, 16
    %v6736 = vrot.slane %v6734, 1
    %v6737 = vsel %vm804, %v6732, %v6736
    %v6738 = vshrl.u32 %v6676, 16
    %v6740 = vor.u32 %v6738, %v6736
    %v6742 = vshll.u32 %v6677, 16
    %v6744 = vrot.slane %v6742, 1
    %v6745 = vsel %vm804, %v6740, %v6744
    %v6770 = vunpack.c.l.b16 %v6619
    %v6771 = vunpack.c.l.b16 %v6620
    %v6772 = vunpack.c.l.b16 %v6621
    %v6773 = vunpack.c.l.b16 %v6622
    %v6774 = vunpack.c.l.b16 %v6623
    %v6775 = vunpack.c.l.b16 %v6624
    %v6776 = vunpack.c.l.b16 %v6625
    %v6777 = vunpack.c.l.b16 %v6626
    %v6778 = vunpack.c.l.b16 %v6627
    %v6779 = vunpack.c.l.b16 %v6628
    %v6780 = vunpack.c.l.b16 %v6629
    %v6781 = vunpack.c.l.b16 %v6630
    %v6782 = vunpack.c.l.b16 %v6631
    %v6783 = vunpack.c.l.b16 %v6632
    %v6784 = vunpack.c.l.b16 %v6633
    %v6785 = vunpack.c.l.b16 %v6634
    %v6786 = vpack.c.b16 %v6771, %v6770
    %v6787 = vpack.c.b16 %v6773, %v6772
    %v6788 = vpack.c.b16 %v6775, %v6774
    %v6789 = vpack.c.b16 %v6777, %v6776
    %v6790 = vpack.c.b16 %v6779, %v6778
    %v6791 = vpack.c.b16 %v6781, %v6780
    %v6792 = vpack.c.b16 %v6783, %v6782
    %v6793 = vpack.c.b16 %v6785, %v6784
    %6802 = vmatprep.subr.bf16.mxu0 0
    %6803 = vmatpush1.bf16.msra.mxu0 %v6793
    %6804 = vmatprep.subr.bf16.mxu0 0
    %6805 = vmatpush1.bf16.msra.mxu0 %v6792
    %6806 = vmatprep.subr.bf16.mxu0 0
    %6807 = vmatpush1.bf16.msra.mxu0 %v6791
    %6808 = vmatprep.subr.bf16.mxu0 0
    %6809 = vmatpush1.bf16.msra.mxu0 %v6790
    %6810 = vmatprep.subr.bf16.mxu0 0
    %6811 = vmatpush1.bf16.msra.mxu0 %v6789
    %6812 = vmatprep.subr.bf16.mxu0 0
    %6813 = vmatpush1.bf16.msra.mxu0 %v6788
    %6814 = vmatprep.subr.bf16.mxu0 0
    %6815 = vmatpush1.bf16.msra.mxu0 %v6787
    %6816 = vmatprep.subr.bf16.mxu0 0
    %6817 = vmatpush1.bf16.msra.mxu0 %v6786
    %6818 = vmatprep.subr.bf16.mxu0 0
    %6819 = vmatpush2.bf16.msra.mxu0 0
    %6820 = vmatprep.subr.bf16.mxu0 0
    %6821 = vmatpush2.bf16.msra.mxu0 0
    %6822 = vmatprep.subr.bf16.mxu0 0
    %6823 = vmatpush2.bf16.msra.mxu0 0
    %6824 = vmatprep.subr.bf16.mxu0 0
    %6825 = vmatpush2.bf16.msra.mxu0 0
    %6826 = vmatprep.subr.bf16.mxu0 0
    %6827 = vmatpush2.bf16.msra.mxu0 0
    %6828 = vmatprep.subr.bf16.mxu0 0
    %6829 = vmatpush2.bf16.msra.mxu0 0
    %6830 = vmatprep.subr.bf16.mxu0 0
    %6831 = vmatpush2.bf16.msra.mxu0 0
    %6832 = vmatprep.subr.bf16.mxu0 0
    %6833 = vmatpush2.bf16.msra.mxu0 0
    %6834 = vmatprep.mubr.bf16.mxu0 0
    %6835 = vmatmul.mubr.bf16.gmra.mxu0 %v6689
    %v6836 = vpop.f32.mrf.mxu0
    %v6837 = vadd.f32 0.0, %v6836
    %v6838 = vpop.f32.mrf.mxu0
    %v6839 = vpop.f32.mrf.mxu0
    %v6840 = vadd.f32 0.0, %v6839
    %v6841 = vpop.f32.mrf.mxu0
    %6842 = vmatprep.mubr.bf16.mxu0 0
    %6843 = vmatmul.mubr.bf16.gmra.mxu0 %v6697
    %v6844 = vpop.f32.mrf.mxu0
    %v6845 = vadd.f32 0.0, %v6844
    %v6846 = vpop.f32.mrf.mxu0
    %v6847 = vpop.f32.mrf.mxu0
    %v6848 = vadd.f32 0.0, %v6847
    %v6849 = vpop.f32.mrf.mxu0
    %6850 = vmatprep.mubr.bf16.mxu0 0
    %6851 = vmatmul.mubr.bf16.gmra.mxu0 %v6705
    %v6852 = vpop.f32.mrf.mxu0
    %v6853 = vadd.f32 0.0, %v6852
    %v6854 = vpop.f32.mrf.mxu0
    %v6855 = vpop.f32.mrf.mxu0
    %v6856 = vadd.f32 0.0, %v6855
    %v6857 = vpop.f32.mrf.mxu0
    %6858 = vmatprep.mubr.bf16.mxu0 0
    %6859 = vmatmul.mubr.bf16.gmra.mxu0 %v6713
    %v6860 = vpop.f32.mrf.mxu0
    %v6861 = vadd.f32 0.0, %v6860
    %v6862 = vpop.f32.mrf.mxu0
    %v6863 = vpop.f32.mrf.mxu0
    %v6864 = vadd.f32 0.0, %v6863
    %v6865 = vpop.f32.mrf.mxu0
    %6866 = vmatprep.mubr.bf16.mxu0 0
    %6867 = vmatmul.mubr.bf16.gmra.mxu0 %v6721
    %v6868 = vpop.f32.mrf.mxu0
    %v6869 = vadd.f32 0.0, %v6868
    %v6870 = vpop.f32.mrf.mxu0
    %v6871 = vpop.f32.mrf.mxu0
    %v6872 = vadd.f32 0.0, %v6871
    %v6873 = vpop.f32.mrf.mxu0
    %6874 = vmatprep.mubr.bf16.mxu0 0
    %6875 = vmatmul.mubr.bf16.gmra.mxu0 %v6729
    %v6876 = vpop.f32.mrf.mxu0
    %v6877 = vadd.f32 0.0, %v6876
    %v6878 = vpop.f32.mrf.mxu0
    %v6879 = vpop.f32.mrf.mxu0
    %v6880 = vadd.f32 0.0, %v6879
    %v6881 = vpop.f32.mrf.mxu0
    %6882 = vmatprep.mubr.bf16.mxu0 0
    %6883 = vmatmul.mubr.bf16.gmra.mxu0 %v6737
    %v6884 = vpop.f32.mrf.mxu0
    %v6885 = vadd.f32 0.0, %v6884
    %v6886 = vpop.f32.mrf.mxu0
    %v6887 = vpop.f32.mrf.mxu0
    %v6888 = vadd.f32 0.0, %v6887
    %v6889 = vpop.f32.mrf.mxu0
    %6890 = vmatprep.mubr.bf16.mxu0 0
    %6891 = vmatmul.mubr.bf16.gmra.mxu0 %v6745
    %v6892 = vpop.f32.mrf.mxu0
    %v6893 = vadd.f32 0.0, %v6892
    %v6894 = vpop.f32.mrf.mxu0
    %v6895 = vpop.f32.mrf.mxu0
    %v6896 = vadd.f32 0.0, %v6895
    %v6897 = vpop.f32.mrf.mxu0
    %6898 = vdwg.mxu0
    %v6899 = vadd.f32 %v6586, %v6837
    %v6900 = vadd.f32 %v6587, %v6840
    %v6901 = vadd.f32 %v6588, %v6845
    %v6902 = vadd.f32 %v6589, %v6848
    %v6903 = vadd.f32 %v6590, %v6853
    %v6904 = vadd.f32 %v6591, %v6856
    %v6905 = vadd.f32 %v6592, %v6861
    %v6906 = vadd.f32 %v6593, %v6864
    %v6907 = vadd.f32 %v6594, %v6869
    %v6908 = vadd.f32 %v6595, %v6872
    %v6909 = vadd.f32 %v6596, %v6877
    %v6910 = vadd.f32 %v6597, %v6880
    %v6911 = vadd.f32 %v6598, %v6885
    %v6912 = vadd.f32 %v6599, %v6888
    %v6913 = vadd.f32 %v6600, %v6893
    %v6914 = vadd.f32 %v6601, %v6896
    %v6915 = vld [vmem:[#allocation2 + $0x10] sm:$0xe]
    %v6916 = vld [vmem:[%s2707] sm:$0xf]
    %v6917 = vld [vmem:[%s2707 + $0x4] sm:$0xf]
    %v6918 = vld [vmem:[%s2707 + $0x8] sm:$0xf]
    %v6919 = vld [vmem:[%s2707 + $0xc] sm:$0xf]
    %v6920 = vld [vmem:[%s2707 + $0x10] sm:$0xf]
    %v6921 = vld [vmem:[%s2707 + $0x14] sm:$0xf]
    %v6922 = vld [vmem:[%s2707 + $0x18] sm:$0xf]
    %v6923 = vld [vmem:[%s2707 + $0x1c] sm:$0xf]
    %v6924 = vld [vmem:[%s2707 + $0x20] sm:$0xf]
    %v6925 = vld [vmem:[%s2707 + $0x24] sm:$0xf]
    %v6926 = vld [vmem:[%s2707 + $0x28] sm:$0xf]
    %v6927 = vld [vmem:[%s2707 + $0x2c] sm:$0xf]
    %v6928 = vld [vmem:[%s2707 + $0x30] sm:$0xf]
    %v6929 = vld [vmem:[%s2707 + $0x34] sm:$0xf]
    %v6930 = vld [vmem:[%s2707 + $0x38] sm:$0xf]
    %v6931 = vld [vmem:[%s2707 + $0x3c] sm:$0xf]
    %v6933 = vunpack.c.l.b16 %v6915
    %v6934 = vpack.c.b16 %v6653, %v6933
    %v6935 = vrot.slane %v6934, 1
    %v6936 = vrot.slane %v6670, 1
    %v6937 = vsel %vm1200, %v6935, %v6936
    %v6938 = vrot.slane %v6671, 1
    %v6939 = vsel %vm1200, %v6936, %v6938
    %v6940 = vrot.slane %v6672, 1
    %v6941 = vsel %vm1200, %v6938, %v6940
    %v6942 = vrot.slane %v6673, 1
    %v6943 = vsel %vm1200, %v6940, %v6942
    %v6944 = vrot.slane %v6674, 1
    %v6945 = vsel %vm1200, %v6942, %v6944
    %v6946 = vrot.slane %v6675, 1
    %v6947 = vsel %vm1200, %v6944, %v6946
    %v6948 = vrot.slane %v6676, 1
    %v6949 = vsel %vm1200, %v6946, %v6948
    %v6950 = vrot.slane %v6677, 1
    %v6951 = vsel %vm1200, %v6948, %v6950
    %v6976 = vunpack.c.l.b16 %v6916
    %v6977 = vunpack.c.l.b16 %v6917
    %v6978 = vunpack.c.l.b16 %v6918
    %v6979 = vunpack.c.l.b16 %v6919
    %v6980 = vunpack.c.l.b16 %v6920
    %v6981 = vunpack.c.l.b16 %v6921
    %v6982 = vunpack.c.l.b16 %v6922
    %v6983 = vunpack.c.l.b16 %v6923
    %v6984 = vunpack.c.l.b16 %v6924
    %v6985 = vunpack.c.l.b16 %v6925
    %v6986 = vunpack.c.l.b16 %v6926
    %v6987 = vunpack.c.l.b16 %v6927
    %v6988 = vunpack.c.l.b16 %v6928
    %v6989 = vunpack.c.l.b16 %v6929
    %v6990 = vunpack.c.l.b16 %v6930
    %v6991 = vunpack.c.l.b16 %v6931
    %v6992 = vpack.c.b16 %v6977, %v6976
    %v6993 = vpack.c.b16 %v6979, %v6978
    %v6994 = vpack.c.b16 %v6981, %v6980
    %v6995 = vpack.c.b16 %v6983, %v6982
    %v6996 = vpack.c.b16 %v6985, %v6984
    %v6997 = vpack.c.b16 %v6987, %v6986
    %v6998 = vpack.c.b16 %v6989, %v6988
    %v6999 = vpack.c.b16 %v6991, %v6990
    %7008 = vmatprep.subr.bf16.mxu0 0
    %7009 = vmatpush1.bf16.msra.mxu0 %v6999
    %7010 = vmatprep.subr.bf16.mxu0 0
    %7011 = vmatpush1.bf16.msra.mxu0 %v6998
    %7012 = vmatprep.subr.bf16.mxu0 0
    %7013 = vmatpush1.bf16.msra.mxu0 %v6997
    %7014 = vmatprep.subr.bf16.mxu0 0
    %7015 = vmatpush1.bf16.msra.mxu0 %v6996
    %7016 = vmatprep.subr.bf16.mxu0 0
    %7017 = vmatpush1.bf16.msra.mxu0 %v6995
    %7018 = vmatprep.subr.bf16.mxu0 0
    %7019 = vmatpush1.bf16.msra.mxu0 %v6994
    %7020 = vmatprep.subr.bf16.mxu0 0
    %7021 = vmatpush1.bf16.msra.mxu0 %v6993
    %7022 = vmatprep.subr.bf16.mxu0 0
    %7023 = vmatpush1.bf16.msra.mxu0 %v6992
    %7024 = vmatprep.subr.bf16.mxu0 0
    %7025 = vmatpush2.bf16.msra.mxu0 0
    %7026 = vmatprep.subr.bf16.mxu0 0
    %7027 = vmatpush2.bf16.msra.mxu0 0
    %7028 = vmatprep.subr.bf16.mxu0 0
    %7029 = vmatpush2.bf16.msra.mxu0 0
    %7030 = vmatprep.subr.bf16.mxu0 0
    %7031 = vmatpush2.bf16.msra.mxu0 0
    %7032 = vmatprep.subr.bf16.mxu0 0
    %7033 = vmatpush2.bf16.msra.mxu0 0
    %7034 = vmatprep.subr.bf16.mxu0 0
    %7035 = vmatpush2.bf16.msra.mxu0 0
    %7036 = vmatprep.subr.bf16.mxu0 0
    %7037 = vmatpush2.bf16.msra.mxu0 0
    %7038 = vmatprep.subr.bf16.mxu0 0
    %7039 = vmatpush2.bf16.msra.mxu0 0
    %7040 = vmatprep.mubr.bf16.mxu0 0
    %7041 = vmatmul.mubr.bf16.gmra.mxu0 %v6937
    %v7042 = vpop.f32.mrf.mxu0
    %v7043 = vadd.f32 0.0, %v7042
    %v7044 = vpop.f32.mrf.mxu0
    %v7045 = vpop.f32.mrf.mxu0
    %v7046 = vadd.f32 0.0, %v7045
    %v7047 = vpop.f32.mrf.mxu0
    %7048 = vmatprep.mubr.bf16.mxu0 0
    %7049 = vmatmul.mubr.bf16.gmra.mxu0 %v6939
    %v7050 = vpop.f32.mrf.mxu0
    %v7051 = vadd.f32 0.0, %v7050
    %v7052 = vpop.f32.mrf.mxu0
    %v7053 = vpop.f32.mrf.mxu0
    %v7054 = vadd.f32 0.0, %v7053
    %v7055 = vpop.f32.mrf.mxu0
    %7056 = vmatprep.mubr.bf16.mxu0 0
    %7057 = vmatmul.mubr.bf16.gmra.mxu0 %v6941
    %v7058 = vpop.f32.mrf.mxu0
    %v7059 = vadd.f32 0.0, %v7058
    %v7060 = vpop.f32.mrf.mxu0
    %v7061 = vpop.f32.mrf.mxu0
    %v7062 = vadd.f32 0.0, %v7061
    %v7063 = vpop.f32.mrf.mxu0
    %7064 = vmatprep.mubr.bf16.mxu0 0
    %7065 = vmatmul.mubr.bf16.gmra.mxu0 %v6943
    %v7066 = vpop.f32.mrf.mxu0
    %v7067 = vadd.f32 0.0, %v7066
    %v7068 = vpop.f32.mrf.mxu0
    %v7069 = vpop.f32.mrf.mxu0
    %v7070 = vadd.f32 0.0, %v7069
    %v7071 = vpop.f32.mrf.mxu0
    %7072 = vmatprep.mubr.bf16.mxu0 0
    %7073 = vmatmul.mubr.bf16.gmra.mxu0 %v6945
    %v7074 = vpop.f32.mrf.mxu0
    %v7075 = vadd.f32 0.0, %v7074
    %v7076 = vpop.f32.mrf.mxu0
    %v7077 = vpop.f32.mrf.mxu0
    %v7078 = vadd.f32 0.0, %v7077
    %v7079 = vpop.f32.mrf.mxu0
    %7080 = vmatprep.mubr.bf16.mxu0 0
    %7081 = vmatmul.mubr.bf16.gmra.mxu0 %v6947
    %v7082 = vpop.f32.mrf.mxu0
    %v7083 = vadd.f32 0.0, %v7082
    %v7084 = vpop.f32.mrf.mxu0
    %v7085 = vpop.f32.mrf.mxu0
    %v7086 = vadd.f32 0.0, %v7085
    %v7087 = vpop.f32.mrf.mxu0
    %7088 = vmatprep.mubr.bf16.mxu0 0
    %7089 = vmatmul.mubr.bf16.gmra.mxu0 %v6949
    %v7090 = vpop.f32.mrf.mxu0
    %v7091 = vadd.f32 0.0, %v7090
    %v7092 = vpop.f32.mrf.mxu0
    %v7093 = vpop.f32.mrf.mxu0
    %v7094 = vadd.f32 0.0, %v7093
    %v7095 = vpop.f32.mrf.mxu0
    %7096 = vmatprep.mubr.bf16.mxu0 0
    %7097 = vmatmul.mubr.bf16.gmra.mxu0 %v6951
    %v7098 = vpop.f32.mrf.mxu0
    %v7099 = vadd.f32 0.0, %v7098
    %v7100 = vpop.f32.mrf.mxu0
    %v7101 = vpop.f32.mrf.mxu0
    %v7102 = vadd.f32 0.0, %v7101
    %v7103 = vpop.f32.mrf.mxu0
    %7104 = vdwg.mxu0
    %v7105 = vadd.f32 %v6899, %v7043
    %v7106 = vadd.f32 %v6900, %v7046
    %v7107 = vadd.f32 %v6901, %v7051
    %v7108 = vadd.f32 %v6902, %v7054
    %v7109 = vadd.f32 %v6903, %v7059
    %v7110 = vadd.f32 %v6904, %v7062
    %v7111 = vadd.f32 %v6905, %v7067
    %v7112 = vadd.f32 %v6906, %v7070
    %v7113 = vadd.f32 %v6907, %v7075
    %v7114 = vadd.f32 %v6908, %v7078
    %v7115 = vadd.f32 %v6909, %v7083
    %v7116 = vadd.f32 %v6910, %v7086
    %v7117 = vadd.f32 %v6911, %v7091
    %v7118 = vadd.f32 %v6912, %v7094
    %v7119 = vadd.f32 %v6913, %v7099
    %v7120 = vadd.f32 %v6914, %v7102
    %v7121 = vld [vmem:[%s4] sm:$0x1]
    %v7123 = vlaneseq
    %v7124 = vshrl.u32 %v7123, 7
    %v7125 = vsub.s32 0, %v7124
    %v7126 = vrot.slane %v7121, %v7125
    %v7128 = vadd.f32 %v7105, %v7126
    %v7129 = vadd.f32 %v7106, %v7126
    %v7130 = vadd.f32 %v7107, %v7126
    %v7131 = vadd.f32 %v7108, %v7126
    %v7132 = vadd.f32 %v7109, %v7126
    %v7133 = vadd.f32 %v7110, %v7126
    %v7134 = vadd.f32 %v7111, %v7126
    %v7135 = vadd.f32 %v7112, %v7126
    %v7136 = vadd.f32 %v7113, %v7126
    %v7137 = vadd.f32 %v7114, %v7126
    %v7138 = vadd.f32 %v7115, %v7126
    %v7139 = vadd.f32 %v7116, %v7126
    %v7140 = vadd.f32 %v7117, %v7126
    %v7141 = vadd.f32 %v7118, %v7126
    %v7142 = vadd.f32 %v7119, %v7126
    %v7143 = vadd.f32 %v7120, %v7126
    %v7144 = vmax.f32 %v7128, 0.0
    %v7145 = vmax.f32 %v7129, 0.0
    %v7146 = vmax.f32 %v7130, 0.0
    %v7147 = vmax.f32 %v7131, 0.0
    %v7148 = vmax.f32 %v7132, 0.0
    %v7149 = vmax.f32 %v7133, 0.0
    %v7150 = vmax.f32 %v7134, 0.0
    %v7151 = vmax.f32 %v7135, 0.0
    %v7152 = vmax.f32 %v7136, 0.0
    %v7153 = vmax.f32 %v7137, 0.0
    %v7154 = vmax.f32 %v7138, 0.0
    %v7155 = vmax.f32 %v7139, 0.0
    %v7156 = vmax.f32 %v7140, 0.0
    %v7157 = vmax.f32 %v7141, 0.0
    %v7158 = vmax.f32 %v7142, 0.0
    %v7159 = vmax.f32 %v7143, 0.0
    %v7160 = vmax.f32 %v7144, %v7146
    %v7161 = vmax.f32 %v7145, %v7147
    %v7162 = vmax.f32 %v7146, %v7148
    %v7163 = vmax.f32 %v7147, %v7149
    %v7164 = vmax.f32 %v7148, %v7150
    %v7165 = vmax.f32 %v7149, %v7151
    %v7166 = vmax.f32 %v7150, %v7152
    %v7167 = vmax.f32 %v7151, %v7153
    %v7168 = vmax.f32 %v7152, %v7154
    %v7169 = vmax.f32 %v7153, %v7155
    %v7170 = vmax.f32 %v7154, %v7156
    %v7171 = vmax.f32 %v7155, %v7157
    %v7172 = vmax.f32 %v7156, %v7158
    %v7173 = vmax.f32 %v7157, %v7159
    %7174 = vst [vmem:[#allocation4] sm:$0xff] %v7160
    %7175 = vst [vmem:[#allocation4 + $0x8] sm:$0xff] %v7161
    %7176 = vst [vmem:[#allocation4 + $0x10] sm:$0xff] %v7162
    %7177 = vst [vmem:[#allocation4 + $0x18] sm:$0xff] %v7163
    %7178 = vst [vmem:[#allocation4 + $0x20] sm:$0xff] %v7164
    %7179 = vst [vmem:[#allocation4 + $0x28] sm:$0xff] %v7165
    %7180 = vst [vmem:[#allocation4 + $0x30] sm:$0xff] %v7166
    %7181 = vst [vmem:[#allocation4 + $0x38] sm:$0xff] %v7167
    %7182 = vst [vmem:[#allocation4 + $0x40] sm:$0xff] %v7168
    %7183 = vst [vmem:[#allocation4 + $0x48] sm:$0xff] %v7169
    %7184 = vst [vmem:[#allocation4 + $0x50] sm:$0xff] %v7170
    %7185 = vst [vmem:[#allocation4 + $0x58] sm:$0xff] %v7171
    %7186 = vst [vmem:[#allocation4 + $0x60] sm:$0xff] %v7172
    %7187 = vst [vmem:[#allocation4 + $0x68] sm:$0xff] %v7173
    %v7188 = vld [vmem:[#allocation4] ss:$2 sm:$0xf]
    %v7189 = vld [vmem:[%s507] ss:$2 sm:$0xf]
    %v7190 = vmax.f32 %v7188, %v7189
    %v7191 = vpack.c.bf16 %v7190, %v7190
    %v7193 = vunpack.c.l.b16 %v7191
    %v7194 = vpack.c.b16 %v7193, %v7193
    %v7196 = vshrl.u32 %v7194, 16
    %v7198 = vrot.slane %v7196, 7
    %v7199 = vshll.u32 %v7194, 16
    %v7201 = vor.u32 %v7198, %v7199
    %v7203 = vld [vmem:[#allocation3 + $0x4] sm:$0x7]
    %v7204 = vsel %vm2997, %v7201, %v7203
    %7205 = vst [vmem:[#allocation3 + $0x4] sm:$0x7] %v7204
    %v7206 = vld [vmem:[%s536] ss:$2 sm:$0xf]
    %v7207 = vld [vmem:[%s538] ss:$2 sm:$0xf]
    %v7208 = vmax.f32 %v7206, %v7207
    %v7209 = vpack.c.bf16 %v7208, %v7208
    %v7211 = vunpack.c.l.b16 %v7209
    %v7212 = vpack.c.b16 %v7211, %v7211
    %v7214 = vshrl.u32 %v7212, 16
    %v7216 = vrot.slane %v7214, 7
    %v7217 = vshll.u32 %v7212, 16
    %v7219 = vor.u32 %v7216, %v7217
    %v7221 = vld [vmem:[#allocation3 + $0x8] sm:$0x7]
    %v7222 = vsel %vm2997, %v7219, %v7221
    %7223 = vst [vmem:[#allocation3 + $0x8] sm:$0x7] %v7222
    %v7224 = vld [vmem:[%s561] ss:$2 sm:$0xf]
    %v7225 = vld [vmem:[%s563] ss:$2 sm:$0xf]
    %v7226 = vmax.f32 %v7224, %v7225
    %v7227 = vpack.c.bf16 %v7226, %v7226
    %v7229 = vunpack.c.l.b16 %v7227
    %v7230 = vpack.c.b16 %v7229, %v7229
    %v7232 = vshrl.u32 %v7230, 16
    %v7234 = vrot.slane %v7232, 7
    %v7235 = vshll.u32 %v7230, 16
    %v7237 = vor.u32 %v7234, %v7235
    %v7239 = vld [vmem:[#allocation3 + $0xc] sm:$0x7]
    %v7240 = vsel %vm2997, %v7237, %v7239
    %7241 = vst [vmem:[#allocation3 + $0xc] sm:$0x7] %v7240
    %v7242 = vld [vmem:[%s586] ss:$2 sm:$0xf]
    %v7243 = vld [vmem:[%s588] ss:$2 sm:$0xf]
    %v7244 = vmax.f32 %v7242, %v7243
    %v7245 = vpack.c.bf16 %v7244, %v7244
    %v7247 = vunpack.c.l.b16 %v7245
    %v7248 = vpack.c.b16 %v7247, %v7247
    %v7250 = vshrl.u32 %v7248, 16
    %v7252 = vrot.slane %v7250, 7
    %v7253 = vshll.u32 %v7248, 16
    %v7255 = vor.u32 %v7252, %v7253
    %v7257 = vld [vmem:[#allocation3 + $0x10] sm:$0x7]
    %v7258 = vsel %vm2997, %v7255, %v7257
    %7259 = vst [vmem:[#allocation3 + $0x10] sm:$0x7] %v7258
    %v7260 = vld [vmem:[#allocation3] sm:$0xf]
    %v7261 = vld [vmem:[#allocation3 + $0x4] sm:$0xf]
    %v7262 = vld [vmem:[#allocation3 + $0x8] sm:$0xf]
    %v7263 = vld [vmem:[#allocation3 + $0xc] sm:$0xf]
    %v7264 = vld [vmem:[%s5] sm:$0xf]
    %v7265 = vld [vmem:[%s5 + $0x4] sm:$0xf]
    %v7266 = vld [vmem:[%s5 + $0x8] sm:$0xf]
    %v7267 = vld [vmem:[%s5 + $0xc] sm:$0xf]
    %v7268 = vld [vmem:[%s5 + $0x10] sm:$0xf]
    %v7269 = vld [vmem:[%s5 + $0x14] sm:$0xf]
    %v7270 = vld [vmem:[%s5 + $0x18] sm:$0xf]
    %v7271 = vld [vmem:[%s5 + $0x1c] sm:$0xf]
    %v7272 = vld [vmem:[%s5 + $0x20] sm:$0xf]
    %v7273 = vld [vmem:[%s5 + $0x24] sm:$0xf]
    %v7274 = vld [vmem:[%s5 + $0x28] sm:$0xf]
    %v7275 = vld [vmem:[%s5 + $0x2c] sm:$0xf]
    %v7276 = vld [vmem:[%s5 + $0x30] sm:$0xf]
    %v7277 = vld [vmem:[%s5 + $0x34] sm:$0xf]
    %v7278 = vld [vmem:[%s5 + $0x38] sm:$0xf]
    %v7279 = vld [vmem:[%s5 + $0x3c] sm:$0xf]
    %v7280 = vld [vmem:[#allocation3 + $0x10] sm:$0x1]
    %v7281 = vld [vmem:[%s3076] sm:$0xf]
    %v7282 = vld [vmem:[%s3076 + $0x4] sm:$0xf]
    %v7283 = vld [vmem:[%s3076 + $0x8] sm:$0xf]
    %v7284 = vld [vmem:[%s3076 + $0xc] sm:$0xf]
    %v7285 = vld [vmem:[%s3076 + $0x10] sm:$0xf]
    %v7286 = vld [vmem:[%s3076 + $0x14] sm:$0xf]
    %v7287 = vld [vmem:[%s3076 + $0x18] sm:$0xf]
    %v7288 = vld [vmem:[%s3076 + $0x1c] sm:$0xf]
    %v7289 = vld [vmem:[%s3076 + $0x20] sm:$0xf]
    %v7290 = vld [vmem:[%s3076 + $0x24] sm:$0xf]
    %v7291 = vld [vmem:[%s3076 + $0x28] sm:$0xf]
    %v7292 = vld [vmem:[%s3076 + $0x2c] sm:$0xf]
    %v7293 = vld [vmem:[%s3076 + $0x30] sm:$0xf]
    %v7294 = vld [vmem:[%s3076 + $0x34] sm:$0xf]
    %v7295 = vld [vmem:[%s3076 + $0x38] sm:$0xf]
    %v7296 = vld [vmem:[%s3076 + $0x3c] sm:$0xf]
    %v7302 = vunpack.c.l.b16 %v7260
    %v7303 = vunpack.c.l.b16 %v7261
    %v7304 = vunpack.c.l.b16 %v7262
    %v7305 = vunpack.c.l.b16 %v7263
    %v7306 = vunpack.c.l.b16 %v7280
    %v7307 = vpack.c.b16 %v7303, %v7302
    %v7308 = vpack.c.b16 %v7305, %v7304
    %v7309 = vpack.c.b16 %v7306, %v7306
    %v7311 = vshrl.u32 %v7307, 16
    %v7313 = vshll.u32 %v7307, 16
    %v7315 = vrot.slane %v7313, 1
    %v7316 = vor.u32 %v7311, %v7315
    %v7318 = vshll.u32 %v7308, 16
    %v7320 = vrot.slane %v7318, 1
    %v7321 = vsel %vm804, %v7316, %v7320
    %v7322 = vshrl.u32 %v7308, 16
    %v7324 = vor.u32 %v7322, %v7320
    %v7326 = vshll.u32 %v7309, 16
    %v7328 = vrot.slane %v7326, 1
    %v7329 = vsel %vm804, %v7324, %v7328
    %v7348 = vunpack.c.l.b16 %v7281
    %v7349 = vunpack.c.l.b16 %v7282
    %v7350 = vunpack.c.l.b16 %v7283
    %v7351 = vunpack.c.l.b16 %v7284
    %v7352 = vunpack.c.l.b16 %v7285
    %v7353 = vunpack.c.l.b16 %v7286
    %v7354 = vunpack.c.l.b16 %v7287
    %v7355 = vunpack.c.l.b16 %v7288
    %v7356 = vunpack.c.l.b16 %v7289
    %v7357 = vunpack.c.l.b16 %v7290
    %v7358 = vunpack.c.l.b16 %v7291
    %v7359 = vunpack.c.l.b16 %v7292
    %v7360 = vunpack.c.l.b16 %v7293
    %v7361 = vunpack.c.l.b16 %v7294
    %v7362 = vunpack.c.l.b16 %v7295
    %v7363 = vunpack.c.l.b16 %v7296
    %v7364 = vpack.c.b16 %v7349, %v7348
    %v7365 = vpack.c.b16 %v7351, %v7350
    %v7366 = vpack.c.b16 %v7353, %v7352
    %v7367 = vpack.c.b16 %v7355, %v7354
    %v7368 = vpack.c.b16 %v7357, %v7356
    %v7369 = vpack.c.b16 %v7359, %v7358
    %v7370 = vpack.c.b16 %v7361, %v7360
    %v7371 = vpack.c.b16 %v7363, %v7362
    %7380 = vmatprep.subr.bf16.mxu0 0
    %7381 = vmatpush1.bf16.msra.mxu0 %v7371
    %7382 = vmatprep.subr.bf16.mxu0 0
    %7383 = vmatpush1.bf16.msra.mxu0 %v7370
    %7384 = vmatprep.subr.bf16.mxu0 0
    %7385 = vmatpush1.bf16.msra.mxu0 %v7369
    %7386 = vmatprep.subr.bf16.mxu0 0
    %7387 = vmatpush1.bf16.msra.mxu0 %v7368
    %7388 = vmatprep.subr.bf16.mxu0 0
    %7389 = vmatpush1.bf16.msra.mxu0 %v7367
    %7390 = vmatprep.subr.bf16.mxu0 0
    %7391 = vmatpush1.bf16.msra.mxu0 %v7366
    %7392 = vmatprep.subr.bf16.mxu0 0
    %7393 = vmatpush1.bf16.msra.mxu0 %v7365
    %7394 = vmatprep.subr.bf16.mxu0 0
    %7395 = vmatpush1.bf16.msra.mxu0 %v7364
    %7396 = vmatprep.subr.bf16.mxu0 0
    %7397 = vmatpush2.bf16.msra.mxu0 0
    %7398 = vmatprep.subr.bf16.mxu0 0
    %7399 = vmatpush2.bf16.msra.mxu0 0
    %7400 = vmatprep.subr.bf16.mxu0 0
    %7401 = vmatpush2.bf16.msra.mxu0 0
    %7402 = vmatprep.subr.bf16.mxu0 0
    %7403 = vmatpush2.bf16.msra.mxu0 0
    %7404 = vmatprep.subr.bf16.mxu0 0
    %7405 = vmatpush2.bf16.msra.mxu0 0
    %7406 = vmatprep.subr.bf16.mxu0 0
    %7407 = vmatpush2.bf16.msra.mxu0 0
    %7408 = vmatprep.subr.bf16.mxu0 0
    %7409 = vmatpush2.bf16.msra.mxu0 0
    %7410 = vmatprep.subr.bf16.mxu0 0
    %7411 = vmatpush2.bf16.msra.mxu0 0
    %7412 = vmatprep.mubr.bf16.mxu0 0
    %7413 = vmatmul.mubr.bf16.gmra.mxu0 %v7321
    %v7414 = vpop.f32.mrf.mxu0
    %v7415 = vadd.f32 0.0, %v7414
    %v7416 = vpop.f32.mrf.mxu0
    %v7417 = vpop.f32.mrf.mxu0
    %v7418 = vadd.f32 0.0, %v7417
    %v7419 = vpop.f32.mrf.mxu0
    %7420 = vmatprep.mubr.bf16.mxu0 0
    %7421 = vmatmul.mubr.bf16.gmra.mxu0 %v7329
    %v7422 = vpop.f32.mrf.mxu0
    %v7423 = vadd.f32 0.0, %v7422
    %v7424 = vpop.f32.mrf.mxu0
    %v7425 = vpop.f32.mrf.mxu0
    %v7426 = vadd.f32 0.0, %v7425
    %v7427 = vpop.f32.mrf.mxu0
    %7428 = vdwg.mxu0
    %v7447 = vunpack.c.l.b16 %v7264
    %v7448 = vunpack.c.l.b16 %v7265
    %v7449 = vunpack.c.l.b16 %v7266
    %v7450 = vunpack.c.l.b16 %v7267
    %v7451 = vunpack.c.l.b16 %v7268
    %v7452 = vunpack.c.l.b16 %v7269
    %v7453 = vunpack.c.l.b16 %v7270
    %v7454 = vunpack.c.l.b16 %v7271
    %v7455 = vunpack.c.l.b16 %v7272
    %v7456 = vunpack.c.l.b16 %v7273
    %v7457 = vunpack.c.l.b16 %v7274
    %v7458 = vunpack.c.l.b16 %v7275
    %v7459 = vunpack.c.l.b16 %v7276
    %v7460 = vunpack.c.l.b16 %v7277
    %v7461 = vunpack.c.l.b16 %v7278
    %v7462 = vunpack.c.l.b16 %v7279
    %v7463 = vpack.c.b16 %v7448, %v7447
    %v7464 = vpack.c.b16 %v7450, %v7449
    %v7465 = vpack.c.b16 %v7452, %v7451
    %v7466 = vpack.c.b16 %v7454, %v7453
    %v7467 = vpack.c.b16 %v7456, %v7455
    %v7468 = vpack.c.b16 %v7458, %v7457
    %v7469 = vpack.c.b16 %v7460, %v7459
    %v7470 = vpack.c.b16 %v7462, %v7461
    %7479 = vmatprep.subr.bf16.mxu0 0
    %7480 = vmatpush1.bf16.msra.mxu0 %v7470
    %7481 = vmatprep.subr.bf16.mxu0 0
    %7482 = vmatpush1.bf16.msra.mxu0 %v7469
    %7483 = vmatprep.subr.bf16.mxu0 0
    %7484 = vmatpush1.bf16.msra.mxu0 %v7468
    %7485 = vmatprep.subr.bf16.mxu0 0
    %7486 = vmatpush1.bf16.msra.mxu0 %v7467
    %7487 = vmatprep.subr.bf16.mxu0 0
    %7488 = vmatpush1.bf16.msra.mxu0 %v7466
    %7489 = vmatprep.subr.bf16.mxu0 0
    %7490 = vmatpush1.bf16.msra.mxu0 %v7465
    %7491 = vmatprep.subr.bf16.mxu0 0
    %7492 = vmatpush1.bf16.msra.mxu0 %v7464
    %7493 = vmatprep.subr.bf16.mxu0 0
    %7494 = vmatpush1.bf16.msra.mxu0 %v7463
    %7495 = vmatprep.subr.bf16.mxu0 0
    %7496 = vmatpush2.bf16.msra.mxu0 0
    %7497 = vmatprep.subr.bf16.mxu0 0
    %7498 = vmatpush2.bf16.msra.mxu0 0
    %7499 = vmatprep.subr.bf16.mxu0 0
    %7500 = vmatpush2.bf16.msra.mxu0 0
    %7501 = vmatprep.subr.bf16.mxu0 0
    %7502 = vmatpush2.bf16.msra.mxu0 0
    %7503 = vmatprep.subr.bf16.mxu0 0
    %7504 = vmatpush2.bf16.msra.mxu0 0
    %7505 = vmatprep.subr.bf16.mxu0 0
    %7506 = vmatpush2.bf16.msra.mxu0 0
    %7507 = vmatprep.subr.bf16.mxu0 0
    %7508 = vmatpush2.bf16.msra.mxu0 0
    %7509 = vmatprep.subr.bf16.mxu0 0
    %7510 = vmatpush2.bf16.msra.mxu0 0
    %7511 = vmatprep.mubr.bf16.mxu0 0
    %7512 = vmatmul.mubr.bf16.gmra.mxu0 %v7307
    %v7513 = vpop.f32.mrf.mxu0
    %v7514 = vadd.f32 %v7415, %v7513
    %v7515 = vpop.f32.mrf.mxu0
    %v7516 = vpop.f32.mrf.mxu0
    %v7517 = vadd.f32 %v7418, %v7516
    %v7518 = vpop.f32.mrf.mxu0
    %7519 = vmatprep.mubr.bf16.mxu0 0
    %7520 = vmatmul.mubr.bf16.gmra.mxu0 %v7308
    %v7521 = vpop.f32.mrf.mxu0
    %v7522 = vadd.f32 %v7423, %v7521
    %v7523 = vpop.f32.mrf.mxu0
    %v7524 = vpop.f32.mrf.mxu0
    %v7525 = vadd.f32 %v7426, %v7524
    %v7526 = vpop.f32.mrf.mxu0
    %7527 = vdwg.mxu0
    %v7528 = vld [vmem:[#allocation3] sm:$0xe]
    %v7529 = vld [vmem:[%s3325] sm:$0xf]
    %v7530 = vld [vmem:[%s3325 + $0x4] sm:$0xf]
    %v7531 = vld [vmem:[%s3325 + $0x8] sm:$0xf]
    %v7532 = vld [vmem:[%s3325 + $0xc] sm:$0xf]
    %v7533 = vld [vmem:[%s3325 + $0x10] sm:$0xf]
    %v7534 = vld [vmem:[%s3325 + $0x14] sm:$0xf]
    %v7535 = vld [vmem:[%s3325 + $0x18] sm:$0xf]
    %v7536 = vld [vmem:[%s3325 + $0x1c] sm:$0xf]
    %v7537 = vld [vmem:[%s3325 + $0x20] sm:$0xf]
    %v7538 = vld [vmem:[%s3325 + $0x24] sm:$0xf]
    %v7539 = vld [vmem:[%s3325 + $0x28] sm:$0xf]
    %v7540 = vld [vmem:[%s3325 + $0x2c] sm:$0xf]
    %v7541 = vld [vmem:[%s3325 + $0x30] sm:$0xf]
    %v7542 = vld [vmem:[%s3325 + $0x34] sm:$0xf]
    %v7543 = vld [vmem:[%s3325 + $0x38] sm:$0xf]
    %v7544 = vld [vmem:[%s3325 + $0x3c] sm:$0xf]
    %v7546 = vunpack.c.l.b16 %v7528
    %v7547 = vpack.c.b16 %v7303, %v7546
    %v7548 = vrot.slane %v7547, 1
    %v7549 = vrot.slane %v7308, 1
    %v7550 = vsel %vm1200, %v7548, %v7549
    %v7551 = vrot.slane %v7309, 1
    %v7552 = vsel %vm1200, %v7549, %v7551
    %v7571 = vunpack.c.l.b16 %v7529
    %v7572 = vunpack.c.l.b16 %v7530
    %v7573 = vunpack.c.l.b16 %v7531
    %v7574 = vunpack.c.l.b16 %v7532
    %v7575 = vunpack.c.l.b16 %v7533
    %v7576 = vunpack.c.l.b16 %v7534
    %v7577 = vunpack.c.l.b16 %v7535
    %v7578 = vunpack.c.l.b16 %v7536
    %v7579 = vunpack.c.l.b16 %v7537
    %v7580 = vunpack.c.l.b16 %v7538
    %v7581 = vunpack.c.l.b16 %v7539
    %v7582 = vunpack.c.l.b16 %v7540
    %v7583 = vunpack.c.l.b16 %v7541
    %v7584 = vunpack.c.l.b16 %v7542
    %v7585 = vunpack.c.l.b16 %v7543
    %v7586 = vunpack.c.l.b16 %v7544
    %v7587 = vpack.c.b16 %v7572, %v7571
    %v7588 = vpack.c.b16 %v7574, %v7573
    %v7589 = vpack.c.b16 %v7576, %v7575
    %v7590 = vpack.c.b16 %v7578, %v7577
    %v7591 = vpack.c.b16 %v7580, %v7579
    %v7592 = vpack.c.b16 %v7582, %v7581
    %v7593 = vpack.c.b16 %v7584, %v7583
    %v7594 = vpack.c.b16 %v7586, %v7585
    %7603 = vmatprep.subr.bf16.mxu0 0
    %7604 = vmatpush1.bf16.msra.mxu0 %v7594
    %7605 = vmatprep.subr.bf16.mxu0 0
    %7606 = vmatpush1.bf16.msra.mxu0 %v7593
    %7607 = vmatprep.subr.bf16.mxu0 0
    %7608 = vmatpush1.bf16.msra.mxu0 %v7592
    %7609 = vmatprep.subr.bf16.mxu0 0
    %7610 = vmatpush1.bf16.msra.mxu0 %v7591
    %7611 = vmatprep.subr.bf16.mxu0 0
    %7612 = vmatpush1.bf16.msra.mxu0 %v7590
    %7613 = vmatprep.subr.bf16.mxu0 0
    %7614 = vmatpush1.bf16.msra.mxu0 %v7589
    %7615 = vmatprep.subr.bf16.mxu0 0
    %7616 = vmatpush1.bf16.msra.mxu0 %v7588
    %7617 = vmatprep.subr.bf16.mxu0 0
    %7618 = vmatpush1.bf16.msra.mxu0 %v7587
    %7619 = vmatprep.subr.bf16.mxu0 0
    %7620 = vmatpush2.bf16.msra.mxu0 0
    %7621 = vmatprep.subr.bf16.mxu0 0
    %7622 = vmatpush2.bf16.msra.mxu0 0
    %7623 = vmatprep.subr.bf16.mxu0 0
    %7624 = vmatpush2.bf16.msra.mxu0 0
    %7625 = vmatprep.subr.bf16.mxu0 0
    %7626 = vmatpush2.bf16.msra.mxu0 0
    %7627 = vmatprep.subr.bf16.mxu0 0
    %7628 = vmatpush2.bf16.msra.mxu0 0
    %7629 = vmatprep.subr.bf16.mxu0 0
    %7630 = vmatpush2.bf16.msra.mxu0 0
    %7631 = vmatprep.subr.bf16.mxu0 0
    %7632 = vmatpush2.bf16.msra.mxu0 0
    %7633 = vmatprep.subr.bf16.mxu0 0
    %7634 = vmatpush2.bf16.msra.mxu0 0
    %7635 = vmatprep.mubr.bf16.mxu0 0
    %7636 = vmatmul.mubr.bf16.gmra.mxu0 %v7550
    %v7637 = vpop.f32.mrf.mxu0
    %v7638 = vadd.f32 0.0, %v7637
    %v7639 = vpop.f32.mrf.mxu0
    %v7640 = vpop.f32.mrf.mxu0
    %v7641 = vadd.f32 0.0, %v7640
    %v7642 = vpop.f32.mrf.mxu0
    %7643 = vmatprep.mubr.bf16.mxu0 0
    %7644 = vmatmul.mubr.bf16.gmra.mxu0 %v7552
    %v7645 = vpop.f32.mrf.mxu0
    %v7646 = vadd.f32 0.0, %v7645
    %v7647 = vpop.f32.mrf.mxu0
    %v7648 = vpop.f32.mrf.mxu0
    %v7649 = vadd.f32 0.0, %v7648
    %v7650 = vpop.f32.mrf.mxu0
    %7651 = vdwg.mxu0
    %v7652 = vadd.f32 %v7514, %v7638
    %v7653 = vadd.f32 %v7517, %v7641
    %v7654 = vadd.f32 %v7522, %v7646
    %v7655 = vadd.f32 %v7525, %v7649
    %v7656 = vld [vmem:[#allocation3 + $0x10] sm:$0xf]
    %v7657 = vld [vmem:[%s3454] sm:$0xf]
    %v7658 = vld [vmem:[%s3454 + $0x4] sm:$0xf]
    %v7659 = vld [vmem:[%s3454 + $0x8] sm:$0xf]
    %v7660 = vld [vmem:[%s3454 + $0xc] sm:$0xf]
    %v7661 = vld [vmem:[%s3454 + $0x10] sm:$0xf]
    %v7662 = vld [vmem:[%s3454 + $0x14] sm:$0xf]
    %v7663 = vld [vmem:[%s3454 + $0x18] sm:$0xf]
    %v7664 = vld [vmem:[%s3454 + $0x1c] sm:$0xf]
    %v7665 = vld [vmem:[%s3454 + $0x20] sm:$0xf]
    %v7666 = vld [vmem:[%s3454 + $0x24] sm:$0xf]
    %v7667 = vld [vmem:[%s3454 + $0x28] sm:$0xf]
    %v7668 = vld [vmem:[%s3454 + $0x2c] sm:$0xf]
    %v7669 = vld [vmem:[%s3454 + $0x30] sm:$0xf]
    %v7670 = vld [vmem:[%s3454 + $0x34] sm:$0xf]
    %v7671 = vld [vmem:[%s3454 + $0x38] sm:$0xf]
    %v7672 = vld [vmem:[%s3454 + $0x3c] sm:$0xf]
    %v7674 = vunpack.c.l.b16 %v7656
    %v7675 = vpack.c.b16 %v7304, %v7303
    %v7676 = vpack.c.b16 %v7674, %v7305
    %v7695 = vunpack.c.l.b16 %v7657
    %v7696 = vunpack.c.l.b16 %v7658
    %v7697 = vunpack.c.l.b16 %v7659
    %v7698 = vunpack.c.l.b16 %v7660
    %v7699 = vunpack.c.l.b16 %v7661
    %v7700 = vunpack.c.l.b16 %v7662
    %v7701 = vunpack.c.l.b16 %v7663
    %v7702 = vunpack.c.l.b16 %v7664
    %v7703 = vunpack.c.l.b16 %v7665
    %v7704 = vunpack.c.l.b16 %v7666
    %v7705 = vunpack.c.l.b16 %v7667
    %v7706 = vunpack.c.l.b16 %v7668
    %v7707 = vunpack.c.l.b16 %v7669
    %v7708 = vunpack.c.l.b16 %v7670
    %v7709 = vunpack.c.l.b16 %v7671
    %v7710 = vunpack.c.l.b16 %v7672
    %v7711 = vpack.c.b16 %v7696, %v7695
    %v7712 = vpack.c.b16 %v7698, %v7697
    %v7713 = vpack.c.b16 %v7700, %v7699
    %v7714 = vpack.c.b16 %v7702, %v7701
    %v7715 = vpack.c.b16 %v7704, %v7703
    %v7716 = vpack.c.b16 %v7706, %v7705
    %v7717 = vpack.c.b16 %v7708, %v7707
    %v7718 = vpack.c.b16 %v7710, %v7709
    %7727 = vmatprep.subr.bf16.mxu0 0
    %7728 = vmatpush1.bf16.msra.mxu0 %v7718
    %7729 = vmatprep.subr.bf16.mxu0 0
    %7730 = vmatpush1.bf16.msra.mxu0 %v7717
    %7731 = vmatprep.subr.bf16.mxu0 0
    %7732 = vmatpush1.bf16.msra.mxu0 %v7716
    %7733 = vmatprep.subr.bf16.mxu0 0
    %7734 = vmatpush1.bf16.msra.mxu0 %v7715
    %7735 = vmatprep.subr.bf16.mxu0 0
    %7736 = vmatpush1.bf16.msra.mxu0 %v7714
    %7737 = vmatprep.subr.bf16.mxu0 0
    %7738 = vmatpush1.bf16.msra.mxu0 %v7713
    %7739 = vmatprep.subr.bf16.mxu0 0
    %7740 = vmatpush1.bf16.msra.mxu0 %v7712
    %7741 = vmatprep.subr.bf16.mxu0 0
    %7742 = vmatpush1.bf16.msra.mxu0 %v7711
    %7743 = vmatprep.subr.bf16.mxu0 0
    %7744 = vmatpush2.bf16.msra.mxu0 0
    %7745 = vmatprep.subr.bf16.mxu0 0
    %7746 = vmatpush2.bf16.msra.mxu0 0
    %7747 = vmatprep.subr.bf16.mxu0 0
    %7748 = vmatpush2.bf16.msra.mxu0 0
    %7749 = vmatprep.subr.bf16.mxu0 0
    %7750 = vmatpush2.bf16.msra.mxu0 0
    %7751 = vmatprep.subr.bf16.mxu0 0
    %7752 = vmatpush2.bf16.msra.mxu0 0
    %7753 = vmatprep.subr.bf16.mxu0 0
    %7754 = vmatpush2.bf16.msra.mxu0 0
    %7755 = vmatprep.subr.bf16.mxu0 0
    %7756 = vmatpush2.bf16.msra.mxu0 0
    %7757 = vmatprep.subr.bf16.mxu0 0
    %7758 = vmatpush2.bf16.msra.mxu0 0
    %7759 = vmatprep.mubr.bf16.mxu0 0
    %7760 = vmatmul.mubr.bf16.gmra.mxu0 %v7675
    %v7761 = vpop.f32.mrf.mxu0
    %v7762 = vadd.f32 0.0, %v7761
    %v7763 = vpop.f32.mrf.mxu0
    %v7764 = vpop.f32.mrf.mxu0
    %v7765 = vadd.f32 0.0, %v7764
    %v7766 = vpop.f32.mrf.mxu0
    %7767 = vmatprep.mubr.bf16.mxu0 0
    %7768 = vmatmul.mubr.bf16.gmra.mxu0 %v7676
    %v7769 = vpop.f32.mrf.mxu0
    %v7770 = vadd.f32 0.0, %v7769
    %v7771 = vpop.f32.mrf.mxu0
    %v7772 = vpop.f32.mrf.mxu0
    %v7773 = vadd.f32 0.0, %v7772
    %v7774 = vpop.f32.mrf.mxu0
    %7775 = vdwg.mxu0
    %v7776 = vadd.f32 %v7652, %v7762
    %v7777 = vadd.f32 %v7653, %v7765
    %v7778 = vadd.f32 %v7654, %v7770
    %v7779 = vadd.f32 %v7655, %v7773
    %v7780 = vld [vmem:[#allocation3 + $0x4] sm:$0xf]
    %v7781 = vld [vmem:[#allocation3 + $0x8] sm:$0xf]
    %v7782 = vld [vmem:[#allocation3 + $0xc] sm:$0xf]
    %v7783 = vld [vmem:[#allocation3 + $0x10] sm:$0xf]
    %v7784 = vld [vmem:[#allocation3 + $0x14] sm:$0x1]
    %v7785 = vld [vmem:[%s3583] sm:$0xf]
    %v7786 = vld [vmem:[%s3583 + $0x4] sm:$0xf]
    %v7787 = vld [vmem:[%s3583 + $0x8] sm:$0xf]
    %v7788 = vld [vmem:[%s3583 + $0xc] sm:$0xf]
    %v7789 = vld [vmem:[%s3583 + $0x10] sm:$0xf]
    %v7790 = vld [vmem:[%s3583 + $0x14] sm:$0xf]
    %v7791 = vld [vmem:[%s3583 + $0x18] sm:$0xf]
    %v7792 = vld [vmem:[%s3583 + $0x1c] sm:$0xf]
    %v7793 = vld [vmem:[%s3583 + $0x20] sm:$0xf]
    %v7794 = vld [vmem:[%s3583 + $0x24] sm:$0xf]
    %v7795 = vld [vmem:[%s3583 + $0x28] sm:$0xf]
    %v7796 = vld [vmem:[%s3583 + $0x2c] sm:$0xf]
    %v7797 = vld [vmem:[%s3583 + $0x30] sm:$0xf]
    %v7798 = vld [vmem:[%s3583 + $0x34] sm:$0xf]
    %v7799 = vld [vmem:[%s3583 + $0x38] sm:$0xf]
    %v7800 = vld [vmem:[%s3583 + $0x3c] sm:$0xf]
    %v7806 = vunpack.c.l.b16 %v7780
    %v7807 = vunpack.c.l.b16 %v7781
    %v7808 = vunpack.c.l.b16 %v7782
    %v7809 = vunpack.c.l.b16 %v7783
    %v7810 = vunpack.c.l.b16 %v7784
    %v7811 = vpack.c.b16 %v7807, %v7806
    %v7812 = vpack.c.b16 %v7809, %v7808
    %v7813 = vpack.c.b16 %v7810, %v7810
    %v7815 = vshrl.u32 %v7811, 16
    %v7817 = vshll.u32 %v7811, 16
    %v7819 = vrot.slane %v7817, 1
    %v7820 = vor.u32 %v7815, %v7819
    %v7822 = vshll.u32 %v7812, 16
    %v7824 = vrot.slane %v7822, 1
    %v7825 = vsel %vm804, %v7820, %v7824
    %v7826 = vshrl.u32 %v7812, 16
    %v7828 = vor.u32 %v7826, %v7824
    %v7830 = vshll.u32 %v7813, 16
    %v7832 = vrot.slane %v7830, 1
    %v7833 = vsel %vm804, %v7828, %v7832
    %v7852 = vunpack.c.l.b16 %v7785
    %v7853 = vunpack.c.l.b16 %v7786
    %v7854 = vunpack.c.l.b16 %v7787
    %v7855 = vunpack.c.l.b16 %v7788
    %v7856 = vunpack.c.l.b16 %v7789
    %v7857 = vunpack.c.l.b16 %v7790
    %v7858 = vunpack.c.l.b16 %v7791
    %v7859 = vunpack.c.l.b16 %v7792
    %v7860 = vunpack.c.l.b16 %v7793
    %v7861 = vunpack.c.l.b16 %v7794
    %v7862 = vunpack.c.l.b16 %v7795
    %v7863 = vunpack.c.l.b16 %v7796
    %v7864 = vunpack.c.l.b16 %v7797
    %v7865 = vunpack.c.l.b16 %v7798
    %v7866 = vunpack.c.l.b16 %v7799
    %v7867 = vunpack.c.l.b16 %v7800
    %v7868 = vpack.c.b16 %v7853, %v7852
    %v7869 = vpack.c.b16 %v7855, %v7854
    %v7870 = vpack.c.b16 %v7857, %v7856
    %v7871 = vpack.c.b16 %v7859, %v7858
    %v7872 = vpack.c.b16 %v7861, %v7860
    %v7873 = vpack.c.b16 %v7863, %v7862
    %v7874 = vpack.c.b16 %v7865, %v7864
    %v7875 = vpack.c.b16 %v7867, %v7866
    %7884 = vmatprep.subr.bf16.mxu0 0
    %7885 = vmatpush1.bf16.msra.mxu0 %v7875
    %7886 = vmatprep.subr.bf16.mxu0 0
    %7887 = vmatpush1.bf16.msra.mxu0 %v7874
    %7888 = vmatprep.subr.bf16.mxu0 0
    %7889 = vmatpush1.bf16.msra.mxu0 %v7873
    %7890 = vmatprep.subr.bf16.mxu0 0
    %7891 = vmatpush1.bf16.msra.mxu0 %v7872
    %7892 = vmatprep.subr.bf16.mxu0 0
    %7893 = vmatpush1.bf16.msra.mxu0 %v7871
    %7894 = vmatprep.subr.bf16.mxu0 0
    %7895 = vmatpush1.bf16.msra.mxu0 %v7870
    %7896 = vmatprep.subr.bf16.mxu0 0
    %7897 = vmatpush1.bf16.msra.mxu0 %v7869
    %7898 = vmatprep.subr.bf16.mxu0 0
    %7899 = vmatpush1.bf16.msra.mxu0 %v7868
    %7900 = vmatprep.subr.bf16.mxu0 0
    %7901 = vmatpush2.bf16.msra.mxu0 0
    %7902 = vmatprep.subr.bf16.mxu0 0
    %7903 = vmatpush2.bf16.msra.mxu0 0
    %7904 = vmatprep.subr.bf16.mxu0 0
    %7905 = vmatpush2.bf16.msra.mxu0 0
    %7906 = vmatprep.subr.bf16.mxu0 0
    %7907 = vmatpush2.bf16.msra.mxu0 0
    %7908 = vmatprep.subr.bf16.mxu0 0
    %7909 = vmatpush2.bf16.msra.mxu0 0
    %7910 = vmatprep.subr.bf16.mxu0 0
    %7911 = vmatpush2.bf16.msra.mxu0 0
    %7912 = vmatprep.subr.bf16.mxu0 0
    %7913 = vmatpush2.bf16.msra.mxu0 0
    %7914 = vmatprep.subr.bf16.mxu0 0
    %7915 = vmatpush2.bf16.msra.mxu0 0
    %7916 = vmatprep.mubr.bf16.mxu0 0
    %7917 = vmatmul.mubr.bf16.gmra.mxu0 %v7825
    %v7918 = vpop.f32.mrf.mxu0
    %v7919 = vadd.f32 0.0, %v7918
    %v7920 = vpop.f32.mrf.mxu0
    %v7921 = vpop.f32.mrf.mxu0
    %v7922 = vadd.f32 0.0, %v7921
    %v7923 = vpop.f32.mrf.mxu0
    %7924 = vmatprep.mubr.bf16.mxu0 0
    %7925 = vmatmul.mubr.bf16.gmra.mxu0 %v7833
    %v7926 = vpop.f32.mrf.mxu0
    %v7927 = vadd.f32 0.0, %v7926
    %v7928 = vpop.f32.mrf.mxu0
    %v7929 = vpop.f32.mrf.mxu0
    %v7930 = vadd.f32 0.0, %v7929
    %v7931 = vpop.f32.mrf.mxu0
    %7932 = vdwg.mxu0
    %v7933 = vadd.f32 %v7776, %v7919
    %v7934 = vadd.f32 %v7777, %v7922
    %v7935 = vadd.f32 %v7778, %v7927
    %v7936 = vadd.f32 %v7779, %v7930
    %v7937 = vld [vmem:[#allocation3 + $0x4] sm:$0xe]
    %v7938 = vld [vmem:[%s3737] sm:$0xf]
    %v7939 = vld [vmem:[%s3737 + $0x4] sm:$0xf]
    %v7940 = vld [vmem:[%s3737 + $0x8] sm:$0xf]
    %v7941 = vld [vmem:[%s3737 + $0xc] sm:$0xf]
    %v7942 = vld [vmem:[%s3737 + $0x10] sm:$0xf]
    %v7943 = vld [vmem:[%s3737 + $0x14] sm:$0xf]
    %v7944 = vld [vmem:[%s3737 + $0x18] sm:$0xf]
    %v7945 = vld [vmem:[%s3737 + $0x1c] sm:$0xf]
    %v7946 = vld [vmem:[%s3737 + $0x20] sm:$0xf]
    %v7947 = vld [vmem:[%s3737 + $0x24] sm:$0xf]
    %v7948 = vld [vmem:[%s3737 + $0x28] sm:$0xf]
    %v7949 = vld [vmem:[%s3737 + $0x2c] sm:$0xf]
    %v7950 = vld [vmem:[%s3737 + $0x30] sm:$0xf]
    %v7951 = vld [vmem:[%s3737 + $0x34] sm:$0xf]
    %v7952 = vld [vmem:[%s3737 + $0x38] sm:$0xf]
    %v7953 = vld [vmem:[%s3737 + $0x3c] sm:$0xf]
    %v7955 = vunpack.c.l.b16 %v7937
    %v7956 = vpack.c.b16 %v7807, %v7955
    %v7957 = vrot.slane %v7956, 1
    %v7958 = vrot.slane %v7812, 1
    %v7959 = vsel %vm1200, %v7957, %v7958
    %v7960 = vrot.slane %v7813, 1
    %v7961 = vsel %vm1200, %v7958, %v7960
    %v7980 = vunpack.c.l.b16 %v7938
    %v7981 = vunpack.c.l.b16 %v7939
    %v7982 = vunpack.c.l.b16 %v7940
    %v7983 = vunpack.c.l.b16 %v7941
    %v7984 = vunpack.c.l.b16 %v7942
    %v7985 = vunpack.c.l.b16 %v7943
    %v7986 = vunpack.c.l.b16 %v7944
    %v7987 = vunpack.c.l.b16 %v7945
    %v7988 = vunpack.c.l.b16 %v7946
    %v7989 = vunpack.c.l.b16 %v7947
    %v7990 = vunpack.c.l.b16 %v7948
    %v7991 = vunpack.c.l.b16 %v7949
    %v7992 = vunpack.c.l.b16 %v7950
    %v7993 = vunpack.c.l.b16 %v7951
    %v7994 = vunpack.c.l.b16 %v7952
    %v7995 = vunpack.c.l.b16 %v7953
    %v7996 = vpack.c.b16 %v7981, %v7980
    %v7997 = vpack.c.b16 %v7983, %v7982
    %v7998 = vpack.c.b16 %v7985, %v7984
    %v7999 = vpack.c.b16 %v7987, %v7986
    %v8000 = vpack.c.b16 %v7989, %v7988
    %v8001 = vpack.c.b16 %v7991, %v7990
    %v8002 = vpack.c.b16 %v7993, %v7992
    %v8003 = vpack.c.b16 %v7995, %v7994
    %8012 = vmatprep.subr.bf16.mxu0 0
    %8013 = vmatpush1.bf16.msra.mxu0 %v8003
    %8014 = vmatprep.subr.bf16.mxu0 0
    %8015 = vmatpush1.bf16.msra.mxu0 %v8002
    %8016 = vmatprep.subr.bf16.mxu0 0
    %8017 = vmatpush1.bf16.msra.mxu0 %v8001
    %8018 = vmatprep.subr.bf16.mxu0 0
    %8019 = vmatpush1.bf16.msra.mxu0 %v8000
    %8020 = vmatprep.subr.bf16.mxu0 0
    %8021 = vmatpush1.bf16.msra.mxu0 %v7999
    %8022 = vmatprep.subr.bf16.mxu0 0
    %8023 = vmatpush1.bf16.msra.mxu0 %v7998
    %8024 = vmatprep.subr.bf16.mxu0 0
    %8025 = vmatpush1.bf16.msra.mxu0 %v7997
    %8026 = vmatprep.subr.bf16.mxu0 0
    %8027 = vmatpush1.bf16.msra.mxu0 %v7996
    %8028 = vmatprep.subr.bf16.mxu0 0
    %8029 = vmatpush2.bf16.msra.mxu0 0
    %8030 = vmatprep.subr.bf16.mxu0 0
    %8031 = vmatpush2.bf16.msra.mxu0 0
    %8032 = vmatprep.subr.bf16.mxu0 0
    %8033 = vmatpush2.bf16.msra.mxu0 0
    %8034 = vmatprep.subr.bf16.mxu0 0
    %8035 = vmatpush2.bf16.msra.mxu0 0
    %8036 = vmatprep.subr.bf16.mxu0 0
    %8037 = vmatpush2.bf16.msra.mxu0 0
    %8038 = vmatprep.subr.bf16.mxu0 0
    %8039 = vmatpush2.bf16.msra.mxu0 0
    %8040 = vmatprep.subr.bf16.mxu0 0
    %8041 = vmatpush2.bf16.msra.mxu0 0
    %8042 = vmatprep.subr.bf16.mxu0 0
    %8043 = vmatpush2.bf16.msra.mxu0 0
    %8044 = vmatprep.mubr.bf16.mxu0 0
    %8045 = vmatmul.mubr.bf16.gmra.mxu0 %v7959
    %v8046 = vpop.f32.mrf.mxu0
    %v8047 = vadd.f32 0.0, %v8046
    %v8048 = vpop.f32.mrf.mxu0
    %v8049 = vpop.f32.mrf.mxu0
    %v8050 = vadd.f32 0.0, %v8049
    %v8051 = vpop.f32.mrf.mxu0
    %8052 = vmatprep.mubr.bf16.mxu0 0
    %8053 = vmatmul.mubr.bf16.gmra.mxu0 %v7961
    %v8054 = vpop.f32.mrf.mxu0
    %v8055 = vadd.f32 0.0, %v8054
    %v8056 = vpop.f32.mrf.mxu0
    %v8057 = vpop.f32.mrf.mxu0
    %v8058 = vadd.f32 0.0, %v8057
    %v8059 = vpop.f32.mrf.mxu0
    %8060 = vdwg.mxu0
    %v8061 = vadd.f32 %v7933, %v8047
    %v8062 = vadd.f32 %v7934, %v8050
    %v8063 = vadd.f32 %v7935, %v8055
    %v8064 = vadd.f32 %v7936, %v8058
    %v8065 = vld [vmem:[#allocation3 + $0x14] sm:$0xf]
    %v8066 = vld [vmem:[%s3866] sm:$0xf]
    %v8067 = vld [vmem:[%s3866 + $0x4] sm:$0xf]
    %v8068 = vld [vmem:[%s3866 + $0x8] sm:$0xf]
    %v8069 = vld [vmem:[%s3866 + $0xc] sm:$0xf]
    %v8070 = vld [vmem:[%s3866 + $0x10] sm:$0xf]
    %v8071 = vld [vmem:[%s3866 + $0x14] sm:$0xf]
    %v8072 = vld [vmem:[%s3866 + $0x18] sm:$0xf]
    %v8073 = vld [vmem:[%s3866 + $0x1c] sm:$0xf]
    %v8074 = vld [vmem:[%s3866 + $0x20] sm:$0xf]
    %v8075 = vld [vmem:[%s3866 + $0x24] sm:$0xf]
    %v8076 = vld [vmem:[%s3866 + $0x28] sm:$0xf]
    %v8077 = vld [vmem:[%s3866 + $0x2c] sm:$0xf]
    %v8078 = vld [vmem:[%s3866 + $0x30] sm:$0xf]
    %v8079 = vld [vmem:[%s3866 + $0x34] sm:$0xf]
    %v8080 = vld [vmem:[%s3866 + $0x38] sm:$0xf]
    %v8081 = vld [vmem:[%s3866 + $0x3c] sm:$0xf]
    %v8083 = vunpack.c.l.b16 %v8065
    %v8084 = vpack.c.b16 %v7808, %v7807
    %v8085 = vpack.c.b16 %v8083, %v7809
    %v8104 = vunpack.c.l.b16 %v8066
    %v8105 = vunpack.c.l.b16 %v8067
    %v8106 = vunpack.c.l.b16 %v8068
    %v8107 = vunpack.c.l.b16 %v8069
    %v8108 = vunpack.c.l.b16 %v8070
    %v8109 = vunpack.c.l.b16 %v8071
    %v8110 = vunpack.c.l.b16 %v8072
    %v8111 = vunpack.c.l.b16 %v8073
    %v8112 = vunpack.c.l.b16 %v8074
    %v8113 = vunpack.c.l.b16 %v8075
    %v8114 = vunpack.c.l.b16 %v8076
    %v8115 = vunpack.c.l.b16 %v8077
    %v8116 = vunpack.c.l.b16 %v8078
    %v8117 = vunpack.c.l.b16 %v8079
    %v8118 = vunpack.c.l.b16 %v8080
    %v8119 = vunpack.c.l.b16 %v8081
    %v8120 = vpack.c.b16 %v8105, %v8104
    %v8121 = vpack.c.b16 %v8107, %v8106
    %v8122 = vpack.c.b16 %v8109, %v8108
    %v8123 = vpack.c.b16 %v8111, %v8110
    %v8124 = vpack.c.b16 %v8113, %v8112
    %v8125 = vpack.c.b16 %v8115, %v8114
    %v8126 = vpack.c.b16 %v8117, %v8116
    %v8127 = vpack.c.b16 %v8119, %v8118
    %8136 = vmatprep.subr.bf16.mxu0 0
    %8137 = vmatpush1.bf16.msra.mxu0 %v8127
    %8138 = vmatprep.subr.bf16.mxu0 0
    %8139 = vmatpush1.bf16.msra.mxu0 %v8126
    %8140 = vmatprep.subr.bf16.mxu0 0
    %8141 = vmatpush1.bf16.msra.mxu0 %v8125
    %8142 = vmatprep.subr.bf16.mxu0 0
    %8143 = vmatpush1.bf16.msra.mxu0 %v8124
    %8144 = vmatprep.subr.bf16.mxu0 0
    %8145 = vmatpush1.bf16.msra.mxu0 %v8123
    %8146 = vmatprep.subr.bf16.mxu0 0
    %8147 = vmatpush1.bf16.msra.mxu0 %v8122
    %8148 = vmatprep.subr.bf16.mxu0 0
    %8149 = vmatpush1.bf16.msra.mxu0 %v8121
    %8150 = vmatprep.subr.bf16.mxu0 0
    %8151 = vmatpush1.bf16.msra.mxu0 %v8120
    %8152 = vmatprep.subr.bf16.mxu0 0
    %8153 = vmatpush2.bf16.msra.mxu0 0
    %8154 = vmatprep.subr.bf16.mxu0 0
    %8155 = vmatpush2.bf16.msra.mxu0 0
    %8156 = vmatprep.subr.bf16.mxu0 0
    %8157 = vmatpush2.bf16.msra.mxu0 0
    %8158 = vmatprep.subr.bf16.mxu0 0
    %8159 = vmatpush2.bf16.msra.mxu0 0
    %8160 = vmatprep.subr.bf16.mxu0 0
    %8161 = vmatpush2.bf16.msra.mxu0 0
    %8162 = vmatprep.subr.bf16.mxu0 0
    %8163 = vmatpush2.bf16.msra.mxu0 0
    %8164 = vmatprep.subr.bf16.mxu0 0
    %8165 = vmatpush2.bf16.msra.mxu0 0
    %8166 = vmatprep.subr.bf16.mxu0 0
    %8167 = vmatpush2.bf16.msra.mxu0 0
    %8168 = vmatprep.mubr.bf16.mxu0 0
    %8169 = vmatmul.mubr.bf16.gmra.mxu0 %v8084
    %v8170 = vpop.f32.mrf.mxu0
    %v8171 = vadd.f32 0.0, %v8170
    %v8172 = vpop.f32.mrf.mxu0
    %v8173 = vpop.f32.mrf.mxu0
    %v8174 = vadd.f32 0.0, %v8173
    %v8175 = vpop.f32.mrf.mxu0
    %8176 = vmatprep.mubr.bf16.mxu0 0
    %8177 = vmatmul.mubr.bf16.gmra.mxu0 %v8085
    %v8178 = vpop.f32.mrf.mxu0
    %v8179 = vadd.f32 0.0, %v8178
    %v8180 = vpop.f32.mrf.mxu0
    %v8181 = vpop.f32.mrf.mxu0
    %v8182 = vadd.f32 0.0, %v8181
    %v8183 = vpop.f32.mrf.mxu0
    %8184 = vdwg.mxu0
    %v8185 = vadd.f32 %v8061, %v8171
    %v8186 = vadd.f32 %v8062, %v8174
    %v8187 = vadd.f32 %v8063, %v8179
    %v8188 = vadd.f32 %v8064, %v8182
    %v8189 = vld [vmem:[#allocation3 + $0x8] sm:$0xf]
    %v8190 = vld [vmem:[#allocation3 + $0xc] sm:$0xf]
    %v8191 = vld [vmem:[#allocation3 + $0x10] sm:$0xf]
    %v8192 = vld [vmem:[#allocation3 + $0x14] sm:$0xf]
    %v8193 = vld [vmem:[#allocation3 + $0x18] sm:$0x1]
    %v8194 = vld [vmem:[%s3995] sm:$0xf]
    %v8195 = vld [vmem:[%s3995 + $0x4] sm:$0xf]
    %v8196 = vld [vmem:[%s3995 + $0x8] sm:$0xf]
    %v8197 = vld [vmem:[%s3995 + $0xc] sm:$0xf]
    %v8198 = vld [vmem:[%s3995 + $0x10] sm:$0xf]
    %v8199 = vld [vmem:[%s3995 + $0x14] sm:$0xf]
    %v8200 = vld [vmem:[%s3995 + $0x18] sm:$0xf]
    %v8201 = vld [vmem:[%s3995 + $0x1c] sm:$0xf]
    %v8202 = vld [vmem:[%s3995 + $0x20] sm:$0xf]
    %v8203 = vld [vmem:[%s3995 + $0x24] sm:$0xf]
    %v8204 = vld [vmem:[%s3995 + $0x28] sm:$0xf]
    %v8205 = vld [vmem:[%s3995 + $0x2c] sm:$0xf]
    %v8206 = vld [vmem:[%s3995 + $0x30] sm:$0xf]
    %v8207 = vld [vmem:[%s3995 + $0x34] sm:$0xf]
    %v8208 = vld [vmem:[%s3995 + $0x38] sm:$0xf]
    %v8209 = vld [vmem:[%s3995 + $0x3c] sm:$0xf]
    %v8215 = vunpack.c.l.b16 %v8189
    %v8216 = vunpack.c.l.b16 %v8190
    %v8217 = vunpack.c.l.b16 %v8191
    %v8218 = vunpack.c.l.b16 %v8192
    %v8219 = vunpack.c.l.b16 %v8193
    %v8220 = vpack.c.b16 %v8216, %v8215
    %v8221 = vpack.c.b16 %v8218, %v8217
    %v8222 = vpack.c.b16 %v8219, %v8219
    %v8224 = vshrl.u32 %v8220, 16
    %v8226 = vshll.u32 %v8220, 16
    %v8228 = vrot.slane %v8226, 1
    %v8229 = vor.u32 %v8224, %v8228
    %v8231 = vshll.u32 %v8221, 16
    %v8233 = vrot.slane %v8231, 1
    %v8234 = vsel %vm804, %v8229, %v8233
    %v8235 = vshrl.u32 %v8221, 16
    %v8237 = vor.u32 %v8235, %v8233
    %v8239 = vshll.u32 %v8222, 16
    %v8241 = vrot.slane %v8239, 1
    %v8242 = vsel %vm804, %v8237, %v8241
    %v8261 = vunpack.c.l.b16 %v8194
    %v8262 = vunpack.c.l.b16 %v8195
    %v8263 = vunpack.c.l.b16 %v8196
    %v8264 = vunpack.c.l.b16 %v8197
    %v8265 = vunpack.c.l.b16 %v8198
    %v8266 = vunpack.c.l.b16 %v8199
    %v8267 = vunpack.c.l.b16 %v8200
    %v8268 = vunpack.c.l.b16 %v8201
    %v8269 = vunpack.c.l.b16 %v8202
    %v8270 = vunpack.c.l.b16 %v8203
    %v8271 = vunpack.c.l.b16 %v8204
    %v8272 = vunpack.c.l.b16 %v8205
    %v8273 = vunpack.c.l.b16 %v8206
    %v8274 = vunpack.c.l.b16 %v8207
    %v8275 = vunpack.c.l.b16 %v8208
    %v8276 = vunpack.c.l.b16 %v8209
    %v8277 = vpack.c.b16 %v8262, %v8261
    %v8278 = vpack.c.b16 %v8264, %v8263
    %v8279 = vpack.c.b16 %v8266, %v8265
    %v8280 = vpack.c.b16 %v8268, %v8267
    %v8281 = vpack.c.b16 %v8270, %v8269
    %v8282 = vpack.c.b16 %v8272, %v8271
    %v8283 = vpack.c.b16 %v8274, %v8273
    %v8284 = vpack.c.b16 %v8276, %v8275
    %8293 = vmatprep.subr.bf16.mxu0 0
    %8294 = vmatpush1.bf16.msra.mxu0 %v8284
    %8295 = vmatprep.subr.bf16.mxu0 0
    %8296 = vmatpush1.bf16.msra.mxu0 %v8283
    %8297 = vmatprep.subr.bf16.mxu0 0
    %8298 = vmatpush1.bf16.msra.mxu0 %v8282
    %8299 = vmatprep.subr.bf16.mxu0 0
    %8300 = vmatpush1.bf16.msra.mxu0 %v8281
    %8301 = vmatprep.subr.bf16.mxu0 0
    %8302 = vmatpush1.bf16.msra.mxu0 %v8280
    %8303 = vmatprep.subr.bf16.mxu0 0
    %8304 = vmatpush1.bf16.msra.mxu0 %v8279
    %8305 = vmatprep.subr.bf16.mxu0 0
    %8306 = vmatpush1.bf16.msra.mxu0 %v8278
    %8307 = vmatprep.subr.bf16.mxu0 0
    %8308 = vmatpush1.bf16.msra.mxu0 %v8277
    %8309 = vmatprep.subr.bf16.mxu0 0
    %8310 = vmatpush2.bf16.msra.mxu0 0
    %8311 = vmatprep.subr.bf16.mxu0 0
    %8312 = vmatpush2.bf16.msra.mxu0 0
    %8313 = vmatprep.subr.bf16.mxu0 0
    %8314 = vmatpush2.bf16.msra.mxu0 0
    %8315 = vmatprep.subr.bf16.mxu0 0
    %8316 = vmatpush2.bf16.msra.mxu0 0
    %8317 = vmatprep.subr.bf16.mxu0 0
    %8318 = vmatpush2.bf16.msra.mxu0 0
    %8319 = vmatprep.subr.bf16.mxu0 0
    %8320 = vmatpush2.bf16.msra.mxu0 0
    %8321 = vmatprep.subr.bf16.mxu0 0
    %8322 = vmatpush2.bf16.msra.mxu0 0
    %8323 = vmatprep.subr.bf16.mxu0 0
    %8324 = vmatpush2.bf16.msra.mxu0 0
    %8325 = vmatprep.mubr.bf16.mxu0 0
    %8326 = vmatmul.mubr.bf16.gmra.mxu0 %v8234
    %v8327 = vpop.f32.mrf.mxu0
    %v8328 = vadd.f32 0.0, %v8327
    %v8329 = vpop.f32.mrf.mxu0
    %v8330 = vpop.f32.mrf.mxu0
    %v8331 = vadd.f32 0.0, %v8330
    %v8332 = vpop.f32.mrf.mxu0
    %8333 = vmatprep.mubr.bf16.mxu0 0
    %8334 = vmatmul.mubr.bf16.gmra.mxu0 %v8242
    %v8335 = vpop.f32.mrf.mxu0
    %v8336 = vadd.f32 0.0, %v8335
    %v8337 = vpop.f32.mrf.mxu0
    %v8338 = vpop.f32.mrf.mxu0
    %v8339 = vadd.f32 0.0, %v8338
    %v8340 = vpop.f32.mrf.mxu0
    %8341 = vdwg.mxu0
    %v8342 = vadd.f32 %v8185, %v8328
    %v8343 = vadd.f32 %v8186, %v8331
    %v8344 = vadd.f32 %v8187, %v8336
    %v8345 = vadd.f32 %v8188, %v8339
    %v8346 = vld [vmem:[#allocation3 + $0x8] sm:$0xe]
    %v8347 = vld [vmem:[%s4149] sm:$0xf]
    %v8348 = vld [vmem:[%s4149 + $0x4] sm:$0xf]
    %v8349 = vld [vmem:[%s4149 + $0x8] sm:$0xf]
    %v8350 = vld [vmem:[%s4149 + $0xc] sm:$0xf]
    %v8351 = vld [vmem:[%s4149 + $0x10] sm:$0xf]
    %v8352 = vld [vmem:[%s4149 + $0x14] sm:$0xf]
    %v8353 = vld [vmem:[%s4149 + $0x18] sm:$0xf]
    %v8354 = vld [vmem:[%s4149 + $0x1c] sm:$0xf]
    %v8355 = vld [vmem:[%s4149 + $0x20] sm:$0xf]
    %v8356 = vld [vmem:[%s4149 + $0x24] sm:$0xf]
    %v8357 = vld [vmem:[%s4149 + $0x28] sm:$0xf]
    %v8358 = vld [vmem:[%s4149 + $0x2c] sm:$0xf]
    %v8359 = vld [vmem:[%s4149 + $0x30] sm:$0xf]
    %v8360 = vld [vmem:[%s4149 + $0x34] sm:$0xf]
    %v8361 = vld [vmem:[%s4149 + $0x38] sm:$0xf]
    %v8362 = vld [vmem:[%s4149 + $0x3c] sm:$0xf]
    %v8364 = vunpack.c.l.b16 %v8346
    %v8365 = vpack.c.b16 %v8216, %v8364
    %v8366 = vrot.slane %v8365, 1
    %v8367 = vrot.slane %v8221, 1
    %v8368 = vsel %vm1200, %v8366, %v8367
    %v8369 = vrot.slane %v8222, 1
    %v8370 = vsel %vm1200, %v8367, %v8369
    %v8389 = vunpack.c.l.b16 %v8347
    %v8390 = vunpack.c.l.b16 %v8348
    %v8391 = vunpack.c.l.b16 %v8349
    %v8392 = vunpack.c.l.b16 %v8350
    %v8393 = vunpack.c.l.b16 %v8351
    %v8394 = vunpack.c.l.b16 %v8352
    %v8395 = vunpack.c.l.b16 %v8353
    %v8396 = vunpack.c.l.b16 %v8354
    %v8397 = vunpack.c.l.b16 %v8355
    %v8398 = vunpack.c.l.b16 %v8356
    %v8399 = vunpack.c.l.b16 %v8357
    %v8400 = vunpack.c.l.b16 %v8358
    %v8401 = vunpack.c.l.b16 %v8359
    %v8402 = vunpack.c.l.b16 %v8360
    %v8403 = vunpack.c.l.b16 %v8361
    %v8404 = vunpack.c.l.b16 %v8362
    %v8405 = vpack.c.b16 %v8390, %v8389
    %v8406 = vpack.c.b16 %v8392, %v8391
    %v8407 = vpack.c.b16 %v8394, %v8393
    %v8408 = vpack.c.b16 %v8396, %v8395
    %v8409 = vpack.c.b16 %v8398, %v8397
    %v8410 = vpack.c.b16 %v8400, %v8399
    %v8411 = vpack.c.b16 %v8402, %v8401
    %v8412 = vpack.c.b16 %v8404, %v8403
    %8421 = vmatprep.subr.bf16.mxu0 0
    %8422 = vmatpush1.bf16.msra.mxu0 %v8412
    %8423 = vmatprep.subr.bf16.mxu0 0
    %8424 = vmatpush1.bf16.msra.mxu0 %v8411
    %8425 = vmatprep.subr.bf16.mxu0 0
    %8426 = vmatpush1.bf16.msra.mxu0 %v8410
    %8427 = vmatprep.subr.bf16.mxu0 0
    %8428 = vmatpush1.bf16.msra.mxu0 %v8409
    %8429 = vmatprep.subr.bf16.mxu0 0
    %8430 = vmatpush1.bf16.msra.mxu0 %v8408
    %8431 = vmatprep.subr.bf16.mxu0 0
    %8432 = vmatpush1.bf16.msra.mxu0 %v8407
    %8433 = vmatprep.subr.bf16.mxu0 0
    %8434 = vmatpush1.bf16.msra.mxu0 %v8406
    %8435 = vmatprep.subr.bf16.mxu0 0
    %8436 = vmatpush1.bf16.msra.mxu0 %v8405
    %8437 = vmatprep.subr.bf16.mxu0 0
    %8438 = vmatpush2.bf16.msra.mxu0 0
    %8439 = vmatprep.subr.bf16.mxu0 0
    %8440 = vmatpush2.bf16.msra.mxu0 0
    %8441 = vmatprep.subr.bf16.mxu0 0
    %8442 = vmatpush2.bf16.msra.mxu0 0
    %8443 = vmatprep.subr.bf16.mxu0 0
    %8444 = vmatpush2.bf16.msra.mxu0 0
    %8445 = vmatprep.subr.bf16.mxu0 0
    %8446 = vmatpush2.bf16.msra.mxu0 0
    %8447 = vmatprep.subr.bf16.mxu0 0
    %8448 = vmatpush2.bf16.msra.mxu0 0
    %8449 = vmatprep.subr.bf16.mxu0 0
    %8450 = vmatpush2.bf16.msra.mxu0 0
    %8451 = vmatprep.subr.bf16.mxu0 0
    %8452 = vmatpush2.bf16.msra.mxu0 0
    %8453 = vmatprep.mubr.bf16.mxu0 0
    %8454 = vmatmul.mubr.bf16.gmra.mxu0 %v8368
    %v8455 = vpop.f32.mrf.mxu0
    %v8456 = vadd.f32 0.0, %v8455
    %v8457 = vpop.f32.mrf.mxu0
    %v8458 = vpop.f32.mrf.mxu0
    %v8459 = vadd.f32 0.0, %v8458
    %v8460 = vpop.f32.mrf.mxu0
    %8461 = vmatprep.mubr.bf16.mxu0 0
    %8462 = vmatmul.mubr.bf16.gmra.mxu0 %v8370
    %v8463 = vpop.f32.mrf.mxu0
    %v8464 = vadd.f32 0.0, %v8463
    %v8465 = vpop.f32.mrf.mxu0
    %v8466 = vpop.f32.mrf.mxu0
    %v8467 = vadd.f32 0.0, %v8466
    %v8468 = vpop.f32.mrf.mxu0
    %8469 = vdwg.mxu0
    %v8470 = vadd.f32 %v8342, %v8456
    %v8471 = vadd.f32 %v8343, %v8459
    %v8472 = vadd.f32 %v8344, %v8464
    %v8473 = vadd.f32 %v8345, %v8467
    %v8474 = vld [vmem:[%s6] sm:$0x1]
    %v8476 = vlaneseq
    %v8477 = vshrl.u32 %v8476, 7
    %v8478 = vsub.s32 0, %v8477
    %v8479 = vrot.slane %v8474, %v8478
    %v8481 = vadd.f32 %v8470, %v8479
    %v8482 = vadd.f32 %v8471, %v8479
    %v8483 = vadd.f32 %v8472, %v8479
    %v8484 = vadd.f32 %v8473, %v8479
    %v8485 = vmax.f32 %v8481, 0.0
    %v8486 = vmax.f32 %v8482, 0.0
    %v8487 = vmax.f32 %v8483, 0.0
    %v8488 = vmax.f32 %v8484, 0.0
    %v8489 = vmax.f32 %v8485, %v8486
    %v8490 = vmax.f32 %v8486, %v8487
    %v8491 = vmax.f32 %v8487, %v8488
    %8492 = vst [vmem:[#allocation4] sm:$0xff] %v8489
    %8493 = vst [vmem:[#allocation4 + $0x8] sm:$0xff] %v8490
    %8494 = vst [vmem:[#allocation4 + $0x10] sm:$0xff] %v8491
    %v8495 = vld [vmem:[#allocation4] ss:$2 sm:$0x3]
    %v8496 = vld [vmem:[%s507] ss:$2 sm:$0x3]
    %v8497 = vmax.f32 %v8495, %v8496
    %8498 = vst [vmem:[#allocation5 + $0x4] sm:$0x3] %v8497
    %v8499 = vld [vmem:[%s4302] ss:$2 sm:$0x3]
    %v8500 = vld [vmem:[%s4304] ss:$2 sm:$0x3]
    %v8501 = vmax.f32 %v8499, %v8500
    %8502 = vst [vmem:[#allocation5 + $0x6] sm:$0x3] %v8501
    %v8503 = vld [vmem:[#allocation5] ss:$4 sm:$0x3]
    %v8504 = vpack.c.bf16 %v8503, %v8503
    %v8505 = vld [vmem:[%s7] sm:$0xff]
    %v8506 = vld [vmem:[%s7 + $0x8] sm:$0xff]
    %v8507 = vld [vmem:[%s7 + $0x10] sm:$0xff]
    %v8508 = vld [vmem:[%s7 + $0x18] sm:$0xff]
    %v8509 = vld [vmem:[%s7 + $0x20] sm:$0xff]
    %v8510 = vld [vmem:[%s7 + $0x28] sm:$0xff]
    %v8511 = vld [vmem:[%s7 + $0x30] sm:$0xff]
    %v8512 = vld [vmem:[%s7 + $0x38] sm:$0xff]
    %v8513 = vld [vmem:[%s7 + $0x40] sm:$0xff]
    %v8514 = vld [vmem:[%s7 + $0x48] sm:$0xff]
    %v8515 = vld [vmem:[%s7 + $0x50] sm:$0xff]
    %v8516 = vld [vmem:[%s7 + $0x58] sm:$0xff]
    %v8517 = vld [vmem:[%s7 + $0x60] sm:$0xff]
    %v8518 = vld [vmem:[%s7 + $0x68] sm:$0xff]
    %v8519 = vld [vmem:[%s7 + $0x70] sm:$0xff]
    %v8520 = vld [vmem:[%s7 + $0x78] sm:$0xff]
    %s8521 = scalar_lea.vmem [#allocation5], 1
    %v8522 = vld [vmem:[%s8521] ss:$4 sm:$0x3]
    %v8523 = vpack.c.bf16 %v8522, %v8522
    %v8524 = vld [vmem:[%s7 + $0x80] sm:$0xff]
    %v8525 = vld [vmem:[%s7 + $0x88] sm:$0xff]
    %v8526 = vld [vmem:[%s7 + $0x90] sm:$0xff]
    %v8527 = vld [vmem:[%s7 + $0x98] sm:$0xff]
    %v8528 = vld [vmem:[%s7 + $0xa0] sm:$0xff]
    %v8529 = vld [vmem:[%s7 + $0xa8] sm:$0xff]
    %v8530 = vld [vmem:[%s7 + $0xb0] sm:$0xff]
    %v8531 = vld [vmem:[%s7 + $0xb8] sm:$0xff]
    %v8532 = vld [vmem:[%s7 + $0xc0] sm:$0xff]
    %v8533 = vld [vmem:[%s7 + $0xc8] sm:$0xff]
    %v8534 = vld [vmem:[%s7 + $0xd0] sm:$0xff]
    %v8535 = vld [vmem:[%s7 + $0xd8] sm:$0xff]
    %v8536 = vld [vmem:[%s7 + $0xe0] sm:$0xff]
    %v8537 = vld [vmem:[%s7 + $0xe8] sm:$0xff]
    %v8538 = vld [vmem:[%s7 + $0xf0] sm:$0xff]
    %v8539 = vld [vmem:[%s7 + $0xf8] sm:$0xff]
    %v8556 = vunpack.c.l.b16 %v8524
    %v8557 = vunpack.c.h.b16 %v8524
    %v8558 = vunpack.c.l.b16 %v8525
    %v8559 = vunpack.c.h.b16 %v8525
    %v8560 = vunpack.c.l.b16 %v8526
    %v8561 = vunpack.c.h.b16 %v8526
    %v8562 = vunpack.c.l.b16 %v8527
    %v8563 = vunpack.c.h.b16 %v8527
    %v8564 = vunpack.c.l.b16 %v8528
    %v8565 = vunpack.c.h.b16 %v8528
    %v8566 = vunpack.c.l.b16 %v8529
    %v8567 = vunpack.c.h.b16 %v8529
    %v8568 = vunpack.c.l.b16 %v8530
    %v8569 = vunpack.c.h.b16 %v8530
    %v8570 = vunpack.c.l.b16 %v8531
    %v8571 = vunpack.c.h.b16 %v8531
    %v8572 = vunpack.c.l.b16 %v8532
    %v8573 = vunpack.c.h.b16 %v8532
    %v8574 = vunpack.c.l.b16 %v8533
    %v8575 = vunpack.c.h.b16 %v8533
    %v8576 = vunpack.c.l.b16 %v8534
    %v8577 = vunpack.c.h.b16 %v8534
    %v8578 = vunpack.c.l.b16 %v8535
    %v8579 = vunpack.c.h.b16 %v8535
    %v8580 = vunpack.c.l.b16 %v8536
    %v8581 = vunpack.c.h.b16 %v8536
    %v8582 = vunpack.c.l.b16 %v8537
    %v8583 = vunpack.c.h.b16 %v8537
    %v8584 = vunpack.c.l.b16 %v8538
    %v8585 = vunpack.c.h.b16 %v8538
    %v8586 = vunpack.c.l.b16 %v8539
    %v8587 = vunpack.c.h.b16 %v8539
    %v8588 = vpack.c.b16 %v8558, %v8556
    %v8589 = vpack.c.b16 %v8559, %v8557
    %v8590 = vpack.c.b16 %v8562, %v8560
    %v8591 = vpack.c.b16 %v8563, %v8561
    %v8592 = vpack.c.b16 %v8566, %v8564
    %v8593 = vpack.c.b16 %v8567, %v8565
    %v8594 = vpack.c.b16 %v8570, %v8568
    %v8595 = vpack.c.b16 %v8571, %v8569
    %v8596 = vpack.c.b16 %v8574, %v8572
    %v8597 = vpack.c.b16 %v8575, %v8573
    %v8598 = vpack.c.b16 %v8578, %v8576
    %v8599 = vpack.c.b16 %v8579, %v8577
    %v8600 = vpack.c.b16 %v8582, %v8580
    %v8601 = vpack.c.b16 %v8583, %v8581
    %v8602 = vpack.c.b16 %v8586, %v8584
    %v8603 = vpack.c.b16 %v8587, %v8585
    %8620 = vmatprep.subr.bf16.mxu0 %v8603
    %8621 = vmatpush1.bf16.msra.mxu0 %v8602
    %8622 = vmatprep.subr.bf16.mxu0 %v8601
    %8623 = vmatpush1.bf16.msra.mxu0 %v8600
    %8624 = vmatprep.subr.bf16.mxu0 %v8599
    %8625 = vmatpush1.bf16.msra.mxu0 %v8598
    %8626 = vmatprep.subr.bf16.mxu0 %v8597
    %8627 = vmatpush1.bf16.msra.mxu0 %v8596
    %8628 = vmatprep.subr.bf16.mxu0 %v8595
    %8629 = vmatpush1.bf16.msra.mxu0 %v8594
    %8630 = vmatprep.subr.bf16.mxu0 %v8593
    %8631 = vmatpush1.bf16.msra.mxu0 %v8592
    %8632 = vmatprep.subr.bf16.mxu0 %v8591
    %8633 = vmatpush1.bf16.msra.mxu0 %v8590
    %8634 = vmatprep.subr.bf16.mxu0 %v8589
    %8635 = vmatpush1.bf16.msra.mxu0 %v8588
    %8636 = vmatprep.subr.bf16.mxu0 0
    %8637 = vmatpush2.bf16.msra.mxu0 0
    %8638 = vmatprep.subr.bf16.mxu0 0
    %8639 = vmatpush2.bf16.msra.mxu0 0
    %8640 = vmatprep.subr.bf16.mxu0 0
    %8641 = vmatpush2.bf16.msra.mxu0 0
    %8642 = vmatprep.subr.bf16.mxu0 0
    %8643 = vmatpush2.bf16.msra.mxu0 0
    %8644 = vmatprep.subr.bf16.mxu0 0
    %8645 = vmatpush2.bf16.msra.mxu0 0
    %8646 = vmatprep.subr.bf16.mxu0 0
    %8647 = vmatpush2.bf16.msra.mxu0 0
    %8648 = vmatprep.subr.bf16.mxu0 0
    %8649 = vmatpush2.bf16.msra.mxu0 0
    %8650 = vmatprep.subr.bf16.mxu0 0
    %8651 = vmatpush2.bf16.msra.mxu0 0
    %8652 = vmatprep.mubr.bf16.mxu0 0
    %8653 = vmatmul.mubr.bf16.gmra.mxu0 %v8523
    %v8654 = vpop.f32.mrf.mxu0
    %v8655 = vadd.f32 0.0, %v8654
    %v8656 = vpop.f32.mrf.mxu0
    %v8657 = vadd.f32 0.0, %v8656
    %v8658 = vpop.f32.mrf.mxu0
    %v8659 = vpop.f32.mrf.mxu0
    %8660 = vdwg.mxu0
    %v8677 = vunpack.c.l.b16 %v8505
    %v8678 = vunpack.c.h.b16 %v8505
    %v8679 = vunpack.c.l.b16 %v8506
    %v8680 = vunpack.c.h.b16 %v8506
    %v8681 = vunpack.c.l.b16 %v8507
    %v8682 = vunpack.c.h.b16 %v8507
    %v8683 = vunpack.c.l.b16 %v8508
    %v8684 = vunpack.c.h.b16 %v8508
    %v8685 = vunpack.c.l.b16 %v8509
    %v8686 = vunpack.c.h.b16 %v8509
    %v8687 = vunpack.c.l.b16 %v8510
    %v8688 = vunpack.c.h.b16 %v8510
    %v8689 = vunpack.c.l.b16 %v8511
    %v8690 = vunpack.c.h.b16 %v8511
    %v8691 = vunpack.c.l.b16 %v8512
    %v8692 = vunpack.c.h.b16 %v8512
    %v8693 = vunpack.c.l.b16 %v8513
    %v8694 = vunpack.c.h.b16 %v8513
    %v8695 = vunpack.c.l.b16 %v8514
    %v8696 = vunpack.c.h.b16 %v8514
    %v8697 = vunpack.c.l.b16 %v8515
    %v8698 = vunpack.c.h.b16 %v8515
    %v8699 = vunpack.c.l.b16 %v8516
    %v8700 = vunpack.c.h.b16 %v8516
    %v8701 = vunpack.c.l.b16 %v8517
    %v8702 = vunpack.c.h.b16 %v8517
    %v8703 = vunpack.c.l.b16 %v8518
    %v8704 = vunpack.c.h.b16 %v8518
    %v8705 = vunpack.c.l.b16 %v8519
    %v8706 = vunpack.c.h.b16 %v8519
    %v8707 = vunpack.c.l.b16 %v8520
    %v8708 = vunpack.c.h.b16 %v8520
    %v8709 = vpack.c.b16 %v8679, %v8677
    %v8710 = vpack.c.b16 %v8680, %v8678
    %v8711 = vpack.c.b16 %v8683, %v8681
    %v8712 = vpack.c.b16 %v8684, %v8682
    %v8713 = vpack.c.b16 %v8687, %v8685
    %v8714 = vpack.c.b16 %v8688, %v8686
    %v8715 = vpack.c.b16 %v8691, %v8689
    %v8716 = vpack.c.b16 %v8692, %v8690
    %v8717 = vpack.c.b16 %v8695, %v8693
    %v8718 = vpack.c.b16 %v8696, %v8694
    %v8719 = vpack.c.b16 %v8699, %v8697
    %v8720 = vpack.c.b16 %v8700, %v8698
    %v8721 = vpack.c.b16 %v8703, %v8701
    %v8722 = vpack.c.b16 %v8704, %v8702
    %v8723 = vpack.c.b16 %v8707, %v8705
    %v8724 = vpack.c.b16 %v8708, %v8706
    %8741 = vmatprep.subr.bf16.mxu0 %v8724
    %8742 = vmatpush1.bf16.msra.mxu0 %v8723
    %8743 = vmatprep.subr.bf16.mxu0 %v8722
    %8744 = vmatpush1.bf16.msra.mxu0 %v8721
    %8745 = vmatprep.subr.bf16.mxu0 %v8720
    %8746 = vmatpush1.bf16.msra.mxu0 %v8719
    %8747 = vmatprep.subr.bf16.mxu0 %v8718
    %8748 = vmatpush1.bf16.msra.mxu0 %v8717
    %8749 = vmatprep.subr.bf16.mxu0 %v8716
    %8750 = vmatpush1.bf16.msra.mxu0 %v8715
    %8751 = vmatprep.subr.bf16.mxu0 %v8714
    %8752 = vmatpush1.bf16.msra.mxu0 %v8713
    %8753 = vmatprep.subr.bf16.mxu0 %v8712
    %8754 = vmatpush1.bf16.msra.mxu0 %v8711
    %8755 = vmatprep.subr.bf16.mxu0 %v8710
    %8756 = vmatpush1.bf16.msra.mxu0 %v8709
    %8757 = vmatprep.subr.bf16.mxu0 0
    %8758 = vmatpush2.bf16.msra.mxu0 0
    %8759 = vmatprep.subr.bf16.mxu0 0
    %8760 = vmatpush2.bf16.msra.mxu0 0
    %8761 = vmatprep.subr.bf16.mxu0 0
    %8762 = vmatpush2.bf16.msra.mxu0 0
    %8763 = vmatprep.subr.bf16.mxu0 0
    %8764 = vmatpush2.bf16.msra.mxu0 0
    %8765 = vmatprep.subr.bf16.mxu0 0
    %8766 = vmatpush2.bf16.msra.mxu0 0
    %8767 = vmatprep.subr.bf16.mxu0 0
    %8768 = vmatpush2.bf16.msra.mxu0 0
    %8769 = vmatprep.subr.bf16.mxu0 0
    %8770 = vmatpush2.bf16.msra.mxu0 0
    %8771 = vmatprep.subr.bf16.mxu0 0
    %8772 = vmatpush2.bf16.msra.mxu0 0
    %8773 = vmatprep.mubr.bf16.mxu0 0
    %8774 = vmatmul.mubr.bf16.gmra.mxu0 %v8504
    %v8775 = vpop.f32.mrf.mxu0
    %v8776 = vadd.f32 %v8655, %v8775
    %v8777 = vpop.f32.mrf.mxu0
    %v8778 = vadd.f32 %v8657, %v8777
    %v8779 = vpop.f32.mrf.mxu0
    %v8780 = vpop.f32.mrf.mxu0
    %8781 = vdwg.mxu0
    %s8782 = scalar_lea.vmem [#allocation5], 2
    %v8783 = vld [vmem:[%s8782] ss:$4 sm:$0x3]
    %v8784 = vpack.c.bf16 %v8783, %v8783
    %v8785 = vld [vmem:[%s7 + $0x100] sm:$0xff]
    %v8786 = vld [vmem:[%s7 + $0x108] sm:$0xff]
    %v8787 = vld [vmem:[%s7 + $0x110] sm:$0xff]
    %v8788 = vld [vmem:[%s7 + $0x118] sm:$0xff]
    %v8789 = vld [vmem:[%s7 + $0x120] sm:$0xff]
    %v8790 = vld [vmem:[%s7 + $0x128] sm:$0xff]
    %v8791 = vld [vmem:[%s7 + $0x130] sm:$0xff]
    %v8792 = vld [vmem:[%s7 + $0x138] sm:$0xff]
    %v8793 = vld [vmem:[%s7 + $0x140] sm:$0xff]
    %v8794 = vld [vmem:[%s7 + $0x148] sm:$0xff]
    %v8795 = vld [vmem:[%s7 + $0x150] sm:$0xff]
    %v8796 = vld [vmem:[%s7 + $0x158] sm:$0xff]
    %v8797 = vld [vmem:[%s7 + $0x160] sm:$0xff]
    %v8798 = vld [vmem:[%s7 + $0x168] sm:$0xff]
    %v8799 = vld [vmem:[%s7 + $0x170] sm:$0xff]
    %v8800 = vld [vmem:[%s7 + $0x178] sm:$0xff]
    %v8817 = vunpack.c.l.b16 %v8785
    %v8818 = vunpack.c.h.b16 %v8785
    %v8819 = vunpack.c.l.b16 %v8786
    %v8820 = vunpack.c.h.b16 %v8786
    %v8821 = vunpack.c.l.b16 %v8787
    %v8822 = vunpack.c.h.b16 %v8787
    %v8823 = vunpack.c.l.b16 %v8788
    %v8824 = vunpack.c.h.b16 %v8788
    %v8825 = vunpack.c.l.b16 %v8789
    %v8826 = vunpack.c.h.b16 %v8789
    %v8827 = vunpack.c.l.b16 %v8790
    %v8828 = vunpack.c.h.b16 %v8790
    %v8829 = vunpack.c.l.b16 %v8791
    %v8830 = vunpack.c.h.b16 %v8791
    %v8831 = vunpack.c.l.b16 %v8792
    %v8832 = vunpack.c.h.b16 %v8792
    %v8833 = vunpack.c.l.b16 %v8793
    %v8834 = vunpack.c.h.b16 %v8793
    %v8835 = vunpack.c.l.b16 %v8794
    %v8836 = vunpack.c.h.b16 %v8794
    %v8837 = vunpack.c.l.b16 %v8795
    %v8838 = vunpack.c.h.b16 %v8795
    %v8839 = vunpack.c.l.b16 %v8796
    %v8840 = vunpack.c.h.b16 %v8796
    %v8841 = vunpack.c.l.b16 %v8797
    %v8842 = vunpack.c.h.b16 %v8797
    %v8843 = vunpack.c.l.b16 %v8798
    %v8844 = vunpack.c.h.b16 %v8798
    %v8845 = vunpack.c.l.b16 %v8799
    %v8846 = vunpack.c.h.b16 %v8799
    %v8847 = vunpack.c.l.b16 %v8800
    %v8848 = vunpack.c.h.b16 %v8800
    %v8849 = vpack.c.b16 %v8819, %v8817
    %v8850 = vpack.c.b16 %v8820, %v8818
    %v8851 = vpack.c.b16 %v8823, %v8821
    %v8852 = vpack.c.b16 %v8824, %v8822
    %v8853 = vpack.c.b16 %v8827, %v8825
    %v8854 = vpack.c.b16 %v8828, %v8826
    %v8855 = vpack.c.b16 %v8831, %v8829
    %v8856 = vpack.c.b16 %v8832, %v8830
    %v8857 = vpack.c.b16 %v8835, %v8833
    %v8858 = vpack.c.b16 %v8836, %v8834
    %v8859 = vpack.c.b16 %v8839, %v8837
    %v8860 = vpack.c.b16 %v8840, %v8838
    %v8861 = vpack.c.b16 %v8843, %v8841
    %v8862 = vpack.c.b16 %v8844, %v8842
    %v8863 = vpack.c.b16 %v8847, %v8845
    %v8864 = vpack.c.b16 %v8848, %v8846
    %8881 = vmatprep.subr.bf16.mxu0 %v8864
    %8882 = vmatpush1.bf16.msra.mxu0 %v8863
    %8883 = vmatprep.subr.bf16.mxu0 %v8862
    %8884 = vmatpush1.bf16.msra.mxu0 %v8861
    %8885 = vmatprep.subr.bf16.mxu0 %v8860
    %8886 = vmatpush1.bf16.msra.mxu0 %v8859
    %8887 = vmatprep.subr.bf16.mxu0 %v8858
    %8888 = vmatpush1.bf16.msra.mxu0 %v8857
    %8889 = vmatprep.subr.bf16.mxu0 %v8856
    %8890 = vmatpush1.bf16.msra.mxu0 %v8855
    %8891 = vmatprep.subr.bf16.mxu0 %v8854
    %8892 = vmatpush1.bf16.msra.mxu0 %v8853
    %8893 = vmatprep.subr.bf16.mxu0 %v8852
    %8894 = vmatpush1.bf16.msra.mxu0 %v8851
    %8895 = vmatprep.subr.bf16.mxu0 %v8850
    %8896 = vmatpush1.bf16.msra.mxu0 %v8849
    %8897 = vmatprep.subr.bf16.mxu0 0
    %8898 = vmatpush2.bf16.msra.mxu0 0
    %8899 = vmatprep.subr.bf16.mxu0 0
    %8900 = vmatpush2.bf16.msra.mxu0 0
    %8901 = vmatprep.subr.bf16.mxu0 0
    %8902 = vmatpush2.bf16.msra.mxu0 0
    %8903 = vmatprep.subr.bf16.mxu0 0
    %8904 = vmatpush2.bf16.msra.mxu0 0
    %8905 = vmatprep.subr.bf16.mxu0 0
    %8906 = vmatpush2.bf16.msra.mxu0 0
    %8907 = vmatprep.subr.bf16.mxu0 0
    %8908 = vmatpush2.bf16.msra.mxu0 0
    %8909 = vmatprep.subr.bf16.mxu0 0
    %8910 = vmatpush2.bf16.msra.mxu0 0
    %8911 = vmatprep.subr.bf16.mxu0 0
    %8912 = vmatpush2.bf16.msra.mxu0 0
    %8913 = vmatprep.mubr.bf16.mxu0 0
    %8914 = vmatmul.mubr.bf16.gmra.mxu0 %v8784
    %v8915 = vpop.f32.mrf.mxu0
    %v8916 = vadd.f32 0.0, %v8915
    %v8917 = vpop.f32.mrf.mxu0
    %v8918 = vadd.f32 0.0, %v8917
    %v8919 = vpop.f32.mrf.mxu0
    %v8920 = vpop.f32.mrf.mxu0
    %8921 = vdwg.mxu0
    %v8922 = vadd.f32 %v8776, %v8916
    %v8923 = vadd.f32 %v8778, %v8918
    %s8924 = scalar_lea.vmem [#allocation5], 3
    %v8925 = vld [vmem:[%s8924] ss:$4 sm:$0x3]
    %v8926 = vpack.c.bf16 %v8925, %v8925
    %v8927 = vld [vmem:[%s7 + $0x180] sm:$0xff]
    %v8928 = vld [vmem:[%s7 + $0x188] sm:$0xff]
    %v8929 = vld [vmem:[%s7 + $0x190] sm:$0xff]
    %v8930 = vld [vmem:[%s7 + $0x198] sm:$0xff]
    %v8931 = vld [vmem:[%s7 + $0x1a0] sm:$0xff]
    %v8932 = vld [vmem:[%s7 + $0x1a8] sm:$0xff]
    %v8933 = vld [vmem:[%s7 + $0x1b0] sm:$0xff]
    %v8934 = vld [vmem:[%s7 + $0x1b8] sm:$0xff]
    %v8935 = vld [vmem:[%s7 + $0x1c0] sm:$0xff]
    %v8936 = vld [vmem:[%s7 + $0x1c8] sm:$0xff]
    %v8937 = vld [vmem:[%s7 + $0x1d0] sm:$0xff]
    %v8938 = vld [vmem:[%s7 + $0x1d8] sm:$0xff]
    %v8939 = vld [vmem:[%s7 + $0x1e0] sm:$0xff]
    %v8940 = vld [vmem:[%s7 + $0x1e8] sm:$0xff]
    %v8941 = vld [vmem:[%s7 + $0x1f0] sm:$0xff]
    %v8942 = vld [vmem:[%s7 + $0x1f8] sm:$0xff]
    %v8959 = vunpack.c.l.b16 %v8927
    %v8960 = vunpack.c.h.b16 %v8927
    %v8961 = vunpack.c.l.b16 %v8928
    %v8962 = vunpack.c.h.b16 %v8928
    %v8963 = vunpack.c.l.b16 %v8929
    %v8964 = vunpack.c.h.b16 %v8929
    %v8965 = vunpack.c.l.b16 %v8930
    %v8966 = vunpack.c.h.b16 %v8930
    %v8967 = vunpack.c.l.b16 %v8931
    %v8968 = vunpack.c.h.b16 %v8931
    %v8969 = vunpack.c.l.b16 %v8932
    %v8970 = vunpack.c.h.b16 %v8932
    %v8971 = vunpack.c.l.b16 %v8933
    %v8972 = vunpack.c.h.b16 %v8933
    %v8973 = vunpack.c.l.b16 %v8934
    %v8974 = vunpack.c.h.b16 %v8934
    %v8975 = vunpack.c.l.b16 %v8935
    %v8976 = vunpack.c.h.b16 %v8935
    %v8977 = vunpack.c.l.b16 %v8936
    %v8978 = vunpack.c.h.b16 %v8936
    %v8979 = vunpack.c.l.b16 %v8937
    %v8980 = vunpack.c.h.b16 %v8937
    %v8981 = vunpack.c.l.b16 %v8938
    %v8982 = vunpack.c.h.b16 %v8938
    %v8983 = vunpack.c.l.b16 %v8939
    %v8984 = vunpack.c.h.b16 %v8939
    %v8985 = vunpack.c.l.b16 %v8940
    %v8986 = vunpack.c.h.b16 %v8940
    %v8987 = vunpack.c.l.b16 %v8941
    %v8988 = vunpack.c.h.b16 %v8941
    %v8989 = vunpack.c.l.b16 %v8942
    %v8990 = vunpack.c.h.b16 %v8942
    %v8991 = vpack.c.b16 %v8961, %v8959
    %v8992 = vpack.c.b16 %v8962, %v8960
    %v8993 = vpack.c.b16 %v8965, %v8963
    %v8994 = vpack.c.b16 %v8966, %v8964
    %v8995 = vpack.c.b16 %v8969, %v8967
    %v8996 = vpack.c.b16 %v8970, %v8968
    %v8997 = vpack.c.b16 %v8973, %v8971
    %v8998 = vpack.c.b16 %v8974, %v8972
    %v8999 = vpack.c.b16 %v8977, %v8975
    %v9000 = vpack.c.b16 %v8978, %v8976
    %v9001 = vpack.c.b16 %v8981, %v8979
    %v9002 = vpack.c.b16 %v8982, %v8980
    %v9003 = vpack.c.b16 %v8985, %v8983
    %v9004 = vpack.c.b16 %v8986, %v8984
    %v9005 = vpack.c.b16 %v8989, %v8987
    %v9006 = vpack.c.b16 %v8990, %v8988
    %9023 = vmatprep.subr.bf16.mxu0 %v9006
    %9024 = vmatpush1.bf16.msra.mxu0 %v9005
    %9025 = vmatprep.subr.bf16.mxu0 %v9004
    %9026 = vmatpush1.bf16.msra.mxu0 %v9003
    %9027 = vmatprep.subr.bf16.mxu0 %v9002
    %9028 = vmatpush1.bf16.msra.mxu0 %v9001
    %9029 = vmatprep.subr.bf16.mxu0 %v9000
    %9030 = vmatpush1.bf16.msra.mxu0 %v8999
    %9031 = vmatprep.subr.bf16.mxu0 %v8998
    %9032 = vmatpush1.bf16.msra.mxu0 %v8997
    %9033 = vmatprep.subr.bf16.mxu0 %v8996
    %9034 = vmatpush1.bf16.msra.mxu0 %v8995
    %9035 = vmatprep.subr.bf16.mxu0 %v8994
    %9036 = vmatpush1.bf16.msra.mxu0 %v8993
    %9037 = vmatprep.subr.bf16.mxu0 %v8992
    %9038 = vmatpush1.bf16.msra.mxu0 %v8991
    %9039 = vmatprep.subr.bf16.mxu0 0
    %9040 = vmatpush2.bf16.msra.mxu0 0
    %9041 = vmatprep.subr.bf16.mxu0 0
    %9042 = vmatpush2.bf16.msra.mxu0 0
    %9043 = vmatprep.subr.bf16.mxu0 0
    %9044 = vmatpush2.bf16.msra.mxu0 0
    %9045 = vmatprep.subr.bf16.mxu0 0
    %9046 = vmatpush2.bf16.msra.mxu0 0
    %9047 = vmatprep.subr.bf16.mxu0 0
    %9048 = vmatpush2.bf16.msra.mxu0 0
    %9049 = vmatprep.subr.bf16.mxu0 0
    %9050 = vmatpush2.bf16.msra.mxu0 0
    %9051 = vmatprep.subr.bf16.mxu0 0
    %9052 = vmatpush2.bf16.msra.mxu0 0
    %9053 = vmatprep.subr.bf16.mxu0 0
    %9054 = vmatpush2.bf16.msra.mxu0 0
    %9055 = vmatprep.mubr.bf16.mxu0 0
    %9056 = vmatmul.mubr.bf16.gmra.mxu0 %v8926
    %v9057 = vpop.f32.mrf.mxu0
    %v9058 = vadd.f32 0.0, %v9057
    %v9059 = vpop.f32.mrf.mxu0
    %v9060 = vadd.f32 0.0, %v9059
    %v9061 = vpop.f32.mrf.mxu0
    %v9062 = vpop.f32.mrf.mxu0
    %9063 = vdwg.mxu0
    %v9064 = vadd.f32 %v8922, %v9058
    %v9065 = vadd.f32 %v8923, %v9060
    %v9066 = vld [vmem:[%s8] sm:$0x3]
    %v9068 = vlaneseq
    %v9069 = vshrl.u32 %v9068, 7
    %v9070 = vsub.s32 0, %v9069
    %v9071 = vrot.slane %v9066, %v9070
    %v9072 = vlaneseq
    %v9073 = vshrl.u32 %v9072, 7
    %v9074 = vsub.s32 1, %v9073
    %v9075 = vrot.slane %v9066, %v9074
    %v9078 = vadd.f32 %v9064, %v9071
    %v9079 = vadd.f32 %v9065, %v9075
    %v9080 = vmax.f32 %v9078, 0.0
    %v9081 = vmax.f32 %v9079, 0.0
    %v9082 = vpack.c.bf16 %v9080, %v9080
    %v9083 = vpack.c.bf16 %v9081, %v9081
    %v9084 = vld [vmem:[%s9] sm:$0xf]
    %v9085 = vld [vmem:[%s9 + $0x4] sm:$0xf]
    %v9086 = vld [vmem:[%s9 + $0x8] sm:$0xf]
    %v9087 = vld [vmem:[%s9 + $0xc] sm:$0xf]
    %v9088 = vld [vmem:[%s9 + $0x10] sm:$0xf]
    %v9089 = vld [vmem:[%s9 + $0x14] sm:$0xf]
    %v9090 = vld [vmem:[%s9 + $0x18] sm:$0xf]
    %v9091 = vld [vmem:[%s9 + $0x1c] sm:$0xf]
    %v9092 = vld [vmem:[%s9 + $0x20] sm:$0xf]
    %v9093 = vld [vmem:[%s9 + $0x24] sm:$0xf]
    %v9094 = vld [vmem:[%s9 + $0x28] sm:$0xf]
    %v9095 = vld [vmem:[%s9 + $0x2c] sm:$0xf]
    %v9096 = vld [vmem:[%s9 + $0x30] sm:$0xf]
    %v9097 = vld [vmem:[%s9 + $0x34] sm:$0xf]
    %v9098 = vld [vmem:[%s9 + $0x38] sm:$0xf]
    %v9099 = vld [vmem:[%s9 + $0x3c] sm:$0xf]
    %v9100 = vld [vmem:[%s9 + $0x40] sm:$0xf]
    %v9101 = vld [vmem:[%s9 + $0x44] sm:$0xf]
    %v9102 = vld [vmem:[%s9 + $0x48] sm:$0xf]
    %v9103 = vld [vmem:[%s9 + $0x4c] sm:$0xf]
    %v9104 = vld [vmem:[%s9 + $0x50] sm:$0xf]
    %v9105 = vld [vmem:[%s9 + $0x54] sm:$0xf]
    %v9106 = vld [vmem:[%s9 + $0x58] sm:$0xf]
    %v9107 = vld [vmem:[%s9 + $0x5c] sm:$0xf]
    %v9108 = vld [vmem:[%s9 + $0x60] sm:$0xf]
    %v9109 = vld [vmem:[%s9 + $0x64] sm:$0xf]
    %v9110 = vld [vmem:[%s9 + $0x68] sm:$0xf]
    %v9111 = vld [vmem:[%s9 + $0x6c] sm:$0xf]
    %v9112 = vld [vmem:[%s9 + $0x70] sm:$0xf]
    %v9113 = vld [vmem:[%s9 + $0x74] sm:$0xf]
    %v9114 = vld [vmem:[%s9 + $0x78] sm:$0xf]
    %v9115 = vld [vmem:[%s9 + $0x7c] sm:$0xf]
    %v9116 = vld [vmem:[%s10] sm:$0x1]
    %v9118 = vlaneseq
    %v9119 = vshrl.u32 %v9118, 7
    %v9120 = vsub.s32 0, %v9119
    %v9121 = vrot.slane %v9116, %v9120
    %v9155 = vunpack.c.l.b16 %v9084
    %v9156 = vunpack.c.l.b16 %v9085
    %v9157 = vunpack.c.l.b16 %v9086
    %v9158 = vunpack.c.l.b16 %v9087
    %v9159 = vunpack.c.l.b16 %v9088
    %v9160 = vunpack.c.l.b16 %v9089
    %v9161 = vunpack.c.l.b16 %v9090
    %v9162 = vunpack.c.l.b16 %v9091
    %v9163 = vunpack.c.l.b16 %v9092
    %v9164 = vunpack.c.l.b16 %v9093
    %v9165 = vunpack.c.l.b16 %v9094
    %v9166 = vunpack.c.l.b16 %v9095
    %v9167 = vunpack.c.l.b16 %v9096
    %v9168 = vunpack.c.l.b16 %v9097
    %v9169 = vunpack.c.l.b16 %v9098
    %v9170 = vunpack.c.l.b16 %v9099
    %v9171 = vunpack.c.l.b16 %v9100
    %v9172 = vunpack.c.l.b16 %v9101
    %v9173 = vunpack.c.l.b16 %v9102
    %v9174 = vunpack.c.l.b16 %v9103
    %v9175 = vunpack.c.l.b16 %v9104
    %v9176 = vunpack.c.l.b16 %v9105
    %v9177 = vunpack.c.l.b16 %v9106
    %v9178 = vunpack.c.l.b16 %v9107
    %v9179 = vunpack.c.l.b16 %v9108
    %v9180 = vunpack.c.l.b16 %v9109
    %v9181 = vunpack.c.l.b16 %v9110
    %v9182 = vunpack.c.l.b16 %v9111
    %v9183 = vunpack.c.l.b16 %v9112
    %v9184 = vunpack.c.l.b16 %v9113
    %v9185 = vunpack.c.l.b16 %v9114
    %v9186 = vunpack.c.l.b16 %v9115
    %v9187 = vpack.c.b16 %v9156, %v9155
    %v9188 = vpack.c.b16 %v9158, %v9157
    %v9189 = vpack.c.b16 %v9160, %v9159
    %v9190 = vpack.c.b16 %v9162, %v9161
    %v9191 = vpack.c.b16 %v9164, %v9163
    %v9192 = vpack.c.b16 %v9166, %v9165
    %v9193 = vpack.c.b16 %v9168, %v9167
    %v9194 = vpack.c.b16 %v9170, %v9169
    %v9195 = vpack.c.b16 %v9172, %v9171
    %v9196 = vpack.c.b16 %v9174, %v9173
    %v9197 = vpack.c.b16 %v9176, %v9175
    %v9198 = vpack.c.b16 %v9178, %v9177
    %v9199 = vpack.c.b16 %v9180, %v9179
    %v9200 = vpack.c.b16 %v9182, %v9181
    %v9201 = vpack.c.b16 %v9184, %v9183
    %v9202 = vpack.c.b16 %v9186, %v9185
    %9219 = vmatprep.subr.bf16.mxu0 0
    %9220 = vmatpush1.bf16.msra.mxu0 %v9194
    %9221 = vmatprep.subr.bf16.mxu0 0
    %9222 = vmatpush1.bf16.msra.mxu0 %v9193
    %9223 = vmatprep.subr.bf16.mxu0 0
    %9224 = vmatpush1.bf16.msra.mxu0 %v9192
    %9225 = vmatprep.subr.bf16.mxu0 0
    %9226 = vmatpush1.bf16.msra.mxu0 %v9191
    %9227 = vmatprep.subr.bf16.mxu0 0
    %9228 = vmatpush1.bf16.msra.mxu0 %v9190
    %9229 = vmatprep.subr.bf16.mxu0 0
    %9230 = vmatpush1.bf16.msra.mxu0 %v9189
    %9231 = vmatprep.subr.bf16.mxu0 0
    %9232 = vmatpush1.bf16.msra.mxu0 %v9188
    %9233 = vmatprep.subr.bf16.mxu0 0
    %9234 = vmatpush1.bf16.msra.mxu0 %v9187
    %9235 = vmatprep.subr.bf16.mxu0 0
    %9236 = vmatpush2.bf16.msra.mxu0 %v9202
    %9237 = vmatprep.subr.bf16.mxu0 0
    %9238 = vmatpush2.bf16.msra.mxu0 %v9201
    %9239 = vmatprep.subr.bf16.mxu0 0
    %9240 = vmatpush2.bf16.msra.mxu0 %v9200
    %9241 = vmatprep.subr.bf16.mxu0 0
    %9242 = vmatpush2.bf16.msra.mxu0 %v9199
    %9243 = vmatprep.subr.bf16.mxu0 0
    %9244 = vmatpush2.bf16.msra.mxu0 %v9198
    %9245 = vmatprep.subr.bf16.mxu0 0
    %9246 = vmatpush2.bf16.msra.mxu0 %v9197
    %9247 = vmatprep.subr.bf16.mxu0 0
    %9248 = vmatpush2.bf16.msra.mxu0 %v9196
    %9249 = vmatprep.subr.bf16.mxu0 0
    %9250 = vmatpush2.bf16.msra.mxu0 %v9195
    %9251 = vmatprep.mubr.bf16.mxu0 %v9083
    %9252 = vmatmul.mubr.bf16.gmra.mxu0 %v9082
    %v9253 = vpop.f32.mrf.mxu0
    %v9254 = vadd.f32 %v9121, %v9253
    %v9255 = vpop.f32.mrf.mxu0
    %v9256 = vpop.f32.mrf.mxu0
    %v9257 = vpop.f32.mrf.mxu0
    %9258 = vdwg.mxu0
    %9259 = vst [vmem:[#allocation6] sm:$0x3] %v9254
    // Predicated region
    $region46: #{_lambda_.1} parent=1 // pred_check
      _
    $region47: #{_lambda_.1} parent=1 // pred_check_branch
      %9261 = sbr.rel (0) target = $region49
    $region48: #{_lambda_.1} parent=1 // pred_region
      %s9263 = ssub.s32 32, 32
      %9264 = vsyncadd [#allocation7], %s9263
      %s9266 = sshll.u32 [#allocation6], 4
      %s9267 = int_to_ptr.vmem [resolvable:$true] %s9266
      %9269 = dma.vmem_to_hbm [thread:$0]  %s9267, 32, %s11, [#allocation7]
    $region49: #{_lambda_.1} parent=1 // pred_fallthru
      _
    // Predicated region
    $region50: #{_lambda_.1} parent=1 // pred_check
      _
    $region51: #{_lambda_.1} parent=1 // pred_check_branch
      %9271 = sbr.rel (0) target = $region53
    $region52: #{_lambda_.1} parent=1 // pred_region
      %9272 = dma.done [#allocation7], 32
    $region53: #{_lambda_.1} parent=1 // pred_fallthru
      _
    %9273 = vsyncpa [#allocation7], 1

</llo_original>
